<compile_context>
chip_gen: v5e
topology: v5e:2x2
jax: 0.10.0
libtpu: 0.0.40
codegen_flags: <defaults>
</compile_context>

<pallas_src>
import jax
import jax.numpy as jnp
from jax.experimental import pallas as pl
from jax.experimental.pallas import tpu as pltpu

D_IN = 64 * 64 * 2   # 8192
H1 = 128
H2 = 256

_INV_SQRT2 = 0.7071067811865476


def _gelu_exact(x):
    # PyTorch nn.GELU() default is the exact erf-based formulation.
    return 0.5 * x * (1.0 + jax.lax.erf(x * _INV_SQRT2))


def mlp_kernel(x_ref, w1_ref, b1_ref, w2_ref, b2_ref, w3_ref, b3_ref,
               w4_ref, b4_ref, o_ref):
    # fc1 (8192 -> 128): bf16 weights, bf16 LHS, f32 accumulate on the MXU.
    x_bf16 = x_ref[...].astype(jnp.bfloat16)
    h = jnp.dot(x_bf16, w1_ref[...], preferred_element_type=jnp.float32)
    h = _gelu_exact(h + b1_ref[...])

    # fc2 / fc3: tiny matmuls, keep f32 end-to-end (v5e has no bf16 VPU/EUP).
    h = jnp.dot(h, w2_ref[...], preferred_element_type=jnp.float32) + b2_ref[...]
    h = _gelu_exact(h)
    h = jnp.dot(h, w3_ref[...], preferred_element_type=jnp.float32) + b3_ref[...]
    h = _gelu_exact(h)

    # fc4 (128 -> 8192): bf16 weights, bf16 LHS, f32 accumulate, no activation.
    o_ref[...] = jnp.dot(h.astype(jnp.bfloat16), w4_ref[...],
                         preferred_element_type=jnp.float32) + b4_ref[...]


def init_params(key):
    """PyTorch-Linear-style deterministic init: U(-1/sqrt(fan_in), 1/sqrt(fan_in)).
    Weights are stored transposed as (fan_in, fan_out) for the kernel matmuls.
    The two large weights (fc1, fc4) are stored in bfloat16 to halve HBM bytes;
    the small ones and all biases stay float32. Biases are (1, fan_out)."""
    dims = [(D_IN, H1), (H1, H2), (H2, H1), (H1, D_IN)]
    w_dtypes = [jnp.bfloat16, jnp.float32, jnp.float32, jnp.bfloat16]
    params = []
    for (fan_in, fan_out), w_dtype in zip(dims, w_dtypes):
        key, kw, kb = jax.random.split(key, 3)
        bound = 1.0 / jnp.sqrt(float(fan_in))
        w = jax.random.uniform(kw, (fan_in, fan_out), jnp.float32, -bound, bound)
        b = jax.random.uniform(kb, (1, fan_out), jnp.float32, -bound, bound)
        params.extend([w.astype(w_dtype), b])
    return tuple(params)


def _round_up(x, m):
    return ((x + m - 1) // m) * m


def _vmem_limit_bytes(tile_b):
    # Weights + biases (double-buffered input windows), double-buffered
    # activation tiles, plus headroom for in-kernel temporaries. Capped at
    # 48 MiB so it is always satisfiable on v7x's 64 MiB VMEM.
    wgt = 2 * ((D_IN * H1 + H1 * D_IN) * 2          # bf16 w1 / w4
               + (H1 * H2 + H2 * H1) * 4            # f32 w2 / w3
               + (H1 + H2 + H1 + D_IN) * 4)         # f32 biases
    act = 2 * 2 * tile_b * D_IN * 4                 # x + out tiles, 2 buffers each
    scratch = 4 * tile_b * D_IN * 4                 # bf16 casts / dot outputs
    return min(max(wgt + act + scratch, 16 * 1024 * 1024), 48 * 1024 * 1024)


def neural_operator(x_complex, params, *, tile_b=128):
    """Equivalent of NeuralOperator.forward for x_complex of shape (B, 64, 64)."""
    B = x_complex.shape[0]
    # view_as_real + flatten(start_dim=1)  (stays in XLA outside the kernel).
    x_real = jnp.stack([jnp.real(x_complex), jnp.imag(x_complex)], axis=-1)
    x_flat = x_real.reshape(B, D_IN).astype(jnp.float32)

    # Batch tiling: bound VMEM independent of B and enable pipelining.
    tile_b = min(tile_b, _round_up(B, 8))
    padded_b = _round_up(B, tile_b)
    if padded_b != B:
        x_flat = jnp.pad(x_flat, ((0, padded_b - B), (0, 0)))
    n_tiles = padded_b // tile_b

    w1, b1, w2, b2, w3, b3, w4, b4 = params

    flops = 2 * padded_b * (D_IN * H1 + H1 * H2 + H2 * H1 + H1 * D_IN)
    transcendentals = padded_b * (H1 + H2 + H1)
    bytes_accessed = ((D_IN * H1 + H1 * D_IN) * 2      # bf16 weights
                      + (H1 * H2 + H2 * H1) * 4        # f32 weights
                      + (H1 + H2 + H1 + D_IN) * 4      # biases
                      + 2 * padded_b * D_IN * 4)       # x in + out
    cost = pl.CostEstimate(flops=flops,
                           transcendentals=transcendentals,
                           bytes_accessed=bytes_accessed)

    out_flat = pl.pallas_call(
        mlp_kernel,
        out_shape=jax.ShapeDtypeStruct((padded_b, D_IN), jnp.float32),
        grid_spec=pltpu.PrefetchScalarGridSpec(
            num_scalar_prefetch=0,
            grid=(n_tiles,),
            in_specs=[
                pl.BlockSpec((tile_b, D_IN), lambda i: (i, 0)),   # x tile
                pl.BlockSpec((D_IN, H1), lambda i: (0, 0)),       # w1 (resident)
                pl.BlockSpec((1, H1), lambda i: (0, 0)),          # b1
                pl.BlockSpec((H1, H2), lambda i: (0, 0)),         # w2
                pl.BlockSpec((1, H2), lambda i: (0, 0)),          # b2
                pl.BlockSpec((H2, H1), lambda i: (0, 0)),         # w3
                pl.BlockSpec((1, H1), lambda i: (0, 0)),          # b3
                pl.BlockSpec((H1, D_IN), lambda i: (0, 0)),       # w4
                pl.BlockSpec((1, D_IN), lambda i: (0, 0)),        # b4
            ],
            out_specs=pl.BlockSpec((tile_b, D_IN), lambda i: (i, 0)),
        ),
        compiler_params=pltpu.CompilerParams(
            dimension_semantics=("parallel",),
            vmem_limit_bytes=_vmem_limit_bytes(tile_b),
        ),
        cost_estimate=cost,
    )(x_flat, w1, b1, w2, b2, w3, b3, w4, b4)

    # view(-1, 64, 64, 2) + view_as_complex
    out = out_flat[:B].reshape(B, 64, 64, 2)
    return jax.lax.complex(out[..., 0], out[..., 1])


def reference(x_complex, params):
    """Pure-JAX reference using the exact same dtypes as the kernel."""
    B = x_complex.shape[0]
    x = jnp.stack([jnp.real(x_complex), jnp.imag(x_complex)], axis=-1)
    x = x.reshape(B, D_IN).astype(jnp.float32)
    w1, b1, w2, b2, w3, b3, w4, b4 = params
    h = jnp.dot(x.astype(jnp.bfloat16), w1,
                preferred_element_type=jnp.float32) + b1
    h = _gelu_exact(h)
    h = _gelu_exact(jnp.dot(h, w2, preferred_element_type=jnp.float32) + b2)
    h = _gelu_exact(jnp.dot(h, w3, preferred_element_type=jnp.float32) + b3)
    y = jnp.dot(h.astype(jnp.bfloat16), w4,
                preferred_element_type=jnp.float32) + b4
    y = y.reshape(B, 64, 64, 2)
    return jax.lax.complex(y[..., 0], y[..., 1])


if __name__ == "__main__":
    key = jax.random.PRNGKey(0)
    kparam, kre, kim = jax.random.split(key, 3)

    params = init_params(kparam)

    B = 2
    x_re = jax.random.normal(kre, (B, 64, 64), jnp.float32)
    x_im = jax.random.normal(kim, (B, 64, 64), jnp.float32)
    x = jax.lax.complex(x_re, x_im)  # (2, 64, 64) complex64

    out = jax.block_until_ready(neural_operator(x, params))
    ref = jax.block_until_ready(reference(x, params))

    assert out.shape == (B, 64, 64) and out.dtype == jnp.complex64
    assert jnp.allclose(out, ref, atol=2e-3, rtol=2e-3), float(
        jnp.max(jnp.abs(out - ref)))

    print("KERNEL_OK")
</pallas_src>

<mosaic_0001>
module attributes {stable_mosaic.version = 11 : i64} {
  func.func @mlp_kernel(%arg0: i32, %arg1: memref<8x8192xf32, #tpu.memory_space<vmem>>, %arg2: memref<8192x128xbf16, #tpu.memory_space<vmem>>, %arg3: memref<1x128xf32, #tpu.memory_space<vmem>>, %arg4: memref<128x256xf32, #tpu.memory_space<vmem>>, %arg5: memref<1x256xf32, #tpu.memory_space<vmem>>, %arg6: memref<256x128xf32, #tpu.memory_space<vmem>>, %arg7: memref<1x128xf32, #tpu.memory_space<vmem>>, %arg8: memref<128x8192xbf16, #tpu.memory_space<vmem>>, %arg9: memref<1x8192xf32, #tpu.memory_space<vmem>>, %arg10: memref<8x8192xf32, #tpu.memory_space<vmem>>) attributes {dimension_semantics = [#tpu.dimension_semantics<parallel>], iteration_bounds = array<i64: 1>, scalar_prefetch = 0 : i64, scratch_operands = 0 : i64, tpu.core_type = #tpu.core_type<tc>, window_params = [{transform_indices = @transform_0, window_bounds = array<i64: 8, 8192>}, {pipeline_mode = #tpu.pipeline_mode<synchronous>, transform_indices = @transform_1, window_bounds = array<i64: 8192, 128>}, {pipeline_mode = #tpu.pipeline_mode<synchronous>, transform_indices = @transform_2, window_bounds = array<i64: 1, 128>}, {pipeline_mode = #tpu.pipeline_mode<synchronous>, transform_indices = @transform_3, window_bounds = array<i64: 128, 256>}, {pipeline_mode = #tpu.pipeline_mode<synchronous>, transform_indices = @transform_4, window_bounds = array<i64: 1, 256>}, {pipeline_mode = #tpu.pipeline_mode<synchronous>, transform_indices = @transform_5, window_bounds = array<i64: 256, 128>}, {pipeline_mode = #tpu.pipeline_mode<synchronous>, transform_indices = @transform_6, window_bounds = array<i64: 1, 128>}, {pipeline_mode = #tpu.pipeline_mode<synchronous>, transform_indices = @transform_7, window_bounds = array<i64: 128, 8192>}, {pipeline_mode = #tpu.pipeline_mode<synchronous>, transform_indices = @transform_8, window_bounds = array<i64: 1, 8192>}, {transform_indices = @transform_9, window_bounds = array<i64: 8, 8192>}]} {
    %c0 = arith.constant 0 : index
    %c0_0 = arith.constant 0 : index
    %0 = vector.load %arg1[%c0, %c0_0] : memref<8x8192xf32, #tpu.memory_space<vmem>>, vector<8x8192xf32>
    %1 = arith.truncf %0 : vector<8x8192xf32> to vector<8x8192xbf16>
    %c0_1 = arith.constant 0 : index
    %c0_2 = arith.constant 0 : index
    %2 = vector.load %arg2[%c0_1, %c0_2] : memref<8192x128xbf16, #tpu.memory_space<vmem>>, vector<8192x128xbf16>
    %cst = arith.constant dense<0.000000e+00> : vector<8x128xf32>
    %3 = tpu.matmul %1, %2, %cst {dimension_numbers = #tpu.dot_dimension_numbers<[1], [0], [0], [1], [0, 0, 1, 1], [], []>} : vector<8x8192xbf16>, vector<8192x128xbf16>, vector<8x128xf32> -> vector<8x128xf32>
    %c0_3 = arith.constant 0 : index
    %c0_4 = arith.constant 0 : index
    %4 = vector.load %arg3[%c0_3, %c0_4] : memref<1x128xf32, #tpu.memory_space<vmem>>, vector<1x128xf32>
    %5 = vector.broadcast %4 : vector<1x128xf32> to vector<8x128xf32>
    %6 = arith.addf %3, %5 : vector<8x128xf32>
    %cst_5 = arith.constant 5.000000e-01 : f32
    %7 = vector.broadcast %cst_5 : f32 to vector<8x128xf32>
    %8 = arith.mulf %7, %6 : vector<8x128xf32>
    %cst_6 = arith.constant 0.707106769 : f32
    %9 = vector.broadcast %cst_6 : f32 to vector<8x128xf32>
    %10 = arith.mulf %6, %9 : vector<8x128xf32>
    %11 = math.erf %10 : vector<8x128xf32>
    %cst_7 = arith.constant 1.000000e+00 : f32
    %12 = vector.broadcast %cst_7 : f32 to vector<8x128xf32>
    %13 = arith.addf %12, %11 : vector<8x128xf32>
    %14 = arith.mulf %8, %13 : vector<8x128xf32>
    %c0_8 = arith.constant 0 : index
    %c0_9 = arith.constant 0 : index
    %15 = vector.load %arg4[%c0_8, %c0_9] : memref<128x256xf32, #tpu.memory_space<vmem>>, vector<128x256xf32>
    %cst_10 = arith.constant dense<0.000000e+00> : vector<8x256xf32>
    %16 = tpu.matmul %14, %15, %cst_10 {dimension_numbers = #tpu.dot_dimension_numbers<[1], [0], [0], [1], [0, 0, 1, 1], [], []>} : vector<8x128xf32>, vector<128x256xf32>, vector<8x256xf32> -> vector<8x256xf32>
    %c0_11 = arith.constant 0 : index
    %c0_12 = arith.constant 0 : index
    %17 = vector.load %arg5[%c0_11, %c0_12] : memref<1x256xf32, #tpu.memory_space<vmem>>, vector<1x256xf32>
    %18 = vector.broadcast %17 : vector<1x256xf32> to vector<8x256xf32>
    %19 = arith.addf %16, %18 : vector<8x256xf32>
    %cst_13 = arith.constant 5.000000e-01 : f32
    %20 = vector.broadcast %cst_13 : f32 to vector<8x256xf32>
    %21 = arith.mulf %20, %19 : vector<8x256xf32>
    %cst_14 = arith.constant 0.707106769 : f32
    %22 = vector.broadcast %cst_14 : f32 to vector<8x256xf32>
    %23 = arith.mulf %19, %22 : vector<8x256xf32>
    %24 = math.erf %23 : vector<8x256xf32>
    %cst_15 = arith.constant 1.000000e+00 : f32
    %25 = vector.broadcast %cst_15 : f32 to vector<8x256xf32>
    %26 = arith.addf %25, %24 : vector<8x256xf32>
    %27 = arith.mulf %21, %26 : vector<8x256xf32>
    %c0_16 = arith.constant 0 : index
    %c0_17 = arith.constant 0 : index
    %28 = vector.load %arg6[%c0_16, %c0_17] : memref<256x128xf32, #tpu.memory_space<vmem>>, vector<256x128xf32>
    %cst_18 = arith.constant dense<0.000000e+00> : vector<8x128xf32>
    %29 = tpu.matmul %27, %28, %cst_18 {dimension_numbers = #tpu.dot_dimension_numbers<[1], [0], [0], [1], [0, 0, 1, 1], [], []>} : vector<8x256xf32>, vector<256x128xf32>, vector<8x128xf32> -> vector<8x128xf32>
    %c0_19 = arith.constant 0 : index
    %c0_20 = arith.constant 0 : index
    %30 = vector.load %arg7[%c0_19, %c0_20] : memref<1x128xf32, #tpu.memory_space<vmem>>, vector<1x128xf32>
    %31 = vector.broadcast %30 : vector<1x128xf32> to vector<8x128xf32>
    %32 = arith.addf %29, %31 : vector<8x128xf32>
    %cst_21 = arith.constant 5.000000e-01 : f32
    %33 = vector.broadcast %cst_21 : f32 to vector<8x128xf32>
    %34 = arith.mulf %33, %32 : vector<8x128xf32>
    %cst_22 = arith.constant 0.707106769 : f32
    %35 = vector.broadcast %cst_22 : f32 to vector<8x128xf32>
    %36 = arith.mulf %32, %35 : vector<8x128xf32>
    %37 = math.erf %36 : vector<8x128xf32>
    %cst_23 = arith.constant 1.000000e+00 : f32
    %38 = vector.broadcast %cst_23 : f32 to vector<8x128xf32>
    %39 = arith.addf %38, %37 : vector<8x128xf32>
    %40 = arith.mulf %34, %39 : vector<8x128xf32>
    %41 = arith.truncf %40 : vector<8x128xf32> to vector<8x128xbf16>
    %c0_24 = arith.constant 0 : index
    %c0_25 = arith.constant 0 : index
    %42 = vector.load %arg8[%c0_24, %c0_25] : memref<128x8192xbf16, #tpu.memory_space<vmem>>, vector<128x8192xbf16>
    %cst_26 = arith.constant dense<0.000000e+00> : vector<8x8192xf32>
    %43 = tpu.matmul %41, %42, %cst_26 {dimension_numbers = #tpu.dot_dimension_numbers<[1], [0], [0], [1], [0, 0, 1, 1], [], []>} : vector<8x128xbf16>, vector<128x8192xbf16>, vector<8x8192xf32> -> vector<8x8192xf32>
    %c0_27 = arith.constant 0 : index
    %c0_28 = arith.constant 0 : index
    %44 = vector.load %arg9[%c0_27, %c0_28] : memref<1x8192xf32, #tpu.memory_space<vmem>>, vector<1x8192xf32>
    %45 = vector.broadcast %44 : vector<1x8192xf32> to vector<8x8192xf32>
    %46 = arith.addf %43, %45 : vector<8x8192xf32>
    %c0_29 = arith.constant 0 : index
    %c0_30 = arith.constant 0 : index
    %47 = vector.load %arg10[%c0_29, %c0_30] : memref<8x8192xf32, #tpu.memory_space<vmem>>, vector<8x8192xf32>
    tpu.vector_store %arg10[%c0_29, %c0_30], %46 {strides = array<i32>} : memref<8x8192xf32, #tpu.memory_space<vmem>>, vector<8x8192xf32>,
    return
  }
  func.func @transform_0(%arg0: i32) -> (i32, i32) {
    %c0_i32 = arith.constant 0 : i32
    %c0_i32_0 = arith.constant 0 : i32
    return %arg0, %c0_i32 : i32, i32
  }
  func.func @transform_1(%arg0: i32) -> (i32, i32) {
    %c0_i32 = arith.constant 0 : i32
    %c0_i32_0 = arith.constant 0 : i32
    %c0_i32_1 = arith.constant 0 : i32
    return %c0_i32, %c0_i32_0 : i32, i32
  }
  func.func @transform_2(%arg0: i32) -> (i32, i32) {
    %c0_i32 = arith.constant 0 : i32
    %c0_i32_0 = arith.constant 0 : i32
    %c0_i32_1 = arith.constant 0 : i32
    return %c0_i32, %c0_i32_0 : i32, i32
  }
  func.func @transform_3(%arg0: i32) -> (i32, i32) {
    %c0_i32 = arith.constant 0 : i32
    %c0_i32_0 = arith.constant 0 : i32
    %c0_i32_1 = arith.constant 0 : i32
    return %c0_i32, %c0_i32_0 : i32, i32
  }
  func.func @transform_4(%arg0: i32) -> (i32, i32) {
    %c0_i32 = arith.constant 0 : i32
    %c0_i32_0 = arith.constant 0 : i32
    %c0_i32_1 = arith.constant 0 : i32
    return %c0_i32, %c0_i32_0 : i32, i32
  }
  func.func @transform_5(%arg0: i32) -> (i32, i32) {
    %c0_i32 = arith.constant 0 : i32
    %c0_i32_0 = arith.constant 0 : i32
    %c0_i32_1 = arith.constant 0 : i32
    return %c0_i32, %c0_i32_0 : i32, i32
  }
  func.func @transform_6(%arg0: i32) -> (i32, i32) {
    %c0_i32 = arith.constant 0 : i32
    %c0_i32_0 = arith.constant 0 : i32
    %c0_i32_1 = arith.constant 0 : i32
    return %c0_i32, %c0_i32_0 : i32, i32
  }
  func.func @transform_7(%arg0: i32) -> (i32, i32) {
    %c0_i32 = arith.constant 0 : i32
    %c0_i32_0 = arith.constant 0 : i32
    %c0_i32_1 = arith.constant 0 : i32
    return %c0_i32, %c0_i32_0 : i32, i32
  }
  func.func @transform_8(%arg0: i32) -> (i32, i32) {
    %c0_i32 = arith.constant 0 : i32
    %c0_i32_0 = arith.constant 0 : i32
    %c0_i32_1 = arith.constant 0 : i32
    return %c0_i32, %c0_i32_0 : i32, i32
  }
  func.func @transform_9(%arg0: i32) -> (i32, i32) {
    %c0_i32 = arith.constant 0 : i32
    %c0_i32_0 = arith.constant 0 : i32
    return %arg0, %c0_i32 : i32, i32
  }
}

</mosaic_0001>

<llo_original>
// kernel: tpu_custom_call.1
$region0: #{tpu_custom_call.1}
  #allocation0 [shape = 'u32[]', space=smem, size = 0x4, offset = 0x4, fixed_abs, tag = 'smem constant byte address 0x4 - core index']
  #allocation1 [shape = 'u32[72,128]{1,0:T(1,128)}', space=vmem, size = 0x9000, scoped, tag = 'internal scratch']
  %s0 = inlined_call_operand.hbm [shape: f32[8,8192], index: 0, kind: input, shape index: {}]
  %s1 = inlined_call_operand.hbm [shape: bf16[8192,128], index: 1, kind: input, shape index: {}]
  %s2 = inlined_call_operand.hbm [shape: f32[1,128], index: 2, kind: input, shape index: {}]
  %s3 = inlined_call_operand.hbm [shape: f32[128,256], index: 3, kind: input, shape index: {}]
  %s4 = inlined_call_operand.hbm [shape: f32[1,256], index: 4, kind: input, shape index: {}]
  %s5 = inlined_call_operand.hbm [shape: f32[256,128], index: 5, kind: input, shape index: {}]
  %s6 = inlined_call_operand.hbm [shape: f32[1,128], index: 6, kind: input, shape index: {}]
  %s7 = inlined_call_operand.hbm [shape: bf16[128,8192], index: 7, kind: input, shape index: {}]
  %s8 = inlined_call_operand.hbm [shape: f32[1,8192], index: 8, kind: input, shape index: {}]
  %s9 = inlined_call_operand.hbm [shape: f32[8,8192], index: 9, kind: output, shape index: {}]
  %s10 = sld [smem:[#allocation0]]
  $region82: #{tpu_custom_call.1} parent=0
    _
  %s12 = ssub.s32 1, %s10
  %s13 = scalar_select 0, %s12, %s10
  $region1: #{tpu_custom_call.1} parent=0
    #allocation2 [shape = 'u8[262144]{0}', space=vmem, size = 0x40000, scoped, tag = 'input window, operand 0, single buffered']
    #allocation3 [shape = 's32[1]{0}', space=sflag, size = 0x4, scoped, tag = 'scoped memory for tpu_custom_call.1']
    #allocation4 [shape = 's32[1]{0}', space=sflag, size = 0x4, scoped, tag = 'scoped memory for tpu_custom_call.1']
    #allocation5 [shape = 'u8[2097152]{0}', space=vmem, size = 0x200000, scoped, tag = 'input window, operand 1, single buffered']
    #allocation6 [shape = 's32[1]{0}', space=sflag, size = 0x4, scoped, tag = 'scoped memory for tpu_custom_call.1']
    #allocation7 [shape = 'u8[512]{0}', space=vmem, size = 0x400, scoped, tag = 'input window, operand 2, single buffered']
    #allocation8 [shape = 'u8[131072]{0}', space=vmem, size = 0x20000, scoped, tag = 'input window, operand 3, single buffered']
    #allocation9 [shape = 's32[1]{0}', space=sflag, size = 0x4, scoped, tag = 'scoped memory for tpu_custom_call.1']
    #allocation10 [shape = 'u8[1024]{0}', space=vmem, size = 0x400, scoped, tag = 'input window, operand 4, single buffered']
    #allocation11 [shape = 'u8[131072]{0}', space=vmem, size = 0x20000, scoped, tag = 'input window, operand 5, single buffered']
    #allocation12 [shape = 's32[1]{0}', space=sflag, size = 0x4, scoped, tag = 'scoped memory for tpu_custom_call.1']
    #allocation13 [shape = 'u8[512]{0}', space=vmem, size = 0x400, scoped, tag = 'input window, operand 6, single buffered']
    #allocation14 [shape = 'u8[2097152]{0}', space=vmem, size = 0x200000, scoped, tag = 'input window, operand 7, single buffered']
    #allocation15 [shape = 's32[1]{0}', space=sflag, size = 0x4, scoped, tag = 'scoped memory for tpu_custom_call.1']
    #allocation16 [shape = 'u8[32768]{0}', space=vmem, size = 0x8000, scoped, tag = 'input window, operand 8, single buffered']
    #allocation17 [shape = 'u8[262144]{0}', space=vmem, size = 0x40000, scoped, tag = 'output window, operand 0, single buffered']
    %14 = vsyncpa [#allocation3], 0
    %15 = vsyncpa [#allocation6], 0
    %16 = vsyncpa [#allocation9], 0
    %17 = vsyncpa [#allocation12], 0
    %18 = vsyncpa [#allocation15], 0
    %19 = vsyncpa [#allocation4], 0
    // Predicated region
    $region2: #{tpu_custom_call.1} parent=1 // pred_check
      _
    $region3: #{tpu_custom_call.1} parent=1 // pred_check_branch
      %21 = sbr.rel (0) target = $region5
    $region4: #{tpu_custom_call.1} parent=1 // pred_region
      %23 = vsyncadd [#allocation3], 0
      %s25 = sshll.u32 %s0, 4
      %s26 = int_to_ptr.hbm [resolvable:$true] %s25
      %s27 = sshll.u32 [#allocation2], 4
      %s28 = int_to_ptr.vmem [resolvable:$true] %s27
      %30 = dma.hbm_to_vmem [thread:$0]  %s26, 8192, %s28, [#allocation3]
    $region5: #{tpu_custom_call.1} parent=1 // pred_fallthru
      _
    // Predicated region
    $region6: #{tpu_custom_call.1} parent=1 // pred_check
      _
    $region7: #{tpu_custom_call.1} parent=1 // pred_check_branch
      %32 = sbr.rel (0) target = $region9
    $region8: #{tpu_custom_call.1} parent=1 // pred_region
      %34 = vsyncadd [#allocation6], 0
      %s35 = sshll.u32 %s1, 4
      %s36 = int_to_ptr.hbm [resolvable:$true] %s35
      %s37 = sshll.u32 [#allocation5], 4
      %s38 = int_to_ptr.vmem [resolvable:$true] %s37
      %43 = dma.hbm_to_vmem [thread:$0]  %s36, 65536, %s38, [#allocation6], 64, 64, 4
    $region9: #{tpu_custom_call.1} parent=1 // pred_fallthru
      _
    // Predicated region
    $region10: #{tpu_custom_call.1} parent=1 // pred_check
      _
    $region11: #{tpu_custom_call.1} parent=1 // pred_check_branch
      %45 = sbr.rel (0) target = $region13
    $region12: #{tpu_custom_call.1} parent=1 // pred_region
      %47 = vsyncadd [#allocation6], 0
      %s49 = sshll.u32 %s2, 4
      %s50 = int_to_ptr.hbm [resolvable:$true] %s49
      %s51 = sshll.u32 [#allocation7], 4
      %s52 = int_to_ptr.vmem [resolvable:$true] %s51
      %54 = dma.hbm_to_vmem [thread:$0]  %s50, 16, %s52, [#allocation6]
    $region13: #{tpu_custom_call.1} parent=1 // pred_fallthru
      _
    // Predicated region
    $region14: #{tpu_custom_call.1} parent=1 // pred_check
      _
    $region15: #{tpu_custom_call.1} parent=1 // pred_check_branch
      %56 = sbr.rel (0) target = $region17
    $region16: #{tpu_custom_call.1} parent=1 // pred_region
      %58 = vsyncadd [#allocation9], 0
      %s59 = sshll.u32 %s3, 4
      %s60 = int_to_ptr.hbm [resolvable:$true] %s59
      %s61 = sshll.u32 [#allocation8], 4
      %s62 = int_to_ptr.vmem [resolvable:$true] %s61
      %67 = dma.hbm_to_vmem [thread:$0]  %s60, 4096, %s62, [#allocation9], 256, 256, 16
    $region17: #{tpu_custom_call.1} parent=1 // pred_fallthru
      _
    // Predicated region
    $region18: #{tpu_custom_call.1} parent=1 // pred_check
      _
    $region19: #{tpu_custom_call.1} parent=1 // pred_check_branch
      %69 = sbr.rel (0) target = $region21
    $region20: #{tpu_custom_call.1} parent=1 // pred_region
      %71 = vsyncadd [#allocation9], 0
      %s73 = sshll.u32 %s4, 4
      %s74 = int_to_ptr.hbm [resolvable:$true] %s73
      %s75 = sshll.u32 [#allocation10], 4
      %s76 = int_to_ptr.vmem [resolvable:$true] %s75
      %78 = dma.hbm_to_vmem [thread:$0]  %s74, 32, %s76, [#allocation9]
    $region21: #{tpu_custom_call.1} parent=1 // pred_fallthru
      _
    // Predicated region
    $region22: #{tpu_custom_call.1} parent=1 // pred_check
      _
    $region23: #{tpu_custom_call.1} parent=1 // pred_check_branch
      %80 = sbr.rel (0) target = $region25
    $region24: #{tpu_custom_call.1} parent=1 // pred_region
      %82 = vsyncadd [#allocation12], 0
      %s83 = sshll.u32 %s5, 4
      %s84 = int_to_ptr.hbm [resolvable:$true] %s83
      %s85 = sshll.u32 [#allocation11], 4
      %s86 = int_to_ptr.vmem [resolvable:$true] %s85
      %91 = dma.hbm_to_vmem [thread:$0]  %s84, 4096, %s86, [#allocation12], 128, 128, 8
    $region25: #{tpu_custom_call.1} parent=1 // pred_fallthru
      _
    // Predicated region
    $region26: #{tpu_custom_call.1} parent=1 // pred_check
      _
    $region27: #{tpu_custom_call.1} parent=1 // pred_check_branch
      %93 = sbr.rel (0) target = $region29
    $region28: #{tpu_custom_call.1} parent=1 // pred_region
      %95 = vsyncadd [#allocation12], 0
      %s97 = sshll.u32 %s6, 4
      %s98 = int_to_ptr.hbm [resolvable:$true] %s97
      %s99 = sshll.u32 [#allocation13], 4
      %s100 = int_to_ptr.vmem [resolvable:$true] %s99
      %102 = dma.hbm_to_vmem [thread:$0]  %s98, 16, %s100, [#allocation12]
    $region29: #{tpu_custom_call.1} parent=1 // pred_fallthru
      _
    // Predicated region
    $region30: #{tpu_custom_call.1} parent=1 // pred_check
      _
    $region31: #{tpu_custom_call.1} parent=1 // pred_check_branch
      %104 = sbr.rel (0) target = $region33
    $region32: #{tpu_custom_call.1} parent=1 // pred_region
      %106 = vsyncadd [#allocation15], 0
      %s107 = sshll.u32 %s7, 4
      %s108 = int_to_ptr.hbm [resolvable:$true] %s107
      %s109 = sshll.u32 [#allocation14], 4
      %s110 = int_to_ptr.vmem [resolvable:$true] %s109
      %115 = dma.hbm_to_vmem [thread:$0]  %s108, 65536, %s110, [#allocation15], 4096, 4096, 256
    $region33: #{tpu_custom_call.1} parent=1 // pred_fallthru
      _
    // Predicated region
    $region34: #{tpu_custom_call.1} parent=1 // pred_check
      _
    $region35: #{tpu_custom_call.1} parent=1 // pred_check_branch
      %117 = sbr.rel (0) target = $region37
    $region36: #{tpu_custom_call.1} parent=1 // pred_region
      %119 = vsyncadd [#allocation15], 0
      %s121 = sshll.u32 %s8, 4
      %s122 = int_to_ptr.hbm [resolvable:$true] %s121
      %s123 = sshll.u32 [#allocation16], 4
      %s124 = int_to_ptr.vmem [resolvable:$true] %s123
      %126 = dma.hbm_to_vmem [thread:$0]  %s122, 1024, %s124, [#allocation15]
    $region37: #{tpu_custom_call.1} parent=1 // pred_fallthru
      _
    // Predicated region
    $region38: #{tpu_custom_call.1} parent=1 // pred_check
      _
    $region39: #{tpu_custom_call.1} parent=1 // pred_check_branch
      %128 = sbr.rel (0) target = $region41
    $region40: #{tpu_custom_call.1} parent=1 // pred_region
      %130 = dma.done [#allocation3], 8192
    $region41: #{tpu_custom_call.1} parent=1 // pred_fallthru
      _
    // Predicated region
    $region42: #{tpu_custom_call.1} parent=1 // pred_check
      _
    $region43: #{tpu_custom_call.1} parent=1 // pred_check_branch
      %132 = sbr.rel (0) target = $region45
    $region44: #{tpu_custom_call.1} parent=1 // pred_region
      %134 = dma.done [#allocation6], 65536
    $region45: #{tpu_custom_call.1} parent=1 // pred_fallthru
      _
    // Predicated region
    $region46: #{tpu_custom_call.1} parent=1 // pred_check
      _
    $region47: #{tpu_custom_call.1} parent=1 // pred_check_branch
      %136 = sbr.rel (0) target = $region49
    $region48: #{tpu_custom_call.1} parent=1 // pred_region
      %138 = dma.done [#allocation6], 16
    $region49: #{tpu_custom_call.1} parent=1 // pred_fallthru
      _
    // Predicated region
    $region50: #{tpu_custom_call.1} parent=1 // pred_check
      _
    $region51: #{tpu_custom_call.1} parent=1 // pred_check_branch
      %140 = sbr.rel (0) target = $region53
    $region52: #{tpu_custom_call.1} parent=1 // pred_region
      %142 = dma.done [#allocation9], 4096
    $region53: #{tpu_custom_call.1} parent=1 // pred_fallthru
      _
    // Predicated region
    $region54: #{tpu_custom_call.1} parent=1 // pred_check
      _
    $region55: #{tpu_custom_call.1} parent=1 // pred_check_branch
      %144 = sbr.rel (0) target = $region57
    $region56: #{tpu_custom_call.1} parent=1 // pred_region
      %146 = dma.done [#allocation9], 32
    $region57: #{tpu_custom_call.1} parent=1 // pred_fallthru
      _
    // Predicated region
    $region58: #{tpu_custom_call.1} parent=1 // pred_check
      _
    $region59: #{tpu_custom_call.1} parent=1 // pred_check_branch
      %148 = sbr.rel (0) target = $region61
    $region60: #{tpu_custom_call.1} parent=1 // pred_region
      %150 = dma.done [#allocation12], 4096
    $region61: #{tpu_custom_call.1} parent=1 // pred_fallthru
      _
    // Predicated region
    $region62: #{tpu_custom_call.1} parent=1 // pred_check
      _
    $region63: #{tpu_custom_call.1} parent=1 // pred_check_branch
      %152 = sbr.rel (0) target = $region65
    $region64: #{tpu_custom_call.1} parent=1 // pred_region
      %154 = dma.done [#allocation12], 16
    $region65: #{tpu_custom_call.1} parent=1 // pred_fallthru
      _
    // Predicated region
    $region66: #{tpu_custom_call.1} parent=1 // pred_check
      _
    $region67: #{tpu_custom_call.1} parent=1 // pred_check_branch
      %156 = sbr.rel (0) target = $region69
    $region68: #{tpu_custom_call.1} parent=1 // pred_region
      %158 = dma.done [#allocation15], 65536
    $region69: #{tpu_custom_call.1} parent=1 // pred_fallthru
      _
    // Predicated region
    $region70: #{tpu_custom_call.1} parent=1 // pred_check
      _
    $region71: #{tpu_custom_call.1} parent=1 // pred_check_branch
      %160 = sbr.rel (0) target = $region73
    $region72: #{tpu_custom_call.1} parent=1 // pred_region
      %162 = dma.done [#allocation15], 1024
    $region73: #{tpu_custom_call.1} parent=1 // pred_fallthru
      _
    %v163 = vld [vmem:[#allocation2] sm:$0xff]
    %v164 = vld [vmem:[#allocation2 + $0x8] sm:$0xff]
    %v165 = vld [vmem:[#allocation2 + $0x10] sm:$0xff]
    %v166 = vld [vmem:[#allocation2 + $0x18] sm:$0xff]
    %v167 = vld [vmem:[#allocation2 + $0x20] sm:$0xff]
    %v168 = vld [vmem:[#allocation2 + $0x28] sm:$0xff]
    %v169 = vld [vmem:[#allocation2 + $0x30] sm:$0xff]
    %v170 = vld [vmem:[#allocation2 + $0x38] sm:$0xff]
    %v171 = vld [vmem:[#allocation2 + $0x40] sm:$0xff]
    %v172 = vld [vmem:[#allocation2 + $0x48] sm:$0xff]
    %v173 = vld [vmem:[#allocation2 + $0x50] sm:$0xff]
    %v174 = vld [vmem:[#allocation2 + $0x58] sm:$0xff]
    %v175 = vld [vmem:[#allocation2 + $0x60] sm:$0xff]
    %v176 = vld [vmem:[#allocation2 + $0x68] sm:$0xff]
    %v177 = vld [vmem:[#allocation2 + $0x70] sm:$0xff]
    %v178 = vld [vmem:[#allocation2 + $0x78] sm:$0xff]
    %v179 = vld [vmem:[#allocation2 + $0x80] sm:$0xff]
    %v180 = vld [vmem:[#allocation2 + $0x88] sm:$0xff]
    %v181 = vld [vmem:[#allocation2 + $0x90] sm:$0xff]
    %v182 = vld [vmem:[#allocation2 + $0x98] sm:$0xff]
    %v183 = vld [vmem:[#allocation2 + $0xa0] sm:$0xff]
    %v184 = vld [vmem:[#allocation2 + $0xa8] sm:$0xff]
    %v185 = vld [vmem:[#allocation2 + $0xb0] sm:$0xff]
    %v186 = vld [vmem:[#allocation2 + $0xb8] sm:$0xff]
    %v187 = vld [vmem:[#allocation2 + $0xc0] sm:$0xff]
    %v188 = vld [vmem:[#allocation2 + $0xc8] sm:$0xff]
    %v189 = vld [vmem:[#allocation2 + $0xd0] sm:$0xff]
    %v190 = vld [vmem:[#allocation2 + $0xd8] sm:$0xff]
    %v191 = vld [vmem:[#allocation2 + $0xe0] sm:$0xff]
    %v192 = vld [vmem:[#allocation2 + $0xe8] sm:$0xff]
    %v193 = vld [vmem:[#allocation2 + $0xf0] sm:$0xff]
    %v194 = vld [vmem:[#allocation2 + $0xf8] sm:$0xff]
    %v195 = vld [vmem:[#allocation2 + $0x100] sm:$0xff]
    %v196 = vld [vmem:[#allocation2 + $0x108] sm:$0xff]
    %v197 = vld [vmem:[#allocation2 + $0x110] sm:$0xff]
    %v198 = vld [vmem:[#allocation2 + $0x118] sm:$0xff]
    %v199 = vld [vmem:[#allocation2 + $0x120] sm:$0xff]
    %v200 = vld [vmem:[#allocation2 + $0x128] sm:$0xff]
    %v201 = vld [vmem:[#allocation2 + $0x130] sm:$0xff]
    %v202 = vld [vmem:[#allocation2 + $0x138] sm:$0xff]
    %v203 = vld [vmem:[#allocation2 + $0x140] sm:$0xff]
    %v204 = vld [vmem:[#allocation2 + $0x148] sm:$0xff]
    %v205 = vld [vmem:[#allocation2 + $0x150] sm:$0xff]
    %v206 = vld [vmem:[#allocation2 + $0x158] sm:$0xff]
    %v207 = vld [vmem:[#allocation2 + $0x160] sm:$0xff]
    %v208 = vld [vmem:[#allocation2 + $0x168] sm:$0xff]
    %v209 = vld [vmem:[#allocation2 + $0x170] sm:$0xff]
    %v210 = vld [vmem:[#allocation2 + $0x178] sm:$0xff]
    %v211 = vld [vmem:[#allocation2 + $0x180] sm:$0xff]
    %v212 = vld [vmem:[#allocation2 + $0x188] sm:$0xff]
    %v213 = vld [vmem:[#allocation2 + $0x190] sm:$0xff]
    %v214 = vld [vmem:[#allocation2 + $0x198] sm:$0xff]
    %v215 = vld [vmem:[#allocation2 + $0x1a0] sm:$0xff]
    %v216 = vld [vmem:[#allocation2 + $0x1a8] sm:$0xff]
    %v217 = vld [vmem:[#allocation2 + $0x1b0] sm:$0xff]
    %v218 = vld [vmem:[#allocation2 + $0x1b8] sm:$0xff]
    %v219 = vld [vmem:[#allocation2 + $0x1c0] sm:$0xff]
    %v220 = vld [vmem:[#allocation2 + $0x1c8] sm:$0xff]
    %v221 = vld [vmem:[#allocation2 + $0x1d0] sm:$0xff]
    %v222 = vld [vmem:[#allocation2 + $0x1d8] sm:$0xff]
    %v223 = vld [vmem:[#allocation2 + $0x1e0] sm:$0xff]
    %v224 = vld [vmem:[#allocation2 + $0x1e8] sm:$0xff]
    %v225 = vld [vmem:[#allocation2 + $0x1f0] sm:$0xff]
    %v226 = vld [vmem:[#allocation2 + $0x1f8] sm:$0xff]
    %v227 = vpack.c.bf16 %v163, %v163
    %v228 = vpack.c.bf16 %v164, %v164
    %v229 = vpack.c.bf16 %v165, %v165
    %v230 = vpack.c.bf16 %v166, %v166
    %v231 = vpack.c.bf16 %v167, %v167
    %v232 = vpack.c.bf16 %v168, %v168
    %v233 = vpack.c.bf16 %v169, %v169
    %v234 = vpack.c.bf16 %v170, %v170
    %v235 = vpack.c.bf16 %v171, %v171
    %v236 = vpack.c.bf16 %v172, %v172
    %v237 = vpack.c.bf16 %v173, %v173
    %v238 = vpack.c.bf16 %v174, %v174
    %v239 = vpack.c.bf16 %v175, %v175
    %v240 = vpack.c.bf16 %v176, %v176
    %v241 = vpack.c.bf16 %v177, %v177
    %v242 = vpack.c.bf16 %v178, %v178
    %v243 = vpack.c.bf16 %v179, %v179
    %v244 = vpack.c.bf16 %v180, %v180
    %v245 = vpack.c.bf16 %v181, %v181
    %v246 = vpack.c.bf16 %v182, %v182
    %v247 = vpack.c.bf16 %v183, %v183
    %v248 = vpack.c.bf16 %v184, %v184
    %v249 = vpack.c.bf16 %v185, %v185
    %v250 = vpack.c.bf16 %v186, %v186
    %v251 = vpack.c.bf16 %v187, %v187
    %v252 = vpack.c.bf16 %v188, %v188
    %v253 = vpack.c.bf16 %v189, %v189
    %v254 = vpack.c.bf16 %v190, %v190
    %v255 = vpack.c.bf16 %v191, %v191
    %v256 = vpack.c.bf16 %v192, %v192
    %v257 = vpack.c.bf16 %v193, %v193
    %v258 = vpack.c.bf16 %v194, %v194
    %v259 = vpack.c.bf16 %v195, %v195
    %v260 = vpack.c.bf16 %v196, %v196
    %v261 = vpack.c.bf16 %v197, %v197
    %v262 = vpack.c.bf16 %v198, %v198
    %v263 = vpack.c.bf16 %v199, %v199
    %v264 = vpack.c.bf16 %v200, %v200
    %v265 = vpack.c.bf16 %v201, %v201
    %v266 = vpack.c.bf16 %v202, %v202
    %v267 = vpack.c.bf16 %v203, %v203
    %v268 = vpack.c.bf16 %v204, %v204
    %v269 = vpack.c.bf16 %v205, %v205
    %v270 = vpack.c.bf16 %v206, %v206
    %v271 = vpack.c.bf16 %v207, %v207
    %v272 = vpack.c.bf16 %v208, %v208
    %v273 = vpack.c.bf16 %v209, %v209
    %v274 = vpack.c.bf16 %v210, %v210
    %v275 = vpack.c.bf16 %v211, %v211
    %v276 = vpack.c.bf16 %v212, %v212
    %v277 = vpack.c.bf16 %v213, %v213
    %v278 = vpack.c.bf16 %v214, %v214
    %v279 = vpack.c.bf16 %v215, %v215
    %v280 = vpack.c.bf16 %v216, %v216
    %v281 = vpack.c.bf16 %v217, %v217
    %v282 = vpack.c.bf16 %v218, %v218
    %v283 = vpack.c.bf16 %v219, %v219
    %v284 = vpack.c.bf16 %v220, %v220
    %v285 = vpack.c.bf16 %v221, %v221
    %v286 = vpack.c.bf16 %v222, %v222
    %v287 = vpack.c.bf16 %v223, %v223
    %v288 = vpack.c.bf16 %v224, %v224
    %v289 = vpack.c.bf16 %v225, %v225
    %v290 = vpack.c.bf16 %v226, %v226
    %v291 = vld [vmem:[#allocation5] sm:$0xf]
    %v292 = vld [vmem:[#allocation5 + $0x4] sm:$0xf]
    %v293 = vld [vmem:[#allocation5 + $0x8] sm:$0xf]
    %v294 = vld [vmem:[#allocation5 + $0xc] sm:$0xf]
    %v295 = vld [vmem:[#allocation5 + $0x10] sm:$0xf]
    %v296 = vld [vmem:[#allocation5 + $0x14] sm:$0xf]
    %v297 = vld [vmem:[#allocation5 + $0x18] sm:$0xf]
    %v298 = vld [vmem:[#allocation5 + $0x1c] sm:$0xf]
    %v299 = vld [vmem:[#allocation5 + $0x20] sm:$0xf]
    %v300 = vld [vmem:[#allocation5 + $0x24] sm:$0xf]
    %v301 = vld [vmem:[#allocation5 + $0x28] sm:$0xf]
    %v302 = vld [vmem:[#allocation5 + $0x2c] sm:$0xf]
    %v303 = vld [vmem:[#allocation5 + $0x30] sm:$0xf]
    %v304 = vld [vmem:[#allocation5 + $0x34] sm:$0xf]
    %v305 = vld [vmem:[#allocation5 + $0x38] sm:$0xf]
    %v306 = vld [vmem:[#allocation5 + $0x3c] sm:$0xf]
    %v307 = vld [vmem:[#allocation5 + $0x40] sm:$0xf]
    %v308 = vld [vmem:[#allocation5 + $0x44] sm:$0xf]
    %v309 = vld [vmem:[#allocation5 + $0x48] sm:$0xf]
    %v310 = vld [vmem:[#allocation5 + $0x4c] sm:$0xf]
    %v311 = vld [vmem:[#allocation5 + $0x50] sm:$0xf]
    %v312 = vld [vmem:[#allocation5 + $0x54] sm:$0xf]
    %v313 = vld [vmem:[#allocation5 + $0x58] sm:$0xf]
    %v314 = vld [vmem:[#allocation5 + $0x5c] sm:$0xf]
    %v315 = vld [vmem:[#allocation5 + $0x60] sm:$0xf]
    %v316 = vld [vmem:[#allocation5 + $0x64] sm:$0xf]
    %v317 = vld [vmem:[#allocation5 + $0x68] sm:$0xf]
    %v318 = vld [vmem:[#allocation5 + $0x6c] sm:$0xf]
    %v319 = vld [vmem:[#allocation5 + $0x70] sm:$0xf]
    %v320 = vld [vmem:[#allocation5 + $0x74] sm:$0xf]
    %v321 = vld [vmem:[#allocation5 + $0x78] sm:$0xf]
    %v322 = vld [vmem:[#allocation5 + $0x7c] sm:$0xf]
    %v323 = vld [vmem:[#allocation5 + $0x80] sm:$0xf]
    %v324 = vld [vmem:[#allocation5 + $0x84] sm:$0xf]
    %v325 = vld [vmem:[#allocation5 + $0x88] sm:$0xf]
    %v326 = vld [vmem:[#allocation5 + $0x8c] sm:$0xf]
    %v327 = vld [vmem:[#allocation5 + $0x90] sm:$0xf]
    %v328 = vld [vmem:[#allocation5 + $0x94] sm:$0xf]
    %v329 = vld [vmem:[#allocation5 + $0x98] sm:$0xf]
    %v330 = vld [vmem:[#allocation5 + $0x9c] sm:$0xf]
    %v331 = vld [vmem:[#allocation5 + $0xa0] sm:$0xf]
    %v332 = vld [vmem:[#allocation5 + $0xa4] sm:$0xf]
    %v333 = vld [vmem:[#allocation5 + $0xa8] sm:$0xf]
    %v334 = vld [vmem:[#allocation5 + $0xac] sm:$0xf]
    %v335 = vld [vmem:[#allocation5 + $0xb0] sm:$0xf]
    %v336 = vld [vmem:[#allocation5 + $0xb4] sm:$0xf]
    %v337 = vld [vmem:[#allocation5 + $0xb8] sm:$0xf]
    %v338 = vld [vmem:[#allocation5 + $0xbc] sm:$0xf]
    %v339 = vld [vmem:[#allocation5 + $0xc0] sm:$0xf]
    %v340 = vld [vmem:[#allocation5 + $0xc4] sm:$0xf]
    %v341 = vld [vmem:[#allocation5 + $0xc8] sm:$0xf]
    %v342 = vld [vmem:[#allocation5 + $0xcc] sm:$0xf]
    %v343 = vld [vmem:[#allocation5 + $0xd0] sm:$0xf]
    %v344 = vld [vmem:[#allocation5 + $0xd4] sm:$0xf]
    %v345 = vld [vmem:[#allocation5 + $0xd8] sm:$0xf]
    %v346 = vld [vmem:[#allocation5 + $0xdc] sm:$0xf]
    %v347 = vld [vmem:[#allocation5 + $0xe0] sm:$0xf]
    %v348 = vld [vmem:[#allocation5 + $0xe4] sm:$0xf]
    %v349 = vld [vmem:[#allocation5 + $0xe8] sm:$0xf]
    %v350 = vld [vmem:[#allocation5 + $0xec] sm:$0xf]
    %v351 = vld [vmem:[#allocation5 + $0xf0] sm:$0xf]
    %v352 = vld [vmem:[#allocation5 + $0xf4] sm:$0xf]
    %v353 = vld [vmem:[#allocation5 + $0xf8] sm:$0xf]
    %v354 = vld [vmem:[#allocation5 + $0xfc] sm:$0xf]
    %v355 = vld [vmem:[#allocation5 + $0x100] sm:$0xf]
    %v356 = vld [vmem:[#allocation5 + $0x104] sm:$0xf]
    %v357 = vld [vmem:[#allocation5 + $0x108] sm:$0xf]
    %v358 = vld [vmem:[#allocation5 + $0x10c] sm:$0xf]
    %v359 = vld [vmem:[#allocation5 + $0x110] sm:$0xf]
    %v360 = vld [vmem:[#allocation5 + $0x114] sm:$0xf]
    %v361 = vld [vmem:[#allocation5 + $0x118] sm:$0xf]
    %v362 = vld [vmem:[#allocation5 + $0x11c] sm:$0xf]
    %v363 = vld [vmem:[#allocation5 + $0x120] sm:$0xf]
    %v364 = vld [vmem:[#allocation5 + $0x124] sm:$0xf]
    %v365 = vld [vmem:[#allocation5 + $0x128] sm:$0xf]
    %v366 = vld [vmem:[#allocation5 + $0x12c] sm:$0xf]
    %v367 = vld [vmem:[#allocation5 + $0x130] sm:$0xf]
    %v368 = vld [vmem:[#allocation5 + $0x134] sm:$0xf]
    %v369 = vld [vmem:[#allocation5 + $0x138] sm:$0xf]
    %v370 = vld [vmem:[#allocation5 + $0x13c] sm:$0xf]
    %v371 = vld [vmem:[#allocation5 + $0x140] sm:$0xf]
    %v372 = vld [vmem:[#allocation5 + $0x144] sm:$0xf]
    %v373 = vld [vmem:[#allocation5 + $0x148] sm:$0xf]
    %v374 = vld [vmem:[#allocation5 + $0x14c] sm:$0xf]
    %v375 = vld [vmem:[#allocation5 + $0x150] sm:$0xf]
    %v376 = vld [vmem:[#allocation5 + $0x154] sm:$0xf]
    %v377 = vld [vmem:[#allocation5 + $0x158] sm:$0xf]
    %v378 = vld [vmem:[#allocation5 + $0x15c] sm:$0xf]
    %v379 = vld [vmem:[#allocation5 + $0x160] sm:$0xf]
    %v380 = vld [vmem:[#allocation5 + $0x164] sm:$0xf]
    %v381 = vld [vmem:[#allocation5 + $0x168] sm:$0xf]
    %v382 = vld [vmem:[#allocation5 + $0x16c] sm:$0xf]
    %v383 = vld [vmem:[#allocation5 + $0x170] sm:$0xf]
    %v384 = vld [vmem:[#allocation5 + $0x174] sm:$0xf]
    %v385 = vld [vmem:[#allocation5 + $0x178] sm:$0xf]
    %v386 = vld [vmem:[#allocation5 + $0x17c] sm:$0xf]
    %v387 = vld [vmem:[#allocation5 + $0x180] sm:$0xf]
    %v388 = vld [vmem:[#allocation5 + $0x184] sm:$0xf]
    %v389 = vld [vmem:[#allocation5 + $0x188] sm:$0xf]
    %v390 = vld [vmem:[#allocation5 + $0x18c] sm:$0xf]
    %v391 = vld [vmem:[#allocation5 + $0x190] sm:$0xf]
    %v392 = vld [vmem:[#allocation5 + $0x194] sm:$0xf]
    %v393 = vld [vmem:[#allocation5 + $0x198] sm:$0xf]
    %v394 = vld [vmem:[#allocation5 + $0x19c] sm:$0xf]
    %v395 = vld [vmem:[#allocation5 + $0x1a0] sm:$0xf]
    %v396 = vld [vmem:[#allocation5 + $0x1a4] sm:$0xf]
    %v397 = vld [vmem:[#allocation5 + $0x1a8] sm:$0xf]
    %v398 = vld [vmem:[#allocation5 + $0x1ac] sm:$0xf]
    %v399 = vld [vmem:[#allocation5 + $0x1b0] sm:$0xf]
    %v400 = vld [vmem:[#allocation5 + $0x1b4] sm:$0xf]
    %v401 = vld [vmem:[#allocation5 + $0x1b8] sm:$0xf]
    %v402 = vld [vmem:[#allocation5 + $0x1bc] sm:$0xf]
    %v403 = vld [vmem:[#allocation5 + $0x1c0] sm:$0xf]
    %v404 = vld [vmem:[#allocation5 + $0x1c4] sm:$0xf]
    %v405 = vld [vmem:[#allocation5 + $0x1c8] sm:$0xf]
    %v406 = vld [vmem:[#allocation5 + $0x1cc] sm:$0xf]
    %v407 = vld [vmem:[#allocation5 + $0x1d0] sm:$0xf]
    %v408 = vld [vmem:[#allocation5 + $0x1d4] sm:$0xf]
    %v409 = vld [vmem:[#allocation5 + $0x1d8] sm:$0xf]
    %v410 = vld [vmem:[#allocation5 + $0x1dc] sm:$0xf]
    %v411 = vld [vmem:[#allocation5 + $0x1e0] sm:$0xf]
    %v412 = vld [vmem:[#allocation5 + $0x1e4] sm:$0xf]
    %v413 = vld [vmem:[#allocation5 + $0x1e8] sm:$0xf]
    %v414 = vld [vmem:[#allocation5 + $0x1ec] sm:$0xf]
    %v415 = vld [vmem:[#allocation5 + $0x1f0] sm:$0xf]
    %v416 = vld [vmem:[#allocation5 + $0x1f4] sm:$0xf]
    %v417 = vld [vmem:[#allocation5 + $0x1f8] sm:$0xf]
    %v418 = vld [vmem:[#allocation5 + $0x1fc] sm:$0xf]
    %v419 = vld [vmem:[#allocation5 + $0x200] sm:$0xf]
    %v420 = vld [vmem:[#allocation5 + $0x204] sm:$0xf]
    %v421 = vld [vmem:[#allocation5 + $0x208] sm:$0xf]
    %v422 = vld [vmem:[#allocation5 + $0x20c] sm:$0xf]
    %v423 = vld [vmem:[#allocation5 + $0x210] sm:$0xf]
    %v424 = vld [vmem:[#allocation5 + $0x214] sm:$0xf]
    %v425 = vld [vmem:[#allocation5 + $0x218] sm:$0xf]
    %v426 = vld [vmem:[#allocation5 + $0x21c] sm:$0xf]
    %v427 = vld [vmem:[#allocation5 + $0x220] sm:$0xf]
    %v428 = vld [vmem:[#allocation5 + $0x224] sm:$0xf]
    %v429 = vld [vmem:[#allocation5 + $0x228] sm:$0xf]
    %v430 = vld [vmem:[#allocation5 + $0x22c] sm:$0xf]
    %v431 = vld [vmem:[#allocation5 + $0x230] sm:$0xf]
    %v432 = vld [vmem:[#allocation5 + $0x234] sm:$0xf]
    %v433 = vld [vmem:[#allocation5 + $0x238] sm:$0xf]
    %v434 = vld [vmem:[#allocation5 + $0x23c] sm:$0xf]
    %v435 = vld [vmem:[#allocation5 + $0x240] sm:$0xf]
    %v436 = vld [vmem:[#allocation5 + $0x244] sm:$0xf]
    %v437 = vld [vmem:[#allocation5 + $0x248] sm:$0xf]
    %v438 = vld [vmem:[#allocation5 + $0x24c] sm:$0xf]
    %v439 = vld [vmem:[#allocation5 + $0x250] sm:$0xf]
    %v440 = vld [vmem:[#allocation5 + $0x254] sm:$0xf]
    %v441 = vld [vmem:[#allocation5 + $0x258] sm:$0xf]
    %v442 = vld [vmem:[#allocation5 + $0x25c] sm:$0xf]
    %v443 = vld [vmem:[#allocation5 + $0x260] sm:$0xf]
    %v444 = vld [vmem:[#allocation5 + $0x264] sm:$0xf]
    %v445 = vld [vmem:[#allocation5 + $0x268] sm:$0xf]
    %v446 = vld [vmem:[#allocation5 + $0x26c] sm:$0xf]
    %v447 = vld [vmem:[#allocation5 + $0x270] sm:$0xf]
    %v448 = vld [vmem:[#allocation5 + $0x274] sm:$0xf]
    %v449 = vld [vmem:[#allocation5 + $0x278] sm:$0xf]
    %v450 = vld [vmem:[#allocation5 + $0x27c] sm:$0xf]
    %v451 = vld [vmem:[#allocation5 + $0x280] sm:$0xf]
    %v452 = vld [vmem:[#allocation5 + $0x284] sm:$0xf]
    %v453 = vld [vmem:[#allocation5 + $0x288] sm:$0xf]
    %v454 = vld [vmem:[#allocation5 + $0x28c] sm:$0xf]
    %v455 = vld [vmem:[#allocation5 + $0x290] sm:$0xf]
    %v456 = vld [vmem:[#allocation5 + $0x294] sm:$0xf]
    %v457 = vld [vmem:[#allocation5 + $0x298] sm:$0xf]
    %v458 = vld [vmem:[#allocation5 + $0x29c] sm:$0xf]
    %v459 = vld [vmem:[#allocation5 + $0x2a0] sm:$0xf]
    %v460 = vld [vmem:[#allocation5 + $0x2a4] sm:$0xf]
    %v461 = vld [vmem:[#allocation5 + $0x2a8] sm:$0xf]
    %v462 = vld [vmem:[#allocation5 + $0x2ac] sm:$0xf]
    %v463 = vld [vmem:[#allocation5 + $0x2b0] sm:$0xf]
    %v464 = vld [vmem:[#allocation5 + $0x2b4] sm:$0xf]
    %v465 = vld [vmem:[#allocation5 + $0x2b8] sm:$0xf]
    %v466 = vld [vmem:[#allocation5 + $0x2bc] sm:$0xf]
    %v467 = vld [vmem:[#allocation5 + $0x2c0] sm:$0xf]
    %v468 = vld [vmem:[#allocation5 + $0x2c4] sm:$0xf]
    %v469 = vld [vmem:[#allocation5 + $0x2c8] sm:$0xf]
    %v470 = vld [vmem:[#allocation5 + $0x2cc] sm:$0xf]
    %v471 = vld [vmem:[#allocation5 + $0x2d0] sm:$0xf]
    %v472 = vld [vmem:[#allocation5 + $0x2d4] sm:$0xf]
    %v473 = vld [vmem:[#allocation5 + $0x2d8] sm:$0xf]
    %v474 = vld [vmem:[#allocation5 + $0x2dc] sm:$0xf]
    %v475 = vld [vmem:[#allocation5 + $0x2e0] sm:$0xf]
    %v476 = vld [vmem:[#allocation5 + $0x2e4] sm:$0xf]
    %v477 = vld [vmem:[#allocation5 + $0x2e8] sm:$0xf]
    %v478 = vld [vmem:[#allocation5 + $0x2ec] sm:$0xf]
    %v479 = vld [vmem:[#allocation5 + $0x2f0] sm:$0xf]
    %v480 = vld [vmem:[#allocation5 + $0x2f4] sm:$0xf]
    %v481 = vld [vmem:[#allocation5 + $0x2f8] sm:$0xf]
    %v482 = vld [vmem:[#allocation5 + $0x2fc] sm:$0xf]
    %v483 = vld [vmem:[#allocation5 + $0x300] sm:$0xf]
    %v484 = vld [vmem:[#allocation5 + $0x304] sm:$0xf]
    %v485 = vld [vmem:[#allocation5 + $0x308] sm:$0xf]
    %v486 = vld [vmem:[#allocation5 + $0x30c] sm:$0xf]
    %v487 = vld [vmem:[#allocation5 + $0x310] sm:$0xf]
    %v488 = vld [vmem:[#allocation5 + $0x314] sm:$0xf]
    %v489 = vld [vmem:[#allocation5 + $0x318] sm:$0xf]
    %v490 = vld [vmem:[#allocation5 + $0x31c] sm:$0xf]
    %v491 = vld [vmem:[#allocation5 + $0x320] sm:$0xf]
    %v492 = vld [vmem:[#allocation5 + $0x324] sm:$0xf]
    %v493 = vld [vmem:[#allocation5 + $0x328] sm:$0xf]
    %v494 = vld [vmem:[#allocation5 + $0x32c] sm:$0xf]
    %v495 = vld [vmem:[#allocation5 + $0x330] sm:$0xf]
    %v496 = vld [vmem:[#allocation5 + $0x334] sm:$0xf]
    %v497 = vld [vmem:[#allocation5 + $0x338] sm:$0xf]
    %v498 = vld [vmem:[#allocation5 + $0x33c] sm:$0xf]
    %v499 = vld [vmem:[#allocation5 + $0x340] sm:$0xf]
    %v500 = vld [vmem:[#allocation5 + $0x344] sm:$0xf]
    %v501 = vld [vmem:[#allocation5 + $0x348] sm:$0xf]
    %v502 = vld [vmem:[#allocation5 + $0x34c] sm:$0xf]
    %v503 = vld [vmem:[#allocation5 + $0x350] sm:$0xf]
    %v504 = vld [vmem:[#allocation5 + $0x354] sm:$0xf]
    %v505 = vld [vmem:[#allocation5 + $0x358] sm:$0xf]
    %v506 = vld [vmem:[#allocation5 + $0x35c] sm:$0xf]
    %v507 = vld [vmem:[#allocation5 + $0x360] sm:$0xf]
    %v508 = vld [vmem:[#allocation5 + $0x364] sm:$0xf]
    %v509 = vld [vmem:[#allocation5 + $0x368] sm:$0xf]
    %v510 = vld [vmem:[#allocation5 + $0x36c] sm:$0xf]
    %v511 = vld [vmem:[#allocation5 + $0x370] sm:$0xf]
    %v512 = vld [vmem:[#allocation5 + $0x374] sm:$0xf]
    %v513 = vld [vmem:[#allocation5 + $0x378] sm:$0xf]
    %v514 = vld [vmem:[#allocation5 + $0x37c] sm:$0xf]
    %v515 = vld [vmem:[#allocation5 + $0x380] sm:$0xf]
    %v516 = vld [vmem:[#allocation5 + $0x384] sm:$0xf]
    %v517 = vld [vmem:[#allocation5 + $0x388] sm:$0xf]
    %v518 = vld [vmem:[#allocation5 + $0x38c] sm:$0xf]
    %v519 = vld [vmem:[#allocation5 + $0x390] sm:$0xf]
    %v520 = vld [vmem:[#allocation5 + $0x394] sm:$0xf]
    %v521 = vld [vmem:[#allocation5 + $0x398] sm:$0xf]
    %v522 = vld [vmem:[#allocation5 + $0x39c] sm:$0xf]
    %v523 = vld [vmem:[#allocation5 + $0x3a0] sm:$0xf]
    %v524 = vld [vmem:[#allocation5 + $0x3a4] sm:$0xf]
    %v525 = vld [vmem:[#allocation5 + $0x3a8] sm:$0xf]
    %v526 = vld [vmem:[#allocation5 + $0x3ac] sm:$0xf]
    %v527 = vld [vmem:[#allocation5 + $0x3b0] sm:$0xf]
    %v528 = vld [vmem:[#allocation5 + $0x3b4] sm:$0xf]
    %v529 = vld [vmem:[#allocation5 + $0x3b8] sm:$0xf]
    %v530 = vld [vmem:[#allocation5 + $0x3bc] sm:$0xf]
    %v531 = vld [vmem:[#allocation5 + $0x3c0] sm:$0xf]
    %v532 = vld [vmem:[#allocation5 + $0x3c4] sm:$0xf]
    %v533 = vld [vmem:[#allocation5 + $0x3c8] sm:$0xf]
    %v534 = vld [vmem:[#allocation5 + $0x3cc] sm:$0xf]
    %v535 = vld [vmem:[#allocation5 + $0x3d0] sm:$0xf]
    %v536 = vld [vmem:[#allocation5 + $0x3d4] sm:$0xf]
    %v537 = vld [vmem:[#allocation5 + $0x3d8] sm:$0xf]
    %v538 = vld [vmem:[#allocation5 + $0x3dc] sm:$0xf]
    %v539 = vld [vmem:[#allocation5 + $0x3e0] sm:$0xf]
    %v540 = vld [vmem:[#allocation5 + $0x3e4] sm:$0xf]
    %v541 = vld [vmem:[#allocation5 + $0x3e8] sm:$0xf]
    %v542 = vld [vmem:[#allocation5 + $0x3ec] sm:$0xf]
    %v543 = vld [vmem:[#allocation5 + $0x3f0] sm:$0xf]
    %v544 = vld [vmem:[#allocation5 + $0x3f4] sm:$0xf]
    %v545 = vld [vmem:[#allocation5 + $0x3f8] sm:$0xf]
    %v546 = vld [vmem:[#allocation5 + $0x3fc] sm:$0xf]
    %v547 = vld [vmem:[#allocation5 + $0x400] sm:$0xf]
    %v548 = vld [vmem:[#allocation5 + $0x404] sm:$0xf]
    %v549 = vld [vmem:[#allocation5 + $0x408] sm:$0xf]
    %v550 = vld [vmem:[#allocation5 + $0x40c] sm:$0xf]
    %v551 = vld [vmem:[#allocation5 + $0x410] sm:$0xf]
    %v552 = vld [vmem:[#allocation5 + $0x414] sm:$0xf]
    %v553 = vld [vmem:[#allocation5 + $0x418] sm:$0xf]
    %v554 = vld [vmem:[#allocation5 + $0x41c] sm:$0xf]
    %v555 = vld [vmem:[#allocation5 + $0x420] sm:$0xf]
    %v556 = vld [vmem:[#allocation5 + $0x424] sm:$0xf]
    %v557 = vld [vmem:[#allocation5 + $0x428] sm:$0xf]
    %v558 = vld [vmem:[#allocation5 + $0x42c] sm:$0xf]
    %v559 = vld [vmem:[#allocation5 + $0x430] sm:$0xf]
    %v560 = vld [vmem:[#allocation5 + $0x434] sm:$0xf]
    %v561 = vld [vmem:[#allocation5 + $0x438] sm:$0xf]
    %v562 = vld [vmem:[#allocation5 + $0x43c] sm:$0xf]
    %v563 = vld [vmem:[#allocation5 + $0x440] sm:$0xf]
    %v564 = vld [vmem:[#allocation5 + $0x444] sm:$0xf]
    %v565 = vld [vmem:[#allocation5 + $0x448] sm:$0xf]
    %v566 = vld [vmem:[#allocation5 + $0x44c] sm:$0xf]
    %v567 = vld [vmem:[#allocation5 + $0x450] sm:$0xf]
    %v568 = vld [vmem:[#allocation5 + $0x454] sm:$0xf]
    %v569 = vld [vmem:[#allocation5 + $0x458] sm:$0xf]
    %v570 = vld [vmem:[#allocation5 + $0x45c] sm:$0xf]
    %v571 = vld [vmem:[#allocation5 + $0x460] sm:$0xf]
    %v572 = vld [vmem:[#allocation5 + $0x464] sm:$0xf]
    %v573 = vld [vmem:[#allocation5 + $0x468] sm:$0xf]
    %v574 = vld [vmem:[#allocation5 + $0x46c] sm:$0xf]
    %v575 = vld [vmem:[#allocation5 + $0x470] sm:$0xf]
    %v576 = vld [vmem:[#allocation5 + $0x474] sm:$0xf]
    %v577 = vld [vmem:[#allocation5 + $0x478] sm:$0xf]
    %v578 = vld [vmem:[#allocation5 + $0x47c] sm:$0xf]
    %v579 = vld [vmem:[#allocation5 + $0x480] sm:$0xf]
    %v580 = vld [vmem:[#allocation5 + $0x484] sm:$0xf]
    %v581 = vld [vmem:[#allocation5 + $0x488] sm:$0xf]
    %v582 = vld [vmem:[#allocation5 + $0x48c] sm:$0xf]
    %v583 = vld [vmem:[#allocation5 + $0x490] sm:$0xf]
    %v584 = vld [vmem:[#allocation5 + $0x494] sm:$0xf]
    %v585 = vld [vmem:[#allocation5 + $0x498] sm:$0xf]
    %v586 = vld [vmem:[#allocation5 + $0x49c] sm:$0xf]
    %v587 = vld [vmem:[#allocation5 + $0x4a0] sm:$0xf]
    %v588 = vld [vmem:[#allocation5 + $0x4a4] sm:$0xf]
    %v589 = vld [vmem:[#allocation5 + $0x4a8] sm:$0xf]
    %v590 = vld [vmem:[#allocation5 + $0x4ac] sm:$0xf]
    %v591 = vld [vmem:[#allocation5 + $0x4b0] sm:$0xf]
    %v592 = vld [vmem:[#allocation5 + $0x4b4] sm:$0xf]
    %v593 = vld [vmem:[#allocation5 + $0x4b8] sm:$0xf]
    %v594 = vld [vmem:[#allocation5 + $0x4bc] sm:$0xf]
    %v595 = vld [vmem:[#allocation5 + $0x4c0] sm:$0xf]
    %v596 = vld [vmem:[#allocation5 + $0x4c4] sm:$0xf]
    %v597 = vld [vmem:[#allocation5 + $0x4c8] sm:$0xf]
    %v598 = vld [vmem:[#allocation5 + $0x4cc] sm:$0xf]
    %v599 = vld [vmem:[#allocation5 + $0x4d0] sm:$0xf]
    %v600 = vld [vmem:[#allocation5 + $0x4d4] sm:$0xf]
    %v601 = vld [vmem:[#allocation5 + $0x4d8] sm:$0xf]
    %v602 = vld [vmem:[#allocation5 + $0x4dc] sm:$0xf]
    %v603 = vld [vmem:[#allocation5 + $0x4e0] sm:$0xf]
    %v604 = vld [vmem:[#allocation5 + $0x4e4] sm:$0xf]
    %v605 = vld [vmem:[#allocation5 + $0x4e8] sm:$0xf]
    %v606 = vld [vmem:[#allocation5 + $0x4ec] sm:$0xf]
    %v607 = vld [vmem:[#allocation5 + $0x4f0] sm:$0xf]
    %v608 = vld [vmem:[#allocation5 + $0x4f4] sm:$0xf]
    %v609 = vld [vmem:[#allocation5 + $0x4f8] sm:$0xf]
    %v610 = vld [vmem:[#allocation5 + $0x4fc] sm:$0xf]
    %v611 = vld [vmem:[#allocation5 + $0x500] sm:$0xf]
    %v612 = vld [vmem:[#allocation5 + $0x504] sm:$0xf]
    %v613 = vld [vmem:[#allocation5 + $0x508] sm:$0xf]
    %v614 = vld [vmem:[#allocation5 + $0x50c] sm:$0xf]
    %v615 = vld [vmem:[#allocation5 + $0x510] sm:$0xf]
    %v616 = vld [vmem:[#allocation5 + $0x514] sm:$0xf]
    %v617 = vld [vmem:[#allocation5 + $0x518] sm:$0xf]
    %v618 = vld [vmem:[#allocation5 + $0x51c] sm:$0xf]
    %v619 = vld [vmem:[#allocation5 + $0x520] sm:$0xf]
    %v620 = vld [vmem:[#allocation5 + $0x524] sm:$0xf]
    %v621 = vld [vmem:[#allocation5 + $0x528] sm:$0xf]
    %v622 = vld [vmem:[#allocation5 + $0x52c] sm:$0xf]
    %v623 = vld [vmem:[#allocation5 + $0x530] sm:$0xf]
    %v624 = vld [vmem:[#allocation5 + $0x534] sm:$0xf]
    %v625 = vld [vmem:[#allocation5 + $0x538] sm:$0xf]
    %v626 = vld [vmem:[#allocation5 + $0x53c] sm:$0xf]
    %v627 = vld [vmem:[#allocation5 + $0x540] sm:$0xf]
    %v628 = vld [vmem:[#allocation5 + $0x544] sm:$0xf]
    %v629 = vld [vmem:[#allocation5 + $0x548] sm:$0xf]
    %v630 = vld [vmem:[#allocation5 + $0x54c] sm:$0xf]
    %v631 = vld [vmem:[#allocation5 + $0x550] sm:$0xf]
    %v632 = vld [vmem:[#allocation5 + $0x554] sm:$0xf]
    %v633 = vld [vmem:[#allocation5 + $0x558] sm:$0xf]
    %v634 = vld [vmem:[#allocation5 + $0x55c] sm:$0xf]
    %v635 = vld [vmem:[#allocation5 + $0x560] sm:$0xf]
    %v636 = vld [vmem:[#allocation5 + $0x564] sm:$0xf]
    %v637 = vld [vmem:[#allocation5 + $0x568] sm:$0xf]
    %v638 = vld [vmem:[#allocation5 + $0x56c] sm:$0xf]
    %v639 = vld [vmem:[#allocation5 + $0x570] sm:$0xf]
    %v640 = vld [vmem:[#allocation5 + $0x574] sm:$0xf]
    %v641 = vld [vmem:[#allocation5 + $0x578] sm:$0xf]
    %v642 = vld [vmem:[#allocation5 + $0x57c] sm:$0xf]
    %v643 = vld [vmem:[#allocation5 + $0x580] sm:$0xf]
    %v644 = vld [vmem:[#allocation5 + $0x584] sm:$0xf]
    %v645 = vld [vmem:[#allocation5 + $0x588] sm:$0xf]
    %v646 = vld [vmem:[#allocation5 + $0x58c] sm:$0xf]
    %v647 = vld [vmem:[#allocation5 + $0x590] sm:$0xf]
    %v648 = vld [vmem:[#allocation5 + $0x594] sm:$0xf]
    %v649 = vld [vmem:[#allocation5 + $0x598] sm:$0xf]
    %v650 = vld [vmem:[#allocation5 + $0x59c] sm:$0xf]
    %v651 = vld [vmem:[#allocation5 + $0x5a0] sm:$0xf]
    %v652 = vld [vmem:[#allocation5 + $0x5a4] sm:$0xf]
    %v653 = vld [vmem:[#allocation5 + $0x5a8] sm:$0xf]
    %v654 = vld [vmem:[#allocation5 + $0x5ac] sm:$0xf]
    %v655 = vld [vmem:[#allocation5 + $0x5b0] sm:$0xf]
    %v656 = vld [vmem:[#allocation5 + $0x5b4] sm:$0xf]
    %v657 = vld [vmem:[#allocation5 + $0x5b8] sm:$0xf]
    %v658 = vld [vmem:[#allocation5 + $0x5bc] sm:$0xf]
    %v659 = vld [vmem:[#allocation5 + $0x5c0] sm:$0xf]
    %v660 = vld [vmem:[#allocation5 + $0x5c4] sm:$0xf]
    %v661 = vld [vmem:[#allocation5 + $0x5c8] sm:$0xf]
    %v662 = vld [vmem:[#allocation5 + $0x5cc] sm:$0xf]
    %v663 = vld [vmem:[#allocation5 + $0x5d0] sm:$0xf]
    %v664 = vld [vmem:[#allocation5 + $0x5d4] sm:$0xf]
    %v665 = vld [vmem:[#allocation5 + $0x5d8] sm:$0xf]
    %v666 = vld [vmem:[#allocation5 + $0x5dc] sm:$0xf]
    %v667 = vld [vmem:[#allocation5 + $0x5e0] sm:$0xf]
    %v668 = vld [vmem:[#allocation5 + $0x5e4] sm:$0xf]
    %v669 = vld [vmem:[#allocation5 + $0x5e8] sm:$0xf]
    %v670 = vld [vmem:[#allocation5 + $0x5ec] sm:$0xf]
    %v671 = vld [vmem:[#allocation5 + $0x5f0] sm:$0xf]
    %v672 = vld [vmem:[#allocation5 + $0x5f4] sm:$0xf]
    %v673 = vld [vmem:[#allocation5 + $0x5f8] sm:$0xf]
    %v674 = vld [vmem:[#allocation5 + $0x5fc] sm:$0xf]
    %v675 = vld [vmem:[#allocation5 + $0x600] sm:$0xf]
    %v676 = vld [vmem:[#allocation5 + $0x604] sm:$0xf]
    %v677 = vld [vmem:[#allocation5 + $0x608] sm:$0xf]
    %v678 = vld [vmem:[#allocation5 + $0x60c] sm:$0xf]
    %v679 = vld [vmem:[#allocation5 + $0x610] sm:$0xf]
    %v680 = vld [vmem:[#allocation5 + $0x614] sm:$0xf]
    %v681 = vld [vmem:[#allocation5 + $0x618] sm:$0xf]
    %v682 = vld [vmem:[#allocation5 + $0x61c] sm:$0xf]
    %v683 = vld [vmem:[#allocation5 + $0x620] sm:$0xf]
    %v684 = vld [vmem:[#allocation5 + $0x624] sm:$0xf]
    %v685 = vld [vmem:[#allocation5 + $0x628] sm:$0xf]
    %v686 = vld [vmem:[#allocation5 + $0x62c] sm:$0xf]
    %v687 = vld [vmem:[#allocation5 + $0x630] sm:$0xf]
    %v688 = vld [vmem:[#allocation5 + $0x634] sm:$0xf]
    %v689 = vld [vmem:[#allocation5 + $0x638] sm:$0xf]
    %v690 = vld [vmem:[#allocation5 + $0x63c] sm:$0xf]
    %v691 = vld [vmem:[#allocation5 + $0x640] sm:$0xf]
    %v692 = vld [vmem:[#allocation5 + $0x644] sm:$0xf]
    %v693 = vld [vmem:[#allocation5 + $0x648] sm:$0xf]
    %v694 = vld [vmem:[#allocation5 + $0x64c] sm:$0xf]
    %v695 = vld [vmem:[#allocation5 + $0x650] sm:$0xf]
    %v696 = vld [vmem:[#allocation5 + $0x654] sm:$0xf]
    %v697 = vld [vmem:[#allocation5 + $0x658] sm:$0xf]
    %v698 = vld [vmem:[#allocation5 + $0x65c] sm:$0xf]
    %v699 = vld [vmem:[#allocation5 + $0x660] sm:$0xf]
    %v700 = vld [vmem:[#allocation5 + $0x664] sm:$0xf]
    %v701 = vld [vmem:[#allocation5 + $0x668] sm:$0xf]
    %v702 = vld [vmem:[#allocation5 + $0x66c] sm:$0xf]
    %v703 = vld [vmem:[#allocation5 + $0x670] sm:$0xf]
    %v704 = vld [vmem:[#allocation5 + $0x674] sm:$0xf]
    %v705 = vld [vmem:[#allocation5 + $0x678] sm:$0xf]
    %v706 = vld [vmem:[#allocation5 + $0x67c] sm:$0xf]
    %v707 = vld [vmem:[#allocation5 + $0x680] sm:$0xf]
    %v708 = vld [vmem:[#allocation5 + $0x684] sm:$0xf]
    %v709 = vld [vmem:[#allocation5 + $0x688] sm:$0xf]
    %v710 = vld [vmem:[#allocation5 + $0x68c] sm:$0xf]
    %v711 = vld [vmem:[#allocation5 + $0x690] sm:$0xf]
    %v712 = vld [vmem:[#allocation5 + $0x694] sm:$0xf]
    %v713 = vld [vmem:[#allocation5 + $0x698] sm:$0xf]
    %v714 = vld [vmem:[#allocation5 + $0x69c] sm:$0xf]
    %v715 = vld [vmem:[#allocation5 + $0x6a0] sm:$0xf]
    %v716 = vld [vmem:[#allocation5 + $0x6a4] sm:$0xf]
    %v717 = vld [vmem:[#allocation5 + $0x6a8] sm:$0xf]
    %v718 = vld [vmem:[#allocation5 + $0x6ac] sm:$0xf]
    %v719 = vld [vmem:[#allocation5 + $0x6b0] sm:$0xf]
    %v720 = vld [vmem:[#allocation5 + $0x6b4] sm:$0xf]
    %v721 = vld [vmem:[#allocation5 + $0x6b8] sm:$0xf]
    %v722 = vld [vmem:[#allocation5 + $0x6bc] sm:$0xf]
    %v723 = vld [vmem:[#allocation5 + $0x6c0] sm:$0xf]
    %v724 = vld [vmem:[#allocation5 + $0x6c4] sm:$0xf]
    %v725 = vld [vmem:[#allocation5 + $0x6c8] sm:$0xf]
    %v726 = vld [vmem:[#allocation5 + $0x6cc] sm:$0xf]
    %v727 = vld [vmem:[#allocation5 + $0x6d0] sm:$0xf]
    %v728 = vld [vmem:[#allocation5 + $0x6d4] sm:$0xf]
    %v729 = vld [vmem:[#allocation5 + $0x6d8] sm:$0xf]
    %v730 = vld [vmem:[#allocation5 + $0x6dc] sm:$0xf]
    %v731 = vld [vmem:[#allocation5 + $0x6e0] sm:$0xf]
    %v732 = vld [vmem:[#allocation5 + $0x6e4] sm:$0xf]
    %v733 = vld [vmem:[#allocation5 + $0x6e8] sm:$0xf]
    %v734 = vld [vmem:[#allocation5 + $0x6ec] sm:$0xf]
    %v735 = vld [vmem:[#allocation5 + $0x6f0] sm:$0xf]
    %v736 = vld [vmem:[#allocation5 + $0x6f4] sm:$0xf]
    %v737 = vld [vmem:[#allocation5 + $0x6f8] sm:$0xf]
    %v738 = vld [vmem:[#allocation5 + $0x6fc] sm:$0xf]
    %v739 = vld [vmem:[#allocation5 + $0x700] sm:$0xf]
    %v740 = vld [vmem:[#allocation5 + $0x704] sm:$0xf]
    %v741 = vld [vmem:[#allocation5 + $0x708] sm:$0xf]
    %v742 = vld [vmem:[#allocation5 + $0x70c] sm:$0xf]
    %v743 = vld [vmem:[#allocation5 + $0x710] sm:$0xf]
    %v744 = vld [vmem:[#allocation5 + $0x714] sm:$0xf]
    %v745 = vld [vmem:[#allocation5 + $0x718] sm:$0xf]
    %v746 = vld [vmem:[#allocation5 + $0x71c] sm:$0xf]
    %v747 = vld [vmem:[#allocation5 + $0x720] sm:$0xf]
    %v748 = vld [vmem:[#allocation5 + $0x724] sm:$0xf]
    %v749 = vld [vmem:[#allocation5 + $0x728] sm:$0xf]
    %v750 = vld [vmem:[#allocation5 + $0x72c] sm:$0xf]
    %v751 = vld [vmem:[#allocation5 + $0x730] sm:$0xf]
    %v752 = vld [vmem:[#allocation5 + $0x734] sm:$0xf]
    %v753 = vld [vmem:[#allocation5 + $0x738] sm:$0xf]
    %v754 = vld [vmem:[#allocation5 + $0x73c] sm:$0xf]
    %v755 = vld [vmem:[#allocation5 + $0x740] sm:$0xf]
    %v756 = vld [vmem:[#allocation5 + $0x744] sm:$0xf]
    %v757 = vld [vmem:[#allocation5 + $0x748] sm:$0xf]
    %v758 = vld [vmem:[#allocation5 + $0x74c] sm:$0xf]
    %v759 = vld [vmem:[#allocation5 + $0x750] sm:$0xf]
    %v760 = vld [vmem:[#allocation5 + $0x754] sm:$0xf]
    %v761 = vld [vmem:[#allocation5 + $0x758] sm:$0xf]
    %v762 = vld [vmem:[#allocation5 + $0x75c] sm:$0xf]
    %v763 = vld [vmem:[#allocation5 + $0x760] sm:$0xf]
    %v764 = vld [vmem:[#allocation5 + $0x764] sm:$0xf]
    %v765 = vld [vmem:[#allocation5 + $0x768] sm:$0xf]
    %v766 = vld [vmem:[#allocation5 + $0x76c] sm:$0xf]
    %v767 = vld [vmem:[#allocation5 + $0x770] sm:$0xf]
    %v768 = vld [vmem:[#allocation5 + $0x774] sm:$0xf]
    %v769 = vld [vmem:[#allocation5 + $0x778] sm:$0xf]
    %v770 = vld [vmem:[#allocation5 + $0x77c] sm:$0xf]
    %v771 = vld [vmem:[#allocation5 + $0x780] sm:$0xf]
    %v772 = vld [vmem:[#allocation5 + $0x784] sm:$0xf]
    %v773 = vld [vmem:[#allocation5 + $0x788] sm:$0xf]
    %v774 = vld [vmem:[#allocation5 + $0x78c] sm:$0xf]
    %v775 = vld [vmem:[#allocation5 + $0x790] sm:$0xf]
    %v776 = vld [vmem:[#allocation5 + $0x794] sm:$0xf]
    %v777 = vld [vmem:[#allocation5 + $0x798] sm:$0xf]
    %v778 = vld [vmem:[#allocation5 + $0x79c] sm:$0xf]
    %v779 = vld [vmem:[#allocation5 + $0x7a0] sm:$0xf]
    %v780 = vld [vmem:[#allocation5 + $0x7a4] sm:$0xf]
    %v781 = vld [vmem:[#allocation5 + $0x7a8] sm:$0xf]
    %v782 = vld [vmem:[#allocation5 + $0x7ac] sm:$0xf]
    %v783 = vld [vmem:[#allocation5 + $0x7b0] sm:$0xf]
    %v784 = vld [vmem:[#allocation5 + $0x7b4] sm:$0xf]
    %v785 = vld [vmem:[#allocation5 + $0x7b8] sm:$0xf]
    %v786 = vld [vmem:[#allocation5 + $0x7bc] sm:$0xf]
    %v787 = vld [vmem:[#allocation5 + $0x7c0] sm:$0xf]
    %v788 = vld [vmem:[#allocation5 + $0x7c4] sm:$0xf]
    %v789 = vld [vmem:[#allocation5 + $0x7c8] sm:$0xf]
    %v790 = vld [vmem:[#allocation5 + $0x7cc] sm:$0xf]
    %v791 = vld [vmem:[#allocation5 + $0x7d0] sm:$0xf]
    %v792 = vld [vmem:[#allocation5 + $0x7d4] sm:$0xf]
    %v793 = vld [vmem:[#allocation5 + $0x7d8] sm:$0xf]
    %v794 = vld [vmem:[#allocation5 + $0x7dc] sm:$0xf]
    %v795 = vld [vmem:[#allocation5 + $0x7e0] sm:$0xf]
    %v796 = vld [vmem:[#allocation5 + $0x7e4] sm:$0xf]
    %v797 = vld [vmem:[#allocation5 + $0x7e8] sm:$0xf]
    %v798 = vld [vmem:[#allocation5 + $0x7ec] sm:$0xf]
    %v799 = vld [vmem:[#allocation5 + $0x7f0] sm:$0xf]
    %v800 = vld [vmem:[#allocation5 + $0x7f4] sm:$0xf]
    %v801 = vld [vmem:[#allocation5 + $0x7f8] sm:$0xf]
    %v802 = vld [vmem:[#allocation5 + $0x7fc] sm:$0xf]
    %v803 = vld [vmem:[#allocation5 + $0x800] sm:$0xf]
    %v804 = vld [vmem:[#allocation5 + $0x804] sm:$0xf]
    %v805 = vld [vmem:[#allocation5 + $0x808] sm:$0xf]
    %v806 = vld [vmem:[#allocation5 + $0x80c] sm:$0xf]
    %v807 = vld [vmem:[#allocation5 + $0x810] sm:$0xf]
    %v808 = vld [vmem:[#allocation5 + $0x814] sm:$0xf]
    %v809 = vld [vmem:[#allocation5 + $0x818] sm:$0xf]
    %v810 = vld [vmem:[#allocation5 + $0x81c] sm:$0xf]
    %v811 = vld [vmem:[#allocation5 + $0x820] sm:$0xf]
    %v812 = vld [vmem:[#allocation5 + $0x824] sm:$0xf]
    %v813 = vld [vmem:[#allocation5 + $0x828] sm:$0xf]
    %v814 = vld [vmem:[#allocation5 + $0x82c] sm:$0xf]
    %v815 = vld [vmem:[#allocation5 + $0x830] sm:$0xf]
    %v816 = vld [vmem:[#allocation5 + $0x834] sm:$0xf]
    %v817 = vld [vmem:[#allocation5 + $0x838] sm:$0xf]
    %v818 = vld [vmem:[#allocation5 + $0x83c] sm:$0xf]
    %v819 = vld [vmem:[#allocation5 + $0x840] sm:$0xf]
    %v820 = vld [vmem:[#allocation5 + $0x844] sm:$0xf]
    %v821 = vld [vmem:[#allocation5 + $0x848] sm:$0xf]
    %v822 = vld [vmem:[#allocation5 + $0x84c] sm:$0xf]
    %v823 = vld [vmem:[#allocation5 + $0x850] sm:$0xf]
    %v824 = vld [vmem:[#allocation5 + $0x854] sm:$0xf]
    %v825 = vld [vmem:[#allocation5 + $0x858] sm:$0xf]
    %v826 = vld [vmem:[#allocation5 + $0x85c] sm:$0xf]
    %v827 = vld [vmem:[#allocation5 + $0x860] sm:$0xf]
    %v828 = vld [vmem:[#allocation5 + $0x864] sm:$0xf]
    %v829 = vld [vmem:[#allocation5 + $0x868] sm:$0xf]
    %v830 = vld [vmem:[#allocation5 + $0x86c] sm:$0xf]
    %v831 = vld [vmem:[#allocation5 + $0x870] sm:$0xf]
    %v832 = vld [vmem:[#allocation5 + $0x874] sm:$0xf]
    %v833 = vld [vmem:[#allocation5 + $0x878] sm:$0xf]
    %v834 = vld [vmem:[#allocation5 + $0x87c] sm:$0xf]
    %v835 = vld [vmem:[#allocation5 + $0x880] sm:$0xf]
    %v836 = vld [vmem:[#allocation5 + $0x884] sm:$0xf]
    %v837 = vld [vmem:[#allocation5 + $0x888] sm:$0xf]
    %v838 = vld [vmem:[#allocation5 + $0x88c] sm:$0xf]
    %v839 = vld [vmem:[#allocation5 + $0x890] sm:$0xf]
    %v840 = vld [vmem:[#allocation5 + $0x894] sm:$0xf]
    %v841 = vld [vmem:[#allocation5 + $0x898] sm:$0xf]
    %v842 = vld [vmem:[#allocation5 + $0x89c] sm:$0xf]
    %v843 = vld [vmem:[#allocation5 + $0x8a0] sm:$0xf]
    %v844 = vld [vmem:[#allocation5 + $0x8a4] sm:$0xf]
    %v845 = vld [vmem:[#allocation5 + $0x8a8] sm:$0xf]
    %v846 = vld [vmem:[#allocation5 + $0x8ac] sm:$0xf]
    %v847 = vld [vmem:[#allocation5 + $0x8b0] sm:$0xf]
    %v848 = vld [vmem:[#allocation5 + $0x8b4] sm:$0xf]
    %v849 = vld [vmem:[#allocation5 + $0x8b8] sm:$0xf]
    %v850 = vld [vmem:[#allocation5 + $0x8bc] sm:$0xf]
    %v851 = vld [vmem:[#allocation5 + $0x8c0] sm:$0xf]
    %v852 = vld [vmem:[#allocation5 + $0x8c4] sm:$0xf]
    %v853 = vld [vmem:[#allocation5 + $0x8c8] sm:$0xf]
    %v854 = vld [vmem:[#allocation5 + $0x8cc] sm:$0xf]
    %v855 = vld [vmem:[#allocation5 + $0x8d0] sm:$0xf]
    %v856 = vld [vmem:[#allocation5 + $0x8d4] sm:$0xf]
    %v857 = vld [vmem:[#allocation5 + $0x8d8] sm:$0xf]
    %v858 = vld [vmem:[#allocation5 + $0x8dc] sm:$0xf]
    %v859 = vld [vmem:[#allocation5 + $0x8e0] sm:$0xf]
    %v860 = vld [vmem:[#allocation5 + $0x8e4] sm:$0xf]
    %v861 = vld [vmem:[#allocation5 + $0x8e8] sm:$0xf]
    %v862 = vld [vmem:[#allocation5 + $0x8ec] sm:$0xf]
    %v863 = vld [vmem:[#allocation5 + $0x8f0] sm:$0xf]
    %v864 = vld [vmem:[#allocation5 + $0x8f4] sm:$0xf]
    %v865 = vld [vmem:[#allocation5 + $0x8f8] sm:$0xf]
    %v866 = vld [vmem:[#allocation5 + $0x8fc] sm:$0xf]
    %v867 = vld [vmem:[#allocation5 + $0x900] sm:$0xf]
    %v868 = vld [vmem:[#allocation5 + $0x904] sm:$0xf]
    %v869 = vld [vmem:[#allocation5 + $0x908] sm:$0xf]
    %v870 = vld [vmem:[#allocation5 + $0x90c] sm:$0xf]
    %v871 = vld [vmem:[#allocation5 + $0x910] sm:$0xf]
    %v872 = vld [vmem:[#allocation5 + $0x914] sm:$0xf]
    %v873 = vld [vmem:[#allocation5 + $0x918] sm:$0xf]
    %v874 = vld [vmem:[#allocation5 + $0x91c] sm:$0xf]
    %v875 = vld [vmem:[#allocation5 + $0x920] sm:$0xf]
    %v876 = vld [vmem:[#allocation5 + $0x924] sm:$0xf]
    %v877 = vld [vmem:[#allocation5 + $0x928] sm:$0xf]
    %v878 = vld [vmem:[#allocation5 + $0x92c] sm:$0xf]
    %v879 = vld [vmem:[#allocation5 + $0x930] sm:$0xf]
    %v880 = vld [vmem:[#allocation5 + $0x934] sm:$0xf]
    %v881 = vld [vmem:[#allocation5 + $0x938] sm:$0xf]
    %v882 = vld [vmem:[#allocation5 + $0x93c] sm:$0xf]
    %v883 = vld [vmem:[#allocation5 + $0x940] sm:$0xf]
    %v884 = vld [vmem:[#allocation5 + $0x944] sm:$0xf]
    %v885 = vld [vmem:[#allocation5 + $0x948] sm:$0xf]
    %v886 = vld [vmem:[#allocation5 + $0x94c] sm:$0xf]
    %v887 = vld [vmem:[#allocation5 + $0x950] sm:$0xf]
    %v888 = vld [vmem:[#allocation5 + $0x954] sm:$0xf]
    %v889 = vld [vmem:[#allocation5 + $0x958] sm:$0xf]
    %v890 = vld [vmem:[#allocation5 + $0x95c] sm:$0xf]
    %v891 = vld [vmem:[#allocation5 + $0x960] sm:$0xf]
    %v892 = vld [vmem:[#allocation5 + $0x964] sm:$0xf]
    %v893 = vld [vmem:[#allocation5 + $0x968] sm:$0xf]
    %v894 = vld [vmem:[#allocation5 + $0x96c] sm:$0xf]
    %v895 = vld [vmem:[#allocation5 + $0x970] sm:$0xf]
    %v896 = vld [vmem:[#allocation5 + $0x974] sm:$0xf]
    %v897 = vld [vmem:[#allocation5 + $0x978] sm:$0xf]
    %v898 = vld [vmem:[#allocation5 + $0x97c] sm:$0xf]
    %v899 = vld [vmem:[#allocation5 + $0x980] sm:$0xf]
    %v900 = vld [vmem:[#allocation5 + $0x984] sm:$0xf]
    %v901 = vld [vmem:[#allocation5 + $0x988] sm:$0xf]
    %v902 = vld [vmem:[#allocation5 + $0x98c] sm:$0xf]
    %v903 = vld [vmem:[#allocation5 + $0x990] sm:$0xf]
    %v904 = vld [vmem:[#allocation5 + $0x994] sm:$0xf]
    %v905 = vld [vmem:[#allocation5 + $0x998] sm:$0xf]
    %v906 = vld [vmem:[#allocation5 + $0x99c] sm:$0xf]
    %v907 = vld [vmem:[#allocation5 + $0x9a0] sm:$0xf]
    %v908 = vld [vmem:[#allocation5 + $0x9a4] sm:$0xf]
    %v909 = vld [vmem:[#allocation5 + $0x9a8] sm:$0xf]
    %v910 = vld [vmem:[#allocation5 + $0x9ac] sm:$0xf]
    %v911 = vld [vmem:[#allocation5 + $0x9b0] sm:$0xf]
    %v912 = vld [vmem:[#allocation5 + $0x9b4] sm:$0xf]
    %v913 = vld [vmem:[#allocation5 + $0x9b8] sm:$0xf]
    %v914 = vld [vmem:[#allocation5 + $0x9bc] sm:$0xf]
    %v915 = vld [vmem:[#allocation5 + $0x9c0] sm:$0xf]
    %v916 = vld [vmem:[#allocation5 + $0x9c4] sm:$0xf]
    %v917 = vld [vmem:[#allocation5 + $0x9c8] sm:$0xf]
    %v918 = vld [vmem:[#allocation5 + $0x9cc] sm:$0xf]
    %v919 = vld [vmem:[#allocation5 + $0x9d0] sm:$0xf]
    %v920 = vld [vmem:[#allocation5 + $0x9d4] sm:$0xf]
    %v921 = vld [vmem:[#allocation5 + $0x9d8] sm:$0xf]
    %v922 = vld [vmem:[#allocation5 + $0x9dc] sm:$0xf]
    %v923 = vld [vmem:[#allocation5 + $0x9e0] sm:$0xf]
    %v924 = vld [vmem:[#allocation5 + $0x9e4] sm:$0xf]
    %v925 = vld [vmem:[#allocation5 + $0x9e8] sm:$0xf]
    %v926 = vld [vmem:[#allocation5 + $0x9ec] sm:$0xf]
    %v927 = vld [vmem:[#allocation5 + $0x9f0] sm:$0xf]
    %v928 = vld [vmem:[#allocation5 + $0x9f4] sm:$0xf]
    %v929 = vld [vmem:[#allocation5 + $0x9f8] sm:$0xf]
    %v930 = vld [vmem:[#allocation5 + $0x9fc] sm:$0xf]
    %v931 = vld [vmem:[#allocation5 + $0xa00] sm:$0xf]
    %v932 = vld [vmem:[#allocation5 + $0xa04] sm:$0xf]
    %v933 = vld [vmem:[#allocation5 + $0xa08] sm:$0xf]
    %v934 = vld [vmem:[#allocation5 + $0xa0c] sm:$0xf]
    %v935 = vld [vmem:[#allocation5 + $0xa10] sm:$0xf]
    %v936 = vld [vmem:[#allocation5 + $0xa14] sm:$0xf]
    %v937 = vld [vmem:[#allocation5 + $0xa18] sm:$0xf]
    %v938 = vld [vmem:[#allocation5 + $0xa1c] sm:$0xf]
    %v939 = vld [vmem:[#allocation5 + $0xa20] sm:$0xf]
    %v940 = vld [vmem:[#allocation5 + $0xa24] sm:$0xf]
    %v941 = vld [vmem:[#allocation5 + $0xa28] sm:$0xf]
    %v942 = vld [vmem:[#allocation5 + $0xa2c] sm:$0xf]
    %v943 = vld [vmem:[#allocation5 + $0xa30] sm:$0xf]
    %v944 = vld [vmem:[#allocation5 + $0xa34] sm:$0xf]
    %v945 = vld [vmem:[#allocation5 + $0xa38] sm:$0xf]
    %v946 = vld [vmem:[#allocation5 + $0xa3c] sm:$0xf]
    %v947 = vld [vmem:[#allocation5 + $0xa40] sm:$0xf]
    %v948 = vld [vmem:[#allocation5 + $0xa44] sm:$0xf]
    %v949 = vld [vmem:[#allocation5 + $0xa48] sm:$0xf]
    %v950 = vld [vmem:[#allocation5 + $0xa4c] sm:$0xf]
    %v951 = vld [vmem:[#allocation5 + $0xa50] sm:$0xf]
    %v952 = vld [vmem:[#allocation5 + $0xa54] sm:$0xf]
    %v953 = vld [vmem:[#allocation5 + $0xa58] sm:$0xf]
    %v954 = vld [vmem:[#allocation5 + $0xa5c] sm:$0xf]
    %v955 = vld [vmem:[#allocation5 + $0xa60] sm:$0xf]
    %v956 = vld [vmem:[#allocation5 + $0xa64] sm:$0xf]
    %v957 = vld [vmem:[#allocation5 + $0xa68] sm:$0xf]
    %v958 = vld [vmem:[#allocation5 + $0xa6c] sm:$0xf]
    %v959 = vld [vmem:[#allocation5 + $0xa70] sm:$0xf]
    %v960 = vld [vmem:[#allocation5 + $0xa74] sm:$0xf]
    %v961 = vld [vmem:[#allocation5 + $0xa78] sm:$0xf]
    %v962 = vld [vmem:[#allocation5 + $0xa7c] sm:$0xf]
    %v963 = vld [vmem:[#allocation5 + $0xa80] sm:$0xf]
    %v964 = vld [vmem:[#allocation5 + $0xa84] sm:$0xf]
    %v965 = vld [vmem:[#allocation5 + $0xa88] sm:$0xf]
    %v966 = vld [vmem:[#allocation5 + $0xa8c] sm:$0xf]
    %v967 = vld [vmem:[#allocation5 + $0xa90] sm:$0xf]
    %v968 = vld [vmem:[#allocation5 + $0xa94] sm:$0xf]
    %v969 = vld [vmem:[#allocation5 + $0xa98] sm:$0xf]
    %v970 = vld [vmem:[#allocation5 + $0xa9c] sm:$0xf]
    %v971 = vld [vmem:[#allocation5 + $0xaa0] sm:$0xf]
    %v972 = vld [vmem:[#allocation5 + $0xaa4] sm:$0xf]
    %v973 = vld [vmem:[#allocation5 + $0xaa8] sm:$0xf]
    %v974 = vld [vmem:[#allocation5 + $0xaac] sm:$0xf]
    %v975 = vld [vmem:[#allocation5 + $0xab0] sm:$0xf]
    %v976 = vld [vmem:[#allocation5 + $0xab4] sm:$0xf]
    %v977 = vld [vmem:[#allocation5 + $0xab8] sm:$0xf]
    %v978 = vld [vmem:[#allocation5 + $0xabc] sm:$0xf]
    %v979 = vld [vmem:[#allocation5 + $0xac0] sm:$0xf]
    %v980 = vld [vmem:[#allocation5 + $0xac4] sm:$0xf]
    %v981 = vld [vmem:[#allocation5 + $0xac8] sm:$0xf]
    %v982 = vld [vmem:[#allocation5 + $0xacc] sm:$0xf]
    %v983 = vld [vmem:[#allocation5 + $0xad0] sm:$0xf]
    %v984 = vld [vmem:[#allocation5 + $0xad4] sm:$0xf]
    %v985 = vld [vmem:[#allocation5 + $0xad8] sm:$0xf]
    %v986 = vld [vmem:[#allocation5 + $0xadc] sm:$0xf]
    %v987 = vld [vmem:[#allocation5 + $0xae0] sm:$0xf]
    %v988 = vld [vmem:[#allocation5 + $0xae4] sm:$0xf]
    %v989 = vld [vmem:[#allocation5 + $0xae8] sm:$0xf]
    %v990 = vld [vmem:[#allocation5 + $0xaec] sm:$0xf]
    %v991 = vld [vmem:[#allocation5 + $0xaf0] sm:$0xf]
    %v992 = vld [vmem:[#allocation5 + $0xaf4] sm:$0xf]
    %v993 = vld [vmem:[#allocation5 + $0xaf8] sm:$0xf]
    %v994 = vld [vmem:[#allocation5 + $0xafc] sm:$0xf]
    %v995 = vld [vmem:[#allocation5 + $0xb00] sm:$0xf]
    %v996 = vld [vmem:[#allocation5 + $0xb04] sm:$0xf]
    %v997 = vld [vmem:[#allocation5 + $0xb08] sm:$0xf]
    %v998 = vld [vmem:[#allocation5 + $0xb0c] sm:$0xf]
    %v999 = vld [vmem:[#allocation5 + $0xb10] sm:$0xf]
    %v1000 = vld [vmem:[#allocation5 + $0xb14] sm:$0xf]
    %v1001 = vld [vmem:[#allocation5 + $0xb18] sm:$0xf]
    %v1002 = vld [vmem:[#allocation5 + $0xb1c] sm:$0xf]
    %v1003 = vld [vmem:[#allocation5 + $0xb20] sm:$0xf]
    %v1004 = vld [vmem:[#allocation5 + $0xb24] sm:$0xf]
    %v1005 = vld [vmem:[#allocation5 + $0xb28] sm:$0xf]
    %v1006 = vld [vmem:[#allocation5 + $0xb2c] sm:$0xf]
    %v1007 = vld [vmem:[#allocation5 + $0xb30] sm:$0xf]
    %v1008 = vld [vmem:[#allocation5 + $0xb34] sm:$0xf]
    %v1009 = vld [vmem:[#allocation5 + $0xb38] sm:$0xf]
    %v1010 = vld [vmem:[#allocation5 + $0xb3c] sm:$0xf]
    %v1011 = vld [vmem:[#allocation5 + $0xb40] sm:$0xf]
    %v1012 = vld [vmem:[#allocation5 + $0xb44] sm:$0xf]
    %v1013 = vld [vmem:[#allocation5 + $0xb48] sm:$0xf]
    %v1014 = vld [vmem:[#allocation5 + $0xb4c] sm:$0xf]
    %v1015 = vld [vmem:[#allocation5 + $0xb50] sm:$0xf]
    %v1016 = vld [vmem:[#allocation5 + $0xb54] sm:$0xf]
    %v1017 = vld [vmem:[#allocation5 + $0xb58] sm:$0xf]
    %v1018 = vld [vmem:[#allocation5 + $0xb5c] sm:$0xf]
    %v1019 = vld [vmem:[#allocation5 + $0xb60] sm:$0xf]
    %v1020 = vld [vmem:[#allocation5 + $0xb64] sm:$0xf]
    %v1021 = vld [vmem:[#allocation5 + $0xb68] sm:$0xf]
    %v1022 = vld [vmem:[#allocation5 + $0xb6c] sm:$0xf]
    %v1023 = vld [vmem:[#allocation5 + $0xb70] sm:$0xf]
    %v1024 = vld [vmem:[#allocation5 + $0xb74] sm:$0xf]
    %v1025 = vld [vmem:[#allocation5 + $0xb78] sm:$0xf]
    %v1026 = vld [vmem:[#allocation5 + $0xb7c] sm:$0xf]
    %v1027 = vld [vmem:[#allocation5 + $0xb80] sm:$0xf]
    %v1028 = vld [vmem:[#allocation5 + $0xb84] sm:$0xf]
    %v1029 = vld [vmem:[#allocation5 + $0xb88] sm:$0xf]
    %v1030 = vld [vmem:[#allocation5 + $0xb8c] sm:$0xf]
    %v1031 = vld [vmem:[#allocation5 + $0xb90] sm:$0xf]
    %v1032 = vld [vmem:[#allocation5 + $0xb94] sm:$0xf]
    %v1033 = vld [vmem:[#allocation5 + $0xb98] sm:$0xf]
    %v1034 = vld [vmem:[#allocation5 + $0xb9c] sm:$0xf]
    %v1035 = vld [vmem:[#allocation5 + $0xba0] sm:$0xf]
    %v1036 = vld [vmem:[#allocation5 + $0xba4] sm:$0xf]
    %v1037 = vld [vmem:[#allocation5 + $0xba8] sm:$0xf]
    %v1038 = vld [vmem:[#allocation5 + $0xbac] sm:$0xf]
    %v1039 = vld [vmem:[#allocation5 + $0xbb0] sm:$0xf]
    %v1040 = vld [vmem:[#allocation5 + $0xbb4] sm:$0xf]
    %v1041 = vld [vmem:[#allocation5 + $0xbb8] sm:$0xf]
    %v1042 = vld [vmem:[#allocation5 + $0xbbc] sm:$0xf]
    %v1043 = vld [vmem:[#allocation5 + $0xbc0] sm:$0xf]
    %v1044 = vld [vmem:[#allocation5 + $0xbc4] sm:$0xf]
    %v1045 = vld [vmem:[#allocation5 + $0xbc8] sm:$0xf]
    %v1046 = vld [vmem:[#allocation5 + $0xbcc] sm:$0xf]
    %v1047 = vld [vmem:[#allocation5 + $0xbd0] sm:$0xf]
    %v1048 = vld [vmem:[#allocation5 + $0xbd4] sm:$0xf]
    %v1049 = vld [vmem:[#allocation5 + $0xbd8] sm:$0xf]
    %v1050 = vld [vmem:[#allocation5 + $0xbdc] sm:$0xf]
    %v1051 = vld [vmem:[#allocation5 + $0xbe0] sm:$0xf]
    %v1052 = vld [vmem:[#allocation5 + $0xbe4] sm:$0xf]
    %v1053 = vld [vmem:[#allocation5 + $0xbe8] sm:$0xf]
    %v1054 = vld [vmem:[#allocation5 + $0xbec] sm:$0xf]
    %v1055 = vld [vmem:[#allocation5 + $0xbf0] sm:$0xf]
    %v1056 = vld [vmem:[#allocation5 + $0xbf4] sm:$0xf]
    %v1057 = vld [vmem:[#allocation5 + $0xbf8] sm:$0xf]
    %v1058 = vld [vmem:[#allocation5 + $0xbfc] sm:$0xf]
    %v1059 = vld [vmem:[#allocation5 + $0xc00] sm:$0xf]
    %v1060 = vld [vmem:[#allocation5 + $0xc04] sm:$0xf]
    %v1061 = vld [vmem:[#allocation5 + $0xc08] sm:$0xf]
    %v1062 = vld [vmem:[#allocation5 + $0xc0c] sm:$0xf]
    %v1063 = vld [vmem:[#allocation5 + $0xc10] sm:$0xf]
    %v1064 = vld [vmem:[#allocation5 + $0xc14] sm:$0xf]
    %v1065 = vld [vmem:[#allocation5 + $0xc18] sm:$0xf]
    %v1066 = vld [vmem:[#allocation5 + $0xc1c] sm:$0xf]
    %v1067 = vld [vmem:[#allocation5 + $0xc20] sm:$0xf]
    %v1068 = vld [vmem:[#allocation5 + $0xc24] sm:$0xf]
    %v1069 = vld [vmem:[#allocation5 + $0xc28] sm:$0xf]
    %v1070 = vld [vmem:[#allocation5 + $0xc2c] sm:$0xf]
    %v1071 = vld [vmem:[#allocation5 + $0xc30] sm:$0xf]
    %v1072 = vld [vmem:[#allocation5 + $0xc34] sm:$0xf]
    %v1073 = vld [vmem:[#allocation5 + $0xc38] sm:$0xf]
    %v1074 = vld [vmem:[#allocation5 + $0xc3c] sm:$0xf]
    %v1075 = vld [vmem:[#allocation5 + $0xc40] sm:$0xf]
    %v1076 = vld [vmem:[#allocation5 + $0xc44] sm:$0xf]
    %v1077 = vld [vmem:[#allocation5 + $0xc48] sm:$0xf]
    %v1078 = vld [vmem:[#allocation5 + $0xc4c] sm:$0xf]
    %v1079 = vld [vmem:[#allocation5 + $0xc50] sm:$0xf]
    %v1080 = vld [vmem:[#allocation5 + $0xc54] sm:$0xf]
    %v1081 = vld [vmem:[#allocation5 + $0xc58] sm:$0xf]
    %v1082 = vld [vmem:[#allocation5 + $0xc5c] sm:$0xf]
    %v1083 = vld [vmem:[#allocation5 + $0xc60] sm:$0xf]
    %v1084 = vld [vmem:[#allocation5 + $0xc64] sm:$0xf]
    %v1085 = vld [vmem:[#allocation5 + $0xc68] sm:$0xf]
    %v1086 = vld [vmem:[#allocation5 + $0xc6c] sm:$0xf]
    %v1087 = vld [vmem:[#allocation5 + $0xc70] sm:$0xf]
    %v1088 = vld [vmem:[#allocation5 + $0xc74] sm:$0xf]
    %v1089 = vld [vmem:[#allocation5 + $0xc78] sm:$0xf]
    %v1090 = vld [vmem:[#allocation5 + $0xc7c] sm:$0xf]
    %v1091 = vld [vmem:[#allocation5 + $0xc80] sm:$0xf]
    %v1092 = vld [vmem:[#allocation5 + $0xc84] sm:$0xf]
    %v1093 = vld [vmem:[#allocation5 + $0xc88] sm:$0xf]
    %v1094 = vld [vmem:[#allocation5 + $0xc8c] sm:$0xf]
    %v1095 = vld [vmem:[#allocation5 + $0xc90] sm:$0xf]
    %v1096 = vld [vmem:[#allocation5 + $0xc94] sm:$0xf]
    %v1097 = vld [vmem:[#allocation5 + $0xc98] sm:$0xf]
    %v1098 = vld [vmem:[#allocation5 + $0xc9c] sm:$0xf]
    %v1099 = vld [vmem:[#allocation5 + $0xca0] sm:$0xf]
    %v1100 = vld [vmem:[#allocation5 + $0xca4] sm:$0xf]
    %v1101 = vld [vmem:[#allocation5 + $0xca8] sm:$0xf]
    %v1102 = vld [vmem:[#allocation5 + $0xcac] sm:$0xf]
    %v1103 = vld [vmem:[#allocation5 + $0xcb0] sm:$0xf]
    %v1104 = vld [vmem:[#allocation5 + $0xcb4] sm:$0xf]
    %v1105 = vld [vmem:[#allocation5 + $0xcb8] sm:$0xf]
    %v1106 = vld [vmem:[#allocation5 + $0xcbc] sm:$0xf]
    %v1107 = vld [vmem:[#allocation5 + $0xcc0] sm:$0xf]
    %v1108 = vld [vmem:[#allocation5 + $0xcc4] sm:$0xf]
    %v1109 = vld [vmem:[#allocation5 + $0xcc8] sm:$0xf]
    %v1110 = vld [vmem:[#allocation5 + $0xccc] sm:$0xf]
    %v1111 = vld [vmem:[#allocation5 + $0xcd0] sm:$0xf]
    %v1112 = vld [vmem:[#allocation5 + $0xcd4] sm:$0xf]
    %v1113 = vld [vmem:[#allocation5 + $0xcd8] sm:$0xf]
    %v1114 = vld [vmem:[#allocation5 + $0xcdc] sm:$0xf]
    %v1115 = vld [vmem:[#allocation5 + $0xce0] sm:$0xf]
    %v1116 = vld [vmem:[#allocation5 + $0xce4] sm:$0xf]
    %v1117 = vld [vmem:[#allocation5 + $0xce8] sm:$0xf]
    %v1118 = vld [vmem:[#allocation5 + $0xcec] sm:$0xf]
    %v1119 = vld [vmem:[#allocation5 + $0xcf0] sm:$0xf]
    %v1120 = vld [vmem:[#allocation5 + $0xcf4] sm:$0xf]
    %v1121 = vld [vmem:[#allocation5 + $0xcf8] sm:$0xf]
    %v1122 = vld [vmem:[#allocation5 + $0xcfc] sm:$0xf]
    %v1123 = vld [vmem:[#allocation5 + $0xd00] sm:$0xf]
    %v1124 = vld [vmem:[#allocation5 + $0xd04] sm:$0xf]
    %v1125 = vld [vmem:[#allocation5 + $0xd08] sm:$0xf]
    %v1126 = vld [vmem:[#allocation5 + $0xd0c] sm:$0xf]
    %v1127 = vld [vmem:[#allocation5 + $0xd10] sm:$0xf]
    %v1128 = vld [vmem:[#allocation5 + $0xd14] sm:$0xf]
    %v1129 = vld [vmem:[#allocation5 + $0xd18] sm:$0xf]
    %v1130 = vld [vmem:[#allocation5 + $0xd1c] sm:$0xf]
    %v1131 = vld [vmem:[#allocation5 + $0xd20] sm:$0xf]
    %v1132 = vld [vmem:[#allocation5 + $0xd24] sm:$0xf]
    %v1133 = vld [vmem:[#allocation5 + $0xd28] sm:$0xf]
    %v1134 = vld [vmem:[#allocation5 + $0xd2c] sm:$0xf]
    %v1135 = vld [vmem:[#allocation5 + $0xd30] sm:$0xf]
    %v1136 = vld [vmem:[#allocation5 + $0xd34] sm:$0xf]
    %v1137 = vld [vmem:[#allocation5 + $0xd38] sm:$0xf]
    %v1138 = vld [vmem:[#allocation5 + $0xd3c] sm:$0xf]
    %v1139 = vld [vmem:[#allocation5 + $0xd40] sm:$0xf]
    %v1140 = vld [vmem:[#allocation5 + $0xd44] sm:$0xf]
    %v1141 = vld [vmem:[#allocation5 + $0xd48] sm:$0xf]
    %v1142 = vld [vmem:[#allocation5 + $0xd4c] sm:$0xf]
    %v1143 = vld [vmem:[#allocation5 + $0xd50] sm:$0xf]
    %v1144 = vld [vmem:[#allocation5 + $0xd54] sm:$0xf]
    %v1145 = vld [vmem:[#allocation5 + $0xd58] sm:$0xf]
    %v1146 = vld [vmem:[#allocation5 + $0xd5c] sm:$0xf]
    %v1147 = vld [vmem:[#allocation5 + $0xd60] sm:$0xf]
    %v1148 = vld [vmem:[#allocation5 + $0xd64] sm:$0xf]
    %v1149 = vld [vmem:[#allocation5 + $0xd68] sm:$0xf]
    %v1150 = vld [vmem:[#allocation5 + $0xd6c] sm:$0xf]
    %v1151 = vld [vmem:[#allocation5 + $0xd70] sm:$0xf]
    %v1152 = vld [vmem:[#allocation5 + $0xd74] sm:$0xf]
    %v1153 = vld [vmem:[#allocation5 + $0xd78] sm:$0xf]
    %v1154 = vld [vmem:[#allocation5 + $0xd7c] sm:$0xf]
    %v1155 = vld [vmem:[#allocation5 + $0xd80] sm:$0xf]
    %v1156 = vld [vmem:[#allocation5 + $0xd84] sm:$0xf]
    %v1157 = vld [vmem:[#allocation5 + $0xd88] sm:$0xf]
    %v1158 = vld [vmem:[#allocation5 + $0xd8c] sm:$0xf]
    %v1159 = vld [vmem:[#allocation5 + $0xd90] sm:$0xf]
    %v1160 = vld [vmem:[#allocation5 + $0xd94] sm:$0xf]
    %v1161 = vld [vmem:[#allocation5 + $0xd98] sm:$0xf]
    %v1162 = vld [vmem:[#allocation5 + $0xd9c] sm:$0xf]
    %v1163 = vld [vmem:[#allocation5 + $0xda0] sm:$0xf]
    %v1164 = vld [vmem:[#allocation5 + $0xda4] sm:$0xf]
    %v1165 = vld [vmem:[#allocation5 + $0xda8] sm:$0xf]
    %v1166 = vld [vmem:[#allocation5 + $0xdac] sm:$0xf]
    %v1167 = vld [vmem:[#allocation5 + $0xdb0] sm:$0xf]
    %v1168 = vld [vmem:[#allocation5 + $0xdb4] sm:$0xf]
    %v1169 = vld [vmem:[#allocation5 + $0xdb8] sm:$0xf]
    %v1170 = vld [vmem:[#allocation5 + $0xdbc] sm:$0xf]
    %v1171 = vld [vmem:[#allocation5 + $0xdc0] sm:$0xf]
    %v1172 = vld [vmem:[#allocation5 + $0xdc4] sm:$0xf]
    %v1173 = vld [vmem:[#allocation5 + $0xdc8] sm:$0xf]
    %v1174 = vld [vmem:[#allocation5 + $0xdcc] sm:$0xf]
    %v1175 = vld [vmem:[#allocation5 + $0xdd0] sm:$0xf]
    %v1176 = vld [vmem:[#allocation5 + $0xdd4] sm:$0xf]
    %v1177 = vld [vmem:[#allocation5 + $0xdd8] sm:$0xf]
    %v1178 = vld [vmem:[#allocation5 + $0xddc] sm:$0xf]
    %v1179 = vld [vmem:[#allocation5 + $0xde0] sm:$0xf]
    %v1180 = vld [vmem:[#allocation5 + $0xde4] sm:$0xf]
    %v1181 = vld [vmem:[#allocation5 + $0xde8] sm:$0xf]
    %v1182 = vld [vmem:[#allocation5 + $0xdec] sm:$0xf]
    %v1183 = vld [vmem:[#allocation5 + $0xdf0] sm:$0xf]
    %v1184 = vld [vmem:[#allocation5 + $0xdf4] sm:$0xf]
    %v1185 = vld [vmem:[#allocation5 + $0xdf8] sm:$0xf]
    %v1186 = vld [vmem:[#allocation5 + $0xdfc] sm:$0xf]
    %v1187 = vld [vmem:[#allocation5 + $0xe00] sm:$0xf]
    %v1188 = vld [vmem:[#allocation5 + $0xe04] sm:$0xf]
    %v1189 = vld [vmem:[#allocation5 + $0xe08] sm:$0xf]
    %v1190 = vld [vmem:[#allocation5 + $0xe0c] sm:$0xf]
    %v1191 = vld [vmem:[#allocation5 + $0xe10] sm:$0xf]
    %v1192 = vld [vmem:[#allocation5 + $0xe14] sm:$0xf]
    %v1193 = vld [vmem:[#allocation5 + $0xe18] sm:$0xf]
    %v1194 = vld [vmem:[#allocation5 + $0xe1c] sm:$0xf]
    %v1195 = vld [vmem:[#allocation5 + $0xe20] sm:$0xf]
    %v1196 = vld [vmem:[#allocation5 + $0xe24] sm:$0xf]
    %v1197 = vld [vmem:[#allocation5 + $0xe28] sm:$0xf]
    %v1198 = vld [vmem:[#allocation5 + $0xe2c] sm:$0xf]
    %v1199 = vld [vmem:[#allocation5 + $0xe30] sm:$0xf]
    %v1200 = vld [vmem:[#allocation5 + $0xe34] sm:$0xf]
    %v1201 = vld [vmem:[#allocation5 + $0xe38] sm:$0xf]
    %v1202 = vld [vmem:[#allocation5 + $0xe3c] sm:$0xf]
    %v1203 = vld [vmem:[#allocation5 + $0xe40] sm:$0xf]
    %v1204 = vld [vmem:[#allocation5 + $0xe44] sm:$0xf]
    %v1205 = vld [vmem:[#allocation5 + $0xe48] sm:$0xf]
    %v1206 = vld [vmem:[#allocation5 + $0xe4c] sm:$0xf]
    %v1207 = vld [vmem:[#allocation5 + $0xe50] sm:$0xf]
    %v1208 = vld [vmem:[#allocation5 + $0xe54] sm:$0xf]
    %v1209 = vld [vmem:[#allocation5 + $0xe58] sm:$0xf]
    %v1210 = vld [vmem:[#allocation5 + $0xe5c] sm:$0xf]
    %v1211 = vld [vmem:[#allocation5 + $0xe60] sm:$0xf]
    %v1212 = vld [vmem:[#allocation5 + $0xe64] sm:$0xf]
    %v1213 = vld [vmem:[#allocation5 + $0xe68] sm:$0xf]
    %v1214 = vld [vmem:[#allocation5 + $0xe6c] sm:$0xf]
    %v1215 = vld [vmem:[#allocation5 + $0xe70] sm:$0xf]
    %v1216 = vld [vmem:[#allocation5 + $0xe74] sm:$0xf]
    %v1217 = vld [vmem:[#allocation5 + $0xe78] sm:$0xf]
    %v1218 = vld [vmem:[#allocation5 + $0xe7c] sm:$0xf]
    %v1219 = vld [vmem:[#allocation5 + $0xe80] sm:$0xf]
    %v1220 = vld [vmem:[#allocation5 + $0xe84] sm:$0xf]
    %v1221 = vld [vmem:[#allocation5 + $0xe88] sm:$0xf]
    %v1222 = vld [vmem:[#allocation5 + $0xe8c] sm:$0xf]
    %v1223 = vld [vmem:[#allocation5 + $0xe90] sm:$0xf]
    %v1224 = vld [vmem:[#allocation5 + $0xe94] sm:$0xf]
    %v1225 = vld [vmem:[#allocation5 + $0xe98] sm:$0xf]
    %v1226 = vld [vmem:[#allocation5 + $0xe9c] sm:$0xf]
    %v1227 = vld [vmem:[#allocation5 + $0xea0] sm:$0xf]
    %v1228 = vld [vmem:[#allocation5 + $0xea4] sm:$0xf]
    %v1229 = vld [vmem:[#allocation5 + $0xea8] sm:$0xf]
    %v1230 = vld [vmem:[#allocation5 + $0xeac] sm:$0xf]
    %v1231 = vld [vmem:[#allocation5 + $0xeb0] sm:$0xf]
    %v1232 = vld [vmem:[#allocation5 + $0xeb4] sm:$0xf]
    %v1233 = vld [vmem:[#allocation5 + $0xeb8] sm:$0xf]
    %v1234 = vld [vmem:[#allocation5 + $0xebc] sm:$0xf]
    %v1235 = vld [vmem:[#allocation5 + $0xec0] sm:$0xf]
    %v1236 = vld [vmem:[#allocation5 + $0xec4] sm:$0xf]
    %v1237 = vld [vmem:[#allocation5 + $0xec8] sm:$0xf]
    %v1238 = vld [vmem:[#allocation5 + $0xecc] sm:$0xf]
    %v1239 = vld [vmem:[#allocation5 + $0xed0] sm:$0xf]
    %v1240 = vld [vmem:[#allocation5 + $0xed4] sm:$0xf]
    %v1241 = vld [vmem:[#allocation5 + $0xed8] sm:$0xf]
    %v1242 = vld [vmem:[#allocation5 + $0xedc] sm:$0xf]
    %v1243 = vld [vmem:[#allocation5 + $0xee0] sm:$0xf]
    %v1244 = vld [vmem:[#allocation5 + $0xee4] sm:$0xf]
    %v1245 = vld [vmem:[#allocation5 + $0xee8] sm:$0xf]
    %v1246 = vld [vmem:[#allocation5 + $0xeec] sm:$0xf]
    %v1247 = vld [vmem:[#allocation5 + $0xef0] sm:$0xf]
    %v1248 = vld [vmem:[#allocation5 + $0xef4] sm:$0xf]
    %v1249 = vld [vmem:[#allocation5 + $0xef8] sm:$0xf]
    %v1250 = vld [vmem:[#allocation5 + $0xefc] sm:$0xf]
    %v1251 = vld [vmem:[#allocation5 + $0xf00] sm:$0xf]
    %v1252 = vld [vmem:[#allocation5 + $0xf04] sm:$0xf]
    %v1253 = vld [vmem:[#allocation5 + $0xf08] sm:$0xf]
    %v1254 = vld [vmem:[#allocation5 + $0xf0c] sm:$0xf]
    %v1255 = vld [vmem:[#allocation5 + $0xf10] sm:$0xf]
    %v1256 = vld [vmem:[#allocation5 + $0xf14] sm:$0xf]
    %v1257 = vld [vmem:[#allocation5 + $0xf18] sm:$0xf]
    %v1258 = vld [vmem:[#allocation5 + $0xf1c] sm:$0xf]
    %v1259 = vld [vmem:[#allocation5 + $0xf20] sm:$0xf]
    %v1260 = vld [vmem:[#allocation5 + $0xf24] sm:$0xf]
    %v1261 = vld [vmem:[#allocation5 + $0xf28] sm:$0xf]
    %v1262 = vld [vmem:[#allocation5 + $0xf2c] sm:$0xf]
    %v1263 = vld [vmem:[#allocation5 + $0xf30] sm:$0xf]
    %v1264 = vld [vmem:[#allocation5 + $0xf34] sm:$0xf]
    %v1265 = vld [vmem:[#allocation5 + $0xf38] sm:$0xf]
    %v1266 = vld [vmem:[#allocation5 + $0xf3c] sm:$0xf]
    %v1267 = vld [vmem:[#allocation5 + $0xf40] sm:$0xf]
    %v1268 = vld [vmem:[#allocation5 + $0xf44] sm:$0xf]
    %v1269 = vld [vmem:[#allocation5 + $0xf48] sm:$0xf]
    %v1270 = vld [vmem:[#allocation5 + $0xf4c] sm:$0xf]
    %v1271 = vld [vmem:[#allocation5 + $0xf50] sm:$0xf]
    %v1272 = vld [vmem:[#allocation5 + $0xf54] sm:$0xf]
    %v1273 = vld [vmem:[#allocation5 + $0xf58] sm:$0xf]
    %v1274 = vld [vmem:[#allocation5 + $0xf5c] sm:$0xf]
    %v1275 = vld [vmem:[#allocation5 + $0xf60] sm:$0xf]
    %v1276 = vld [vmem:[#allocation5 + $0xf64] sm:$0xf]
    %v1277 = vld [vmem:[#allocation5 + $0xf68] sm:$0xf]
    %v1278 = vld [vmem:[#allocation5 + $0xf6c] sm:$0xf]
    %v1279 = vld [vmem:[#allocation5 + $0xf70] sm:$0xf]
    %v1280 = vld [vmem:[#allocation5 + $0xf74] sm:$0xf]
    %v1281 = vld [vmem:[#allocation5 + $0xf78] sm:$0xf]
    %v1282 = vld [vmem:[#allocation5 + $0xf7c] sm:$0xf]
    %v1283 = vld [vmem:[#allocation5 + $0xf80] sm:$0xf]
    %v1284 = vld [vmem:[#allocation5 + $0xf84] sm:$0xf]
    %v1285 = vld [vmem:[#allocation5 + $0xf88] sm:$0xf]
    %v1286 = vld [vmem:[#allocation5 + $0xf8c] sm:$0xf]
    %v1287 = vld [vmem:[#allocation5 + $0xf90] sm:$0xf]
    %v1288 = vld [vmem:[#allocation5 + $0xf94] sm:$0xf]
    %v1289 = vld [vmem:[#allocation5 + $0xf98] sm:$0xf]
    %v1290 = vld [vmem:[#allocation5 + $0xf9c] sm:$0xf]
    %v1291 = vld [vmem:[#allocation5 + $0xfa0] sm:$0xf]
    %v1292 = vld [vmem:[#allocation5 + $0xfa4] sm:$0xf]
    %v1293 = vld [vmem:[#allocation5 + $0xfa8] sm:$0xf]
    %v1294 = vld [vmem:[#allocation5 + $0xfac] sm:$0xf]
    %v1295 = vld [vmem:[#allocation5 + $0xfb0] sm:$0xf]
    %v1296 = vld [vmem:[#allocation5 + $0xfb4] sm:$0xf]
    %v1297 = vld [vmem:[#allocation5 + $0xfb8] sm:$0xf]
    %v1298 = vld [vmem:[#allocation5 + $0xfbc] sm:$0xf]
    %v1299 = vld [vmem:[#allocation5 + $0xfc0] sm:$0xf]
    %v1300 = vld [vmem:[#allocation5 + $0xfc4] sm:$0xf]
    %v1301 = vld [vmem:[#allocation5 + $0xfc8] sm:$0xf]
    %v1302 = vld [vmem:[#allocation5 + $0xfcc] sm:$0xf]
    %v1303 = vld [vmem:[#allocation5 + $0xfd0] sm:$0xf]
    %v1304 = vld [vmem:[#allocation5 + $0xfd4] sm:$0xf]
    %v1305 = vld [vmem:[#allocation5 + $0xfd8] sm:$0xf]
    %v1306 = vld [vmem:[#allocation5 + $0xfdc] sm:$0xf]
    %v1307 = vld [vmem:[#allocation5 + $0xfe0] sm:$0xf]
    %v1308 = vld [vmem:[#allocation5 + $0xfe4] sm:$0xf]
    %v1309 = vld [vmem:[#allocation5 + $0xfe8] sm:$0xf]
    %v1310 = vld [vmem:[#allocation5 + $0xfec] sm:$0xf]
    %v1311 = vld [vmem:[#allocation5 + $0xff0] sm:$0xf]
    %v1312 = vld [vmem:[#allocation5 + $0xff4] sm:$0xf]
    %v1313 = vld [vmem:[#allocation5 + $0xff8] sm:$0xf]
    %v1314 = vld [vmem:[#allocation5 + $0xffc] sm:$0xf]
    %v1315 = vld [vmem:[#allocation7] sm:$0x1]
    %v1317 = vperm.slane %v1315, 0
    %v2343 = vunpack.c.l.b16 %v291
    %v2344 = vunpack.c.l.b16 %v292
    %v2345 = vunpack.c.l.b16 %v293
    %v2346 = vunpack.c.l.b16 %v294
    %v2347 = vunpack.c.l.b16 %v295
    %v2348 = vunpack.c.l.b16 %v296
    %v2349 = vunpack.c.l.b16 %v297
    %v2350 = vunpack.c.l.b16 %v298
    %v2351 = vunpack.c.l.b16 %v299
    %v2352 = vunpack.c.l.b16 %v300
    %v2353 = vunpack.c.l.b16 %v301
    %v2354 = vunpack.c.l.b16 %v302
    %v2355 = vunpack.c.l.b16 %v303
    %v2356 = vunpack.c.l.b16 %v304
    %v2357 = vunpack.c.l.b16 %v305
    %v2358 = vunpack.c.l.b16 %v306
    %v2359 = vunpack.c.l.b16 %v307
    %v2360 = vunpack.c.l.b16 %v308
    %v2361 = vunpack.c.l.b16 %v309
    %v2362 = vunpack.c.l.b16 %v310
    %v2363 = vunpack.c.l.b16 %v311
    %v2364 = vunpack.c.l.b16 %v312
    %v2365 = vunpack.c.l.b16 %v313
    %v2366 = vunpack.c.l.b16 %v314
    %v2367 = vunpack.c.l.b16 %v315
    %v2368 = vunpack.c.l.b16 %v316
    %v2369 = vunpack.c.l.b16 %v317
    %v2370 = vunpack.c.l.b16 %v318
    %v2371 = vunpack.c.l.b16 %v319
    %v2372 = vunpack.c.l.b16 %v320
    %v2373 = vunpack.c.l.b16 %v321
    %v2374 = vunpack.c.l.b16 %v322
    %v2375 = vunpack.c.l.b16 %v323
    %v2376 = vunpack.c.l.b16 %v324
    %v2377 = vunpack.c.l.b16 %v325
    %v2378 = vunpack.c.l.b16 %v326
    %v2379 = vunpack.c.l.b16 %v327
    %v2380 = vunpack.c.l.b16 %v328
    %v2381 = vunpack.c.l.b16 %v329
    %v2382 = vunpack.c.l.b16 %v330
    %v2383 = vunpack.c.l.b16 %v331
    %v2384 = vunpack.c.l.b16 %v332
    %v2385 = vunpack.c.l.b16 %v333
    %v2386 = vunpack.c.l.b16 %v334
    %v2387 = vunpack.c.l.b16 %v335
    %v2388 = vunpack.c.l.b16 %v336
    %v2389 = vunpack.c.l.b16 %v337
    %v2390 = vunpack.c.l.b16 %v338
    %v2391 = vunpack.c.l.b16 %v339
    %v2392 = vunpack.c.l.b16 %v340
    %v2393 = vunpack.c.l.b16 %v341
    %v2394 = vunpack.c.l.b16 %v342
    %v2395 = vunpack.c.l.b16 %v343
    %v2396 = vunpack.c.l.b16 %v344
    %v2397 = vunpack.c.l.b16 %v345
    %v2398 = vunpack.c.l.b16 %v346
    %v2399 = vunpack.c.l.b16 %v347
    %v2400 = vunpack.c.l.b16 %v348
    %v2401 = vunpack.c.l.b16 %v349
    %v2402 = vunpack.c.l.b16 %v350
    %v2403 = vunpack.c.l.b16 %v351
    %v2404 = vunpack.c.l.b16 %v352
    %v2405 = vunpack.c.l.b16 %v353
    %v2406 = vunpack.c.l.b16 %v354
    %v2407 = vunpack.c.l.b16 %v355
    %v2408 = vunpack.c.l.b16 %v356
    %v2409 = vunpack.c.l.b16 %v357
    %v2410 = vunpack.c.l.b16 %v358
    %v2411 = vunpack.c.l.b16 %v359
    %v2412 = vunpack.c.l.b16 %v360
    %v2413 = vunpack.c.l.b16 %v361
    %v2414 = vunpack.c.l.b16 %v362
    %v2415 = vunpack.c.l.b16 %v363
    %v2416 = vunpack.c.l.b16 %v364
    %v2417 = vunpack.c.l.b16 %v365
    %v2418 = vunpack.c.l.b16 %v366
    %v2419 = vunpack.c.l.b16 %v367
    %v2420 = vunpack.c.l.b16 %v368
    %v2421 = vunpack.c.l.b16 %v369
    %v2422 = vunpack.c.l.b16 %v370
    %v2423 = vunpack.c.l.b16 %v371
    %v2424 = vunpack.c.l.b16 %v372
    %v2425 = vunpack.c.l.b16 %v373
    %v2426 = vunpack.c.l.b16 %v374
    %v2427 = vunpack.c.l.b16 %v375
    %v2428 = vunpack.c.l.b16 %v376
    %v2429 = vunpack.c.l.b16 %v377
    %v2430 = vunpack.c.l.b16 %v378
    %v2431 = vunpack.c.l.b16 %v379
    %v2432 = vunpack.c.l.b16 %v380
    %v2433 = vunpack.c.l.b16 %v381
    %v2434 = vunpack.c.l.b16 %v382
    %v2435 = vunpack.c.l.b16 %v383
    %v2436 = vunpack.c.l.b16 %v384
    %v2437 = vunpack.c.l.b16 %v385
    %v2438 = vunpack.c.l.b16 %v386
    %v2439 = vunpack.c.l.b16 %v387
    %v2440 = vunpack.c.l.b16 %v388
    %v2441 = vunpack.c.l.b16 %v389
    %v2442 = vunpack.c.l.b16 %v390
    %v2443 = vunpack.c.l.b16 %v391
    %v2444 = vunpack.c.l.b16 %v392
    %v2445 = vunpack.c.l.b16 %v393
    %v2446 = vunpack.c.l.b16 %v394
    %v2447 = vunpack.c.l.b16 %v395
    %v2448 = vunpack.c.l.b16 %v396
    %v2449 = vunpack.c.l.b16 %v397
    %v2450 = vunpack.c.l.b16 %v398
    %v2451 = vunpack.c.l.b16 %v399
    %v2452 = vunpack.c.l.b16 %v400
    %v2453 = vunpack.c.l.b16 %v401
    %v2454 = vunpack.c.l.b16 %v402
    %v2455 = vunpack.c.l.b16 %v403
    %v2456 = vunpack.c.l.b16 %v404
    %v2457 = vunpack.c.l.b16 %v405
    %v2458 = vunpack.c.l.b16 %v406
    %v2459 = vunpack.c.l.b16 %v407
    %v2460 = vunpack.c.l.b16 %v408
    %v2461 = vunpack.c.l.b16 %v409
    %v2462 = vunpack.c.l.b16 %v410
    %v2463 = vunpack.c.l.b16 %v411
    %v2464 = vunpack.c.l.b16 %v412
    %v2465 = vunpack.c.l.b16 %v413
    %v2466 = vunpack.c.l.b16 %v414
    %v2467 = vunpack.c.l.b16 %v415
    %v2468 = vunpack.c.l.b16 %v416
    %v2469 = vunpack.c.l.b16 %v417
    %v2470 = vunpack.c.l.b16 %v418
    %v2471 = vunpack.c.l.b16 %v419
    %v2472 = vunpack.c.l.b16 %v420
    %v2473 = vunpack.c.l.b16 %v421
    %v2474 = vunpack.c.l.b16 %v422
    %v2475 = vunpack.c.l.b16 %v423
    %v2476 = vunpack.c.l.b16 %v424
    %v2477 = vunpack.c.l.b16 %v425
    %v2478 = vunpack.c.l.b16 %v426
    %v2479 = vunpack.c.l.b16 %v427
    %v2480 = vunpack.c.l.b16 %v428
    %v2481 = vunpack.c.l.b16 %v429
    %v2482 = vunpack.c.l.b16 %v430
    %v2483 = vunpack.c.l.b16 %v431
    %v2484 = vunpack.c.l.b16 %v432
    %v2485 = vunpack.c.l.b16 %v433
    %v2486 = vunpack.c.l.b16 %v434
    %v2487 = vunpack.c.l.b16 %v435
    %v2488 = vunpack.c.l.b16 %v436
    %v2489 = vunpack.c.l.b16 %v437
    %v2490 = vunpack.c.l.b16 %v438
    %v2491 = vunpack.c.l.b16 %v439
    %v2492 = vunpack.c.l.b16 %v440
    %v2493 = vunpack.c.l.b16 %v441
    %v2494 = vunpack.c.l.b16 %v442
    %v2495 = vunpack.c.l.b16 %v443
    %v2496 = vunpack.c.l.b16 %v444
    %v2497 = vunpack.c.l.b16 %v445
    %v2498 = vunpack.c.l.b16 %v446
    %v2499 = vunpack.c.l.b16 %v447
    %v2500 = vunpack.c.l.b16 %v448
    %v2501 = vunpack.c.l.b16 %v449
    %v2502 = vunpack.c.l.b16 %v450
    %v2503 = vunpack.c.l.b16 %v451
    %v2504 = vunpack.c.l.b16 %v452
    %v2505 = vunpack.c.l.b16 %v453
    %v2506 = vunpack.c.l.b16 %v454
    %v2507 = vunpack.c.l.b16 %v455
    %v2508 = vunpack.c.l.b16 %v456
    %v2509 = vunpack.c.l.b16 %v457
    %v2510 = vunpack.c.l.b16 %v458
    %v2511 = vunpack.c.l.b16 %v459
    %v2512 = vunpack.c.l.b16 %v460
    %v2513 = vunpack.c.l.b16 %v461
    %v2514 = vunpack.c.l.b16 %v462
    %v2515 = vunpack.c.l.b16 %v463
    %v2516 = vunpack.c.l.b16 %v464
    %v2517 = vunpack.c.l.b16 %v465
    %v2518 = vunpack.c.l.b16 %v466
    %v2519 = vunpack.c.l.b16 %v467
    %v2520 = vunpack.c.l.b16 %v468
    %v2521 = vunpack.c.l.b16 %v469
    %v2522 = vunpack.c.l.b16 %v470
    %v2523 = vunpack.c.l.b16 %v471
    %v2524 = vunpack.c.l.b16 %v472
    %v2525 = vunpack.c.l.b16 %v473
    %v2526 = vunpack.c.l.b16 %v474
    %v2527 = vunpack.c.l.b16 %v475
    %v2528 = vunpack.c.l.b16 %v476
    %v2529 = vunpack.c.l.b16 %v477
    %v2530 = vunpack.c.l.b16 %v478
    %v2531 = vunpack.c.l.b16 %v479
    %v2532 = vunpack.c.l.b16 %v480
    %v2533 = vunpack.c.l.b16 %v481
    %v2534 = vunpack.c.l.b16 %v482
    %v2535 = vunpack.c.l.b16 %v483
    %v2536 = vunpack.c.l.b16 %v484
    %v2537 = vunpack.c.l.b16 %v485
    %v2538 = vunpack.c.l.b16 %v486
    %v2539 = vunpack.c.l.b16 %v487
    %v2540 = vunpack.c.l.b16 %v488
    %v2541 = vunpack.c.l.b16 %v489
    %v2542 = vunpack.c.l.b16 %v490
    %v2543 = vunpack.c.l.b16 %v491
    %v2544 = vunpack.c.l.b16 %v492
    %v2545 = vunpack.c.l.b16 %v493
    %v2546 = vunpack.c.l.b16 %v494
    %v2547 = vunpack.c.l.b16 %v495
    %v2548 = vunpack.c.l.b16 %v496
    %v2549 = vunpack.c.l.b16 %v497
    %v2550 = vunpack.c.l.b16 %v498
    %v2551 = vunpack.c.l.b16 %v499
    %v2552 = vunpack.c.l.b16 %v500
    %v2553 = vunpack.c.l.b16 %v501
    %v2554 = vunpack.c.l.b16 %v502
    %v2555 = vunpack.c.l.b16 %v503
    %v2556 = vunpack.c.l.b16 %v504
    %v2557 = vunpack.c.l.b16 %v505
    %v2558 = vunpack.c.l.b16 %v506
    %v2559 = vunpack.c.l.b16 %v507
    %v2560 = vunpack.c.l.b16 %v508
    %v2561 = vunpack.c.l.b16 %v509
    %v2562 = vunpack.c.l.b16 %v510
    %v2563 = vunpack.c.l.b16 %v511
    %v2564 = vunpack.c.l.b16 %v512
    %v2565 = vunpack.c.l.b16 %v513
    %v2566 = vunpack.c.l.b16 %v514
    %v2567 = vunpack.c.l.b16 %v515
    %v2568 = vunpack.c.l.b16 %v516
    %v2569 = vunpack.c.l.b16 %v517
    %v2570 = vunpack.c.l.b16 %v518
    %v2571 = vunpack.c.l.b16 %v519
    %v2572 = vunpack.c.l.b16 %v520
    %v2573 = vunpack.c.l.b16 %v521
    %v2574 = vunpack.c.l.b16 %v522
    %v2575 = vunpack.c.l.b16 %v523
    %v2576 = vunpack.c.l.b16 %v524
    %v2577 = vunpack.c.l.b16 %v525
    %v2578 = vunpack.c.l.b16 %v526
    %v2579 = vunpack.c.l.b16 %v527
    %v2580 = vunpack.c.l.b16 %v528
    %v2581 = vunpack.c.l.b16 %v529
    %v2582 = vunpack.c.l.b16 %v530
    %v2583 = vunpack.c.l.b16 %v531
    %v2584 = vunpack.c.l.b16 %v532
    %v2585 = vunpack.c.l.b16 %v533
    %v2586 = vunpack.c.l.b16 %v534
    %v2587 = vunpack.c.l.b16 %v535
    %v2588 = vunpack.c.l.b16 %v536
    %v2589 = vunpack.c.l.b16 %v537
    %v2590 = vunpack.c.l.b16 %v538
    %v2591 = vunpack.c.l.b16 %v539
    %v2592 = vunpack.c.l.b16 %v540
    %v2593 = vunpack.c.l.b16 %v541
    %v2594 = vunpack.c.l.b16 %v542
    %v2595 = vunpack.c.l.b16 %v543
    %v2596 = vunpack.c.l.b16 %v544
    %v2597 = vunpack.c.l.b16 %v545
    %v2598 = vunpack.c.l.b16 %v546
    %v2599 = vunpack.c.l.b16 %v547
    %v2600 = vunpack.c.l.b16 %v548
    %v2601 = vunpack.c.l.b16 %v549
    %v2602 = vunpack.c.l.b16 %v550
    %v2603 = vunpack.c.l.b16 %v551
    %v2604 = vunpack.c.l.b16 %v552
    %v2605 = vunpack.c.l.b16 %v553
    %v2606 = vunpack.c.l.b16 %v554
    %v2607 = vunpack.c.l.b16 %v555
    %v2608 = vunpack.c.l.b16 %v556
    %v2609 = vunpack.c.l.b16 %v557
    %v2610 = vunpack.c.l.b16 %v558
    %v2611 = vunpack.c.l.b16 %v559
    %v2612 = vunpack.c.l.b16 %v560
    %v2613 = vunpack.c.l.b16 %v561
    %v2614 = vunpack.c.l.b16 %v562
    %v2615 = vunpack.c.l.b16 %v563
    %v2616 = vunpack.c.l.b16 %v564
    %v2617 = vunpack.c.l.b16 %v565
    %v2618 = vunpack.c.l.b16 %v566
    %v2619 = vunpack.c.l.b16 %v567
    %v2620 = vunpack.c.l.b16 %v568
    %v2621 = vunpack.c.l.b16 %v569
    %v2622 = vunpack.c.l.b16 %v570
    %v2623 = vunpack.c.l.b16 %v571
    %v2624 = vunpack.c.l.b16 %v572
    %v2625 = vunpack.c.l.b16 %v573
    %v2626 = vunpack.c.l.b16 %v574
    %v2627 = vunpack.c.l.b16 %v575
    %v2628 = vunpack.c.l.b16 %v576
    %v2629 = vunpack.c.l.b16 %v577
    %v2630 = vunpack.c.l.b16 %v578
    %v2631 = vunpack.c.l.b16 %v579
    %v2632 = vunpack.c.l.b16 %v580
    %v2633 = vunpack.c.l.b16 %v581
    %v2634 = vunpack.c.l.b16 %v582
    %v2635 = vunpack.c.l.b16 %v583
    %v2636 = vunpack.c.l.b16 %v584
    %v2637 = vunpack.c.l.b16 %v585
    %v2638 = vunpack.c.l.b16 %v586
    %v2639 = vunpack.c.l.b16 %v587
    %v2640 = vunpack.c.l.b16 %v588
    %v2641 = vunpack.c.l.b16 %v589
    %v2642 = vunpack.c.l.b16 %v590
    %v2643 = vunpack.c.l.b16 %v591
    %v2644 = vunpack.c.l.b16 %v592
    %v2645 = vunpack.c.l.b16 %v593
    %v2646 = vunpack.c.l.b16 %v594
    %v2647 = vunpack.c.l.b16 %v595
    %v2648 = vunpack.c.l.b16 %v596
    %v2649 = vunpack.c.l.b16 %v597
    %v2650 = vunpack.c.l.b16 %v598
    %v2651 = vunpack.c.l.b16 %v599
    %v2652 = vunpack.c.l.b16 %v600
    %v2653 = vunpack.c.l.b16 %v601
    %v2654 = vunpack.c.l.b16 %v602
    %v2655 = vunpack.c.l.b16 %v603
    %v2656 = vunpack.c.l.b16 %v604
    %v2657 = vunpack.c.l.b16 %v605
    %v2658 = vunpack.c.l.b16 %v606
    %v2659 = vunpack.c.l.b16 %v607
    %v2660 = vunpack.c.l.b16 %v608
    %v2661 = vunpack.c.l.b16 %v609
    %v2662 = vunpack.c.l.b16 %v610
    %v2663 = vunpack.c.l.b16 %v611
    %v2664 = vunpack.c.l.b16 %v612
    %v2665 = vunpack.c.l.b16 %v613
    %v2666 = vunpack.c.l.b16 %v614
    %v2667 = vunpack.c.l.b16 %v615
    %v2668 = vunpack.c.l.b16 %v616
    %v2669 = vunpack.c.l.b16 %v617
    %v2670 = vunpack.c.l.b16 %v618
    %v2671 = vunpack.c.l.b16 %v619
    %v2672 = vunpack.c.l.b16 %v620
    %v2673 = vunpack.c.l.b16 %v621
    %v2674 = vunpack.c.l.b16 %v622
    %v2675 = vunpack.c.l.b16 %v623
    %v2676 = vunpack.c.l.b16 %v624
    %v2677 = vunpack.c.l.b16 %v625
    %v2678 = vunpack.c.l.b16 %v626
    %v2679 = vunpack.c.l.b16 %v627
    %v2680 = vunpack.c.l.b16 %v628
    %v2681 = vunpack.c.l.b16 %v629
    %v2682 = vunpack.c.l.b16 %v630
    %v2683 = vunpack.c.l.b16 %v631
    %v2684 = vunpack.c.l.b16 %v632
    %v2685 = vunpack.c.l.b16 %v633
    %v2686 = vunpack.c.l.b16 %v634
    %v2687 = vunpack.c.l.b16 %v635
    %v2688 = vunpack.c.l.b16 %v636
    %v2689 = vunpack.c.l.b16 %v637
    %v2690 = vunpack.c.l.b16 %v638
    %v2691 = vunpack.c.l.b16 %v639
    %v2692 = vunpack.c.l.b16 %v640
    %v2693 = vunpack.c.l.b16 %v641
    %v2694 = vunpack.c.l.b16 %v642
    %v2695 = vunpack.c.l.b16 %v643
    %v2696 = vunpack.c.l.b16 %v644
    %v2697 = vunpack.c.l.b16 %v645
    %v2698 = vunpack.c.l.b16 %v646
    %v2699 = vunpack.c.l.b16 %v647
    %v2700 = vunpack.c.l.b16 %v648
    %v2701 = vunpack.c.l.b16 %v649
    %v2702 = vunpack.c.l.b16 %v650
    %v2703 = vunpack.c.l.b16 %v651
    %v2704 = vunpack.c.l.b16 %v652
    %v2705 = vunpack.c.l.b16 %v653
    %v2706 = vunpack.c.l.b16 %v654
    %v2707 = vunpack.c.l.b16 %v655
    %v2708 = vunpack.c.l.b16 %v656
    %v2709 = vunpack.c.l.b16 %v657
    %v2710 = vunpack.c.l.b16 %v658
    %v2711 = vunpack.c.l.b16 %v659
    %v2712 = vunpack.c.l.b16 %v660
    %v2713 = vunpack.c.l.b16 %v661
    %v2714 = vunpack.c.l.b16 %v662
    %v2715 = vunpack.c.l.b16 %v663
    %v2716 = vunpack.c.l.b16 %v664
    %v2717 = vunpack.c.l.b16 %v665
    %v2718 = vunpack.c.l.b16 %v666
    %v2719 = vunpack.c.l.b16 %v667
    %v2720 = vunpack.c.l.b16 %v668
    %v2721 = vunpack.c.l.b16 %v669
    %v2722 = vunpack.c.l.b16 %v670
    %v2723 = vunpack.c.l.b16 %v671
    %v2724 = vunpack.c.l.b16 %v672
    %v2725 = vunpack.c.l.b16 %v673
    %v2726 = vunpack.c.l.b16 %v674
    %v2727 = vunpack.c.l.b16 %v675
    %v2728 = vunpack.c.l.b16 %v676
    %v2729 = vunpack.c.l.b16 %v677
    %v2730 = vunpack.c.l.b16 %v678
    %v2731 = vunpack.c.l.b16 %v679
    %v2732 = vunpack.c.l.b16 %v680
    %v2733 = vunpack.c.l.b16 %v681
    %v2734 = vunpack.c.l.b16 %v682
    %v2735 = vunpack.c.l.b16 %v683
    %v2736 = vunpack.c.l.b16 %v684
    %v2737 = vunpack.c.l.b16 %v685
    %v2738 = vunpack.c.l.b16 %v686
    %v2739 = vunpack.c.l.b16 %v687
    %v2740 = vunpack.c.l.b16 %v688
    %v2741 = vunpack.c.l.b16 %v689
    %v2742 = vunpack.c.l.b16 %v690
    %v2743 = vunpack.c.l.b16 %v691
    %v2744 = vunpack.c.l.b16 %v692
    %v2745 = vunpack.c.l.b16 %v693
    %v2746 = vunpack.c.l.b16 %v694
    %v2747 = vunpack.c.l.b16 %v695
    %v2748 = vunpack.c.l.b16 %v696
    %v2749 = vunpack.c.l.b16 %v697
    %v2750 = vunpack.c.l.b16 %v698
    %v2751 = vunpack.c.l.b16 %v699
    %v2752 = vunpack.c.l.b16 %v700
    %v2753 = vunpack.c.l.b16 %v701
    %v2754 = vunpack.c.l.b16 %v702
    %v2755 = vunpack.c.l.b16 %v703
    %v2756 = vunpack.c.l.b16 %v704
    %v2757 = vunpack.c.l.b16 %v705
    %v2758 = vunpack.c.l.b16 %v706
    %v2759 = vunpack.c.l.b16 %v707
    %v2760 = vunpack.c.l.b16 %v708
    %v2761 = vunpack.c.l.b16 %v709
    %v2762 = vunpack.c.l.b16 %v710
    %v2763 = vunpack.c.l.b16 %v711
    %v2764 = vunpack.c.l.b16 %v712
    %v2765 = vunpack.c.l.b16 %v713
    %v2766 = vunpack.c.l.b16 %v714
    %v2767 = vunpack.c.l.b16 %v715
    %v2768 = vunpack.c.l.b16 %v716
    %v2769 = vunpack.c.l.b16 %v717
    %v2770 = vunpack.c.l.b16 %v718
    %v2771 = vunpack.c.l.b16 %v719
    %v2772 = vunpack.c.l.b16 %v720
    %v2773 = vunpack.c.l.b16 %v721
    %v2774 = vunpack.c.l.b16 %v722
    %v2775 = vunpack.c.l.b16 %v723
    %v2776 = vunpack.c.l.b16 %v724
    %v2777 = vunpack.c.l.b16 %v725
    %v2778 = vunpack.c.l.b16 %v726
    %v2779 = vunpack.c.l.b16 %v727
    %v2780 = vunpack.c.l.b16 %v728
    %v2781 = vunpack.c.l.b16 %v729
    %v2782 = vunpack.c.l.b16 %v730
    %v2783 = vunpack.c.l.b16 %v731
    %v2784 = vunpack.c.l.b16 %v732
    %v2785 = vunpack.c.l.b16 %v733
    %v2786 = vunpack.c.l.b16 %v734
    %v2787 = vunpack.c.l.b16 %v735
    %v2788 = vunpack.c.l.b16 %v736
    %v2789 = vunpack.c.l.b16 %v737
    %v2790 = vunpack.c.l.b16 %v738
    %v2791 = vunpack.c.l.b16 %v739
    %v2792 = vunpack.c.l.b16 %v740
    %v2793 = vunpack.c.l.b16 %v741
    %v2794 = vunpack.c.l.b16 %v742
    %v2795 = vunpack.c.l.b16 %v743
    %v2796 = vunpack.c.l.b16 %v744
    %v2797 = vunpack.c.l.b16 %v745
    %v2798 = vunpack.c.l.b16 %v746
    %v2799 = vunpack.c.l.b16 %v747
    %v2800 = vunpack.c.l.b16 %v748
    %v2801 = vunpack.c.l.b16 %v749
    %v2802 = vunpack.c.l.b16 %v750
    %v2803 = vunpack.c.l.b16 %v751
    %v2804 = vunpack.c.l.b16 %v752
    %v2805 = vunpack.c.l.b16 %v753
    %v2806 = vunpack.c.l.b16 %v754
    %v2807 = vunpack.c.l.b16 %v755
    %v2808 = vunpack.c.l.b16 %v756
    %v2809 = vunpack.c.l.b16 %v757
    %v2810 = vunpack.c.l.b16 %v758
    %v2811 = vunpack.c.l.b16 %v759
    %v2812 = vunpack.c.l.b16 %v760
    %v2813 = vunpack.c.l.b16 %v761
    %v2814 = vunpack.c.l.b16 %v762
    %v2815 = vunpack.c.l.b16 %v763
    %v2816 = vunpack.c.l.b16 %v764
    %v2817 = vunpack.c.l.b16 %v765
    %v2818 = vunpack.c.l.b16 %v766
    %v2819 = vunpack.c.l.b16 %v767
    %v2820 = vunpack.c.l.b16 %v768
    %v2821 = vunpack.c.l.b16 %v769
    %v2822 = vunpack.c.l.b16 %v770
    %v2823 = vunpack.c.l.b16 %v771
    %v2824 = vunpack.c.l.b16 %v772
    %v2825 = vunpack.c.l.b16 %v773
    %v2826 = vunpack.c.l.b16 %v774
    %v2827 = vunpack.c.l.b16 %v775
    %v2828 = vunpack.c.l.b16 %v776
    %v2829 = vunpack.c.l.b16 %v777
    %v2830 = vunpack.c.l.b16 %v778
    %v2831 = vunpack.c.l.b16 %v779
    %v2832 = vunpack.c.l.b16 %v780
    %v2833 = vunpack.c.l.b16 %v781
    %v2834 = vunpack.c.l.b16 %v782
    %v2835 = vunpack.c.l.b16 %v783
    %v2836 = vunpack.c.l.b16 %v784
    %v2837 = vunpack.c.l.b16 %v785
    %v2838 = vunpack.c.l.b16 %v786
    %v2839 = vunpack.c.l.b16 %v787
    %v2840 = vunpack.c.l.b16 %v788
    %v2841 = vunpack.c.l.b16 %v789
    %v2842 = vunpack.c.l.b16 %v790
    %v2843 = vunpack.c.l.b16 %v791
    %v2844 = vunpack.c.l.b16 %v792
    %v2845 = vunpack.c.l.b16 %v793
    %v2846 = vunpack.c.l.b16 %v794
    %v2847 = vunpack.c.l.b16 %v795
    %v2848 = vunpack.c.l.b16 %v796
    %v2849 = vunpack.c.l.b16 %v797
    %v2850 = vunpack.c.l.b16 %v798
    %v2851 = vunpack.c.l.b16 %v799
    %v2852 = vunpack.c.l.b16 %v800
    %v2853 = vunpack.c.l.b16 %v801
    %v2854 = vunpack.c.l.b16 %v802
    %v2855 = vunpack.c.l.b16 %v803
    %v2856 = vunpack.c.l.b16 %v804
    %v2857 = vunpack.c.l.b16 %v805
    %v2858 = vunpack.c.l.b16 %v806
    %v2859 = vunpack.c.l.b16 %v807
    %v2860 = vunpack.c.l.b16 %v808
    %v2861 = vunpack.c.l.b16 %v809
    %v2862 = vunpack.c.l.b16 %v810
    %v2863 = vunpack.c.l.b16 %v811
    %v2864 = vunpack.c.l.b16 %v812
    %v2865 = vunpack.c.l.b16 %v813
    %v2866 = vunpack.c.l.b16 %v814
    %v2867 = vunpack.c.l.b16 %v815
    %v2868 = vunpack.c.l.b16 %v816
    %v2869 = vunpack.c.l.b16 %v817
    %v2870 = vunpack.c.l.b16 %v818
    %v2871 = vunpack.c.l.b16 %v819
    %v2872 = vunpack.c.l.b16 %v820
    %v2873 = vunpack.c.l.b16 %v821
    %v2874 = vunpack.c.l.b16 %v822
    %v2875 = vunpack.c.l.b16 %v823
    %v2876 = vunpack.c.l.b16 %v824
    %v2877 = vunpack.c.l.b16 %v825
    %v2878 = vunpack.c.l.b16 %v826
    %v2879 = vunpack.c.l.b16 %v827
    %v2880 = vunpack.c.l.b16 %v828
    %v2881 = vunpack.c.l.b16 %v829
    %v2882 = vunpack.c.l.b16 %v830
    %v2883 = vunpack.c.l.b16 %v831
    %v2884 = vunpack.c.l.b16 %v832
    %v2885 = vunpack.c.l.b16 %v833
    %v2886 = vunpack.c.l.b16 %v834
    %v2887 = vunpack.c.l.b16 %v835
    %v2888 = vunpack.c.l.b16 %v836
    %v2889 = vunpack.c.l.b16 %v837
    %v2890 = vunpack.c.l.b16 %v838
    %v2891 = vunpack.c.l.b16 %v839
    %v2892 = vunpack.c.l.b16 %v840
    %v2893 = vunpack.c.l.b16 %v841
    %v2894 = vunpack.c.l.b16 %v842
    %v2895 = vunpack.c.l.b16 %v843
    %v2896 = vunpack.c.l.b16 %v844
    %v2897 = vunpack.c.l.b16 %v845
    %v2898 = vunpack.c.l.b16 %v846
    %v2899 = vunpack.c.l.b16 %v847
    %v2900 = vunpack.c.l.b16 %v848
    %v2901 = vunpack.c.l.b16 %v849
    %v2902 = vunpack.c.l.b16 %v850
    %v2903 = vunpack.c.l.b16 %v851
    %v2904 = vunpack.c.l.b16 %v852
    %v2905 = vunpack.c.l.b16 %v853
    %v2906 = vunpack.c.l.b16 %v854
    %v2907 = vunpack.c.l.b16 %v855
    %v2908 = vunpack.c.l.b16 %v856
    %v2909 = vunpack.c.l.b16 %v857
    %v2910 = vunpack.c.l.b16 %v858
    %v2911 = vunpack.c.l.b16 %v859
    %v2912 = vunpack.c.l.b16 %v860
    %v2913 = vunpack.c.l.b16 %v861
    %v2914 = vunpack.c.l.b16 %v862
    %v2915 = vunpack.c.l.b16 %v863
    %v2916 = vunpack.c.l.b16 %v864
    %v2917 = vunpack.c.l.b16 %v865
    %v2918 = vunpack.c.l.b16 %v866
    %v2919 = vunpack.c.l.b16 %v867
    %v2920 = vunpack.c.l.b16 %v868
    %v2921 = vunpack.c.l.b16 %v869
    %v2922 = vunpack.c.l.b16 %v870
    %v2923 = vunpack.c.l.b16 %v871
    %v2924 = vunpack.c.l.b16 %v872
    %v2925 = vunpack.c.l.b16 %v873
    %v2926 = vunpack.c.l.b16 %v874
    %v2927 = vunpack.c.l.b16 %v875
    %v2928 = vunpack.c.l.b16 %v876
    %v2929 = vunpack.c.l.b16 %v877
    %v2930 = vunpack.c.l.b16 %v878
    %v2931 = vunpack.c.l.b16 %v879
    %v2932 = vunpack.c.l.b16 %v880
    %v2933 = vunpack.c.l.b16 %v881
    %v2934 = vunpack.c.l.b16 %v882
    %v2935 = vunpack.c.l.b16 %v883
    %v2936 = vunpack.c.l.b16 %v884
    %v2937 = vunpack.c.l.b16 %v885
    %v2938 = vunpack.c.l.b16 %v886
    %v2939 = vunpack.c.l.b16 %v887
    %v2940 = vunpack.c.l.b16 %v888
    %v2941 = vunpack.c.l.b16 %v889
    %v2942 = vunpack.c.l.b16 %v890
    %v2943 = vunpack.c.l.b16 %v891
    %v2944 = vunpack.c.l.b16 %v892
    %v2945 = vunpack.c.l.b16 %v893
    %v2946 = vunpack.c.l.b16 %v894
    %v2947 = vunpack.c.l.b16 %v895
    %v2948 = vunpack.c.l.b16 %v896
    %v2949 = vunpack.c.l.b16 %v897
    %v2950 = vunpack.c.l.b16 %v898
    %v2951 = vunpack.c.l.b16 %v899
    %v2952 = vunpack.c.l.b16 %v900
    %v2953 = vunpack.c.l.b16 %v901
    %v2954 = vunpack.c.l.b16 %v902
    %v2955 = vunpack.c.l.b16 %v903
    %v2956 = vunpack.c.l.b16 %v904
    %v2957 = vunpack.c.l.b16 %v905
    %v2958 = vunpack.c.l.b16 %v906
    %v2959 = vunpack.c.l.b16 %v907
    %v2960 = vunpack.c.l.b16 %v908
    %v2961 = vunpack.c.l.b16 %v909
    %v2962 = vunpack.c.l.b16 %v910
    %v2963 = vunpack.c.l.b16 %v911
    %v2964 = vunpack.c.l.b16 %v912
    %v2965 = vunpack.c.l.b16 %v913
    %v2966 = vunpack.c.l.b16 %v914
    %v2967 = vunpack.c.l.b16 %v915
    %v2968 = vunpack.c.l.b16 %v916
    %v2969 = vunpack.c.l.b16 %v917
    %v2970 = vunpack.c.l.b16 %v918
    %v2971 = vunpack.c.l.b16 %v919
    %v2972 = vunpack.c.l.b16 %v920
    %v2973 = vunpack.c.l.b16 %v921
    %v2974 = vunpack.c.l.b16 %v922
    %v2975 = vunpack.c.l.b16 %v923
    %v2976 = vunpack.c.l.b16 %v924
    %v2977 = vunpack.c.l.b16 %v925
    %v2978 = vunpack.c.l.b16 %v926
    %v2979 = vunpack.c.l.b16 %v927
    %v2980 = vunpack.c.l.b16 %v928
    %v2981 = vunpack.c.l.b16 %v929
    %v2982 = vunpack.c.l.b16 %v930
    %v2983 = vunpack.c.l.b16 %v931
    %v2984 = vunpack.c.l.b16 %v932
    %v2985 = vunpack.c.l.b16 %v933
    %v2986 = vunpack.c.l.b16 %v934
    %v2987 = vunpack.c.l.b16 %v935
    %v2988 = vunpack.c.l.b16 %v936
    %v2989 = vunpack.c.l.b16 %v937
    %v2990 = vunpack.c.l.b16 %v938
    %v2991 = vunpack.c.l.b16 %v939
    %v2992 = vunpack.c.l.b16 %v940
    %v2993 = vunpack.c.l.b16 %v941
    %v2994 = vunpack.c.l.b16 %v942
    %v2995 = vunpack.c.l.b16 %v943
    %v2996 = vunpack.c.l.b16 %v944
    %v2997 = vunpack.c.l.b16 %v945
    %v2998 = vunpack.c.l.b16 %v946
    %v2999 = vunpack.c.l.b16 %v947
    %v3000 = vunpack.c.l.b16 %v948
    %v3001 = vunpack.c.l.b16 %v949
    %v3002 = vunpack.c.l.b16 %v950
    %v3003 = vunpack.c.l.b16 %v951
    %v3004 = vunpack.c.l.b16 %v952
    %v3005 = vunpack.c.l.b16 %v953
    %v3006 = vunpack.c.l.b16 %v954
    %v3007 = vunpack.c.l.b16 %v955
    %v3008 = vunpack.c.l.b16 %v956
    %v3009 = vunpack.c.l.b16 %v957
    %v3010 = vunpack.c.l.b16 %v958
    %v3011 = vunpack.c.l.b16 %v959
    %v3012 = vunpack.c.l.b16 %v960
    %v3013 = vunpack.c.l.b16 %v961
    %v3014 = vunpack.c.l.b16 %v962
    %v3015 = vunpack.c.l.b16 %v963
    %v3016 = vunpack.c.l.b16 %v964
    %v3017 = vunpack.c.l.b16 %v965
    %v3018 = vunpack.c.l.b16 %v966
    %v3019 = vunpack.c.l.b16 %v967
    %v3020 = vunpack.c.l.b16 %v968
    %v3021 = vunpack.c.l.b16 %v969
    %v3022 = vunpack.c.l.b16 %v970
    %v3023 = vunpack.c.l.b16 %v971
    %v3024 = vunpack.c.l.b16 %v972
    %v3025 = vunpack.c.l.b16 %v973
    %v3026 = vunpack.c.l.b16 %v974
    %v3027 = vunpack.c.l.b16 %v975
    %v3028 = vunpack.c.l.b16 %v976
    %v3029 = vunpack.c.l.b16 %v977
    %v3030 = vunpack.c.l.b16 %v978
    %v3031 = vunpack.c.l.b16 %v979
    %v3032 = vunpack.c.l.b16 %v980
    %v3033 = vunpack.c.l.b16 %v981
    %v3034 = vunpack.c.l.b16 %v982
    %v3035 = vunpack.c.l.b16 %v983
    %v3036 = vunpack.c.l.b16 %v984
    %v3037 = vunpack.c.l.b16 %v985
    %v3038 = vunpack.c.l.b16 %v986
    %v3039 = vunpack.c.l.b16 %v987
    %v3040 = vunpack.c.l.b16 %v988
    %v3041 = vunpack.c.l.b16 %v989
    %v3042 = vunpack.c.l.b16 %v990
    %v3043 = vunpack.c.l.b16 %v991
    %v3044 = vunpack.c.l.b16 %v992
    %v3045 = vunpack.c.l.b16 %v993
    %v3046 = vunpack.c.l.b16 %v994
    %v3047 = vunpack.c.l.b16 %v995
    %v3048 = vunpack.c.l.b16 %v996
    %v3049 = vunpack.c.l.b16 %v997
    %v3050 = vunpack.c.l.b16 %v998
    %v3051 = vunpack.c.l.b16 %v999
    %v3052 = vunpack.c.l.b16 %v1000
    %v3053 = vunpack.c.l.b16 %v1001
    %v3054 = vunpack.c.l.b16 %v1002
    %v3055 = vunpack.c.l.b16 %v1003
    %v3056 = vunpack.c.l.b16 %v1004
    %v3057 = vunpack.c.l.b16 %v1005
    %v3058 = vunpack.c.l.b16 %v1006
    %v3059 = vunpack.c.l.b16 %v1007
    %v3060 = vunpack.c.l.b16 %v1008
    %v3061 = vunpack.c.l.b16 %v1009
    %v3062 = vunpack.c.l.b16 %v1010
    %v3063 = vunpack.c.l.b16 %v1011
    %v3064 = vunpack.c.l.b16 %v1012
    %v3065 = vunpack.c.l.b16 %v1013
    %v3066 = vunpack.c.l.b16 %v1014
    %v3067 = vunpack.c.l.b16 %v1015
    %v3068 = vunpack.c.l.b16 %v1016
    %v3069 = vunpack.c.l.b16 %v1017
    %v3070 = vunpack.c.l.b16 %v1018
    %v3071 = vunpack.c.l.b16 %v1019
    %v3072 = vunpack.c.l.b16 %v1020
    %v3073 = vunpack.c.l.b16 %v1021
    %v3074 = vunpack.c.l.b16 %v1022
    %v3075 = vunpack.c.l.b16 %v1023
    %v3076 = vunpack.c.l.b16 %v1024
    %v3077 = vunpack.c.l.b16 %v1025
    %v3078 = vunpack.c.l.b16 %v1026
    %v3079 = vunpack.c.l.b16 %v1027
    %v3080 = vunpack.c.l.b16 %v1028
    %v3081 = vunpack.c.l.b16 %v1029
    %v3082 = vunpack.c.l.b16 %v1030
    %v3083 = vunpack.c.l.b16 %v1031
    %v3084 = vunpack.c.l.b16 %v1032
    %v3085 = vunpack.c.l.b16 %v1033
    %v3086 = vunpack.c.l.b16 %v1034
    %v3087 = vunpack.c.l.b16 %v1035
    %v3088 = vunpack.c.l.b16 %v1036
    %v3089 = vunpack.c.l.b16 %v1037
    %v3090 = vunpack.c.l.b16 %v1038
    %v3091 = vunpack.c.l.b16 %v1039
    %v3092 = vunpack.c.l.b16 %v1040
    %v3093 = vunpack.c.l.b16 %v1041
    %v3094 = vunpack.c.l.b16 %v1042
    %v3095 = vunpack.c.l.b16 %v1043
    %v3096 = vunpack.c.l.b16 %v1044
    %v3097 = vunpack.c.l.b16 %v1045
    %v3098 = vunpack.c.l.b16 %v1046
    %v3099 = vunpack.c.l.b16 %v1047
    %v3100 = vunpack.c.l.b16 %v1048
    %v3101 = vunpack.c.l.b16 %v1049
    %v3102 = vunpack.c.l.b16 %v1050
    %v3103 = vunpack.c.l.b16 %v1051
    %v3104 = vunpack.c.l.b16 %v1052
    %v3105 = vunpack.c.l.b16 %v1053
    %v3106 = vunpack.c.l.b16 %v1054
    %v3107 = vunpack.c.l.b16 %v1055
    %v3108 = vunpack.c.l.b16 %v1056
    %v3109 = vunpack.c.l.b16 %v1057
    %v3110 = vunpack.c.l.b16 %v1058
    %v3111 = vunpack.c.l.b16 %v1059
    %v3112 = vunpack.c.l.b16 %v1060
    %v3113 = vunpack.c.l.b16 %v1061
    %v3114 = vunpack.c.l.b16 %v1062
    %v3115 = vunpack.c.l.b16 %v1063
    %v3116 = vunpack.c.l.b16 %v1064
    %v3117 = vunpack.c.l.b16 %v1065
    %v3118 = vunpack.c.l.b16 %v1066
    %v3119 = vunpack.c.l.b16 %v1067
    %v3120 = vunpack.c.l.b16 %v1068
    %v3121 = vunpack.c.l.b16 %v1069
    %v3122 = vunpack.c.l.b16 %v1070
    %v3123 = vunpack.c.l.b16 %v1071
    %v3124 = vunpack.c.l.b16 %v1072
    %v3125 = vunpack.c.l.b16 %v1073
    %v3126 = vunpack.c.l.b16 %v1074
    %v3127 = vunpack.c.l.b16 %v1075
    %v3128 = vunpack.c.l.b16 %v1076
    %v3129 = vunpack.c.l.b16 %v1077
    %v3130 = vunpack.c.l.b16 %v1078
    %v3131 = vunpack.c.l.b16 %v1079
    %v3132 = vunpack.c.l.b16 %v1080
    %v3133 = vunpack.c.l.b16 %v1081
    %v3134 = vunpack.c.l.b16 %v1082
    %v3135 = vunpack.c.l.b16 %v1083
    %v3136 = vunpack.c.l.b16 %v1084
    %v3137 = vunpack.c.l.b16 %v1085
    %v3138 = vunpack.c.l.b16 %v1086
    %v3139 = vunpack.c.l.b16 %v1087
    %v3140 = vunpack.c.l.b16 %v1088
    %v3141 = vunpack.c.l.b16 %v1089
    %v3142 = vunpack.c.l.b16 %v1090
    %v3143 = vunpack.c.l.b16 %v1091
    %v3144 = vunpack.c.l.b16 %v1092
    %v3145 = vunpack.c.l.b16 %v1093
    %v3146 = vunpack.c.l.b16 %v1094
    %v3147 = vunpack.c.l.b16 %v1095
    %v3148 = vunpack.c.l.b16 %v1096
    %v3149 = vunpack.c.l.b16 %v1097
    %v3150 = vunpack.c.l.b16 %v1098
    %v3151 = vunpack.c.l.b16 %v1099
    %v3152 = vunpack.c.l.b16 %v1100
    %v3153 = vunpack.c.l.b16 %v1101
    %v3154 = vunpack.c.l.b16 %v1102
    %v3155 = vunpack.c.l.b16 %v1103
    %v3156 = vunpack.c.l.b16 %v1104
    %v3157 = vunpack.c.l.b16 %v1105
    %v3158 = vunpack.c.l.b16 %v1106
    %v3159 = vunpack.c.l.b16 %v1107
    %v3160 = vunpack.c.l.b16 %v1108
    %v3161 = vunpack.c.l.b16 %v1109
    %v3162 = vunpack.c.l.b16 %v1110
    %v3163 = vunpack.c.l.b16 %v1111
    %v3164 = vunpack.c.l.b16 %v1112
    %v3165 = vunpack.c.l.b16 %v1113
    %v3166 = vunpack.c.l.b16 %v1114
    %v3167 = vunpack.c.l.b16 %v1115
    %v3168 = vunpack.c.l.b16 %v1116
    %v3169 = vunpack.c.l.b16 %v1117
    %v3170 = vunpack.c.l.b16 %v1118
    %v3171 = vunpack.c.l.b16 %v1119
    %v3172 = vunpack.c.l.b16 %v1120
    %v3173 = vunpack.c.l.b16 %v1121
    %v3174 = vunpack.c.l.b16 %v1122
    %v3175 = vunpack.c.l.b16 %v1123
    %v3176 = vunpack.c.l.b16 %v1124
    %v3177 = vunpack.c.l.b16 %v1125
    %v3178 = vunpack.c.l.b16 %v1126
    %v3179 = vunpack.c.l.b16 %v1127
    %v3180 = vunpack.c.l.b16 %v1128
    %v3181 = vunpack.c.l.b16 %v1129
    %v3182 = vunpack.c.l.b16 %v1130
    %v3183 = vunpack.c.l.b16 %v1131
    %v3184 = vunpack.c.l.b16 %v1132
    %v3185 = vunpack.c.l.b16 %v1133
    %v3186 = vunpack.c.l.b16 %v1134
    %v3187 = vunpack.c.l.b16 %v1135
    %v3188 = vunpack.c.l.b16 %v1136
    %v3189 = vunpack.c.l.b16 %v1137
    %v3190 = vunpack.c.l.b16 %v1138
    %v3191 = vunpack.c.l.b16 %v1139
    %v3192 = vunpack.c.l.b16 %v1140
    %v3193 = vunpack.c.l.b16 %v1141
    %v3194 = vunpack.c.l.b16 %v1142
    %v3195 = vunpack.c.l.b16 %v1143
    %v3196 = vunpack.c.l.b16 %v1144
    %v3197 = vunpack.c.l.b16 %v1145
    %v3198 = vunpack.c.l.b16 %v1146
    %v3199 = vunpack.c.l.b16 %v1147
    %v3200 = vunpack.c.l.b16 %v1148
    %v3201 = vunpack.c.l.b16 %v1149
    %v3202 = vunpack.c.l.b16 %v1150
    %v3203 = vunpack.c.l.b16 %v1151
    %v3204 = vunpack.c.l.b16 %v1152
    %v3205 = vunpack.c.l.b16 %v1153
    %v3206 = vunpack.c.l.b16 %v1154
    %v3207 = vunpack.c.l.b16 %v1155
    %v3208 = vunpack.c.l.b16 %v1156
    %v3209 = vunpack.c.l.b16 %v1157
    %v3210 = vunpack.c.l.b16 %v1158
    %v3211 = vunpack.c.l.b16 %v1159
    %v3212 = vunpack.c.l.b16 %v1160
    %v3213 = vunpack.c.l.b16 %v1161
    %v3214 = vunpack.c.l.b16 %v1162
    %v3215 = vunpack.c.l.b16 %v1163
    %v3216 = vunpack.c.l.b16 %v1164
    %v3217 = vunpack.c.l.b16 %v1165
    %v3218 = vunpack.c.l.b16 %v1166
    %v3219 = vunpack.c.l.b16 %v1167
    %v3220 = vunpack.c.l.b16 %v1168
    %v3221 = vunpack.c.l.b16 %v1169
    %v3222 = vunpack.c.l.b16 %v1170
    %v3223 = vunpack.c.l.b16 %v1171
    %v3224 = vunpack.c.l.b16 %v1172
    %v3225 = vunpack.c.l.b16 %v1173
    %v3226 = vunpack.c.l.b16 %v1174
    %v3227 = vunpack.c.l.b16 %v1175
    %v3228 = vunpack.c.l.b16 %v1176
    %v3229 = vunpack.c.l.b16 %v1177
    %v3230 = vunpack.c.l.b16 %v1178
    %v3231 = vunpack.c.l.b16 %v1179
    %v3232 = vunpack.c.l.b16 %v1180
    %v3233 = vunpack.c.l.b16 %v1181
    %v3234 = vunpack.c.l.b16 %v1182
    %v3235 = vunpack.c.l.b16 %v1183
    %v3236 = vunpack.c.l.b16 %v1184
    %v3237 = vunpack.c.l.b16 %v1185
    %v3238 = vunpack.c.l.b16 %v1186
    %v3239 = vunpack.c.l.b16 %v1187
    %v3240 = vunpack.c.l.b16 %v1188
    %v3241 = vunpack.c.l.b16 %v1189
    %v3242 = vunpack.c.l.b16 %v1190
    %v3243 = vunpack.c.l.b16 %v1191
    %v3244 = vunpack.c.l.b16 %v1192
    %v3245 = vunpack.c.l.b16 %v1193
    %v3246 = vunpack.c.l.b16 %v1194
    %v3247 = vunpack.c.l.b16 %v1195
    %v3248 = vunpack.c.l.b16 %v1196
    %v3249 = vunpack.c.l.b16 %v1197
    %v3250 = vunpack.c.l.b16 %v1198
    %v3251 = vunpack.c.l.b16 %v1199
    %v3252 = vunpack.c.l.b16 %v1200
    %v3253 = vunpack.c.l.b16 %v1201
    %v3254 = vunpack.c.l.b16 %v1202
    %v3255 = vunpack.c.l.b16 %v1203
    %v3256 = vunpack.c.l.b16 %v1204
    %v3257 = vunpack.c.l.b16 %v1205
    %v3258 = vunpack.c.l.b16 %v1206
    %v3259 = vunpack.c.l.b16 %v1207
    %v3260 = vunpack.c.l.b16 %v1208
    %v3261 = vunpack.c.l.b16 %v1209
    %v3262 = vunpack.c.l.b16 %v1210
    %v3263 = vunpack.c.l.b16 %v1211
    %v3264 = vunpack.c.l.b16 %v1212
    %v3265 = vunpack.c.l.b16 %v1213
    %v3266 = vunpack.c.l.b16 %v1214
    %v3267 = vunpack.c.l.b16 %v1215
    %v3268 = vunpack.c.l.b16 %v1216
    %v3269 = vunpack.c.l.b16 %v1217
    %v3270 = vunpack.c.l.b16 %v1218
    %v3271 = vunpack.c.l.b16 %v1219
    %v3272 = vunpack.c.l.b16 %v1220
    %v3273 = vunpack.c.l.b16 %v1221
    %v3274 = vunpack.c.l.b16 %v1222
    %v3275 = vunpack.c.l.b16 %v1223
    %v3276 = vunpack.c.l.b16 %v1224
    %v3277 = vunpack.c.l.b16 %v1225
    %v3278 = vunpack.c.l.b16 %v1226
    %v3279 = vunpack.c.l.b16 %v1227
    %v3280 = vunpack.c.l.b16 %v1228
    %v3281 = vunpack.c.l.b16 %v1229
    %v3282 = vunpack.c.l.b16 %v1230
    %v3283 = vunpack.c.l.b16 %v1231
    %v3284 = vunpack.c.l.b16 %v1232
    %v3285 = vunpack.c.l.b16 %v1233
    %v3286 = vunpack.c.l.b16 %v1234
    %v3287 = vunpack.c.l.b16 %v1235
    %v3288 = vunpack.c.l.b16 %v1236
    %v3289 = vunpack.c.l.b16 %v1237
    %v3290 = vunpack.c.l.b16 %v1238
    %v3291 = vunpack.c.l.b16 %v1239
    %v3292 = vunpack.c.l.b16 %v1240
    %v3293 = vunpack.c.l.b16 %v1241
    %v3294 = vunpack.c.l.b16 %v1242
    %v3295 = vunpack.c.l.b16 %v1243
    %v3296 = vunpack.c.l.b16 %v1244
    %v3297 = vunpack.c.l.b16 %v1245
    %v3298 = vunpack.c.l.b16 %v1246
    %v3299 = vunpack.c.l.b16 %v1247
    %v3300 = vunpack.c.l.b16 %v1248
    %v3301 = vunpack.c.l.b16 %v1249
    %v3302 = vunpack.c.l.b16 %v1250
    %v3303 = vunpack.c.l.b16 %v1251
    %v3304 = vunpack.c.l.b16 %v1252
    %v3305 = vunpack.c.l.b16 %v1253
    %v3306 = vunpack.c.l.b16 %v1254
    %v3307 = vunpack.c.l.b16 %v1255
    %v3308 = vunpack.c.l.b16 %v1256
    %v3309 = vunpack.c.l.b16 %v1257
    %v3310 = vunpack.c.l.b16 %v1258
    %v3311 = vunpack.c.l.b16 %v1259
    %v3312 = vunpack.c.l.b16 %v1260
    %v3313 = vunpack.c.l.b16 %v1261
    %v3314 = vunpack.c.l.b16 %v1262
    %v3315 = vunpack.c.l.b16 %v1263
    %v3316 = vunpack.c.l.b16 %v1264
    %v3317 = vunpack.c.l.b16 %v1265
    %v3318 = vunpack.c.l.b16 %v1266
    %v3319 = vunpack.c.l.b16 %v1267
    %v3320 = vunpack.c.l.b16 %v1268
    %v3321 = vunpack.c.l.b16 %v1269
    %v3322 = vunpack.c.l.b16 %v1270
    %v3323 = vunpack.c.l.b16 %v1271
    %v3324 = vunpack.c.l.b16 %v1272
    %v3325 = vunpack.c.l.b16 %v1273
    %v3326 = vunpack.c.l.b16 %v1274
    %v3327 = vunpack.c.l.b16 %v1275
    %v3328 = vunpack.c.l.b16 %v1276
    %v3329 = vunpack.c.l.b16 %v1277
    %v3330 = vunpack.c.l.b16 %v1278
    %v3331 = vunpack.c.l.b16 %v1279
    %v3332 = vunpack.c.l.b16 %v1280
    %v3333 = vunpack.c.l.b16 %v1281
    %v3334 = vunpack.c.l.b16 %v1282
    %v3335 = vunpack.c.l.b16 %v1283
    %v3336 = vunpack.c.l.b16 %v1284
    %v3337 = vunpack.c.l.b16 %v1285
    %v3338 = vunpack.c.l.b16 %v1286
    %v3339 = vunpack.c.l.b16 %v1287
    %v3340 = vunpack.c.l.b16 %v1288
    %v3341 = vunpack.c.l.b16 %v1289
    %v3342 = vunpack.c.l.b16 %v1290
    %v3343 = vunpack.c.l.b16 %v1291
    %v3344 = vunpack.c.l.b16 %v1292
    %v3345 = vunpack.c.l.b16 %v1293
    %v3346 = vunpack.c.l.b16 %v1294
    %v3347 = vunpack.c.l.b16 %v1295
    %v3348 = vunpack.c.l.b16 %v1296
    %v3349 = vunpack.c.l.b16 %v1297
    %v3350 = vunpack.c.l.b16 %v1298
    %v3351 = vunpack.c.l.b16 %v1299
    %v3352 = vunpack.c.l.b16 %v1300
    %v3353 = vunpack.c.l.b16 %v1301
    %v3354 = vunpack.c.l.b16 %v1302
    %v3355 = vunpack.c.l.b16 %v1303
    %v3356 = vunpack.c.l.b16 %v1304
    %v3357 = vunpack.c.l.b16 %v1305
    %v3358 = vunpack.c.l.b16 %v1306
    %v3359 = vunpack.c.l.b16 %v1307
    %v3360 = vunpack.c.l.b16 %v1308
    %v3361 = vunpack.c.l.b16 %v1309
    %v3362 = vunpack.c.l.b16 %v1310
    %v3363 = vunpack.c.l.b16 %v1311
    %v3364 = vunpack.c.l.b16 %v1312
    %v3365 = vunpack.c.l.b16 %v1313
    %v3366 = vunpack.c.l.b16 %v1314
    %v3367 = vpack.c.b16 %v2344, %v2343
    %v3368 = vpack.c.b16 %v2346, %v2345
    %v3369 = vpack.c.b16 %v2348, %v2347
    %v3370 = vpack.c.b16 %v2350, %v2349
    %v3371 = vpack.c.b16 %v2352, %v2351
    %v3372 = vpack.c.b16 %v2354, %v2353
    %v3373 = vpack.c.b16 %v2356, %v2355
    %v3374 = vpack.c.b16 %v2358, %v2357
    %v3375 = vpack.c.b16 %v2360, %v2359
    %v3376 = vpack.c.b16 %v2362, %v2361
    %v3377 = vpack.c.b16 %v2364, %v2363
    %v3378 = vpack.c.b16 %v2366, %v2365
    %v3379 = vpack.c.b16 %v2368, %v2367
    %v3380 = vpack.c.b16 %v2370, %v2369
    %v3381 = vpack.c.b16 %v2372, %v2371
    %v3382 = vpack.c.b16 %v2374, %v2373
    %v3383 = vpack.c.b16 %v2376, %v2375
    %v3384 = vpack.c.b16 %v2378, %v2377
    %v3385 = vpack.c.b16 %v2380, %v2379
    %v3386 = vpack.c.b16 %v2382, %v2381
    %v3387 = vpack.c.b16 %v2384, %v2383
    %v3388 = vpack.c.b16 %v2386, %v2385
    %v3389 = vpack.c.b16 %v2388, %v2387
    %v3390 = vpack.c.b16 %v2390, %v2389
    %v3391 = vpack.c.b16 %v2392, %v2391
    %v3392 = vpack.c.b16 %v2394, %v2393
    %v3393 = vpack.c.b16 %v2396, %v2395
    %v3394 = vpack.c.b16 %v2398, %v2397
    %v3395 = vpack.c.b16 %v2400, %v2399
    %v3396 = vpack.c.b16 %v2402, %v2401
    %v3397 = vpack.c.b16 %v2404, %v2403
    %v3398 = vpack.c.b16 %v2406, %v2405
    %v3399 = vpack.c.b16 %v2408, %v2407
    %v3400 = vpack.c.b16 %v2410, %v2409
    %v3401 = vpack.c.b16 %v2412, %v2411
    %v3402 = vpack.c.b16 %v2414, %v2413
    %v3403 = vpack.c.b16 %v2416, %v2415
    %v3404 = vpack.c.b16 %v2418, %v2417
    %v3405 = vpack.c.b16 %v2420, %v2419
    %v3406 = vpack.c.b16 %v2422, %v2421
    %v3407 = vpack.c.b16 %v2424, %v2423
    %v3408 = vpack.c.b16 %v2426, %v2425
    %v3409 = vpack.c.b16 %v2428, %v2427
    %v3410 = vpack.c.b16 %v2430, %v2429
    %v3411 = vpack.c.b16 %v2432, %v2431
    %v3412 = vpack.c.b16 %v2434, %v2433
    %v3413 = vpack.c.b16 %v2436, %v2435
    %v3414 = vpack.c.b16 %v2438, %v2437
    %v3415 = vpack.c.b16 %v2440, %v2439
    %v3416 = vpack.c.b16 %v2442, %v2441
    %v3417 = vpack.c.b16 %v2444, %v2443
    %v3418 = vpack.c.b16 %v2446, %v2445
    %v3419 = vpack.c.b16 %v2448, %v2447
    %v3420 = vpack.c.b16 %v2450, %v2449
    %v3421 = vpack.c.b16 %v2452, %v2451
    %v3422 = vpack.c.b16 %v2454, %v2453
    %v3423 = vpack.c.b16 %v2456, %v2455
    %v3424 = vpack.c.b16 %v2458, %v2457
    %v3425 = vpack.c.b16 %v2460, %v2459
    %v3426 = vpack.c.b16 %v2462, %v2461
    %v3427 = vpack.c.b16 %v2464, %v2463
    %v3428 = vpack.c.b16 %v2466, %v2465
    %v3429 = vpack.c.b16 %v2468, %v2467
    %v3430 = vpack.c.b16 %v2470, %v2469
    %v3431 = vpack.c.b16 %v2472, %v2471
    %v3432 = vpack.c.b16 %v2474, %v2473
    %v3433 = vpack.c.b16 %v2476, %v2475
    %v3434 = vpack.c.b16 %v2478, %v2477
    %v3435 = vpack.c.b16 %v2480, %v2479
    %v3436 = vpack.c.b16 %v2482, %v2481
    %v3437 = vpack.c.b16 %v2484, %v2483
    %v3438 = vpack.c.b16 %v2486, %v2485
    %v3439 = vpack.c.b16 %v2488, %v2487
    %v3440 = vpack.c.b16 %v2490, %v2489
    %v3441 = vpack.c.b16 %v2492, %v2491
    %v3442 = vpack.c.b16 %v2494, %v2493
    %v3443 = vpack.c.b16 %v2496, %v2495
    %v3444 = vpack.c.b16 %v2498, %v2497
    %v3445 = vpack.c.b16 %v2500, %v2499
    %v3446 = vpack.c.b16 %v2502, %v2501
    %v3447 = vpack.c.b16 %v2504, %v2503
    %v3448 = vpack.c.b16 %v2506, %v2505
    %v3449 = vpack.c.b16 %v2508, %v2507
    %v3450 = vpack.c.b16 %v2510, %v2509
    %v3451 = vpack.c.b16 %v2512, %v2511
    %v3452 = vpack.c.b16 %v2514, %v2513
    %v3453 = vpack.c.b16 %v2516, %v2515
    %v3454 = vpack.c.b16 %v2518, %v2517
    %v3455 = vpack.c.b16 %v2520, %v2519
    %v3456 = vpack.c.b16 %v2522, %v2521
    %v3457 = vpack.c.b16 %v2524, %v2523
    %v3458 = vpack.c.b16 %v2526, %v2525
    %v3459 = vpack.c.b16 %v2528, %v2527
    %v3460 = vpack.c.b16 %v2530, %v2529
    %v3461 = vpack.c.b16 %v2532, %v2531
    %v3462 = vpack.c.b16 %v2534, %v2533
    %v3463 = vpack.c.b16 %v2536, %v2535
    %v3464 = vpack.c.b16 %v2538, %v2537
    %v3465 = vpack.c.b16 %v2540, %v2539
    %v3466 = vpack.c.b16 %v2542, %v2541
    %v3467 = vpack.c.b16 %v2544, %v2543
    %v3468 = vpack.c.b16 %v2546, %v2545
    %v3469 = vpack.c.b16 %v2548, %v2547
    %v3470 = vpack.c.b16 %v2550, %v2549
    %v3471 = vpack.c.b16 %v2552, %v2551
    %v3472 = vpack.c.b16 %v2554, %v2553
    %v3473 = vpack.c.b16 %v2556, %v2555
    %v3474 = vpack.c.b16 %v2558, %v2557
    %v3475 = vpack.c.b16 %v2560, %v2559
    %v3476 = vpack.c.b16 %v2562, %v2561
    %v3477 = vpack.c.b16 %v2564, %v2563
    %v3478 = vpack.c.b16 %v2566, %v2565
    %v3479 = vpack.c.b16 %v2568, %v2567
    %v3480 = vpack.c.b16 %v2570, %v2569
    %v3481 = vpack.c.b16 %v2572, %v2571
    %v3482 = vpack.c.b16 %v2574, %v2573
    %v3483 = vpack.c.b16 %v2576, %v2575
    %v3484 = vpack.c.b16 %v2578, %v2577
    %v3485 = vpack.c.b16 %v2580, %v2579
    %v3486 = vpack.c.b16 %v2582, %v2581
    %v3487 = vpack.c.b16 %v2584, %v2583
    %v3488 = vpack.c.b16 %v2586, %v2585
    %v3489 = vpack.c.b16 %v2588, %v2587
    %v3490 = vpack.c.b16 %v2590, %v2589
    %v3491 = vpack.c.b16 %v2592, %v2591
    %v3492 = vpack.c.b16 %v2594, %v2593
    %v3493 = vpack.c.b16 %v2596, %v2595
    %v3494 = vpack.c.b16 %v2598, %v2597
    %v3495 = vpack.c.b16 %v2600, %v2599
    %v3496 = vpack.c.b16 %v2602, %v2601
    %v3497 = vpack.c.b16 %v2604, %v2603
    %v3498 = vpack.c.b16 %v2606, %v2605
    %v3499 = vpack.c.b16 %v2608, %v2607
    %v3500 = vpack.c.b16 %v2610, %v2609
    %v3501 = vpack.c.b16 %v2612, %v2611
    %v3502 = vpack.c.b16 %v2614, %v2613
    %v3503 = vpack.c.b16 %v2616, %v2615
    %v3504 = vpack.c.b16 %v2618, %v2617
    %v3505 = vpack.c.b16 %v2620, %v2619
    %v3506 = vpack.c.b16 %v2622, %v2621
    %v3507 = vpack.c.b16 %v2624, %v2623
    %v3508 = vpack.c.b16 %v2626, %v2625
    %v3509 = vpack.c.b16 %v2628, %v2627
    %v3510 = vpack.c.b16 %v2630, %v2629
    %v3511 = vpack.c.b16 %v2632, %v2631
    %v3512 = vpack.c.b16 %v2634, %v2633
    %v3513 = vpack.c.b16 %v2636, %v2635
    %v3514 = vpack.c.b16 %v2638, %v2637
    %v3515 = vpack.c.b16 %v2640, %v2639
    %v3516 = vpack.c.b16 %v2642, %v2641
    %v3517 = vpack.c.b16 %v2644, %v2643
    %v3518 = vpack.c.b16 %v2646, %v2645
    %v3519 = vpack.c.b16 %v2648, %v2647
    %v3520 = vpack.c.b16 %v2650, %v2649
    %v3521 = vpack.c.b16 %v2652, %v2651
    %v3522 = vpack.c.b16 %v2654, %v2653
    %v3523 = vpack.c.b16 %v2656, %v2655
    %v3524 = vpack.c.b16 %v2658, %v2657
    %v3525 = vpack.c.b16 %v2660, %v2659
    %v3526 = vpack.c.b16 %v2662, %v2661
    %v3527 = vpack.c.b16 %v2664, %v2663
    %v3528 = vpack.c.b16 %v2666, %v2665
    %v3529 = vpack.c.b16 %v2668, %v2667
    %v3530 = vpack.c.b16 %v2670, %v2669
    %v3531 = vpack.c.b16 %v2672, %v2671
    %v3532 = vpack.c.b16 %v2674, %v2673
    %v3533 = vpack.c.b16 %v2676, %v2675
    %v3534 = vpack.c.b16 %v2678, %v2677
    %v3535 = vpack.c.b16 %v2680, %v2679
    %v3536 = vpack.c.b16 %v2682, %v2681
    %v3537 = vpack.c.b16 %v2684, %v2683
    %v3538 = vpack.c.b16 %v2686, %v2685
    %v3539 = vpack.c.b16 %v2688, %v2687
    %v3540 = vpack.c.b16 %v2690, %v2689
    %v3541 = vpack.c.b16 %v2692, %v2691
    %v3542 = vpack.c.b16 %v2694, %v2693
    %v3543 = vpack.c.b16 %v2696, %v2695
    %v3544 = vpack.c.b16 %v2698, %v2697
    %v3545 = vpack.c.b16 %v2700, %v2699
    %v3546 = vpack.c.b16 %v2702, %v2701
    %v3547 = vpack.c.b16 %v2704, %v2703
    %v3548 = vpack.c.b16 %v2706, %v2705
    %v3549 = vpack.c.b16 %v2708, %v2707
    %v3550 = vpack.c.b16 %v2710, %v2709
    %v3551 = vpack.c.b16 %v2712, %v2711
    %v3552 = vpack.c.b16 %v2714, %v2713
    %v3553 = vpack.c.b16 %v2716, %v2715
    %v3554 = vpack.c.b16 %v2718, %v2717
    %v3555 = vpack.c.b16 %v2720, %v2719
    %v3556 = vpack.c.b16 %v2722, %v2721
    %v3557 = vpack.c.b16 %v2724, %v2723
    %v3558 = vpack.c.b16 %v2726, %v2725
    %v3559 = vpack.c.b16 %v2728, %v2727
    %v3560 = vpack.c.b16 %v2730, %v2729
    %v3561 = vpack.c.b16 %v2732, %v2731
    %v3562 = vpack.c.b16 %v2734, %v2733
    %v3563 = vpack.c.b16 %v2736, %v2735
    %v3564 = vpack.c.b16 %v2738, %v2737
    %v3565 = vpack.c.b16 %v2740, %v2739
    %v3566 = vpack.c.b16 %v2742, %v2741
    %v3567 = vpack.c.b16 %v2744, %v2743
    %v3568 = vpack.c.b16 %v2746, %v2745
    %v3569 = vpack.c.b16 %v2748, %v2747
    %v3570 = vpack.c.b16 %v2750, %v2749
    %v3571 = vpack.c.b16 %v2752, %v2751
    %v3572 = vpack.c.b16 %v2754, %v2753
    %v3573 = vpack.c.b16 %v2756, %v2755
    %v3574 = vpack.c.b16 %v2758, %v2757
    %v3575 = vpack.c.b16 %v2760, %v2759
    %v3576 = vpack.c.b16 %v2762, %v2761
    %v3577 = vpack.c.b16 %v2764, %v2763
    %v3578 = vpack.c.b16 %v2766, %v2765
    %v3579 = vpack.c.b16 %v2768, %v2767
    %v3580 = vpack.c.b16 %v2770, %v2769
    %v3581 = vpack.c.b16 %v2772, %v2771
    %v3582 = vpack.c.b16 %v2774, %v2773
    %v3583 = vpack.c.b16 %v2776, %v2775
    %v3584 = vpack.c.b16 %v2778, %v2777
    %v3585 = vpack.c.b16 %v2780, %v2779
    %v3586 = vpack.c.b16 %v2782, %v2781
    %v3587 = vpack.c.b16 %v2784, %v2783
    %v3588 = vpack.c.b16 %v2786, %v2785
    %v3589 = vpack.c.b16 %v2788, %v2787
    %v3590 = vpack.c.b16 %v2790, %v2789
    %v3591 = vpack.c.b16 %v2792, %v2791
    %v3592 = vpack.c.b16 %v2794, %v2793
    %v3593 = vpack.c.b16 %v2796, %v2795
    %v3594 = vpack.c.b16 %v2798, %v2797
    %v3595 = vpack.c.b16 %v2800, %v2799
    %v3596 = vpack.c.b16 %v2802, %v2801
    %v3597 = vpack.c.b16 %v2804, %v2803
    %v3598 = vpack.c.b16 %v2806, %v2805
    %v3599 = vpack.c.b16 %v2808, %v2807
    %v3600 = vpack.c.b16 %v2810, %v2809
    %v3601 = vpack.c.b16 %v2812, %v2811
    %v3602 = vpack.c.b16 %v2814, %v2813
    %v3603 = vpack.c.b16 %v2816, %v2815
    %v3604 = vpack.c.b16 %v2818, %v2817
    %v3605 = vpack.c.b16 %v2820, %v2819
    %v3606 = vpack.c.b16 %v2822, %v2821
    %v3607 = vpack.c.b16 %v2824, %v2823
    %v3608 = vpack.c.b16 %v2826, %v2825
    %v3609 = vpack.c.b16 %v2828, %v2827
    %v3610 = vpack.c.b16 %v2830, %v2829
    %v3611 = vpack.c.b16 %v2832, %v2831
    %v3612 = vpack.c.b16 %v2834, %v2833
    %v3613 = vpack.c.b16 %v2836, %v2835
    %v3614 = vpack.c.b16 %v2838, %v2837
    %v3615 = vpack.c.b16 %v2840, %v2839
    %v3616 = vpack.c.b16 %v2842, %v2841
    %v3617 = vpack.c.b16 %v2844, %v2843
    %v3618 = vpack.c.b16 %v2846, %v2845
    %v3619 = vpack.c.b16 %v2848, %v2847
    %v3620 = vpack.c.b16 %v2850, %v2849
    %v3621 = vpack.c.b16 %v2852, %v2851
    %v3622 = vpack.c.b16 %v2854, %v2853
    %v3623 = vpack.c.b16 %v2856, %v2855
    %v3624 = vpack.c.b16 %v2858, %v2857
    %v3625 = vpack.c.b16 %v2860, %v2859
    %v3626 = vpack.c.b16 %v2862, %v2861
    %v3627 = vpack.c.b16 %v2864, %v2863
    %v3628 = vpack.c.b16 %v2866, %v2865
    %v3629 = vpack.c.b16 %v2868, %v2867
    %v3630 = vpack.c.b16 %v2870, %v2869
    %v3631 = vpack.c.b16 %v2872, %v2871
    %v3632 = vpack.c.b16 %v2874, %v2873
    %v3633 = vpack.c.b16 %v2876, %v2875
    %v3634 = vpack.c.b16 %v2878, %v2877
    %v3635 = vpack.c.b16 %v2880, %v2879
    %v3636 = vpack.c.b16 %v2882, %v2881
    %v3637 = vpack.c.b16 %v2884, %v2883
    %v3638 = vpack.c.b16 %v2886, %v2885
    %v3639 = vpack.c.b16 %v2888, %v2887
    %v3640 = vpack.c.b16 %v2890, %v2889
    %v3641 = vpack.c.b16 %v2892, %v2891
    %v3642 = vpack.c.b16 %v2894, %v2893
    %v3643 = vpack.c.b16 %v2896, %v2895
    %v3644 = vpack.c.b16 %v2898, %v2897
    %v3645 = vpack.c.b16 %v2900, %v2899
    %v3646 = vpack.c.b16 %v2902, %v2901
    %v3647 = vpack.c.b16 %v2904, %v2903
    %v3648 = vpack.c.b16 %v2906, %v2905
    %v3649 = vpack.c.b16 %v2908, %v2907
    %v3650 = vpack.c.b16 %v2910, %v2909
    %v3651 = vpack.c.b16 %v2912, %v2911
    %v3652 = vpack.c.b16 %v2914, %v2913
    %v3653 = vpack.c.b16 %v2916, %v2915
    %v3654 = vpack.c.b16 %v2918, %v2917
    %v3655 = vpack.c.b16 %v2920, %v2919
    %v3656 = vpack.c.b16 %v2922, %v2921
    %v3657 = vpack.c.b16 %v2924, %v2923
    %v3658 = vpack.c.b16 %v2926, %v2925
    %v3659 = vpack.c.b16 %v2928, %v2927
    %v3660 = vpack.c.b16 %v2930, %v2929
    %v3661 = vpack.c.b16 %v2932, %v2931
    %v3662 = vpack.c.b16 %v2934, %v2933
    %v3663 = vpack.c.b16 %v2936, %v2935
    %v3664 = vpack.c.b16 %v2938, %v2937
    %v3665 = vpack.c.b16 %v2940, %v2939
    %v3666 = vpack.c.b16 %v2942, %v2941
    %v3667 = vpack.c.b16 %v2944, %v2943
    %v3668 = vpack.c.b16 %v2946, %v2945
    %v3669 = vpack.c.b16 %v2948, %v2947
    %v3670 = vpack.c.b16 %v2950, %v2949
    %v3671 = vpack.c.b16 %v2952, %v2951
    %v3672 = vpack.c.b16 %v2954, %v2953
    %v3673 = vpack.c.b16 %v2956, %v2955
    %v3674 = vpack.c.b16 %v2958, %v2957
    %v3675 = vpack.c.b16 %v2960, %v2959
    %v3676 = vpack.c.b16 %v2962, %v2961
    %v3677 = vpack.c.b16 %v2964, %v2963
    %v3678 = vpack.c.b16 %v2966, %v2965
    %v3679 = vpack.c.b16 %v2968, %v2967
    %v3680 = vpack.c.b16 %v2970, %v2969
    %v3681 = vpack.c.b16 %v2972, %v2971
    %v3682 = vpack.c.b16 %v2974, %v2973
    %v3683 = vpack.c.b16 %v2976, %v2975
    %v3684 = vpack.c.b16 %v2978, %v2977
    %v3685 = vpack.c.b16 %v2980, %v2979
    %v3686 = vpack.c.b16 %v2982, %v2981
    %v3687 = vpack.c.b16 %v2984, %v2983
    %v3688 = vpack.c.b16 %v2986, %v2985
    %v3689 = vpack.c.b16 %v2988, %v2987
    %v3690 = vpack.c.b16 %v2990, %v2989
    %v3691 = vpack.c.b16 %v2992, %v2991
    %v3692 = vpack.c.b16 %v2994, %v2993
    %v3693 = vpack.c.b16 %v2996, %v2995
    %v3694 = vpack.c.b16 %v2998, %v2997
    %v3695 = vpack.c.b16 %v3000, %v2999
    %v3696 = vpack.c.b16 %v3002, %v3001
    %v3697 = vpack.c.b16 %v3004, %v3003
    %v3698 = vpack.c.b16 %v3006, %v3005
    %v3699 = vpack.c.b16 %v3008, %v3007
    %v3700 = vpack.c.b16 %v3010, %v3009
    %v3701 = vpack.c.b16 %v3012, %v3011
    %v3702 = vpack.c.b16 %v3014, %v3013
    %v3703 = vpack.c.b16 %v3016, %v3015
    %v3704 = vpack.c.b16 %v3018, %v3017
    %v3705 = vpack.c.b16 %v3020, %v3019
    %v3706 = vpack.c.b16 %v3022, %v3021
    %v3707 = vpack.c.b16 %v3024, %v3023
    %v3708 = vpack.c.b16 %v3026, %v3025
    %v3709 = vpack.c.b16 %v3028, %v3027
    %v3710 = vpack.c.b16 %v3030, %v3029
    %v3711 = vpack.c.b16 %v3032, %v3031
    %v3712 = vpack.c.b16 %v3034, %v3033
    %v3713 = vpack.c.b16 %v3036, %v3035
    %v3714 = vpack.c.b16 %v3038, %v3037
    %v3715 = vpack.c.b16 %v3040, %v3039
    %v3716 = vpack.c.b16 %v3042, %v3041
    %v3717 = vpack.c.b16 %v3044, %v3043
    %v3718 = vpack.c.b16 %v3046, %v3045
    %v3719 = vpack.c.b16 %v3048, %v3047
    %v3720 = vpack.c.b16 %v3050, %v3049
    %v3721 = vpack.c.b16 %v3052, %v3051
    %v3722 = vpack.c.b16 %v3054, %v3053
    %v3723 = vpack.c.b16 %v3056, %v3055
    %v3724 = vpack.c.b16 %v3058, %v3057
    %v3725 = vpack.c.b16 %v3060, %v3059
    %v3726 = vpack.c.b16 %v3062, %v3061
    %v3727 = vpack.c.b16 %v3064, %v3063
    %v3728 = vpack.c.b16 %v3066, %v3065
    %v3729 = vpack.c.b16 %v3068, %v3067
    %v3730 = vpack.c.b16 %v3070, %v3069
    %v3731 = vpack.c.b16 %v3072, %v3071
    %v3732 = vpack.c.b16 %v3074, %v3073
    %v3733 = vpack.c.b16 %v3076, %v3075
    %v3734 = vpack.c.b16 %v3078, %v3077
    %v3735 = vpack.c.b16 %v3080, %v3079
    %v3736 = vpack.c.b16 %v3082, %v3081
    %v3737 = vpack.c.b16 %v3084, %v3083
    %v3738 = vpack.c.b16 %v3086, %v3085
    %v3739 = vpack.c.b16 %v3088, %v3087
    %v3740 = vpack.c.b16 %v3090, %v3089
    %v3741 = vpack.c.b16 %v3092, %v3091
    %v3742 = vpack.c.b16 %v3094, %v3093
    %v3743 = vpack.c.b16 %v3096, %v3095
    %v3744 = vpack.c.b16 %v3098, %v3097
    %v3745 = vpack.c.b16 %v3100, %v3099
    %v3746 = vpack.c.b16 %v3102, %v3101
    %v3747 = vpack.c.b16 %v3104, %v3103
    %v3748 = vpack.c.b16 %v3106, %v3105
    %v3749 = vpack.c.b16 %v3108, %v3107
    %v3750 = vpack.c.b16 %v3110, %v3109
    %v3751 = vpack.c.b16 %v3112, %v3111
    %v3752 = vpack.c.b16 %v3114, %v3113
    %v3753 = vpack.c.b16 %v3116, %v3115
    %v3754 = vpack.c.b16 %v3118, %v3117
    %v3755 = vpack.c.b16 %v3120, %v3119
    %v3756 = vpack.c.b16 %v3122, %v3121
    %v3757 = vpack.c.b16 %v3124, %v3123
    %v3758 = vpack.c.b16 %v3126, %v3125
    %v3759 = vpack.c.b16 %v3128, %v3127
    %v3760 = vpack.c.b16 %v3130, %v3129
    %v3761 = vpack.c.b16 %v3132, %v3131
    %v3762 = vpack.c.b16 %v3134, %v3133
    %v3763 = vpack.c.b16 %v3136, %v3135
    %v3764 = vpack.c.b16 %v3138, %v3137
    %v3765 = vpack.c.b16 %v3140, %v3139
    %v3766 = vpack.c.b16 %v3142, %v3141
    %v3767 = vpack.c.b16 %v3144, %v3143
    %v3768 = vpack.c.b16 %v3146, %v3145
    %v3769 = vpack.c.b16 %v3148, %v3147
    %v3770 = vpack.c.b16 %v3150, %v3149
    %v3771 = vpack.c.b16 %v3152, %v3151
    %v3772 = vpack.c.b16 %v3154, %v3153
    %v3773 = vpack.c.b16 %v3156, %v3155
    %v3774 = vpack.c.b16 %v3158, %v3157
    %v3775 = vpack.c.b16 %v3160, %v3159
    %v3776 = vpack.c.b16 %v3162, %v3161
    %v3777 = vpack.c.b16 %v3164, %v3163
    %v3778 = vpack.c.b16 %v3166, %v3165
    %v3779 = vpack.c.b16 %v3168, %v3167
    %v3780 = vpack.c.b16 %v3170, %v3169
    %v3781 = vpack.c.b16 %v3172, %v3171
    %v3782 = vpack.c.b16 %v3174, %v3173
    %v3783 = vpack.c.b16 %v3176, %v3175
    %v3784 = vpack.c.b16 %v3178, %v3177
    %v3785 = vpack.c.b16 %v3180, %v3179
    %v3786 = vpack.c.b16 %v3182, %v3181
    %v3787 = vpack.c.b16 %v3184, %v3183
    %v3788 = vpack.c.b16 %v3186, %v3185
    %v3789 = vpack.c.b16 %v3188, %v3187
    %v3790 = vpack.c.b16 %v3190, %v3189
    %v3791 = vpack.c.b16 %v3192, %v3191
    %v3792 = vpack.c.b16 %v3194, %v3193
    %v3793 = vpack.c.b16 %v3196, %v3195
    %v3794 = vpack.c.b16 %v3198, %v3197
    %v3795 = vpack.c.b16 %v3200, %v3199
    %v3796 = vpack.c.b16 %v3202, %v3201
    %v3797 = vpack.c.b16 %v3204, %v3203
    %v3798 = vpack.c.b16 %v3206, %v3205
    %v3799 = vpack.c.b16 %v3208, %v3207
    %v3800 = vpack.c.b16 %v3210, %v3209
    %v3801 = vpack.c.b16 %v3212, %v3211
    %v3802 = vpack.c.b16 %v3214, %v3213
    %v3803 = vpack.c.b16 %v3216, %v3215
    %v3804 = vpack.c.b16 %v3218, %v3217
    %v3805 = vpack.c.b16 %v3220, %v3219
    %v3806 = vpack.c.b16 %v3222, %v3221
    %v3807 = vpack.c.b16 %v3224, %v3223
    %v3808 = vpack.c.b16 %v3226, %v3225
    %v3809 = vpack.c.b16 %v3228, %v3227
    %v3810 = vpack.c.b16 %v3230, %v3229
    %v3811 = vpack.c.b16 %v3232, %v3231
    %v3812 = vpack.c.b16 %v3234, %v3233
    %v3813 = vpack.c.b16 %v3236, %v3235
    %v3814 = vpack.c.b16 %v3238, %v3237
    %v3815 = vpack.c.b16 %v3240, %v3239
    %v3816 = vpack.c.b16 %v3242, %v3241
    %v3817 = vpack.c.b16 %v3244, %v3243
    %v3818 = vpack.c.b16 %v3246, %v3245
    %v3819 = vpack.c.b16 %v3248, %v3247
    %v3820 = vpack.c.b16 %v3250, %v3249
    %v3821 = vpack.c.b16 %v3252, %v3251
    %v3822 = vpack.c.b16 %v3254, %v3253
    %v3823 = vpack.c.b16 %v3256, %v3255
    %v3824 = vpack.c.b16 %v3258, %v3257
    %v3825 = vpack.c.b16 %v3260, %v3259
    %v3826 = vpack.c.b16 %v3262, %v3261
    %v3827 = vpack.c.b16 %v3264, %v3263
    %v3828 = vpack.c.b16 %v3266, %v3265
    %v3829 = vpack.c.b16 %v3268, %v3267
    %v3830 = vpack.c.b16 %v3270, %v3269
    %v3831 = vpack.c.b16 %v3272, %v3271
    %v3832 = vpack.c.b16 %v3274, %v3273
    %v3833 = vpack.c.b16 %v3276, %v3275
    %v3834 = vpack.c.b16 %v3278, %v3277
    %v3835 = vpack.c.b16 %v3280, %v3279
    %v3836 = vpack.c.b16 %v3282, %v3281
    %v3837 = vpack.c.b16 %v3284, %v3283
    %v3838 = vpack.c.b16 %v3286, %v3285
    %v3839 = vpack.c.b16 %v3288, %v3287
    %v3840 = vpack.c.b16 %v3290, %v3289
    %v3841 = vpack.c.b16 %v3292, %v3291
    %v3842 = vpack.c.b16 %v3294, %v3293
    %v3843 = vpack.c.b16 %v3296, %v3295
    %v3844 = vpack.c.b16 %v3298, %v3297
    %v3845 = vpack.c.b16 %v3300, %v3299
    %v3846 = vpack.c.b16 %v3302, %v3301
    %v3847 = vpack.c.b16 %v3304, %v3303
    %v3848 = vpack.c.b16 %v3306, %v3305
    %v3849 = vpack.c.b16 %v3308, %v3307
    %v3850 = vpack.c.b16 %v3310, %v3309
    %v3851 = vpack.c.b16 %v3312, %v3311
    %v3852 = vpack.c.b16 %v3314, %v3313
    %v3853 = vpack.c.b16 %v3316, %v3315
    %v3854 = vpack.c.b16 %v3318, %v3317
    %v3855 = vpack.c.b16 %v3320, %v3319
    %v3856 = vpack.c.b16 %v3322, %v3321
    %v3857 = vpack.c.b16 %v3324, %v3323
    %v3858 = vpack.c.b16 %v3326, %v3325
    %v3859 = vpack.c.b16 %v3328, %v3327
    %v3860 = vpack.c.b16 %v3330, %v3329
    %v3861 = vpack.c.b16 %v3332, %v3331
    %v3862 = vpack.c.b16 %v3334, %v3333
    %v3863 = vpack.c.b16 %v3336, %v3335
    %v3864 = vpack.c.b16 %v3338, %v3337
    %v3865 = vpack.c.b16 %v3340, %v3339
    %v3866 = vpack.c.b16 %v3342, %v3341
    %v3867 = vpack.c.b16 %v3344, %v3343
    %v3868 = vpack.c.b16 %v3346, %v3345
    %v3869 = vpack.c.b16 %v3348, %v3347
    %v3870 = vpack.c.b16 %v3350, %v3349
    %v3871 = vpack.c.b16 %v3352, %v3351
    %v3872 = vpack.c.b16 %v3354, %v3353
    %v3873 = vpack.c.b16 %v3356, %v3355
    %v3874 = vpack.c.b16 %v3358, %v3357
    %v3875 = vpack.c.b16 %v3360, %v3359
    %v3876 = vpack.c.b16 %v3362, %v3361
    %v3877 = vpack.c.b16 %v3364, %v3363
    %v3878 = vpack.c.b16 %v3366, %v3365
    %4391 = vmatpush.bf16.msra.mxu0 %v3374
    %4392 = vmatpush.bf16.msra.mxu0 %v3373
    %4393 = vmatpush.bf16.msra.mxu0 %v3372
    %4394 = vmatpush.bf16.msra.mxu0 %v3371
    %4395 = vmatpush.bf16.msra.mxu0 %v3370
    %4396 = vmatpush.bf16.msra.mxu0 %v3369
    %4397 = vmatpush.bf16.msra.mxu0 %v3368
    %4398 = vmatpush.bf16.msra.mxu0 %v3367
    %4399 = vmatmul.bf16.gmra.mxu0 %v227
    %v4400 = vpop.f32.mrf.mxu0
    %v4401 = vadd.f32 %v1317, %v4400
    %v4402 = vpop.f32.mrf.mxu0
    %4403 = vdwg.mxu0
    %4404 = vmatpush.bf16.msra.mxu0 %v3382
    %4405 = vmatpush.bf16.msra.mxu0 %v3381
    %4406 = vmatpush.bf16.msra.mxu0 %v3380
    %4407 = vmatpush.bf16.msra.mxu0 %v3379
    %4408 = vmatpush.bf16.msra.mxu0 %v3378
    %4409 = vmatpush.bf16.msra.mxu0 %v3377
    %4410 = vmatpush.bf16.msra.mxu0 %v3376
    %4411 = vmatpush.bf16.msra.mxu0 %v3375
    %4412 = vmatmul.bf16.gmra.mxu0 %v228
    %v4413 = vpop.f32.mrf.mxu0
    %v4414 = vadd.f32 %v4401, %v4413
    %v4415 = vpop.f32.mrf.mxu0
    %4416 = vdwg.mxu0
    %4417 = vmatpush.bf16.msra.mxu0 %v3390
    %4418 = vmatpush.bf16.msra.mxu0 %v3389
    %4419 = vmatpush.bf16.msra.mxu0 %v3388
    %4420 = vmatpush.bf16.msra.mxu0 %v3387
    %4421 = vmatpush.bf16.msra.mxu0 %v3386
    %4422 = vmatpush.bf16.msra.mxu0 %v3385
    %4423 = vmatpush.bf16.msra.mxu0 %v3384
    %4424 = vmatpush.bf16.msra.mxu0 %v3383
    %4425 = vmatmul.bf16.gmra.mxu0 %v229
    %v4426 = vpop.f32.mrf.mxu0
    %v4427 = vadd.f32 %v4414, %v4426
    %v4428 = vpop.f32.mrf.mxu0
    %4429 = vdwg.mxu0
    %4430 = vmatpush.bf16.msra.mxu0 %v3398
    %4431 = vmatpush.bf16.msra.mxu0 %v3397
    %4432 = vmatpush.bf16.msra.mxu0 %v3396
    %4433 = vmatpush.bf16.msra.mxu0 %v3395
    %4434 = vmatpush.bf16.msra.mxu0 %v3394
    %4435 = vmatpush.bf16.msra.mxu0 %v3393
    %4436 = vmatpush.bf16.msra.mxu0 %v3392
    %4437 = vmatpush.bf16.msra.mxu0 %v3391
    %4438 = vmatmul.bf16.gmra.mxu0 %v230
    %v4439 = vpop.f32.mrf.mxu0
    %v4440 = vadd.f32 %v4427, %v4439
    %v4441 = vpop.f32.mrf.mxu0
    %4442 = vdwg.mxu0
    %4443 = vmatpush.bf16.msra.mxu0 %v3406
    %4444 = vmatpush.bf16.msra.mxu0 %v3405
    %4445 = vmatpush.bf16.msra.mxu0 %v3404
    %4446 = vmatpush.bf16.msra.mxu0 %v3403
    %4447 = vmatpush.bf16.msra.mxu0 %v3402
    %4448 = vmatpush.bf16.msra.mxu0 %v3401
    %4449 = vmatpush.bf16.msra.mxu0 %v3400
    %4450 = vmatpush.bf16.msra.mxu0 %v3399
    %4451 = vmatmul.bf16.gmra.mxu0 %v231
    %v4452 = vpop.f32.mrf.mxu0
    %v4453 = vadd.f32 %v4440, %v4452
    %v4454 = vpop.f32.mrf.mxu0
    %4455 = vdwg.mxu0
    %4456 = vmatpush.bf16.msra.mxu0 %v3414
    %4457 = vmatpush.bf16.msra.mxu0 %v3413
    %4458 = vmatpush.bf16.msra.mxu0 %v3412
    %4459 = vmatpush.bf16.msra.mxu0 %v3411
    %4460 = vmatpush.bf16.msra.mxu0 %v3410
    %4461 = vmatpush.bf16.msra.mxu0 %v3409
    %4462 = vmatpush.bf16.msra.mxu0 %v3408
    %4463 = vmatpush.bf16.msra.mxu0 %v3407
    %4464 = vmatmul.bf16.gmra.mxu0 %v232
    %v4465 = vpop.f32.mrf.mxu0
    %v4466 = vadd.f32 %v4453, %v4465
    %v4467 = vpop.f32.mrf.mxu0
    %4468 = vdwg.mxu0
    %4469 = vmatpush.bf16.msra.mxu0 %v3422
    %4470 = vmatpush.bf16.msra.mxu0 %v3421
    %4471 = vmatpush.bf16.msra.mxu0 %v3420
    %4472 = vmatpush.bf16.msra.mxu0 %v3419
    %4473 = vmatpush.bf16.msra.mxu0 %v3418
    %4474 = vmatpush.bf16.msra.mxu0 %v3417
    %4475 = vmatpush.bf16.msra.mxu0 %v3416
    %4476 = vmatpush.bf16.msra.mxu0 %v3415
    %4477 = vmatmul.bf16.gmra.mxu0 %v233
    %v4478 = vpop.f32.mrf.mxu0
    %v4479 = vadd.f32 %v4466, %v4478
    %v4480 = vpop.f32.mrf.mxu0
    %4481 = vdwg.mxu0
    %4482 = vmatpush.bf16.msra.mxu0 %v3430
    %4483 = vmatpush.bf16.msra.mxu0 %v3429
    %4484 = vmatpush.bf16.msra.mxu0 %v3428
    %4485 = vmatpush.bf16.msra.mxu0 %v3427
    %4486 = vmatpush.bf16.msra.mxu0 %v3426
    %4487 = vmatpush.bf16.msra.mxu0 %v3425
    %4488 = vmatpush.bf16.msra.mxu0 %v3424
    %4489 = vmatpush.bf16.msra.mxu0 %v3423
    %4490 = vmatmul.bf16.gmra.mxu0 %v234
    %v4491 = vpop.f32.mrf.mxu0
    %v4492 = vadd.f32 %v4479, %v4491
    %v4493 = vpop.f32.mrf.mxu0
    %4494 = vdwg.mxu0
    %4495 = vmatpush.bf16.msra.mxu0 %v3438
    %4496 = vmatpush.bf16.msra.mxu0 %v3437
    %4497 = vmatpush.bf16.msra.mxu0 %v3436
    %4498 = vmatpush.bf16.msra.mxu0 %v3435
    %4499 = vmatpush.bf16.msra.mxu0 %v3434
    %4500 = vmatpush.bf16.msra.mxu0 %v3433
    %4501 = vmatpush.bf16.msra.mxu0 %v3432
    %4502 = vmatpush.bf16.msra.mxu0 %v3431
    %4503 = vmatmul.bf16.gmra.mxu0 %v235
    %v4504 = vpop.f32.mrf.mxu0
    %v4505 = vadd.f32 %v4492, %v4504
    %v4506 = vpop.f32.mrf.mxu0
    %4507 = vdwg.mxu0
    %4508 = vmatpush.bf16.msra.mxu0 %v3446
    %4509 = vmatpush.bf16.msra.mxu0 %v3445
    %4510 = vmatpush.bf16.msra.mxu0 %v3444
    %4511 = vmatpush.bf16.msra.mxu0 %v3443
    %4512 = vmatpush.bf16.msra.mxu0 %v3442
    %4513 = vmatpush.bf16.msra.mxu0 %v3441
    %4514 = vmatpush.bf16.msra.mxu0 %v3440
    %4515 = vmatpush.bf16.msra.mxu0 %v3439
    %4516 = vmatmul.bf16.gmra.mxu0 %v236
    %v4517 = vpop.f32.mrf.mxu0
    %v4518 = vadd.f32 %v4505, %v4517
    %v4519 = vpop.f32.mrf.mxu0
    %4520 = vdwg.mxu0
    %4521 = vmatpush.bf16.msra.mxu0 %v3454
    %4522 = vmatpush.bf16.msra.mxu0 %v3453
    %4523 = vmatpush.bf16.msra.mxu0 %v3452
    %4524 = vmatpush.bf16.msra.mxu0 %v3451
    %4525 = vmatpush.bf16.msra.mxu0 %v3450
    %4526 = vmatpush.bf16.msra.mxu0 %v3449
    %4527 = vmatpush.bf16.msra.mxu0 %v3448
    %4528 = vmatpush.bf16.msra.mxu0 %v3447
    %4529 = vmatmul.bf16.gmra.mxu0 %v237
    %v4530 = vpop.f32.mrf.mxu0
    %v4531 = vadd.f32 %v4518, %v4530
    %v4532 = vpop.f32.mrf.mxu0
    %4533 = vdwg.mxu0
    %4534 = vmatpush.bf16.msra.mxu0 %v3462
    %4535 = vmatpush.bf16.msra.mxu0 %v3461
    %4536 = vmatpush.bf16.msra.mxu0 %v3460
    %4537 = vmatpush.bf16.msra.mxu0 %v3459
    %4538 = vmatpush.bf16.msra.mxu0 %v3458
    %4539 = vmatpush.bf16.msra.mxu0 %v3457
    %4540 = vmatpush.bf16.msra.mxu0 %v3456
    %4541 = vmatpush.bf16.msra.mxu0 %v3455
    %4542 = vmatmul.bf16.gmra.mxu0 %v238
    %v4543 = vpop.f32.mrf.mxu0
    %v4544 = vadd.f32 %v4531, %v4543
    %v4545 = vpop.f32.mrf.mxu0
    %4546 = vdwg.mxu0
    %4547 = vmatpush.bf16.msra.mxu0 %v3470
    %4548 = vmatpush.bf16.msra.mxu0 %v3469
    %4549 = vmatpush.bf16.msra.mxu0 %v3468
    %4550 = vmatpush.bf16.msra.mxu0 %v3467
    %4551 = vmatpush.bf16.msra.mxu0 %v3466
    %4552 = vmatpush.bf16.msra.mxu0 %v3465
    %4553 = vmatpush.bf16.msra.mxu0 %v3464
    %4554 = vmatpush.bf16.msra.mxu0 %v3463
    %4555 = vmatmul.bf16.gmra.mxu0 %v239
    %v4556 = vpop.f32.mrf.mxu0
    %v4557 = vadd.f32 %v4544, %v4556
    %v4558 = vpop.f32.mrf.mxu0
    %4559 = vdwg.mxu0
    %4560 = vmatpush.bf16.msra.mxu0 %v3478
    %4561 = vmatpush.bf16.msra.mxu0 %v3477
    %4562 = vmatpush.bf16.msra.mxu0 %v3476
    %4563 = vmatpush.bf16.msra.mxu0 %v3475
    %4564 = vmatpush.bf16.msra.mxu0 %v3474
    %4565 = vmatpush.bf16.msra.mxu0 %v3473
    %4566 = vmatpush.bf16.msra.mxu0 %v3472
    %4567 = vmatpush.bf16.msra.mxu0 %v3471
    %4568 = vmatmul.bf16.gmra.mxu0 %v240
    %v4569 = vpop.f32.mrf.mxu0
    %v4570 = vadd.f32 %v4557, %v4569
    %v4571 = vpop.f32.mrf.mxu0
    %4572 = vdwg.mxu0
    %4573 = vmatpush.bf16.msra.mxu0 %v3486
    %4574 = vmatpush.bf16.msra.mxu0 %v3485
    %4575 = vmatpush.bf16.msra.mxu0 %v3484
    %4576 = vmatpush.bf16.msra.mxu0 %v3483
    %4577 = vmatpush.bf16.msra.mxu0 %v3482
    %4578 = vmatpush.bf16.msra.mxu0 %v3481
    %4579 = vmatpush.bf16.msra.mxu0 %v3480
    %4580 = vmatpush.bf16.msra.mxu0 %v3479
    %4581 = vmatmul.bf16.gmra.mxu0 %v241
    %v4582 = vpop.f32.mrf.mxu0
    %v4583 = vadd.f32 %v4570, %v4582
    %v4584 = vpop.f32.mrf.mxu0
    %4585 = vdwg.mxu0
    %4586 = vmatpush.bf16.msra.mxu0 %v3494
    %4587 = vmatpush.bf16.msra.mxu0 %v3493
    %4588 = vmatpush.bf16.msra.mxu0 %v3492
    %4589 = vmatpush.bf16.msra.mxu0 %v3491
    %4590 = vmatpush.bf16.msra.mxu0 %v3490
    %4591 = vmatpush.bf16.msra.mxu0 %v3489
    %4592 = vmatpush.bf16.msra.mxu0 %v3488
    %4593 = vmatpush.bf16.msra.mxu0 %v3487
    %4594 = vmatmul.bf16.gmra.mxu0 %v242
    %v4595 = vpop.f32.mrf.mxu0
    %v4596 = vadd.f32 %v4583, %v4595
    %v4597 = vpop.f32.mrf.mxu0
    %4598 = vdwg.mxu0
    %4599 = vmatpush.bf16.msra.mxu0 %v3502
    %4600 = vmatpush.bf16.msra.mxu0 %v3501
    %4601 = vmatpush.bf16.msra.mxu0 %v3500
    %4602 = vmatpush.bf16.msra.mxu0 %v3499
    %4603 = vmatpush.bf16.msra.mxu0 %v3498
    %4604 = vmatpush.bf16.msra.mxu0 %v3497
    %4605 = vmatpush.bf16.msra.mxu0 %v3496
    %4606 = vmatpush.bf16.msra.mxu0 %v3495
    %4607 = vmatmul.bf16.gmra.mxu0 %v243
    %v4608 = vpop.f32.mrf.mxu0
    %v4609 = vadd.f32 %v4596, %v4608
    %v4610 = vpop.f32.mrf.mxu0
    %4611 = vdwg.mxu0
    %4612 = vmatpush.bf16.msra.mxu0 %v3510
    %4613 = vmatpush.bf16.msra.mxu0 %v3509
    %4614 = vmatpush.bf16.msra.mxu0 %v3508
    %4615 = vmatpush.bf16.msra.mxu0 %v3507
    %4616 = vmatpush.bf16.msra.mxu0 %v3506
    %4617 = vmatpush.bf16.msra.mxu0 %v3505
    %4618 = vmatpush.bf16.msra.mxu0 %v3504
    %4619 = vmatpush.bf16.msra.mxu0 %v3503
    %4620 = vmatmul.bf16.gmra.mxu0 %v244
    %v4621 = vpop.f32.mrf.mxu0
    %v4622 = vadd.f32 %v4609, %v4621
    %v4623 = vpop.f32.mrf.mxu0
    %4624 = vdwg.mxu0
    %4625 = vmatpush.bf16.msra.mxu0 %v3518
    %4626 = vmatpush.bf16.msra.mxu0 %v3517
    %4627 = vmatpush.bf16.msra.mxu0 %v3516
    %4628 = vmatpush.bf16.msra.mxu0 %v3515
    %4629 = vmatpush.bf16.msra.mxu0 %v3514
    %4630 = vmatpush.bf16.msra.mxu0 %v3513
    %4631 = vmatpush.bf16.msra.mxu0 %v3512
    %4632 = vmatpush.bf16.msra.mxu0 %v3511
    %4633 = vmatmul.bf16.gmra.mxu0 %v245
    %v4634 = vpop.f32.mrf.mxu0
    %v4635 = vadd.f32 %v4622, %v4634
    %v4636 = vpop.f32.mrf.mxu0
    %4637 = vdwg.mxu0
    %4638 = vmatpush.bf16.msra.mxu0 %v3526
    %4639 = vmatpush.bf16.msra.mxu0 %v3525
    %4640 = vmatpush.bf16.msra.mxu0 %v3524
    %4641 = vmatpush.bf16.msra.mxu0 %v3523
    %4642 = vmatpush.bf16.msra.mxu0 %v3522
    %4643 = vmatpush.bf16.msra.mxu0 %v3521
    %4644 = vmatpush.bf16.msra.mxu0 %v3520
    %4645 = vmatpush.bf16.msra.mxu0 %v3519
    %4646 = vmatmul.bf16.gmra.mxu0 %v246
    %v4647 = vpop.f32.mrf.mxu0
    %v4648 = vadd.f32 %v4635, %v4647
    %v4649 = vpop.f32.mrf.mxu0
    %4650 = vdwg.mxu0
    %4651 = vmatpush.bf16.msra.mxu0 %v3534
    %4652 = vmatpush.bf16.msra.mxu0 %v3533
    %4653 = vmatpush.bf16.msra.mxu0 %v3532
    %4654 = vmatpush.bf16.msra.mxu0 %v3531
    %4655 = vmatpush.bf16.msra.mxu0 %v3530
    %4656 = vmatpush.bf16.msra.mxu0 %v3529
    %4657 = vmatpush.bf16.msra.mxu0 %v3528
    %4658 = vmatpush.bf16.msra.mxu0 %v3527
    %4659 = vmatmul.bf16.gmra.mxu0 %v247
    %v4660 = vpop.f32.mrf.mxu0
    %v4661 = vadd.f32 %v4648, %v4660
    %v4662 = vpop.f32.mrf.mxu0
    %4663 = vdwg.mxu0
    %4664 = vmatpush.bf16.msra.mxu0 %v3542
    %4665 = vmatpush.bf16.msra.mxu0 %v3541
    %4666 = vmatpush.bf16.msra.mxu0 %v3540
    %4667 = vmatpush.bf16.msra.mxu0 %v3539
    %4668 = vmatpush.bf16.msra.mxu0 %v3538
    %4669 = vmatpush.bf16.msra.mxu0 %v3537
    %4670 = vmatpush.bf16.msra.mxu0 %v3536
    %4671 = vmatpush.bf16.msra.mxu0 %v3535
    %4672 = vmatmul.bf16.gmra.mxu0 %v248
    %v4673 = vpop.f32.mrf.mxu0
    %v4674 = vadd.f32 %v4661, %v4673
    %v4675 = vpop.f32.mrf.mxu0
    %4676 = vdwg.mxu0
    %4677 = vmatpush.bf16.msra.mxu0 %v3550
    %4678 = vmatpush.bf16.msra.mxu0 %v3549
    %4679 = vmatpush.bf16.msra.mxu0 %v3548
    %4680 = vmatpush.bf16.msra.mxu0 %v3547
    %4681 = vmatpush.bf16.msra.mxu0 %v3546
    %4682 = vmatpush.bf16.msra.mxu0 %v3545
    %4683 = vmatpush.bf16.msra.mxu0 %v3544
    %4684 = vmatpush.bf16.msra.mxu0 %v3543
    %4685 = vmatmul.bf16.gmra.mxu0 %v249
    %v4686 = vpop.f32.mrf.mxu0
    %v4687 = vadd.f32 %v4674, %v4686
    %v4688 = vpop.f32.mrf.mxu0
    %4689 = vdwg.mxu0
    %4690 = vmatpush.bf16.msra.mxu0 %v3558
    %4691 = vmatpush.bf16.msra.mxu0 %v3557
    %4692 = vmatpush.bf16.msra.mxu0 %v3556
    %4693 = vmatpush.bf16.msra.mxu0 %v3555
    %4694 = vmatpush.bf16.msra.mxu0 %v3554
    %4695 = vmatpush.bf16.msra.mxu0 %v3553
    %4696 = vmatpush.bf16.msra.mxu0 %v3552
    %4697 = vmatpush.bf16.msra.mxu0 %v3551
    %4698 = vmatmul.bf16.gmra.mxu0 %v250
    %v4699 = vpop.f32.mrf.mxu0
    %v4700 = vadd.f32 %v4687, %v4699
    %v4701 = vpop.f32.mrf.mxu0
    %4702 = vdwg.mxu0
    %4703 = vmatpush.bf16.msra.mxu0 %v3566
    %4704 = vmatpush.bf16.msra.mxu0 %v3565
    %4705 = vmatpush.bf16.msra.mxu0 %v3564
    %4706 = vmatpush.bf16.msra.mxu0 %v3563
    %4707 = vmatpush.bf16.msra.mxu0 %v3562
    %4708 = vmatpush.bf16.msra.mxu0 %v3561
    %4709 = vmatpush.bf16.msra.mxu0 %v3560
    %4710 = vmatpush.bf16.msra.mxu0 %v3559
    %4711 = vmatmul.bf16.gmra.mxu0 %v251
    %v4712 = vpop.f32.mrf.mxu0
    %v4713 = vadd.f32 %v4700, %v4712
    %v4714 = vpop.f32.mrf.mxu0
    %4715 = vdwg.mxu0
    %4716 = vmatpush.bf16.msra.mxu0 %v3574
    %4717 = vmatpush.bf16.msra.mxu0 %v3573
    %4718 = vmatpush.bf16.msra.mxu0 %v3572
    %4719 = vmatpush.bf16.msra.mxu0 %v3571
    %4720 = vmatpush.bf16.msra.mxu0 %v3570
    %4721 = vmatpush.bf16.msra.mxu0 %v3569
    %4722 = vmatpush.bf16.msra.mxu0 %v3568
    %4723 = vmatpush.bf16.msra.mxu0 %v3567
    %4724 = vmatmul.bf16.gmra.mxu0 %v252
    %v4725 = vpop.f32.mrf.mxu0
    %v4726 = vadd.f32 %v4713, %v4725
    %v4727 = vpop.f32.mrf.mxu0
    %4728 = vdwg.mxu0
    %4729 = vmatpush.bf16.msra.mxu0 %v3582
    %4730 = vmatpush.bf16.msra.mxu0 %v3581
    %4731 = vmatpush.bf16.msra.mxu0 %v3580
    %4732 = vmatpush.bf16.msra.mxu0 %v3579
    %4733 = vmatpush.bf16.msra.mxu0 %v3578
    %4734 = vmatpush.bf16.msra.mxu0 %v3577
    %4735 = vmatpush.bf16.msra.mxu0 %v3576
    %4736 = vmatpush.bf16.msra.mxu0 %v3575
    %4737 = vmatmul.bf16.gmra.mxu0 %v253
    %v4738 = vpop.f32.mrf.mxu0
    %v4739 = vadd.f32 %v4726, %v4738
    %v4740 = vpop.f32.mrf.mxu0
    %4741 = vdwg.mxu0
    %4742 = vmatpush.bf16.msra.mxu0 %v3590
    %4743 = vmatpush.bf16.msra.mxu0 %v3589
    %4744 = vmatpush.bf16.msra.mxu0 %v3588
    %4745 = vmatpush.bf16.msra.mxu0 %v3587
    %4746 = vmatpush.bf16.msra.mxu0 %v3586
    %4747 = vmatpush.bf16.msra.mxu0 %v3585
    %4748 = vmatpush.bf16.msra.mxu0 %v3584
    %4749 = vmatpush.bf16.msra.mxu0 %v3583
    %4750 = vmatmul.bf16.gmra.mxu0 %v254
    %v4751 = vpop.f32.mrf.mxu0
    %v4752 = vadd.f32 %v4739, %v4751
    %v4753 = vpop.f32.mrf.mxu0
    %4754 = vdwg.mxu0
    %4755 = vmatpush.bf16.msra.mxu0 %v3598
    %4756 = vmatpush.bf16.msra.mxu0 %v3597
    %4757 = vmatpush.bf16.msra.mxu0 %v3596
    %4758 = vmatpush.bf16.msra.mxu0 %v3595
    %4759 = vmatpush.bf16.msra.mxu0 %v3594
    %4760 = vmatpush.bf16.msra.mxu0 %v3593
    %4761 = vmatpush.bf16.msra.mxu0 %v3592
    %4762 = vmatpush.bf16.msra.mxu0 %v3591
    %4763 = vmatmul.bf16.gmra.mxu0 %v255
    %v4764 = vpop.f32.mrf.mxu0
    %v4765 = vadd.f32 %v4752, %v4764
    %v4766 = vpop.f32.mrf.mxu0
    %4767 = vdwg.mxu0
    %4768 = vmatpush.bf16.msra.mxu0 %v3606
    %4769 = vmatpush.bf16.msra.mxu0 %v3605
    %4770 = vmatpush.bf16.msra.mxu0 %v3604
    %4771 = vmatpush.bf16.msra.mxu0 %v3603
    %4772 = vmatpush.bf16.msra.mxu0 %v3602
    %4773 = vmatpush.bf16.msra.mxu0 %v3601
    %4774 = vmatpush.bf16.msra.mxu0 %v3600
    %4775 = vmatpush.bf16.msra.mxu0 %v3599
    %4776 = vmatmul.bf16.gmra.mxu0 %v256
    %v4777 = vpop.f32.mrf.mxu0
    %v4778 = vadd.f32 %v4765, %v4777
    %v4779 = vpop.f32.mrf.mxu0
    %4780 = vdwg.mxu0
    %4781 = vmatpush.bf16.msra.mxu0 %v3614
    %4782 = vmatpush.bf16.msra.mxu0 %v3613
    %4783 = vmatpush.bf16.msra.mxu0 %v3612
    %4784 = vmatpush.bf16.msra.mxu0 %v3611
    %4785 = vmatpush.bf16.msra.mxu0 %v3610
    %4786 = vmatpush.bf16.msra.mxu0 %v3609
    %4787 = vmatpush.bf16.msra.mxu0 %v3608
    %4788 = vmatpush.bf16.msra.mxu0 %v3607
    %4789 = vmatmul.bf16.gmra.mxu0 %v257
    %v4790 = vpop.f32.mrf.mxu0
    %v4791 = vadd.f32 %v4778, %v4790
    %v4792 = vpop.f32.mrf.mxu0
    %4793 = vdwg.mxu0
    %4794 = vmatpush.bf16.msra.mxu0 %v3622
    %4795 = vmatpush.bf16.msra.mxu0 %v3621
    %4796 = vmatpush.bf16.msra.mxu0 %v3620
    %4797 = vmatpush.bf16.msra.mxu0 %v3619
    %4798 = vmatpush.bf16.msra.mxu0 %v3618
    %4799 = vmatpush.bf16.msra.mxu0 %v3617
    %4800 = vmatpush.bf16.msra.mxu0 %v3616
    %4801 = vmatpush.bf16.msra.mxu0 %v3615
    %4802 = vmatmul.bf16.gmra.mxu0 %v258
    %v4803 = vpop.f32.mrf.mxu0
    %v4804 = vadd.f32 %v4791, %v4803
    %v4805 = vpop.f32.mrf.mxu0
    %4806 = vdwg.mxu0
    %4807 = vmatpush.bf16.msra.mxu0 %v3630
    %4808 = vmatpush.bf16.msra.mxu0 %v3629
    %4809 = vmatpush.bf16.msra.mxu0 %v3628
    %4810 = vmatpush.bf16.msra.mxu0 %v3627
    %4811 = vmatpush.bf16.msra.mxu0 %v3626
    %4812 = vmatpush.bf16.msra.mxu0 %v3625
    %4813 = vmatpush.bf16.msra.mxu0 %v3624
    %4814 = vmatpush.bf16.msra.mxu0 %v3623
    %4815 = vmatmul.bf16.gmra.mxu0 %v259
    %v4816 = vpop.f32.mrf.mxu0
    %v4817 = vadd.f32 %v4804, %v4816
    %v4818 = vpop.f32.mrf.mxu0
    %4819 = vdwg.mxu0
    %4820 = vmatpush.bf16.msra.mxu0 %v3638
    %4821 = vmatpush.bf16.msra.mxu0 %v3637
    %4822 = vmatpush.bf16.msra.mxu0 %v3636
    %4823 = vmatpush.bf16.msra.mxu0 %v3635
    %4824 = vmatpush.bf16.msra.mxu0 %v3634
    %4825 = vmatpush.bf16.msra.mxu0 %v3633
    %4826 = vmatpush.bf16.msra.mxu0 %v3632
    %4827 = vmatpush.bf16.msra.mxu0 %v3631
    %4828 = vmatmul.bf16.gmra.mxu0 %v260
    %v4829 = vpop.f32.mrf.mxu0
    %v4830 = vadd.f32 %v4817, %v4829
    %v4831 = vpop.f32.mrf.mxu0
    %4832 = vdwg.mxu0
    %4833 = vmatpush.bf16.msra.mxu0 %v3646
    %4834 = vmatpush.bf16.msra.mxu0 %v3645
    %4835 = vmatpush.bf16.msra.mxu0 %v3644
    %4836 = vmatpush.bf16.msra.mxu0 %v3643
    %4837 = vmatpush.bf16.msra.mxu0 %v3642
    %4838 = vmatpush.bf16.msra.mxu0 %v3641
    %4839 = vmatpush.bf16.msra.mxu0 %v3640
    %4840 = vmatpush.bf16.msra.mxu0 %v3639
    %4841 = vmatmul.bf16.gmra.mxu0 %v261
    %v4842 = vpop.f32.mrf.mxu0
    %v4843 = vadd.f32 %v4830, %v4842
    %v4844 = vpop.f32.mrf.mxu0
    %4845 = vdwg.mxu0
    %4846 = vmatpush.bf16.msra.mxu0 %v3654
    %4847 = vmatpush.bf16.msra.mxu0 %v3653
    %4848 = vmatpush.bf16.msra.mxu0 %v3652
    %4849 = vmatpush.bf16.msra.mxu0 %v3651
    %4850 = vmatpush.bf16.msra.mxu0 %v3650
    %4851 = vmatpush.bf16.msra.mxu0 %v3649
    %4852 = vmatpush.bf16.msra.mxu0 %v3648
    %4853 = vmatpush.bf16.msra.mxu0 %v3647
    %4854 = vmatmul.bf16.gmra.mxu0 %v262
    %v4855 = vpop.f32.mrf.mxu0
    %v4856 = vadd.f32 %v4843, %v4855
    %v4857 = vpop.f32.mrf.mxu0
    %4858 = vdwg.mxu0
    %4859 = vmatpush.bf16.msra.mxu0 %v3662
    %4860 = vmatpush.bf16.msra.mxu0 %v3661
    %4861 = vmatpush.bf16.msra.mxu0 %v3660
    %4862 = vmatpush.bf16.msra.mxu0 %v3659
    %4863 = vmatpush.bf16.msra.mxu0 %v3658
    %4864 = vmatpush.bf16.msra.mxu0 %v3657
    %4865 = vmatpush.bf16.msra.mxu0 %v3656
    %4866 = vmatpush.bf16.msra.mxu0 %v3655
    %4867 = vmatmul.bf16.gmra.mxu0 %v263
    %v4868 = vpop.f32.mrf.mxu0
    %v4869 = vadd.f32 %v4856, %v4868
    %v4870 = vpop.f32.mrf.mxu0
    %4871 = vdwg.mxu0
    %4872 = vmatpush.bf16.msra.mxu0 %v3670
    %4873 = vmatpush.bf16.msra.mxu0 %v3669
    %4874 = vmatpush.bf16.msra.mxu0 %v3668
    %4875 = vmatpush.bf16.msra.mxu0 %v3667
    %4876 = vmatpush.bf16.msra.mxu0 %v3666
    %4877 = vmatpush.bf16.msra.mxu0 %v3665
    %4878 = vmatpush.bf16.msra.mxu0 %v3664
    %4879 = vmatpush.bf16.msra.mxu0 %v3663
    %4880 = vmatmul.bf16.gmra.mxu0 %v264
    %v4881 = vpop.f32.mrf.mxu0
    %v4882 = vadd.f32 %v4869, %v4881
    %v4883 = vpop.f32.mrf.mxu0
    %4884 = vdwg.mxu0
    %4885 = vmatpush.bf16.msra.mxu0 %v3678
    %4886 = vmatpush.bf16.msra.mxu0 %v3677
    %4887 = vmatpush.bf16.msra.mxu0 %v3676
    %4888 = vmatpush.bf16.msra.mxu0 %v3675
    %4889 = vmatpush.bf16.msra.mxu0 %v3674
    %4890 = vmatpush.bf16.msra.mxu0 %v3673
    %4891 = vmatpush.bf16.msra.mxu0 %v3672
    %4892 = vmatpush.bf16.msra.mxu0 %v3671
    %4893 = vmatmul.bf16.gmra.mxu0 %v265
    %v4894 = vpop.f32.mrf.mxu0
    %v4895 = vadd.f32 %v4882, %v4894
    %v4896 = vpop.f32.mrf.mxu0
    %4897 = vdwg.mxu0
    %4898 = vmatpush.bf16.msra.mxu0 %v3686
    %4899 = vmatpush.bf16.msra.mxu0 %v3685
    %4900 = vmatpush.bf16.msra.mxu0 %v3684
    %4901 = vmatpush.bf16.msra.mxu0 %v3683
    %4902 = vmatpush.bf16.msra.mxu0 %v3682
    %4903 = vmatpush.bf16.msra.mxu0 %v3681
    %4904 = vmatpush.bf16.msra.mxu0 %v3680
    %4905 = vmatpush.bf16.msra.mxu0 %v3679
    %4906 = vmatmul.bf16.gmra.mxu0 %v266
    %v4907 = vpop.f32.mrf.mxu0
    %v4908 = vadd.f32 %v4895, %v4907
    %v4909 = vpop.f32.mrf.mxu0
    %4910 = vdwg.mxu0
    %4911 = vmatpush.bf16.msra.mxu0 %v3694
    %4912 = vmatpush.bf16.msra.mxu0 %v3693
    %4913 = vmatpush.bf16.msra.mxu0 %v3692
    %4914 = vmatpush.bf16.msra.mxu0 %v3691
    %4915 = vmatpush.bf16.msra.mxu0 %v3690
    %4916 = vmatpush.bf16.msra.mxu0 %v3689
    %4917 = vmatpush.bf16.msra.mxu0 %v3688
    %4918 = vmatpush.bf16.msra.mxu0 %v3687
    %4919 = vmatmul.bf16.gmra.mxu0 %v267
    %v4920 = vpop.f32.mrf.mxu0
    %v4921 = vadd.f32 %v4908, %v4920
    %v4922 = vpop.f32.mrf.mxu0
    %4923 = vdwg.mxu0
    %4924 = vmatpush.bf16.msra.mxu0 %v3702
    %4925 = vmatpush.bf16.msra.mxu0 %v3701
    %4926 = vmatpush.bf16.msra.mxu0 %v3700
    %4927 = vmatpush.bf16.msra.mxu0 %v3699
    %4928 = vmatpush.bf16.msra.mxu0 %v3698
    %4929 = vmatpush.bf16.msra.mxu0 %v3697
    %4930 = vmatpush.bf16.msra.mxu0 %v3696
    %4931 = vmatpush.bf16.msra.mxu0 %v3695
    %4932 = vmatmul.bf16.gmra.mxu0 %v268
    %v4933 = vpop.f32.mrf.mxu0
    %v4934 = vadd.f32 %v4921, %v4933
    %v4935 = vpop.f32.mrf.mxu0
    %4936 = vdwg.mxu0
    %4937 = vmatpush.bf16.msra.mxu0 %v3710
    %4938 = vmatpush.bf16.msra.mxu0 %v3709
    %4939 = vmatpush.bf16.msra.mxu0 %v3708
    %4940 = vmatpush.bf16.msra.mxu0 %v3707
    %4941 = vmatpush.bf16.msra.mxu0 %v3706
    %4942 = vmatpush.bf16.msra.mxu0 %v3705
    %4943 = vmatpush.bf16.msra.mxu0 %v3704
    %4944 = vmatpush.bf16.msra.mxu0 %v3703
    %4945 = vmatmul.bf16.gmra.mxu0 %v269
    %v4946 = vpop.f32.mrf.mxu0
    %v4947 = vadd.f32 %v4934, %v4946
    %v4948 = vpop.f32.mrf.mxu0
    %4949 = vdwg.mxu0
    %4950 = vmatpush.bf16.msra.mxu0 %v3718
    %4951 = vmatpush.bf16.msra.mxu0 %v3717
    %4952 = vmatpush.bf16.msra.mxu0 %v3716
    %4953 = vmatpush.bf16.msra.mxu0 %v3715
    %4954 = vmatpush.bf16.msra.mxu0 %v3714
    %4955 = vmatpush.bf16.msra.mxu0 %v3713
    %4956 = vmatpush.bf16.msra.mxu0 %v3712
    %4957 = vmatpush.bf16.msra.mxu0 %v3711
    %4958 = vmatmul.bf16.gmra.mxu0 %v270
    %v4959 = vpop.f32.mrf.mxu0
    %v4960 = vadd.f32 %v4947, %v4959
    %v4961 = vpop.f32.mrf.mxu0
    %4962 = vdwg.mxu0
    %4963 = vmatpush.bf16.msra.mxu0 %v3726
    %4964 = vmatpush.bf16.msra.mxu0 %v3725
    %4965 = vmatpush.bf16.msra.mxu0 %v3724
    %4966 = vmatpush.bf16.msra.mxu0 %v3723
    %4967 = vmatpush.bf16.msra.mxu0 %v3722
    %4968 = vmatpush.bf16.msra.mxu0 %v3721
    %4969 = vmatpush.bf16.msra.mxu0 %v3720
    %4970 = vmatpush.bf16.msra.mxu0 %v3719
    %4971 = vmatmul.bf16.gmra.mxu0 %v271
    %v4972 = vpop.f32.mrf.mxu0
    %v4973 = vadd.f32 %v4960, %v4972
    %v4974 = vpop.f32.mrf.mxu0
    %4975 = vdwg.mxu0
    %4976 = vmatpush.bf16.msra.mxu0 %v3734
    %4977 = vmatpush.bf16.msra.mxu0 %v3733
    %4978 = vmatpush.bf16.msra.mxu0 %v3732
    %4979 = vmatpush.bf16.msra.mxu0 %v3731
    %4980 = vmatpush.bf16.msra.mxu0 %v3730
    %4981 = vmatpush.bf16.msra.mxu0 %v3729
    %4982 = vmatpush.bf16.msra.mxu0 %v3728
    %4983 = vmatpush.bf16.msra.mxu0 %v3727
    %4984 = vmatmul.bf16.gmra.mxu0 %v272
    %v4985 = vpop.f32.mrf.mxu0
    %v4986 = vadd.f32 %v4973, %v4985
    %v4987 = vpop.f32.mrf.mxu0
    %4988 = vdwg.mxu0
    %4989 = vmatpush.bf16.msra.mxu0 %v3742
    %4990 = vmatpush.bf16.msra.mxu0 %v3741
    %4991 = vmatpush.bf16.msra.mxu0 %v3740
    %4992 = vmatpush.bf16.msra.mxu0 %v3739
    %4993 = vmatpush.bf16.msra.mxu0 %v3738
    %4994 = vmatpush.bf16.msra.mxu0 %v3737
    %4995 = vmatpush.bf16.msra.mxu0 %v3736
    %4996 = vmatpush.bf16.msra.mxu0 %v3735
    %4997 = vmatmul.bf16.gmra.mxu0 %v273
    %v4998 = vpop.f32.mrf.mxu0
    %v4999 = vadd.f32 %v4986, %v4998
    %v5000 = vpop.f32.mrf.mxu0
    %5001 = vdwg.mxu0
    %5002 = vmatpush.bf16.msra.mxu0 %v3750
    %5003 = vmatpush.bf16.msra.mxu0 %v3749
    %5004 = vmatpush.bf16.msra.mxu0 %v3748
    %5005 = vmatpush.bf16.msra.mxu0 %v3747
    %5006 = vmatpush.bf16.msra.mxu0 %v3746
    %5007 = vmatpush.bf16.msra.mxu0 %v3745
    %5008 = vmatpush.bf16.msra.mxu0 %v3744
    %5009 = vmatpush.bf16.msra.mxu0 %v3743
    %5010 = vmatmul.bf16.gmra.mxu0 %v274
    %v5011 = vpop.f32.mrf.mxu0
    %v5012 = vadd.f32 %v4999, %v5011
    %v5013 = vpop.f32.mrf.mxu0
    %5014 = vdwg.mxu0
    %5015 = vmatpush.bf16.msra.mxu0 %v3758
    %5016 = vmatpush.bf16.msra.mxu0 %v3757
    %5017 = vmatpush.bf16.msra.mxu0 %v3756
    %5018 = vmatpush.bf16.msra.mxu0 %v3755
    %5019 = vmatpush.bf16.msra.mxu0 %v3754
    %5020 = vmatpush.bf16.msra.mxu0 %v3753
    %5021 = vmatpush.bf16.msra.mxu0 %v3752
    %5022 = vmatpush.bf16.msra.mxu0 %v3751
    %5023 = vmatmul.bf16.gmra.mxu0 %v275
    %v5024 = vpop.f32.mrf.mxu0
    %v5025 = vadd.f32 %v5012, %v5024
    %v5026 = vpop.f32.mrf.mxu0
    %5027 = vdwg.mxu0
    %5028 = vmatpush.bf16.msra.mxu0 %v3766
    %5029 = vmatpush.bf16.msra.mxu0 %v3765
    %5030 = vmatpush.bf16.msra.mxu0 %v3764
    %5031 = vmatpush.bf16.msra.mxu0 %v3763
    %5032 = vmatpush.bf16.msra.mxu0 %v3762
    %5033 = vmatpush.bf16.msra.mxu0 %v3761
    %5034 = vmatpush.bf16.msra.mxu0 %v3760
    %5035 = vmatpush.bf16.msra.mxu0 %v3759
    %5036 = vmatmul.bf16.gmra.mxu0 %v276
    %v5037 = vpop.f32.mrf.mxu0
    %v5038 = vadd.f32 %v5025, %v5037
    %v5039 = vpop.f32.mrf.mxu0
    %5040 = vdwg.mxu0
    %5041 = vmatpush.bf16.msra.mxu0 %v3774
    %5042 = vmatpush.bf16.msra.mxu0 %v3773
    %5043 = vmatpush.bf16.msra.mxu0 %v3772
    %5044 = vmatpush.bf16.msra.mxu0 %v3771
    %5045 = vmatpush.bf16.msra.mxu0 %v3770
    %5046 = vmatpush.bf16.msra.mxu0 %v3769
    %5047 = vmatpush.bf16.msra.mxu0 %v3768
    %5048 = vmatpush.bf16.msra.mxu0 %v3767
    %5049 = vmatmul.bf16.gmra.mxu0 %v277
    %v5050 = vpop.f32.mrf.mxu0
    %v5051 = vadd.f32 %v5038, %v5050
    %v5052 = vpop.f32.mrf.mxu0
    %5053 = vdwg.mxu0
    %5054 = vmatpush.bf16.msra.mxu0 %v3782
    %5055 = vmatpush.bf16.msra.mxu0 %v3781
    %5056 = vmatpush.bf16.msra.mxu0 %v3780
    %5057 = vmatpush.bf16.msra.mxu0 %v3779
    %5058 = vmatpush.bf16.msra.mxu0 %v3778
    %5059 = vmatpush.bf16.msra.mxu0 %v3777
    %5060 = vmatpush.bf16.msra.mxu0 %v3776
    %5061 = vmatpush.bf16.msra.mxu0 %v3775
    %5062 = vmatmul.bf16.gmra.mxu0 %v278
    %v5063 = vpop.f32.mrf.mxu0
    %v5064 = vadd.f32 %v5051, %v5063
    %v5065 = vpop.f32.mrf.mxu0
    %5066 = vdwg.mxu0
    %5067 = vmatpush.bf16.msra.mxu0 %v3790
    %5068 = vmatpush.bf16.msra.mxu0 %v3789
    %5069 = vmatpush.bf16.msra.mxu0 %v3788
    %5070 = vmatpush.bf16.msra.mxu0 %v3787
    %5071 = vmatpush.bf16.msra.mxu0 %v3786
    %5072 = vmatpush.bf16.msra.mxu0 %v3785
    %5073 = vmatpush.bf16.msra.mxu0 %v3784
    %5074 = vmatpush.bf16.msra.mxu0 %v3783
    %5075 = vmatmul.bf16.gmra.mxu0 %v279
    %v5076 = vpop.f32.mrf.mxu0
    %v5077 = vadd.f32 %v5064, %v5076
    %v5078 = vpop.f32.mrf.mxu0
    %5079 = vdwg.mxu0
    %5080 = vmatpush.bf16.msra.mxu0 %v3798
    %5081 = vmatpush.bf16.msra.mxu0 %v3797
    %5082 = vmatpush.bf16.msra.mxu0 %v3796
    %5083 = vmatpush.bf16.msra.mxu0 %v3795
    %5084 = vmatpush.bf16.msra.mxu0 %v3794
    %5085 = vmatpush.bf16.msra.mxu0 %v3793
    %5086 = vmatpush.bf16.msra.mxu0 %v3792
    %5087 = vmatpush.bf16.msra.mxu0 %v3791
    %5088 = vmatmul.bf16.gmra.mxu0 %v280
    %v5089 = vpop.f32.mrf.mxu0
    %v5090 = vadd.f32 %v5077, %v5089
    %v5091 = vpop.f32.mrf.mxu0
    %5092 = vdwg.mxu0
    %5093 = vmatpush.bf16.msra.mxu0 %v3806
    %5094 = vmatpush.bf16.msra.mxu0 %v3805
    %5095 = vmatpush.bf16.msra.mxu0 %v3804
    %5096 = vmatpush.bf16.msra.mxu0 %v3803
    %5097 = vmatpush.bf16.msra.mxu0 %v3802
    %5098 = vmatpush.bf16.msra.mxu0 %v3801
    %5099 = vmatpush.bf16.msra.mxu0 %v3800
    %5100 = vmatpush.bf16.msra.mxu0 %v3799
    %5101 = vmatmul.bf16.gmra.mxu0 %v281
    %v5102 = vpop.f32.mrf.mxu0
    %v5103 = vadd.f32 %v5090, %v5102
    %v5104 = vpop.f32.mrf.mxu0
    %5105 = vdwg.mxu0
    %5106 = vmatpush.bf16.msra.mxu0 %v3814
    %5107 = vmatpush.bf16.msra.mxu0 %v3813
    %5108 = vmatpush.bf16.msra.mxu0 %v3812
    %5109 = vmatpush.bf16.msra.mxu0 %v3811
    %5110 = vmatpush.bf16.msra.mxu0 %v3810
    %5111 = vmatpush.bf16.msra.mxu0 %v3809
    %5112 = vmatpush.bf16.msra.mxu0 %v3808
    %5113 = vmatpush.bf16.msra.mxu0 %v3807
    %5114 = vmatmul.bf16.gmra.mxu0 %v282
    %v5115 = vpop.f32.mrf.mxu0
    %v5116 = vadd.f32 %v5103, %v5115
    %v5117 = vpop.f32.mrf.mxu0
    %5118 = vdwg.mxu0
    %5119 = vmatpush.bf16.msra.mxu0 %v3822
    %5120 = vmatpush.bf16.msra.mxu0 %v3821
    %5121 = vmatpush.bf16.msra.mxu0 %v3820
    %5122 = vmatpush.bf16.msra.mxu0 %v3819
    %5123 = vmatpush.bf16.msra.mxu0 %v3818
    %5124 = vmatpush.bf16.msra.mxu0 %v3817
    %5125 = vmatpush.bf16.msra.mxu0 %v3816
    %5126 = vmatpush.bf16.msra.mxu0 %v3815
    %5127 = vmatmul.bf16.gmra.mxu0 %v283
    %v5128 = vpop.f32.mrf.mxu0
    %v5129 = vadd.f32 %v5116, %v5128
    %v5130 = vpop.f32.mrf.mxu0
    %5131 = vdwg.mxu0
    %5132 = vmatpush.bf16.msra.mxu0 %v3830
    %5133 = vmatpush.bf16.msra.mxu0 %v3829
    %5134 = vmatpush.bf16.msra.mxu0 %v3828
    %5135 = vmatpush.bf16.msra.mxu0 %v3827
    %5136 = vmatpush.bf16.msra.mxu0 %v3826
    %5137 = vmatpush.bf16.msra.mxu0 %v3825
    %5138 = vmatpush.bf16.msra.mxu0 %v3824
    %5139 = vmatpush.bf16.msra.mxu0 %v3823
    %5140 = vmatmul.bf16.gmra.mxu0 %v284
    %v5141 = vpop.f32.mrf.mxu0
    %v5142 = vadd.f32 %v5129, %v5141
    %v5143 = vpop.f32.mrf.mxu0
    %5144 = vdwg.mxu0
    %5145 = vmatpush.bf16.msra.mxu0 %v3838
    %5146 = vmatpush.bf16.msra.mxu0 %v3837
    %5147 = vmatpush.bf16.msra.mxu0 %v3836
    %5148 = vmatpush.bf16.msra.mxu0 %v3835
    %5149 = vmatpush.bf16.msra.mxu0 %v3834
    %5150 = vmatpush.bf16.msra.mxu0 %v3833
    %5151 = vmatpush.bf16.msra.mxu0 %v3832
    %5152 = vmatpush.bf16.msra.mxu0 %v3831
    %5153 = vmatmul.bf16.gmra.mxu0 %v285
    %v5154 = vpop.f32.mrf.mxu0
    %v5155 = vadd.f32 %v5142, %v5154
    %v5156 = vpop.f32.mrf.mxu0
    %5157 = vdwg.mxu0
    %5158 = vmatpush.bf16.msra.mxu0 %v3846
    %5159 = vmatpush.bf16.msra.mxu0 %v3845
    %5160 = vmatpush.bf16.msra.mxu0 %v3844
    %5161 = vmatpush.bf16.msra.mxu0 %v3843
    %5162 = vmatpush.bf16.msra.mxu0 %v3842
    %5163 = vmatpush.bf16.msra.mxu0 %v3841
    %5164 = vmatpush.bf16.msra.mxu0 %v3840
    %5165 = vmatpush.bf16.msra.mxu0 %v3839
    %5166 = vmatmul.bf16.gmra.mxu0 %v286
    %v5167 = vpop.f32.mrf.mxu0
    %v5168 = vadd.f32 %v5155, %v5167
    %v5169 = vpop.f32.mrf.mxu0
    %5170 = vdwg.mxu0
    %5171 = vmatpush.bf16.msra.mxu0 %v3854
    %5172 = vmatpush.bf16.msra.mxu0 %v3853
    %5173 = vmatpush.bf16.msra.mxu0 %v3852
    %5174 = vmatpush.bf16.msra.mxu0 %v3851
    %5175 = vmatpush.bf16.msra.mxu0 %v3850
    %5176 = vmatpush.bf16.msra.mxu0 %v3849
    %5177 = vmatpush.bf16.msra.mxu0 %v3848
    %5178 = vmatpush.bf16.msra.mxu0 %v3847
    %5179 = vmatmul.bf16.gmra.mxu0 %v287
    %v5180 = vpop.f32.mrf.mxu0
    %v5181 = vadd.f32 %v5168, %v5180
    %v5182 = vpop.f32.mrf.mxu0
    %5183 = vdwg.mxu0
    %5184 = vmatpush.bf16.msra.mxu0 %v3862
    %5185 = vmatpush.bf16.msra.mxu0 %v3861
    %5186 = vmatpush.bf16.msra.mxu0 %v3860
    %5187 = vmatpush.bf16.msra.mxu0 %v3859
    %5188 = vmatpush.bf16.msra.mxu0 %v3858
    %5189 = vmatpush.bf16.msra.mxu0 %v3857
    %5190 = vmatpush.bf16.msra.mxu0 %v3856
    %5191 = vmatpush.bf16.msra.mxu0 %v3855
    %5192 = vmatmul.bf16.gmra.mxu0 %v288
    %v5193 = vpop.f32.mrf.mxu0
    %v5194 = vadd.f32 %v5181, %v5193
    %v5195 = vpop.f32.mrf.mxu0
    %5196 = vdwg.mxu0
    %5197 = vmatpush.bf16.msra.mxu0 %v3870
    %5198 = vmatpush.bf16.msra.mxu0 %v3869
    %5199 = vmatpush.bf16.msra.mxu0 %v3868
    %5200 = vmatpush.bf16.msra.mxu0 %v3867
    %5201 = vmatpush.bf16.msra.mxu0 %v3866
    %5202 = vmatpush.bf16.msra.mxu0 %v3865
    %5203 = vmatpush.bf16.msra.mxu0 %v3864
    %5204 = vmatpush.bf16.msra.mxu0 %v3863
    %5205 = vmatmul.bf16.gmra.mxu0 %v289
    %v5206 = vpop.f32.mrf.mxu0
    %v5207 = vadd.f32 %v5194, %v5206
    %v5208 = vpop.f32.mrf.mxu0
    %5209 = vdwg.mxu0
    %5210 = vmatpush.bf16.msra.mxu0 %v3878
    %5211 = vmatpush.bf16.msra.mxu0 %v3877
    %5212 = vmatpush.bf16.msra.mxu0 %v3876
    %5213 = vmatpush.bf16.msra.mxu0 %v3875
    %5214 = vmatpush.bf16.msra.mxu0 %v3874
    %5215 = vmatpush.bf16.msra.mxu0 %v3873
    %5216 = vmatpush.bf16.msra.mxu0 %v3872
    %5217 = vmatpush.bf16.msra.mxu0 %v3871
    %5218 = vmatmul.bf16.gmra.mxu0 %v290
    %v5219 = vpop.f32.mrf.mxu0
    %v5220 = vadd.f32 %v5207, %v5219
    %v5221 = vpop.f32.mrf.mxu0
    %5222 = vdwg.mxu0
    %v5223 = vmul.f32 %v5220, 0.5
    %v5224 = vmul.f32 %v5220, 0.70710677
    %v5225 = vmul.f32 %v5224, %v5224
    %v5226 = vmin.f32 16.0, %v5225
    %v5227 = vmul.f32 %v5226, 2.1237322e-06
    %v5228 = vadd.f32 %v5227, 0.00028619796
    %v5229 = vmul.f32 %v5226, %v5228
    %v5230 = vadd.f32 %v5229, 0.0036580483
    %v5231 = vmul.f32 %v5226, %v5230
    %v5232 = vadd.f32 %v5231, 0.05243302
    %v5233 = vmul.f32 %v5226, %v5232
    %v5234 = vadd.f32 %v5233, 0.18741608
    %v5235 = vmul.f32 %v5226, %v5234
    %v5236 = vadd.f32 %v5235, 1.1283791
    %v5237 = vmul.f32 %v5224, %v5236
    %v5238 = vmul.f32 %v5226, 3.8918573e-05
    %v5239 = vadd.f32 %v5238, 0.001143296
    %v5240 = vmul.f32 %v5226, %v5239
    %v5241 = vadd.f32 %v5240, 0.014752088
    %v5242 = vmul.f32 %v5226, %v5241
    %v5243 = vadd.f32 %v5242, 0.112945676
    %v5244 = vmul.f32 %v5226, %v5243
    %v5245 = vadd.f32 %v5244, 0.4994258
    %v5246 = vmul.f32 %v5226, %v5245
    %v5247 = vadd.f32 %v5246, 1.0
    %v5248 = vrcp.pop %v5247
    %v5249 = vmul.f32 %v5247, %v5248
    %v5250 = vsub.f32 1.0, %v5249
    %v5251 = vmul.f32 %v5248, %v5250
    %v5252 = vadd.f32 %v5248, %v5251
    %vm5253 = vweird.f32 %v5247
    %vm5254 = vweird.f32 %v5248
    %vm5255 = vmor %vm5253, %vm5254
    %v5256 = vsel %vm5255, %v5248, %v5252
    %v5257 = vand.u32 2147483647, %v5247
    %vm5258 = vcmp.eq.f32.partialorder %v5257, 8.507059e+37
    %v5259 = vand.u32 %v5247, 2147483648
    %v5260 = vor.u32 1.1754944e-38, %v5259
    %v5261 = vsel %vm5258, %v5260, %v5256
    %v5262 = vmul.f32 %v5237, %v5261
    %v5263 = vmin.f32 %v5262, 1.0
    %v5264 = vmax.f32 %v5263, -1.0
    %v5265 = vadd.f32 %v5264, 1.0
    %v5266 = vmul.f32 %v5223, %v5265
    %v5267 = vld [vmem:[#allocation8] sm:$0xff]
    %v5268 = vld [vmem:[#allocation8 + $0x8] sm:$0xff]
    %v5269 = vld [vmem:[#allocation8 + $0x10] sm:$0xff]
    %v5270 = vld [vmem:[#allocation8 + $0x18] sm:$0xff]
    %v5271 = vld [vmem:[#allocation8 + $0x20] sm:$0xff]
    %v5272 = vld [vmem:[#allocation8 + $0x28] sm:$0xff]
    %v5273 = vld [vmem:[#allocation8 + $0x30] sm:$0xff]
    %v5274 = vld [vmem:[#allocation8 + $0x38] sm:$0xff]
    %v5275 = vld [vmem:[#allocation8 + $0x40] sm:$0xff]
    %v5276 = vld [vmem:[#allocation8 + $0x48] sm:$0xff]
    %v5277 = vld [vmem:[#allocation8 + $0x50] sm:$0xff]
    %v5278 = vld [vmem:[#allocation8 + $0x58] sm:$0xff]
    %v5279 = vld [vmem:[#allocation8 + $0x60] sm:$0xff]
    %v5280 = vld [vmem:[#allocation8 + $0x68] sm:$0xff]
    %v5281 = vld [vmem:[#allocation8 + $0x70] sm:$0xff]
    %v5282 = vld [vmem:[#allocation8 + $0x78] sm:$0xff]
    %v5283 = vld [vmem:[#allocation8 + $0x80] sm:$0xff]
    %v5284 = vld [vmem:[#allocation8 + $0x88] sm:$0xff]
    %v5285 = vld [vmem:[#allocation8 + $0x90] sm:$0xff]
    %v5286 = vld [vmem:[#allocation8 + $0x98] sm:$0xff]
    %v5287 = vld [vmem:[#allocation8 + $0xa0] sm:$0xff]
    %v5288 = vld [vmem:[#allocation8 + $0xa8] sm:$0xff]
    %v5289 = vld [vmem:[#allocation8 + $0xb0] sm:$0xff]
    %v5290 = vld [vmem:[#allocation8 + $0xb8] sm:$0xff]
    %v5291 = vld [vmem:[#allocation8 + $0xc0] sm:$0xff]
    %v5292 = vld [vmem:[#allocation8 + $0xc8] sm:$0xff]
    %v5293 = vld [vmem:[#allocation8 + $0xd0] sm:$0xff]
    %v5294 = vld [vmem:[#allocation8 + $0xd8] sm:$0xff]
    %v5295 = vld [vmem:[#allocation8 + $0xe0] sm:$0xff]
    %v5296 = vld [vmem:[#allocation8 + $0xe8] sm:$0xff]
    %v5297 = vld [vmem:[#allocation8 + $0xf0] sm:$0xff]
    %v5298 = vld [vmem:[#allocation8 + $0xf8] sm:$0xff]
    %v5299 = vld [vmem:[#allocation10] sm:$0x3]
    %v5301 = vperm.slane %v5299, 0
    %v5302 = vperm.slane %v5299, 1
    %5305 = vmatpush.msra.mxu0 %v5297
    %5306 = vmatpush.msra.mxu0 %v5295
    %5307 = vmatpush.msra.mxu0 %v5293
    %5308 = vmatpush.msra.mxu0 %v5291
    %5309 = vmatpush.msra.mxu0 %v5289
    %5310 = vmatpush.msra.mxu0 %v5287
    %5311 = vmatpush.msra.mxu0 %v5285
    %5312 = vmatpush.msra.mxu0 %v5283
    %5313 = vmatpush.msra.mxu0 %v5281
    %5314 = vmatpush.msra.mxu0 %v5279
    %5315 = vmatpush.msra.mxu0 %v5277
    %5316 = vmatpush.msra.mxu0 %v5275
    %5317 = vmatpush.msra.mxu0 %v5273
    %5318 = vmatpush.msra.mxu0 %v5271
    %5319 = vmatpush.msra.mxu0 %v5269
    %5320 = vmatpush.msra.mxu0 %v5267
    %5321 = vmatmul.f32.gmra.mxu0 %v5266
    %v5322 = vpop.f32.mrf.mxu0
    %v5323 = vadd.f32 %v5301, %v5322
    %5324 = vdwg.mxu0
    %5325 = vmatpush.msra.mxu0 %v5298
    %5326 = vmatpush.msra.mxu0 %v5296
    %5327 = vmatpush.msra.mxu0 %v5294
    %5328 = vmatpush.msra.mxu0 %v5292
    %5329 = vmatpush.msra.mxu0 %v5290
    %5330 = vmatpush.msra.mxu0 %v5288
    %5331 = vmatpush.msra.mxu0 %v5286
    %5332 = vmatpush.msra.mxu0 %v5284
    %5333 = vmatpush.msra.mxu0 %v5282
    %5334 = vmatpush.msra.mxu0 %v5280
    %5335 = vmatpush.msra.mxu0 %v5278
    %5336 = vmatpush.msra.mxu0 %v5276
    %5337 = vmatpush.msra.mxu0 %v5274
    %5338 = vmatpush.msra.mxu0 %v5272
    %5339 = vmatpush.msra.mxu0 %v5270
    %5340 = vmatpush.msra.mxu0 %v5268
    %5341 = vmatmul.f32.gmra.mxu0 %v5266
    %v5342 = vpop.f32.mrf.mxu0
    %v5343 = vadd.f32 %v5302, %v5342
    %5344 = vdwg.mxu0
    %v5345 = vmul.f32 %v5323, 0.5
    %v5346 = vmul.f32 %v5343, 0.5
    %v5347 = vmul.f32 %v5323, 0.70710677
    %v5348 = vmul.f32 %v5343, 0.70710677
    %v5349 = vmul.f32 %v5347, %v5347
    %v5350 = vmin.f32 16.0, %v5349
    %v5351 = vmul.f32 %v5350, 2.1237322e-06
    %v5352 = vadd.f32 %v5351, 0.00028619796
    %v5353 = vmul.f32 %v5350, %v5352
    %v5354 = vadd.f32 %v5353, 0.0036580483
    %v5355 = vmul.f32 %v5350, %v5354
    %v5356 = vadd.f32 %v5355, 0.05243302
    %v5357 = vmul.f32 %v5350, %v5356
    %v5358 = vadd.f32 %v5357, 0.18741608
    %v5359 = vmul.f32 %v5350, %v5358
    %v5360 = vadd.f32 %v5359, 1.1283791
    %v5361 = vmul.f32 %v5347, %v5360
    %v5362 = vmul.f32 %v5350, 3.8918573e-05
    %v5363 = vadd.f32 %v5362, 0.001143296
    %v5364 = vmul.f32 %v5350, %v5363
    %v5365 = vadd.f32 %v5364, 0.014752088
    %v5366 = vmul.f32 %v5350, %v5365
    %v5367 = vadd.f32 %v5366, 0.112945676
    %v5368 = vmul.f32 %v5350, %v5367
    %v5369 = vadd.f32 %v5368, 0.4994258
    %v5370 = vmul.f32 %v5350, %v5369
    %v5371 = vadd.f32 %v5370, 1.0
    %v5372 = vrcp.pop %v5371
    %v5373 = vmul.f32 %v5371, %v5372
    %v5374 = vsub.f32 1.0, %v5373
    %v5375 = vmul.f32 %v5372, %v5374
    %v5376 = vadd.f32 %v5372, %v5375
    %vm5377 = vweird.f32 %v5371
    %vm5378 = vweird.f32 %v5372
    %vm5379 = vmor %vm5377, %vm5378
    %v5380 = vsel %vm5379, %v5372, %v5376
    %v5381 = vand.u32 2147483647, %v5371
    %vm5382 = vcmp.eq.f32.partialorder %v5381, 8.507059e+37
    %v5383 = vand.u32 %v5371, 2147483648
    %v5384 = vor.u32 1.1754944e-38, %v5383
    %v5385 = vsel %vm5382, %v5384, %v5380
    %v5386 = vmul.f32 %v5361, %v5385
    %v5387 = vmin.f32 %v5386, 1.0
    %v5388 = vmax.f32 %v5387, -1.0
    %v5389 = vmul.f32 %v5348, %v5348
    %v5390 = vmin.f32 16.0, %v5389
    %v5391 = vmul.f32 %v5390, 2.1237322e-06
    %v5392 = vadd.f32 %v5391, 0.00028619796
    %v5393 = vmul.f32 %v5390, %v5392
    %v5394 = vadd.f32 %v5393, 0.0036580483
    %v5395 = vmul.f32 %v5390, %v5394
    %v5396 = vadd.f32 %v5395, 0.05243302
    %v5397 = vmul.f32 %v5390, %v5396
    %v5398 = vadd.f32 %v5397, 0.18741608
    %v5399 = vmul.f32 %v5390, %v5398
    %v5400 = vadd.f32 %v5399, 1.1283791
    %v5401 = vmul.f32 %v5348, %v5400
    %v5402 = vmul.f32 %v5390, 3.8918573e-05
    %v5403 = vadd.f32 %v5402, 0.001143296
    %v5404 = vmul.f32 %v5390, %v5403
    %v5405 = vadd.f32 %v5404, 0.014752088
    %v5406 = vmul.f32 %v5390, %v5405
    %v5407 = vadd.f32 %v5406, 0.112945676
    %v5408 = vmul.f32 %v5390, %v5407
    %v5409 = vadd.f32 %v5408, 0.4994258
    %v5410 = vmul.f32 %v5390, %v5409
    %v5411 = vadd.f32 %v5410, 1.0
    %v5412 = vrcp.pop %v5411
    %v5413 = vmul.f32 %v5411, %v5412
    %v5414 = vsub.f32 1.0, %v5413
    %v5415 = vmul.f32 %v5412, %v5414
    %v5416 = vadd.f32 %v5412, %v5415
    %vm5417 = vweird.f32 %v5411
    %vm5418 = vweird.f32 %v5412
    %vm5419 = vmor %vm5417, %vm5418
    %v5420 = vsel %vm5419, %v5412, %v5416
    %v5421 = vand.u32 2147483647, %v5411
    %vm5422 = vcmp.eq.f32.partialorder %v5421, 8.507059e+37
    %v5423 = vand.u32 %v5411, 2147483648
    %v5424 = vor.u32 1.1754944e-38, %v5423
    %v5425 = vsel %vm5422, %v5424, %v5420
    %v5426 = vmul.f32 %v5401, %v5425
    %v5427 = vmin.f32 %v5426, 1.0
    %v5428 = vmax.f32 %v5427, -1.0
    %v5429 = vadd.f32 %v5388, 1.0
    %v5430 = vadd.f32 %v5428, 1.0
    %v5431 = vmul.f32 %v5345, %v5429
    %v5432 = vmul.f32 %v5346, %v5430
    %v5433 = vld [vmem:[#allocation11] sm:$0xff]
    %v5434 = vld [vmem:[#allocation11 + $0x8] sm:$0xff]
    %v5435 = vld [vmem:[#allocation11 + $0x10] sm:$0xff]
    %v5436 = vld [vmem:[#allocation11 + $0x18] sm:$0xff]
    %v5437 = vld [vmem:[#allocation11 + $0x20] sm:$0xff]
    %v5438 = vld [vmem:[#allocation11 + $0x28] sm:$0xff]
    %v5439 = vld [vmem:[#allocation11 + $0x30] sm:$0xff]
    %v5440 = vld [vmem:[#allocation11 + $0x38] sm:$0xff]
    %v5441 = vld [vmem:[#allocation11 + $0x40] sm:$0xff]
    %v5442 = vld [vmem:[#allocation11 + $0x48] sm:$0xff]
    %v5443 = vld [vmem:[#allocation11 + $0x50] sm:$0xff]
    %v5444 = vld [vmem:[#allocation11 + $0x58] sm:$0xff]
    %v5445 = vld [vmem:[#allocation11 + $0x60] sm:$0xff]
    %v5446 = vld [vmem:[#allocation11 + $0x68] sm:$0xff]
    %v5447 = vld [vmem:[#allocation11 + $0x70] sm:$0xff]
    %v5448 = vld [vmem:[#allocation11 + $0x78] sm:$0xff]
    %v5449 = vld [vmem:[#allocation11 + $0x80] sm:$0xff]
    %v5450 = vld [vmem:[#allocation11 + $0x88] sm:$0xff]
    %v5451 = vld [vmem:[#allocation11 + $0x90] sm:$0xff]
    %v5452 = vld [vmem:[#allocation11 + $0x98] sm:$0xff]
    %v5453 = vld [vmem:[#allocation11 + $0xa0] sm:$0xff]
    %v5454 = vld [vmem:[#allocation11 + $0xa8] sm:$0xff]
    %v5455 = vld [vmem:[#allocation11 + $0xb0] sm:$0xff]
    %v5456 = vld [vmem:[#allocation11 + $0xb8] sm:$0xff]
    %v5457 = vld [vmem:[#allocation11 + $0xc0] sm:$0xff]
    %v5458 = vld [vmem:[#allocation11 + $0xc8] sm:$0xff]
    %v5459 = vld [vmem:[#allocation11 + $0xd0] sm:$0xff]
    %v5460 = vld [vmem:[#allocation11 + $0xd8] sm:$0xff]
    %v5461 = vld [vmem:[#allocation11 + $0xe0] sm:$0xff]
    %v5462 = vld [vmem:[#allocation11 + $0xe8] sm:$0xff]
    %v5463 = vld [vmem:[#allocation11 + $0xf0] sm:$0xff]
    %v5464 = vld [vmem:[#allocation11 + $0xf8] sm:$0xff]
    %v5465 = vld [vmem:[#allocation13] sm:$0x1]
    %v5467 = vperm.slane %v5465, 0
    %5469 = vmatpush.msra.mxu0 %v5448
    %5470 = vmatpush.msra.mxu0 %v5447
    %5471 = vmatpush.msra.mxu0 %v5446
    %5472 = vmatpush.msra.mxu0 %v5445
    %5473 = vmatpush.msra.mxu0 %v5444
    %5474 = vmatpush.msra.mxu0 %v5443
    %5475 = vmatpush.msra.mxu0 %v5442
    %5476 = vmatpush.msra.mxu0 %v5441
    %5477 = vmatpush.msra.mxu0 %v5440
    %5478 = vmatpush.msra.mxu0 %v5439
    %5479 = vmatpush.msra.mxu0 %v5438
    %5480 = vmatpush.msra.mxu0 %v5437
    %5481 = vmatpush.msra.mxu0 %v5436
    %5482 = vmatpush.msra.mxu0 %v5435
    %5483 = vmatpush.msra.mxu0 %v5434
    %5484 = vmatpush.msra.mxu0 %v5433
    %5485 = vmatmul.f32.gmra.mxu0 %v5431
    %v5486 = vpop.f32.mrf.mxu0
    %v5487 = vadd.f32 %v5467, %v5486
    %5488 = vdwg.mxu0
    %5489 = vmatpush.msra.mxu0 %v5464
    %5490 = vmatpush.msra.mxu0 %v5463
    %5491 = vmatpush.msra.mxu0 %v5462
    %5492 = vmatpush.msra.mxu0 %v5461
    %5493 = vmatpush.msra.mxu0 %v5460
    %5494 = vmatpush.msra.mxu0 %v5459
    %5495 = vmatpush.msra.mxu0 %v5458
    %5496 = vmatpush.msra.mxu0 %v5457
    %5497 = vmatpush.msra.mxu0 %v5456
    %5498 = vmatpush.msra.mxu0 %v5455
    %5499 = vmatpush.msra.mxu0 %v5454
    %5500 = vmatpush.msra.mxu0 %v5453
    %5501 = vmatpush.msra.mxu0 %v5452
    %5502 = vmatpush.msra.mxu0 %v5451
    %5503 = vmatpush.msra.mxu0 %v5450
    %5504 = vmatpush.msra.mxu0 %v5449
    %5505 = vmatmul.f32.gmra.mxu0 %v5432
    %v5506 = vpop.f32.mrf.mxu0
    %v5507 = vadd.f32 %v5487, %v5506
    %5508 = vdwg.mxu0
    %v5509 = vmul.f32 %v5507, 0.5
    %v5510 = vmul.f32 %v5507, 0.70710677
    %v5511 = vmul.f32 %v5510, %v5510
    %v5512 = vmin.f32 16.0, %v5511
    %v5513 = vmul.f32 %v5512, 2.1237322e-06
    %v5514 = vadd.f32 %v5513, 0.00028619796
    %v5515 = vmul.f32 %v5512, %v5514
    %v5516 = vadd.f32 %v5515, 0.0036580483
    %v5517 = vmul.f32 %v5512, %v5516
    %v5518 = vadd.f32 %v5517, 0.05243302
    %v5519 = vmul.f32 %v5512, %v5518
    %v5520 = vadd.f32 %v5519, 0.18741608
    %v5521 = vmul.f32 %v5512, %v5520
    %v5522 = vadd.f32 %v5521, 1.1283791
    %v5523 = vmul.f32 %v5510, %v5522
    %v5524 = vmul.f32 %v5512, 3.8918573e-05
    %v5525 = vadd.f32 %v5524, 0.001143296
    %v5526 = vmul.f32 %v5512, %v5525
    %v5527 = vadd.f32 %v5526, 0.014752088
    %v5528 = vmul.f32 %v5512, %v5527
    %v5529 = vadd.f32 %v5528, 0.112945676
    %v5530 = vmul.f32 %v5512, %v5529
    %v5531 = vadd.f32 %v5530, 0.4994258
    %v5532 = vmul.f32 %v5512, %v5531
    %v5533 = vadd.f32 %v5532, 1.0
    %v5534 = vrcp.pop %v5533
    %v5535 = vmul.f32 %v5533, %v5534
    %v5536 = vsub.f32 1.0, %v5535
    %v5537 = vmul.f32 %v5534, %v5536
    %v5538 = vadd.f32 %v5534, %v5537
    %vm5539 = vweird.f32 %v5533
    %vm5540 = vweird.f32 %v5534
    %vm5541 = vmor %vm5539, %vm5540
    %v5542 = vsel %vm5541, %v5534, %v5538
    %v5543 = vand.u32 2147483647, %v5533
    %vm5544 = vcmp.eq.f32.partialorder %v5543, 8.507059e+37
    %v5545 = vand.u32 %v5533, 2147483648
    %v5546 = vor.u32 1.1754944e-38, %v5545
    %v5547 = vsel %vm5544, %v5546, %v5542
    %v5548 = vmul.f32 %v5523, %v5547
    %v5549 = vmin.f32 %v5548, 1.0
    %v5550 = vmax.f32 %v5549, -1.0
    %v5551 = vadd.f32 %v5550, 1.0
    %v5552 = vmul.f32 %v5509, %v5551
    %v5553 = vpack.c.bf16 %v5552, %v5552
    %v5554 = vld [vmem:[#allocation14] sm:$0xff]
    %v5555 = vld [vmem:[#allocation14 + $0x8] sm:$0xff]
    %v5556 = vld [vmem:[#allocation14 + $0x10] sm:$0xff]
    %v5557 = vld [vmem:[#allocation14 + $0x18] sm:$0xff]
    %v5558 = vld [vmem:[#allocation14 + $0x20] sm:$0xff]
    %v5559 = vld [vmem:[#allocation14 + $0x28] sm:$0xff]
    %v5560 = vld [vmem:[#allocation14 + $0x30] sm:$0xff]
    %v5561 = vld [vmem:[#allocation14 + $0x38] sm:$0xff]
    %v5562 = vld [vmem:[#allocation14 + $0x40] sm:$0xff]
    %v5563 = vld [vmem:[#allocation14 + $0x48] sm:$0xff]
    %v5564 = vld [vmem:[#allocation14 + $0x50] sm:$0xff]
    %v5565 = vld [vmem:[#allocation14 + $0x58] sm:$0xff]
    %v5566 = vld [vmem:[#allocation14 + $0x60] sm:$0xff]
    %v5567 = vld [vmem:[#allocation14 + $0x68] sm:$0xff]
    %v5568 = vld [vmem:[#allocation14 + $0x70] sm:$0xff]
    %v5569 = vld [vmem:[#allocation14 + $0x78] sm:$0xff]
    %v5570 = vld [vmem:[#allocation14 + $0x80] sm:$0xff]
    %v5571 = vld [vmem:[#allocation14 + $0x88] sm:$0xff]
    %v5572 = vld [vmem:[#allocation14 + $0x90] sm:$0xff]
    %v5573 = vld [vmem:[#allocation14 + $0x98] sm:$0xff]
    %v5574 = vld [vmem:[#allocation14 + $0xa0] sm:$0xff]
    %v5575 = vld [vmem:[#allocation14 + $0xa8] sm:$0xff]
    %v5576 = vld [vmem:[#allocation14 + $0xb0] sm:$0xff]
    %v5577 = vld [vmem:[#allocation14 + $0xb8] sm:$0xff]
    %v5578 = vld [vmem:[#allocation14 + $0xc0] sm:$0xff]
    %v5579 = vld [vmem:[#allocation14 + $0xc8] sm:$0xff]
    %v5580 = vld [vmem:[#allocation14 + $0xd0] sm:$0xff]
    %v5581 = vld [vmem:[#allocation14 + $0xd8] sm:$0xff]
    %v5582 = vld [vmem:[#allocation14 + $0xe0] sm:$0xff]
    %v5583 = vld [vmem:[#allocation14 + $0xe8] sm:$0xff]
    %v5584 = vld [vmem:[#allocation14 + $0xf0] sm:$0xff]
    %v5585 = vld [vmem:[#allocation14 + $0xf8] sm:$0xff]
    %v5586 = vld [vmem:[#allocation14 + $0x100] sm:$0xff]
    %v5587 = vld [vmem:[#allocation14 + $0x108] sm:$0xff]
    %v5588 = vld [vmem:[#allocation14 + $0x110] sm:$0xff]
    %v5589 = vld [vmem:[#allocation14 + $0x118] sm:$0xff]
    %v5590 = vld [vmem:[#allocation14 + $0x120] sm:$0xff]
    %v5591 = vld [vmem:[#allocation14 + $0x128] sm:$0xff]
    %v5592 = vld [vmem:[#allocation14 + $0x130] sm:$0xff]
    %v5593 = vld [vmem:[#allocation14 + $0x138] sm:$0xff]
    %v5594 = vld [vmem:[#allocation14 + $0x140] sm:$0xff]
    %v5595 = vld [vmem:[#allocation14 + $0x148] sm:$0xff]
    %v5596 = vld [vmem:[#allocation14 + $0x150] sm:$0xff]
    %v5597 = vld [vmem:[#allocation14 + $0x158] sm:$0xff]
    %v5598 = vld [vmem:[#allocation14 + $0x160] sm:$0xff]
    %v5599 = vld [vmem:[#allocation14 + $0x168] sm:$0xff]
    %v5600 = vld [vmem:[#allocation14 + $0x170] sm:$0xff]
    %v5601 = vld [vmem:[#allocation14 + $0x178] sm:$0xff]
    %v5602 = vld [vmem:[#allocation14 + $0x180] sm:$0xff]
    %v5603 = vld [vmem:[#allocation14 + $0x188] sm:$0xff]
    %v5604 = vld [vmem:[#allocation14 + $0x190] sm:$0xff]
    %v5605 = vld [vmem:[#allocation14 + $0x198] sm:$0xff]
    %v5606 = vld [vmem:[#allocation14 + $0x1a0] sm:$0xff]
    %v5607 = vld [vmem:[#allocation14 + $0x1a8] sm:$0xff]
    %v5608 = vld [vmem:[#allocation14 + $0x1b0] sm:$0xff]
    %v5609 = vld [vmem:[#allocation14 + $0x1b8] sm:$0xff]
    %v5610 = vld [vmem:[#allocation14 + $0x1c0] sm:$0xff]
    %v5611 = vld [vmem:[#allocation14 + $0x1c8] sm:$0xff]
    %v5612 = vld [vmem:[#allocation14 + $0x1d0] sm:$0xff]
    %v5613 = vld [vmem:[#allocation14 + $0x1d8] sm:$0xff]
    %v5614 = vld [vmem:[#allocation14 + $0x1e0] sm:$0xff]
    %v5615 = vld [vmem:[#allocation14 + $0x1e8] sm:$0xff]
    %v5616 = vld [vmem:[#allocation14 + $0x1f0] sm:$0xff]
    %v5617 = vld [vmem:[#allocation14 + $0x1f8] sm:$0xff]
    %v5618 = vld [vmem:[#allocation14 + $0x200] sm:$0xff]
    %v5619 = vld [vmem:[#allocation14 + $0x208] sm:$0xff]
    %v5620 = vld [vmem:[#allocation14 + $0x210] sm:$0xff]
    %v5621 = vld [vmem:[#allocation14 + $0x218] sm:$0xff]
    %v5622 = vld [vmem:[#allocation14 + $0x220] sm:$0xff]
    %v5623 = vld [vmem:[#allocation14 + $0x228] sm:$0xff]
    %v5624 = vld [vmem:[#allocation14 + $0x230] sm:$0xff]
    %v5625 = vld [vmem:[#allocation14 + $0x238] sm:$0xff]
    %v5626 = vld [vmem:[#allocation14 + $0x240] sm:$0xff]
    %v5627 = vld [vmem:[#allocation14 + $0x248] sm:$0xff]
    %v5628 = vld [vmem:[#allocation14 + $0x250] sm:$0xff]
    %v5629 = vld [vmem:[#allocation14 + $0x258] sm:$0xff]
    %v5630 = vld [vmem:[#allocation14 + $0x260] sm:$0xff]
    %v5631 = vld [vmem:[#allocation14 + $0x268] sm:$0xff]
    %v5632 = vld [vmem:[#allocation14 + $0x270] sm:$0xff]
    %v5633 = vld [vmem:[#allocation14 + $0x278] sm:$0xff]
    %v5634 = vld [vmem:[#allocation14 + $0x280] sm:$0xff]
    %v5635 = vld [vmem:[#allocation14 + $0x288] sm:$0xff]
    %v5636 = vld [vmem:[#allocation14 + $0x290] sm:$0xff]
    %v5637 = vld [vmem:[#allocation14 + $0x298] sm:$0xff]
    %v5638 = vld [vmem:[#allocation14 + $0x2a0] sm:$0xff]
    %v5639 = vld [vmem:[#allocation14 + $0x2a8] sm:$0xff]
    %v5640 = vld [vmem:[#allocation14 + $0x2b0] sm:$0xff]
    %v5641 = vld [vmem:[#allocation14 + $0x2b8] sm:$0xff]
    %v5642 = vld [vmem:[#allocation14 + $0x2c0] sm:$0xff]
    %v5643 = vld [vmem:[#allocation14 + $0x2c8] sm:$0xff]
    %v5644 = vld [vmem:[#allocation14 + $0x2d0] sm:$0xff]
    %v5645 = vld [vmem:[#allocation14 + $0x2d8] sm:$0xff]
    %v5646 = vld [vmem:[#allocation14 + $0x2e0] sm:$0xff]
    %v5647 = vld [vmem:[#allocation14 + $0x2e8] sm:$0xff]
    %v5648 = vld [vmem:[#allocation14 + $0x2f0] sm:$0xff]
    %v5649 = vld [vmem:[#allocation14 + $0x2f8] sm:$0xff]
    %v5650 = vld [vmem:[#allocation14 + $0x300] sm:$0xff]
    %v5651 = vld [vmem:[#allocation14 + $0x308] sm:$0xff]
    %v5652 = vld [vmem:[#allocation14 + $0x310] sm:$0xff]
    %v5653 = vld [vmem:[#allocation14 + $0x318] sm:$0xff]
    %v5654 = vld [vmem:[#allocation14 + $0x320] sm:$0xff]
    %v5655 = vld [vmem:[#allocation14 + $0x328] sm:$0xff]
    %v5656 = vld [vmem:[#allocation14 + $0x330] sm:$0xff]
    %v5657 = vld [vmem:[#allocation14 + $0x338] sm:$0xff]
    %v5658 = vld [vmem:[#allocation14 + $0x340] sm:$0xff]
    %v5659 = vld [vmem:[#allocation14 + $0x348] sm:$0xff]
    %v5660 = vld [vmem:[#allocation14 + $0x350] sm:$0xff]
    %v5661 = vld [vmem:[#allocation14 + $0x358] sm:$0xff]
    %v5662 = vld [vmem:[#allocation14 + $0x360] sm:$0xff]
    %v5663 = vld [vmem:[#allocation14 + $0x368] sm:$0xff]
    %v5664 = vld [vmem:[#allocation14 + $0x370] sm:$0xff]
    %v5665 = vld [vmem:[#allocation14 + $0x378] sm:$0xff]
    %v5666 = vld [vmem:[#allocation14 + $0x380] sm:$0xff]
    %v5667 = vld [vmem:[#allocation14 + $0x388] sm:$0xff]
    %v5668 = vld [vmem:[#allocation14 + $0x390] sm:$0xff]
    %v5669 = vld [vmem:[#allocation14 + $0x398] sm:$0xff]
    %v5670 = vld [vmem:[#allocation14 + $0x3a0] sm:$0xff]
    %v5671 = vld [vmem:[#allocation14 + $0x3a8] sm:$0xff]
    %v5672 = vld [vmem:[#allocation14 + $0x3b0] sm:$0xff]
    %v5673 = vld [vmem:[#allocation14 + $0x3b8] sm:$0xff]
    %v5674 = vld [vmem:[#allocation14 + $0x3c0] sm:$0xff]
    %v5675 = vld [vmem:[#allocation14 + $0x3c8] sm:$0xff]
    %v5676 = vld [vmem:[#allocation14 + $0x3d0] sm:$0xff]
    %v5677 = vld [vmem:[#allocation14 + $0x3d8] sm:$0xff]
    %v5678 = vld [vmem:[#allocation14 + $0x3e0] sm:$0xff]
    %v5679 = vld [vmem:[#allocation14 + $0x3e8] sm:$0xff]
    %v5680 = vld [vmem:[#allocation14 + $0x3f0] sm:$0xff]
    %v5681 = vld [vmem:[#allocation14 + $0x3f8] sm:$0xff]
    %v5682 = vld [vmem:[#allocation14 + $0x400] sm:$0xff]
    %v5683 = vld [vmem:[#allocation14 + $0x408] sm:$0xff]
    %v5684 = vld [vmem:[#allocation14 + $0x410] sm:$0xff]
    %v5685 = vld [vmem:[#allocation14 + $0x418] sm:$0xff]
    %v5686 = vld [vmem:[#allocation14 + $0x420] sm:$0xff]
    %v5687 = vld [vmem:[#allocation14 + $0x428] sm:$0xff]
    %v5688 = vld [vmem:[#allocation14 + $0x430] sm:$0xff]
    %v5689 = vld [vmem:[#allocation14 + $0x438] sm:$0xff]
    %v5690 = vld [vmem:[#allocation14 + $0x440] sm:$0xff]
    %v5691 = vld [vmem:[#allocation14 + $0x448] sm:$0xff]
    %v5692 = vld [vmem:[#allocation14 + $0x450] sm:$0xff]
    %v5693 = vld [vmem:[#allocation14 + $0x458] sm:$0xff]
    %v5694 = vld [vmem:[#allocation14 + $0x460] sm:$0xff]
    %v5695 = vld [vmem:[#allocation14 + $0x468] sm:$0xff]
    %v5696 = vld [vmem:[#allocation14 + $0x470] sm:$0xff]
    %v5697 = vld [vmem:[#allocation14 + $0x478] sm:$0xff]
    %v5698 = vld [vmem:[#allocation14 + $0x480] sm:$0xff]
    %v5699 = vld [vmem:[#allocation14 + $0x488] sm:$0xff]
    %v5700 = vld [vmem:[#allocation14 + $0x490] sm:$0xff]
    %v5701 = vld [vmem:[#allocation14 + $0x498] sm:$0xff]
    %v5702 = vld [vmem:[#allocation14 + $0x4a0] sm:$0xff]
    %v5703 = vld [vmem:[#allocation14 + $0x4a8] sm:$0xff]
    %v5704 = vld [vmem:[#allocation14 + $0x4b0] sm:$0xff]
    %v5705 = vld [vmem:[#allocation14 + $0x4b8] sm:$0xff]
    %v5706 = vld [vmem:[#allocation14 + $0x4c0] sm:$0xff]
    %v5707 = vld [vmem:[#allocation14 + $0x4c8] sm:$0xff]
    %v5708 = vld [vmem:[#allocation14 + $0x4d0] sm:$0xff]
    %v5709 = vld [vmem:[#allocation14 + $0x4d8] sm:$0xff]
    %v5710 = vld [vmem:[#allocation14 + $0x4e0] sm:$0xff]
    %v5711 = vld [vmem:[#allocation14 + $0x4e8] sm:$0xff]
    %v5712 = vld [vmem:[#allocation14 + $0x4f0] sm:$0xff]
    %v5713 = vld [vmem:[#allocation14 + $0x4f8] sm:$0xff]
    %v5714 = vld [vmem:[#allocation14 + $0x500] sm:$0xff]
    %v5715 = vld [vmem:[#allocation14 + $0x508] sm:$0xff]
    %v5716 = vld [vmem:[#allocation14 + $0x510] sm:$0xff]
    %v5717 = vld [vmem:[#allocation14 + $0x518] sm:$0xff]
    %v5718 = vld [vmem:[#allocation14 + $0x520] sm:$0xff]
    %v5719 = vld [vmem:[#allocation14 + $0x528] sm:$0xff]
    %v5720 = vld [vmem:[#allocation14 + $0x530] sm:$0xff]
    %v5721 = vld [vmem:[#allocation14 + $0x538] sm:$0xff]
    %v5722 = vld [vmem:[#allocation14 + $0x540] sm:$0xff]
    %v5723 = vld [vmem:[#allocation14 + $0x548] sm:$0xff]
    %v5724 = vld [vmem:[#allocation14 + $0x550] sm:$0xff]
    %v5725 = vld [vmem:[#allocation14 + $0x558] sm:$0xff]
    %v5726 = vld [vmem:[#allocation14 + $0x560] sm:$0xff]
    %v5727 = vld [vmem:[#allocation14 + $0x568] sm:$0xff]
    %v5728 = vld [vmem:[#allocation14 + $0x570] sm:$0xff]
    %v5729 = vld [vmem:[#allocation14 + $0x578] sm:$0xff]
    %v5730 = vld [vmem:[#allocation14 + $0x580] sm:$0xff]
    %v5731 = vld [vmem:[#allocation14 + $0x588] sm:$0xff]
    %v5732 = vld [vmem:[#allocation14 + $0x590] sm:$0xff]
    %v5733 = vld [vmem:[#allocation14 + $0x598] sm:$0xff]
    %v5734 = vld [vmem:[#allocation14 + $0x5a0] sm:$0xff]
    %v5735 = vld [vmem:[#allocation14 + $0x5a8] sm:$0xff]
    %v5736 = vld [vmem:[#allocation14 + $0x5b0] sm:$0xff]
    %v5737 = vld [vmem:[#allocation14 + $0x5b8] sm:$0xff]
    %v5738 = vld [vmem:[#allocation14 + $0x5c0] sm:$0xff]
    %v5739 = vld [vmem:[#allocation14 + $0x5c8] sm:$0xff]
    %v5740 = vld [vmem:[#allocation14 + $0x5d0] sm:$0xff]
    %v5741 = vld [vmem:[#allocation14 + $0x5d8] sm:$0xff]
    %v5742 = vld [vmem:[#allocation14 + $0x5e0] sm:$0xff]
    %v5743 = vld [vmem:[#allocation14 + $0x5e8] sm:$0xff]
    %v5744 = vld [vmem:[#allocation14 + $0x5f0] sm:$0xff]
    %v5745 = vld [vmem:[#allocation14 + $0x5f8] sm:$0xff]
    %v5746 = vld [vmem:[#allocation14 + $0x600] sm:$0xff]
    %v5747 = vld [vmem:[#allocation14 + $0x608] sm:$0xff]
    %v5748 = vld [vmem:[#allocation14 + $0x610] sm:$0xff]
    %v5749 = vld [vmem:[#allocation14 + $0x618] sm:$0xff]
    %v5750 = vld [vmem:[#allocation14 + $0x620] sm:$0xff]
    %v5751 = vld [vmem:[#allocation14 + $0x628] sm:$0xff]
    %v5752 = vld [vmem:[#allocation14 + $0x630] sm:$0xff]
    %v5753 = vld [vmem:[#allocation14 + $0x638] sm:$0xff]
    %v5754 = vld [vmem:[#allocation14 + $0x640] sm:$0xff]
    %v5755 = vld [vmem:[#allocation14 + $0x648] sm:$0xff]
    %v5756 = vld [vmem:[#allocation14 + $0x650] sm:$0xff]
    %v5757 = vld [vmem:[#allocation14 + $0x658] sm:$0xff]
    %v5758 = vld [vmem:[#allocation14 + $0x660] sm:$0xff]
    %v5759 = vld [vmem:[#allocation14 + $0x668] sm:$0xff]
    %v5760 = vld [vmem:[#allocation14 + $0x670] sm:$0xff]
    %v5761 = vld [vmem:[#allocation14 + $0x678] sm:$0xff]
    %v5762 = vld [vmem:[#allocation14 + $0x680] sm:$0xff]
    %v5763 = vld [vmem:[#allocation14 + $0x688] sm:$0xff]
    %v5764 = vld [vmem:[#allocation14 + $0x690] sm:$0xff]
    %v5765 = vld [vmem:[#allocation14 + $0x698] sm:$0xff]
    %v5766 = vld [vmem:[#allocation14 + $0x6a0] sm:$0xff]
    %v5767 = vld [vmem:[#allocation14 + $0x6a8] sm:$0xff]
    %v5768 = vld [vmem:[#allocation14 + $0x6b0] sm:$0xff]
    %v5769 = vld [vmem:[#allocation14 + $0x6b8] sm:$0xff]
    %v5770 = vld [vmem:[#allocation14 + $0x6c0] sm:$0xff]
    %v5771 = vld [vmem:[#allocation14 + $0x6c8] sm:$0xff]
    %v5772 = vld [vmem:[#allocation14 + $0x6d0] sm:$0xff]
    %v5773 = vld [vmem:[#allocation14 + $0x6d8] sm:$0xff]
    %v5774 = vld [vmem:[#allocation14 + $0x6e0] sm:$0xff]
    %v5775 = vld [vmem:[#allocation14 + $0x6e8] sm:$0xff]
    %v5776 = vld [vmem:[#allocation14 + $0x6f0] sm:$0xff]
    %v5777 = vld [vmem:[#allocation14 + $0x6f8] sm:$0xff]
    %v5778 = vld [vmem:[#allocation14 + $0x700] sm:$0xff]
    %v5779 = vld [vmem:[#allocation14 + $0x708] sm:$0xff]
    %v5780 = vld [vmem:[#allocation14 + $0x710] sm:$0xff]
    %v5781 = vld [vmem:[#allocation14 + $0x718] sm:$0xff]
    %v5782 = vld [vmem:[#allocation14 + $0x720] sm:$0xff]
    %v5783 = vld [vmem:[#allocation14 + $0x728] sm:$0xff]
    %v5784 = vld [vmem:[#allocation14 + $0x730] sm:$0xff]
    %v5785 = vld [vmem:[#allocation14 + $0x738] sm:$0xff]
    %v5786 = vld [vmem:[#allocation14 + $0x740] sm:$0xff]
    %v5787 = vld [vmem:[#allocation14 + $0x748] sm:$0xff]
    %v5788 = vld [vmem:[#allocation14 + $0x750] sm:$0xff]
    %v5789 = vld [vmem:[#allocation14 + $0x758] sm:$0xff]
    %v5790 = vld [vmem:[#allocation14 + $0x760] sm:$0xff]
    %v5791 = vld [vmem:[#allocation14 + $0x768] sm:$0xff]
    %v5792 = vld [vmem:[#allocation14 + $0x770] sm:$0xff]
    %v5793 = vld [vmem:[#allocation14 + $0x778] sm:$0xff]
    %v5794 = vld [vmem:[#allocation14 + $0x780] sm:$0xff]
    %v5795 = vld [vmem:[#allocation14 + $0x788] sm:$0xff]
    %v5796 = vld [vmem:[#allocation14 + $0x790] sm:$0xff]
    %v5797 = vld [vmem:[#allocation14 + $0x798] sm:$0xff]
    %v5798 = vld [vmem:[#allocation14 + $0x7a0] sm:$0xff]
    %v5799 = vld [vmem:[#allocation14 + $0x7a8] sm:$0xff]
    %v5800 = vld [vmem:[#allocation14 + $0x7b0] sm:$0xff]
    %v5801 = vld [vmem:[#allocation14 + $0x7b8] sm:$0xff]
    %v5802 = vld [vmem:[#allocation14 + $0x7c0] sm:$0xff]
    %v5803 = vld [vmem:[#allocation14 + $0x7c8] sm:$0xff]
    %v5804 = vld [vmem:[#allocation14 + $0x7d0] sm:$0xff]
    %v5805 = vld [vmem:[#allocation14 + $0x7d8] sm:$0xff]
    %v5806 = vld [vmem:[#allocation14 + $0x7e0] sm:$0xff]
    %v5807 = vld [vmem:[#allocation14 + $0x7e8] sm:$0xff]
    %v5808 = vld [vmem:[#allocation14 + $0x7f0] sm:$0xff]
    %v5809 = vld [vmem:[#allocation14 + $0x7f8] sm:$0xff]
    %v5810 = vld [vmem:[#allocation14 + $0x800] sm:$0xff]
    %v5811 = vld [vmem:[#allocation14 + $0x808] sm:$0xff]
    %v5812 = vld [vmem:[#allocation14 + $0x810] sm:$0xff]
    %v5813 = vld [vmem:[#allocation14 + $0x818] sm:$0xff]
    %v5814 = vld [vmem:[#allocation14 + $0x820] sm:$0xff]
    %v5815 = vld [vmem:[#allocation14 + $0x828] sm:$0xff]
    %v5816 = vld [vmem:[#allocation14 + $0x830] sm:$0xff]
    %v5817 = vld [vmem:[#allocation14 + $0x838] sm:$0xff]
    %v5818 = vld [vmem:[#allocation14 + $0x840] sm:$0xff]
    %v5819 = vld [vmem:[#allocation14 + $0x848] sm:$0xff]
    %v5820 = vld [vmem:[#allocation14 + $0x850] sm:$0xff]
    %v5821 = vld [vmem:[#allocation14 + $0x858] sm:$0xff]
    %v5822 = vld [vmem:[#allocation14 + $0x860] sm:$0xff]
    %v5823 = vld [vmem:[#allocation14 + $0x868] sm:$0xff]
    %v5824 = vld [vmem:[#allocation14 + $0x870] sm:$0xff]
    %v5825 = vld [vmem:[#allocation14 + $0x878] sm:$0xff]
    %v5826 = vld [vmem:[#allocation14 + $0x880] sm:$0xff]
    %v5827 = vld [vmem:[#allocation14 + $0x888] sm:$0xff]
    %v5828 = vld [vmem:[#allocation14 + $0x890] sm:$0xff]
    %v5829 = vld [vmem:[#allocation14 + $0x898] sm:$0xff]
    %v5830 = vld [vmem:[#allocation14 + $0x8a0] sm:$0xff]
    %v5831 = vld [vmem:[#allocation14 + $0x8a8] sm:$0xff]
    %v5832 = vld [vmem:[#allocation14 + $0x8b0] sm:$0xff]
    %v5833 = vld [vmem:[#allocation14 + $0x8b8] sm:$0xff]
    %v5834 = vld [vmem:[#allocation14 + $0x8c0] sm:$0xff]
    %v5835 = vld [vmem:[#allocation14 + $0x8c8] sm:$0xff]
    %v5836 = vld [vmem:[#allocation14 + $0x8d0] sm:$0xff]
    %v5837 = vld [vmem:[#allocation14 + $0x8d8] sm:$0xff]
    %v5838 = vld [vmem:[#allocation14 + $0x8e0] sm:$0xff]
    %v5839 = vld [vmem:[#allocation14 + $0x8e8] sm:$0xff]
    %v5840 = vld [vmem:[#allocation14 + $0x8f0] sm:$0xff]
    %v5841 = vld [vmem:[#allocation14 + $0x8f8] sm:$0xff]
    %v5842 = vld [vmem:[#allocation14 + $0x900] sm:$0xff]
    %v5843 = vld [vmem:[#allocation14 + $0x908] sm:$0xff]
    %v5844 = vld [vmem:[#allocation14 + $0x910] sm:$0xff]
    %v5845 = vld [vmem:[#allocation14 + $0x918] sm:$0xff]
    %v5846 = vld [vmem:[#allocation14 + $0x920] sm:$0xff]
    %v5847 = vld [vmem:[#allocation14 + $0x928] sm:$0xff]
    %v5848 = vld [vmem:[#allocation14 + $0x930] sm:$0xff]
    %v5849 = vld [vmem:[#allocation14 + $0x938] sm:$0xff]
    %v5850 = vld [vmem:[#allocation14 + $0x940] sm:$0xff]
    %v5851 = vld [vmem:[#allocation14 + $0x948] sm:$0xff]
    %v5852 = vld [vmem:[#allocation14 + $0x950] sm:$0xff]
    %v5853 = vld [vmem:[#allocation14 + $0x958] sm:$0xff]
    %v5854 = vld [vmem:[#allocation14 + $0x960] sm:$0xff]
    %v5855 = vld [vmem:[#allocation14 + $0x968] sm:$0xff]
    %v5856 = vld [vmem:[#allocation14 + $0x970] sm:$0xff]
    %v5857 = vld [vmem:[#allocation14 + $0x978] sm:$0xff]
    %v5858 = vld [vmem:[#allocation14 + $0x980] sm:$0xff]
    %v5859 = vld [vmem:[#allocation14 + $0x988] sm:$0xff]
    %v5860 = vld [vmem:[#allocation14 + $0x990] sm:$0xff]
    %v5861 = vld [vmem:[#allocation14 + $0x998] sm:$0xff]
    %v5862 = vld [vmem:[#allocation14 + $0x9a0] sm:$0xff]
    %v5863 = vld [vmem:[#allocation14 + $0x9a8] sm:$0xff]
    %v5864 = vld [vmem:[#allocation14 + $0x9b0] sm:$0xff]
    %v5865 = vld [vmem:[#allocation14 + $0x9b8] sm:$0xff]
    %v5866 = vld [vmem:[#allocation14 + $0x9c0] sm:$0xff]
    %v5867 = vld [vmem:[#allocation14 + $0x9c8] sm:$0xff]
    %v5868 = vld [vmem:[#allocation14 + $0x9d0] sm:$0xff]
    %v5869 = vld [vmem:[#allocation14 + $0x9d8] sm:$0xff]
    %v5870 = vld [vmem:[#allocation14 + $0x9e0] sm:$0xff]
    %v5871 = vld [vmem:[#allocation14 + $0x9e8] sm:$0xff]
    %v5872 = vld [vmem:[#allocation14 + $0x9f0] sm:$0xff]
    %v5873 = vld [vmem:[#allocation14 + $0x9f8] sm:$0xff]
    %v5874 = vld [vmem:[#allocation14 + $0xa00] sm:$0xff]
    %v5875 = vld [vmem:[#allocation14 + $0xa08] sm:$0xff]
    %v5876 = vld [vmem:[#allocation14 + $0xa10] sm:$0xff]
    %v5877 = vld [vmem:[#allocation14 + $0xa18] sm:$0xff]
    %v5878 = vld [vmem:[#allocation14 + $0xa20] sm:$0xff]
    %v5879 = vld [vmem:[#allocation14 + $0xa28] sm:$0xff]
    %v5880 = vld [vmem:[#allocation14 + $0xa30] sm:$0xff]
    %v5881 = vld [vmem:[#allocation14 + $0xa38] sm:$0xff]
    %v5882 = vld [vmem:[#allocation14 + $0xa40] sm:$0xff]
    %v5883 = vld [vmem:[#allocation14 + $0xa48] sm:$0xff]
    %v5884 = vld [vmem:[#allocation14 + $0xa50] sm:$0xff]
    %v5885 = vld [vmem:[#allocation14 + $0xa58] sm:$0xff]
    %v5886 = vld [vmem:[#allocation14 + $0xa60] sm:$0xff]
    %v5887 = vld [vmem:[#allocation14 + $0xa68] sm:$0xff]
    %v5888 = vld [vmem:[#allocation14 + $0xa70] sm:$0xff]
    %v5889 = vld [vmem:[#allocation14 + $0xa78] sm:$0xff]
    %v5890 = vld [vmem:[#allocation14 + $0xa80] sm:$0xff]
    %v5891 = vld [vmem:[#allocation14 + $0xa88] sm:$0xff]
    %v5892 = vld [vmem:[#allocation14 + $0xa90] sm:$0xff]
    %v5893 = vld [vmem:[#allocation14 + $0xa98] sm:$0xff]
    %v5894 = vld [vmem:[#allocation14 + $0xaa0] sm:$0xff]
    %v5895 = vld [vmem:[#allocation14 + $0xaa8] sm:$0xff]
    %v5896 = vld [vmem:[#allocation14 + $0xab0] sm:$0xff]
    %v5897 = vld [vmem:[#allocation14 + $0xab8] sm:$0xff]
    %v5898 = vld [vmem:[#allocation14 + $0xac0] sm:$0xff]
    %v5899 = vld [vmem:[#allocation14 + $0xac8] sm:$0xff]
    %v5900 = vld [vmem:[#allocation14 + $0xad0] sm:$0xff]
    %v5901 = vld [vmem:[#allocation14 + $0xad8] sm:$0xff]
    %v5902 = vld [vmem:[#allocation14 + $0xae0] sm:$0xff]
    %v5903 = vld [vmem:[#allocation14 + $0xae8] sm:$0xff]
    %v5904 = vld [vmem:[#allocation14 + $0xaf0] sm:$0xff]
    %v5905 = vld [vmem:[#allocation14 + $0xaf8] sm:$0xff]
    %v5906 = vld [vmem:[#allocation14 + $0xb00] sm:$0xff]
    %v5907 = vld [vmem:[#allocation14 + $0xb08] sm:$0xff]
    %v5908 = vld [vmem:[#allocation14 + $0xb10] sm:$0xff]
    %v5909 = vld [vmem:[#allocation14 + $0xb18] sm:$0xff]
    %v5910 = vld [vmem:[#allocation14 + $0xb20] sm:$0xff]
    %v5911 = vld [vmem:[#allocation14 + $0xb28] sm:$0xff]
    %v5912 = vld [vmem:[#allocation14 + $0xb30] sm:$0xff]
    %v5913 = vld [vmem:[#allocation14 + $0xb38] sm:$0xff]
    %v5914 = vld [vmem:[#allocation14 + $0xb40] sm:$0xff]
    %v5915 = vld [vmem:[#allocation14 + $0xb48] sm:$0xff]
    %v5916 = vld [vmem:[#allocation14 + $0xb50] sm:$0xff]
    %v5917 = vld [vmem:[#allocation14 + $0xb58] sm:$0xff]
    %v5918 = vld [vmem:[#allocation14 + $0xb60] sm:$0xff]
    %v5919 = vld [vmem:[#allocation14 + $0xb68] sm:$0xff]
    %v5920 = vld [vmem:[#allocation14 + $0xb70] sm:$0xff]
    %v5921 = vld [vmem:[#allocation14 + $0xb78] sm:$0xff]
    %v5922 = vld [vmem:[#allocation14 + $0xb80] sm:$0xff]
    %v5923 = vld [vmem:[#allocation14 + $0xb88] sm:$0xff]
    %v5924 = vld [vmem:[#allocation14 + $0xb90] sm:$0xff]
    %v5925 = vld [vmem:[#allocation14 + $0xb98] sm:$0xff]
    %v5926 = vld [vmem:[#allocation14 + $0xba0] sm:$0xff]
    %v5927 = vld [vmem:[#allocation14 + $0xba8] sm:$0xff]
    %v5928 = vld [vmem:[#allocation14 + $0xbb0] sm:$0xff]
    %v5929 = vld [vmem:[#allocation14 + $0xbb8] sm:$0xff]
    %v5930 = vld [vmem:[#allocation14 + $0xbc0] sm:$0xff]
    %v5931 = vld [vmem:[#allocation14 + $0xbc8] sm:$0xff]
    %v5932 = vld [vmem:[#allocation14 + $0xbd0] sm:$0xff]
    %v5933 = vld [vmem:[#allocation14 + $0xbd8] sm:$0xff]
    %v5934 = vld [vmem:[#allocation14 + $0xbe0] sm:$0xff]
    %v5935 = vld [vmem:[#allocation14 + $0xbe8] sm:$0xff]
    %v5936 = vld [vmem:[#allocation14 + $0xbf0] sm:$0xff]
    %v5937 = vld [vmem:[#allocation14 + $0xbf8] sm:$0xff]
    %v5938 = vld [vmem:[#allocation14 + $0xc00] sm:$0xff]
    %v5939 = vld [vmem:[#allocation14 + $0xc08] sm:$0xff]
    %v5940 = vld [vmem:[#allocation14 + $0xc10] sm:$0xff]
    %v5941 = vld [vmem:[#allocation14 + $0xc18] sm:$0xff]
    %v5942 = vld [vmem:[#allocation14 + $0xc20] sm:$0xff]
    %v5943 = vld [vmem:[#allocation14 + $0xc28] sm:$0xff]
    %v5944 = vld [vmem:[#allocation14 + $0xc30] sm:$0xff]
    %v5945 = vld [vmem:[#allocation14 + $0xc38] sm:$0xff]
    %v5946 = vld [vmem:[#allocation14 + $0xc40] sm:$0xff]
    %v5947 = vld [vmem:[#allocation14 + $0xc48] sm:$0xff]
    %v5948 = vld [vmem:[#allocation14 + $0xc50] sm:$0xff]
    %v5949 = vld [vmem:[#allocation14 + $0xc58] sm:$0xff]
    %v5950 = vld [vmem:[#allocation14 + $0xc60] sm:$0xff]
    %v5951 = vld [vmem:[#allocation14 + $0xc68] sm:$0xff]
    %v5952 = vld [vmem:[#allocation14 + $0xc70] sm:$0xff]
    %v5953 = vld [vmem:[#allocation14 + $0xc78] sm:$0xff]
    %v5954 = vld [vmem:[#allocation14 + $0xc80] sm:$0xff]
    %v5955 = vld [vmem:[#allocation14 + $0xc88] sm:$0xff]
    %v5956 = vld [vmem:[#allocation14 + $0xc90] sm:$0xff]
    %v5957 = vld [vmem:[#allocation14 + $0xc98] sm:$0xff]
    %v5958 = vld [vmem:[#allocation14 + $0xca0] sm:$0xff]
    %v5959 = vld [vmem:[#allocation14 + $0xca8] sm:$0xff]
    %v5960 = vld [vmem:[#allocation14 + $0xcb0] sm:$0xff]
    %v5961 = vld [vmem:[#allocation14 + $0xcb8] sm:$0xff]
    %v5962 = vld [vmem:[#allocation14 + $0xcc0] sm:$0xff]
    %v5963 = vld [vmem:[#allocation14 + $0xcc8] sm:$0xff]
    %v5964 = vld [vmem:[#allocation14 + $0xcd0] sm:$0xff]
    %v5965 = vld [vmem:[#allocation14 + $0xcd8] sm:$0xff]
    %v5966 = vld [vmem:[#allocation14 + $0xce0] sm:$0xff]
    %v5967 = vld [vmem:[#allocation14 + $0xce8] sm:$0xff]
    %v5968 = vld [vmem:[#allocation14 + $0xcf0] sm:$0xff]
    %v5969 = vld [vmem:[#allocation14 + $0xcf8] sm:$0xff]
    %v5970 = vld [vmem:[#allocation14 + $0xd00] sm:$0xff]
    %v5971 = vld [vmem:[#allocation14 + $0xd08] sm:$0xff]
    %v5972 = vld [vmem:[#allocation14 + $0xd10] sm:$0xff]
    %v5973 = vld [vmem:[#allocation14 + $0xd18] sm:$0xff]
    %v5974 = vld [vmem:[#allocation14 + $0xd20] sm:$0xff]
    %v5975 = vld [vmem:[#allocation14 + $0xd28] sm:$0xff]
    %v5976 = vld [vmem:[#allocation14 + $0xd30] sm:$0xff]
    %v5977 = vld [vmem:[#allocation14 + $0xd38] sm:$0xff]
    %v5978 = vld [vmem:[#allocation14 + $0xd40] sm:$0xff]
    %v5979 = vld [vmem:[#allocation14 + $0xd48] sm:$0xff]
    %v5980 = vld [vmem:[#allocation14 + $0xd50] sm:$0xff]
    %v5981 = vld [vmem:[#allocation14 + $0xd58] sm:$0xff]
    %v5982 = vld [vmem:[#allocation14 + $0xd60] sm:$0xff]
    %v5983 = vld [vmem:[#allocation14 + $0xd68] sm:$0xff]
    %v5984 = vld [vmem:[#allocation14 + $0xd70] sm:$0xff]
    %v5985 = vld [vmem:[#allocation14 + $0xd78] sm:$0xff]
    %v5986 = vld [vmem:[#allocation14 + $0xd80] sm:$0xff]
    %v5987 = vld [vmem:[#allocation14 + $0xd88] sm:$0xff]
    %v5988 = vld [vmem:[#allocation14 + $0xd90] sm:$0xff]
    %v5989 = vld [vmem:[#allocation14 + $0xd98] sm:$0xff]
    %v5990 = vld [vmem:[#allocation14 + $0xda0] sm:$0xff]
    %v5991 = vld [vmem:[#allocation14 + $0xda8] sm:$0xff]
    %v5992 = vld [vmem:[#allocation14 + $0xdb0] sm:$0xff]
    %v5993 = vld [vmem:[#allocation14 + $0xdb8] sm:$0xff]
    %v5994 = vld [vmem:[#allocation14 + $0xdc0] sm:$0xff]
    %v5995 = vld [vmem:[#allocation14 + $0xdc8] sm:$0xff]
    %v5996 = vld [vmem:[#allocation14 + $0xdd0] sm:$0xff]
    %v5997 = vld [vmem:[#allocation14 + $0xdd8] sm:$0xff]
    %v5998 = vld [vmem:[#allocation14 + $0xde0] sm:$0xff]
    %v5999 = vld [vmem:[#allocation14 + $0xde8] sm:$0xff]
    %v6000 = vld [vmem:[#allocation14 + $0xdf0] sm:$0xff]
    %v6001 = vld [vmem:[#allocation14 + $0xdf8] sm:$0xff]
    %v6002 = vld [vmem:[#allocation14 + $0xe00] sm:$0xff]
    %v6003 = vld [vmem:[#allocation14 + $0xe08] sm:$0xff]
    %v6004 = vld [vmem:[#allocation14 + $0xe10] sm:$0xff]
    %v6005 = vld [vmem:[#allocation14 + $0xe18] sm:$0xff]
    %v6006 = vld [vmem:[#allocation14 + $0xe20] sm:$0xff]
    %v6007 = vld [vmem:[#allocation14 + $0xe28] sm:$0xff]
    %v6008 = vld [vmem:[#allocation14 + $0xe30] sm:$0xff]
    %v6009 = vld [vmem:[#allocation14 + $0xe38] sm:$0xff]
    %v6010 = vld [vmem:[#allocation14 + $0xe40] sm:$0xff]
    %v6011 = vld [vmem:[#allocation14 + $0xe48] sm:$0xff]
    %v6012 = vld [vmem:[#allocation14 + $0xe50] sm:$0xff]
    %v6013 = vld [vmem:[#allocation14 + $0xe58] sm:$0xff]
    %v6014 = vld [vmem:[#allocation14 + $0xe60] sm:$0xff]
    %v6015 = vld [vmem:[#allocation14 + $0xe68] sm:$0xff]
    %v6016 = vld [vmem:[#allocation14 + $0xe70] sm:$0xff]
    %v6017 = vld [vmem:[#allocation14 + $0xe78] sm:$0xff]
    %v6018 = vld [vmem:[#allocation14 + $0xe80] sm:$0xff]
    %v6019 = vld [vmem:[#allocation14 + $0xe88] sm:$0xff]
    %v6020 = vld [vmem:[#allocation14 + $0xe90] sm:$0xff]
    %v6021 = vld [vmem:[#allocation14 + $0xe98] sm:$0xff]
    %v6022 = vld [vmem:[#allocation14 + $0xea0] sm:$0xff]
    %v6023 = vld [vmem:[#allocation14 + $0xea8] sm:$0xff]
    %v6024 = vld [vmem:[#allocation14 + $0xeb0] sm:$0xff]
    %v6025 = vld [vmem:[#allocation14 + $0xeb8] sm:$0xff]
    %v6026 = vld [vmem:[#allocation14 + $0xec0] sm:$0xff]
    %v6027 = vld [vmem:[#allocation14 + $0xec8] sm:$0xff]
    %v6028 = vld [vmem:[#allocation14 + $0xed0] sm:$0xff]
    %v6029 = vld [vmem:[#allocation14 + $0xed8] sm:$0xff]
    %v6030 = vld [vmem:[#allocation14 + $0xee0] sm:$0xff]
    %v6031 = vld [vmem:[#allocation14 + $0xee8] sm:$0xff]
    %v6032 = vld [vmem:[#allocation14 + $0xef0] sm:$0xff]
    %v6033 = vld [vmem:[#allocation14 + $0xef8] sm:$0xff]
    %v6034 = vld [vmem:[#allocation14 + $0xf00] sm:$0xff]
    %v6035 = vld [vmem:[#allocation14 + $0xf08] sm:$0xff]
    %v6036 = vld [vmem:[#allocation14 + $0xf10] sm:$0xff]
    %v6037 = vld [vmem:[#allocation14 + $0xf18] sm:$0xff]
    %v6038 = vld [vmem:[#allocation14 + $0xf20] sm:$0xff]
    %v6039 = vld [vmem:[#allocation14 + $0xf28] sm:$0xff]
    %v6040 = vld [vmem:[#allocation14 + $0xf30] sm:$0xff]
    %v6041 = vld [vmem:[#allocation14 + $0xf38] sm:$0xff]
    %v6042 = vld [vmem:[#allocation14 + $0xf40] sm:$0xff]
    %v6043 = vld [vmem:[#allocation14 + $0xf48] sm:$0xff]
    %v6044 = vld [vmem:[#allocation14 + $0xf50] sm:$0xff]
    %v6045 = vld [vmem:[#allocation14 + $0xf58] sm:$0xff]
    %v6046 = vld [vmem:[#allocation14 + $0xf60] sm:$0xff]
    %v6047 = vld [vmem:[#allocation14 + $0xf68] sm:$0xff]
    %v6048 = vld [vmem:[#allocation14 + $0xf70] sm:$0xff]
    %v6049 = vld [vmem:[#allocation14 + $0xf78] sm:$0xff]
    %v6050 = vld [vmem:[#allocation14 + $0xf80] sm:$0xff]
    %v6051 = vld [vmem:[#allocation14 + $0xf88] sm:$0xff]
    %v6052 = vld [vmem:[#allocation14 + $0xf90] sm:$0xff]
    %v6053 = vld [vmem:[#allocation14 + $0xf98] sm:$0xff]
    %v6054 = vld [vmem:[#allocation14 + $0xfa0] sm:$0xff]
    %v6055 = vld [vmem:[#allocation14 + $0xfa8] sm:$0xff]
    %v6056 = vld [vmem:[#allocation14 + $0xfb0] sm:$0xff]
    %v6057 = vld [vmem:[#allocation14 + $0xfb8] sm:$0xff]
    %v6058 = vld [vmem:[#allocation14 + $0xfc0] sm:$0xff]
    %v6059 = vld [vmem:[#allocation14 + $0xfc8] sm:$0xff]
    %v6060 = vld [vmem:[#allocation14 + $0xfd0] sm:$0xff]
    %v6061 = vld [vmem:[#allocation14 + $0xfd8] sm:$0xff]
    %v6062 = vld [vmem:[#allocation14 + $0xfe0] sm:$0xff]
    %v6063 = vld [vmem:[#allocation14 + $0xfe8] sm:$0xff]
    %v6064 = vld [vmem:[#allocation14 + $0xff0] sm:$0xff]
    %v6065 = vld [vmem:[#allocation14 + $0xff8] sm:$0xff]
    %v6066 = vld [vmem:[#allocation16] sm:$0xff]
    %v6067 = vld [vmem:[#allocation16 + $0x8] sm:$0xff]
    %v6068 = vld [vmem:[#allocation16 + $0x10] sm:$0xff]
    %v6069 = vld [vmem:[#allocation16 + $0x18] sm:$0xff]
    %v6070 = vld [vmem:[#allocation16 + $0x20] sm:$0xff]
    %v6071 = vld [vmem:[#allocation16 + $0x28] sm:$0xff]
    %v6072 = vld [vmem:[#allocation16 + $0x30] sm:$0xff]
    %v6073 = vld [vmem:[#allocation16 + $0x38] sm:$0xff]
    %v6082 = vperm.slane %v6066, 0
    %v6083 = vperm.slane %v6066, 1
    %v6084 = vperm.slane %v6066, 2
    %v6085 = vperm.slane %v6066, 3
    %v6086 = vperm.slane %v6066, 4
    %v6087 = vperm.slane %v6066, 5
    %v6088 = vperm.slane %v6066, 6
    %v6089 = vperm.slane %v6066, 7
    %v6090 = vperm.slane %v6067, 0
    %v6091 = vperm.slane %v6067, 1
    %v6092 = vperm.slane %v6067, 2
    %v6093 = vperm.slane %v6067, 3
    %v6094 = vperm.slane %v6067, 4
    %v6095 = vperm.slane %v6067, 5
    %v6096 = vperm.slane %v6067, 6
    %v6097 = vperm.slane %v6067, 7
    %v6098 = vperm.slane %v6068, 0
    %v6099 = vperm.slane %v6068, 1
    %v6100 = vperm.slane %v6068, 2
    %v6101 = vperm.slane %v6068, 3
    %v6102 = vperm.slane %v6068, 4
    %v6103 = vperm.slane %v6068, 5
    %v6104 = vperm.slane %v6068, 6
    %v6105 = vperm.slane %v6068, 7
    %v6106 = vperm.slane %v6069, 0
    %v6107 = vperm.slane %v6069, 1
    %v6108 = vperm.slane %v6069, 2
    %v6109 = vperm.slane %v6069, 3
    %v6110 = vperm.slane %v6069, 4
    %v6111 = vperm.slane %v6069, 5
    %v6112 = vperm.slane %v6069, 6
    %v6113 = vperm.slane %v6069, 7
    %v6114 = vperm.slane %v6070, 0
    %v6115 = vperm.slane %v6070, 1
    %v6116 = vperm.slane %v6070, 2
    %v6117 = vperm.slane %v6070, 3
    %v6118 = vperm.slane %v6070, 4
    %v6119 = vperm.slane %v6070, 5
    %v6120 = vperm.slane %v6070, 6
    %v6121 = vperm.slane %v6070, 7
    %v6122 = vperm.slane %v6071, 0
    %v6123 = vperm.slane %v6071, 1
    %v6124 = vperm.slane %v6071, 2
    %v6125 = vperm.slane %v6071, 3
    %v6126 = vperm.slane %v6071, 4
    %v6127 = vperm.slane %v6071, 5
    %v6128 = vperm.slane %v6071, 6
    %v6129 = vperm.slane %v6071, 7
    %v6130 = vperm.slane %v6072, 0
    %v6131 = vperm.slane %v6072, 1
    %v6132 = vperm.slane %v6072, 2
    %v6133 = vperm.slane %v6072, 3
    %v6134 = vperm.slane %v6072, 4
    %v6135 = vperm.slane %v6072, 5
    %v6136 = vperm.slane %v6072, 6
    %v6137 = vperm.slane %v6072, 7
    %v6138 = vperm.slane %v6073, 0
    %v6139 = vperm.slane %v6073, 1
    %v6140 = vperm.slane %v6073, 2
    %v6141 = vperm.slane %v6073, 3
    %v6142 = vperm.slane %v6073, 4
    %v6143 = vperm.slane %v6073, 5
    %v6144 = vperm.slane %v6073, 6
    %v6145 = vperm.slane %v6073, 7
    %v6722 = vunpack.c.l.b16 %v5554
    %v6723 = vunpack.c.h.b16 %v5554
    %v6724 = vunpack.c.l.b16 %v5555
    %v6725 = vunpack.c.h.b16 %v5555
    %v6726 = vunpack.c.l.b16 %v5556
    %v6727 = vunpack.c.h.b16 %v5556
    %v6728 = vunpack.c.l.b16 %v5557
    %v6729 = vunpack.c.h.b16 %v5557
    %v6730 = vunpack.c.l.b16 %v5558
    %v6731 = vunpack.c.h.b16 %v5558
    %v6732 = vunpack.c.l.b16 %v5559
    %v6733 = vunpack.c.h.b16 %v5559
    %v6734 = vunpack.c.l.b16 %v5560
    %v6735 = vunpack.c.h.b16 %v5560
    %v6736 = vunpack.c.l.b16 %v5561
    %v6737 = vunpack.c.h.b16 %v5561
    %v6738 = vunpack.c.l.b16 %v5562
    %v6739 = vunpack.c.h.b16 %v5562
    %v6740 = vunpack.c.l.b16 %v5563
    %v6741 = vunpack.c.h.b16 %v5563
    %v6742 = vunpack.c.l.b16 %v5564
    %v6743 = vunpack.c.h.b16 %v5564
    %v6744 = vunpack.c.l.b16 %v5565
    %v6745 = vunpack.c.h.b16 %v5565
    %v6746 = vunpack.c.l.b16 %v5566
    %v6747 = vunpack.c.h.b16 %v5566
    %v6748 = vunpack.c.l.b16 %v5567
    %v6749 = vunpack.c.h.b16 %v5567
    %v6750 = vunpack.c.l.b16 %v5568
    %v6751 = vunpack.c.h.b16 %v5568
    %v6752 = vunpack.c.l.b16 %v5569
    %v6753 = vunpack.c.h.b16 %v5569
    %v6754 = vunpack.c.l.b16 %v5570
    %v6755 = vunpack.c.h.b16 %v5570
    %v6756 = vunpack.c.l.b16 %v5571
    %v6757 = vunpack.c.h.b16 %v5571
    %v6758 = vunpack.c.l.b16 %v5572
    %v6759 = vunpack.c.h.b16 %v5572
    %v6760 = vunpack.c.l.b16 %v5573
    %v6761 = vunpack.c.h.b16 %v5573
    %v6762 = vunpack.c.l.b16 %v5574
    %v6763 = vunpack.c.h.b16 %v5574
    %v6764 = vunpack.c.l.b16 %v5575
    %v6765 = vunpack.c.h.b16 %v5575
    %v6766 = vunpack.c.l.b16 %v5576
    %v6767 = vunpack.c.h.b16 %v5576
    %v6768 = vunpack.c.l.b16 %v5577
    %v6769 = vunpack.c.h.b16 %v5577
    %v6770 = vunpack.c.l.b16 %v5578
    %v6771 = vunpack.c.h.b16 %v5578
    %v6772 = vunpack.c.l.b16 %v5579
    %v6773 = vunpack.c.h.b16 %v5579
    %v6774 = vunpack.c.l.b16 %v5580
    %v6775 = vunpack.c.h.b16 %v5580
    %v6776 = vunpack.c.l.b16 %v5581
    %v6777 = vunpack.c.h.b16 %v5581
    %v6778 = vunpack.c.l.b16 %v5582
    %v6779 = vunpack.c.h.b16 %v5582
    %v6780 = vunpack.c.l.b16 %v5583
    %v6781 = vunpack.c.h.b16 %v5583
    %v6782 = vunpack.c.l.b16 %v5584
    %v6783 = vunpack.c.h.b16 %v5584
    %v6784 = vunpack.c.l.b16 %v5585
    %v6785 = vunpack.c.h.b16 %v5585
    %v6786 = vunpack.c.l.b16 %v5586
    %v6787 = vunpack.c.h.b16 %v5586
    %v6788 = vunpack.c.l.b16 %v5587
    %v6789 = vunpack.c.h.b16 %v5587
    %v6790 = vunpack.c.l.b16 %v5588
    %v6791 = vunpack.c.h.b16 %v5588
    %v6792 = vunpack.c.l.b16 %v5589
    %v6793 = vunpack.c.h.b16 %v5589
    %v6794 = vunpack.c.l.b16 %v5590
    %v6795 = vunpack.c.h.b16 %v5590
    %v6796 = vunpack.c.l.b16 %v5591
    %v6797 = vunpack.c.h.b16 %v5591
    %v6798 = vunpack.c.l.b16 %v5592
    %v6799 = vunpack.c.h.b16 %v5592
    %v6800 = vunpack.c.l.b16 %v5593
    %v6801 = vunpack.c.h.b16 %v5593
    %v6802 = vunpack.c.l.b16 %v5594
    %v6803 = vunpack.c.h.b16 %v5594
    %v6804 = vunpack.c.l.b16 %v5595
    %v6805 = vunpack.c.h.b16 %v5595
    %v6806 = vunpack.c.l.b16 %v5596
    %v6807 = vunpack.c.h.b16 %v5596
    %v6808 = vunpack.c.l.b16 %v5597
    %v6809 = vunpack.c.h.b16 %v5597
    %v6810 = vunpack.c.l.b16 %v5598
    %v6811 = vunpack.c.h.b16 %v5598
    %v6812 = vunpack.c.l.b16 %v5599
    %v6813 = vunpack.c.h.b16 %v5599
    %v6814 = vunpack.c.l.b16 %v5600
    %v6815 = vunpack.c.h.b16 %v5600
    %v6816 = vunpack.c.l.b16 %v5601
    %v6817 = vunpack.c.h.b16 %v5601
    %v6818 = vunpack.c.l.b16 %v5602
    %v6819 = vunpack.c.h.b16 %v5602
    %v6820 = vunpack.c.l.b16 %v5603
    %v6821 = vunpack.c.h.b16 %v5603
    %v6822 = vunpack.c.l.b16 %v5604
    %v6823 = vunpack.c.h.b16 %v5604
    %v6824 = vunpack.c.l.b16 %v5605
    %v6825 = vunpack.c.h.b16 %v5605
    %v6826 = vunpack.c.l.b16 %v5606
    %v6827 = vunpack.c.h.b16 %v5606
    %v6828 = vunpack.c.l.b16 %v5607
    %v6829 = vunpack.c.h.b16 %v5607
    %v6830 = vunpack.c.l.b16 %v5608
    %v6831 = vunpack.c.h.b16 %v5608
    %v6832 = vunpack.c.l.b16 %v5609
    %v6833 = vunpack.c.h.b16 %v5609
    %v6834 = vunpack.c.l.b16 %v5610
    %v6835 = vunpack.c.h.b16 %v5610
    %v6836 = vunpack.c.l.b16 %v5611
    %v6837 = vunpack.c.h.b16 %v5611
    %v6838 = vunpack.c.l.b16 %v5612
    %v6839 = vunpack.c.h.b16 %v5612
    %v6840 = vunpack.c.l.b16 %v5613
    %v6841 = vunpack.c.h.b16 %v5613
    %v6842 = vunpack.c.l.b16 %v5614
    %v6843 = vunpack.c.h.b16 %v5614
    %v6844 = vunpack.c.l.b16 %v5615
    %v6845 = vunpack.c.h.b16 %v5615
    %v6846 = vunpack.c.l.b16 %v5616
    %v6847 = vunpack.c.h.b16 %v5616
    %v6848 = vunpack.c.l.b16 %v5617
    %v6849 = vunpack.c.h.b16 %v5617
    %v6850 = vunpack.c.l.b16 %v5618
    %v6851 = vunpack.c.h.b16 %v5618
    %v6852 = vunpack.c.l.b16 %v5619
    %v6853 = vunpack.c.h.b16 %v5619
    %v6854 = vunpack.c.l.b16 %v5620
    %v6855 = vunpack.c.h.b16 %v5620
    %v6856 = vunpack.c.l.b16 %v5621
    %v6857 = vunpack.c.h.b16 %v5621
    %v6858 = vunpack.c.l.b16 %v5622
    %v6859 = vunpack.c.h.b16 %v5622
    %v6860 = vunpack.c.l.b16 %v5623
    %v6861 = vunpack.c.h.b16 %v5623
    %v6862 = vunpack.c.l.b16 %v5624
    %v6863 = vunpack.c.h.b16 %v5624
    %v6864 = vunpack.c.l.b16 %v5625
    %v6865 = vunpack.c.h.b16 %v5625
    %v6866 = vunpack.c.l.b16 %v5626
    %v6867 = vunpack.c.h.b16 %v5626
    %v6868 = vunpack.c.l.b16 %v5627
    %v6869 = vunpack.c.h.b16 %v5627
    %v6870 = vunpack.c.l.b16 %v5628
    %v6871 = vunpack.c.h.b16 %v5628
    %v6872 = vunpack.c.l.b16 %v5629
    %v6873 = vunpack.c.h.b16 %v5629
    %v6874 = vunpack.c.l.b16 %v5630
    %v6875 = vunpack.c.h.b16 %v5630
    %v6876 = vunpack.c.l.b16 %v5631
    %v6877 = vunpack.c.h.b16 %v5631
    %v6878 = vunpack.c.l.b16 %v5632
    %v6879 = vunpack.c.h.b16 %v5632
    %v6880 = vunpack.c.l.b16 %v5633
    %v6881 = vunpack.c.h.b16 %v5633
    %v6882 = vunpack.c.l.b16 %v5634
    %v6883 = vunpack.c.h.b16 %v5634
    %v6884 = vunpack.c.l.b16 %v5635
    %v6885 = vunpack.c.h.b16 %v5635
    %v6886 = vunpack.c.l.b16 %v5636
    %v6887 = vunpack.c.h.b16 %v5636
    %v6888 = vunpack.c.l.b16 %v5637
    %v6889 = vunpack.c.h.b16 %v5637
    %v6890 = vunpack.c.l.b16 %v5638
    %v6891 = vunpack.c.h.b16 %v5638
    %v6892 = vunpack.c.l.b16 %v5639
    %v6893 = vunpack.c.h.b16 %v5639
    %v6894 = vunpack.c.l.b16 %v5640
    %v6895 = vunpack.c.h.b16 %v5640
    %v6896 = vunpack.c.l.b16 %v5641
    %v6897 = vunpack.c.h.b16 %v5641
    %v6898 = vunpack.c.l.b16 %v5642
    %v6899 = vunpack.c.h.b16 %v5642
    %v6900 = vunpack.c.l.b16 %v5643
    %v6901 = vunpack.c.h.b16 %v5643
    %v6902 = vunpack.c.l.b16 %v5644
    %v6903 = vunpack.c.h.b16 %v5644
    %v6904 = vunpack.c.l.b16 %v5645
    %v6905 = vunpack.c.h.b16 %v5645
    %v6906 = vunpack.c.l.b16 %v5646
    %v6907 = vunpack.c.h.b16 %v5646
    %v6908 = vunpack.c.l.b16 %v5647
    %v6909 = vunpack.c.h.b16 %v5647
    %v6910 = vunpack.c.l.b16 %v5648
    %v6911 = vunpack.c.h.b16 %v5648
    %v6912 = vunpack.c.l.b16 %v5649
    %v6913 = vunpack.c.h.b16 %v5649
    %v6914 = vunpack.c.l.b16 %v5650
    %v6915 = vunpack.c.h.b16 %v5650
    %v6916 = vunpack.c.l.b16 %v5651
    %v6917 = vunpack.c.h.b16 %v5651
    %v6918 = vunpack.c.l.b16 %v5652
    %v6919 = vunpack.c.h.b16 %v5652
    %v6920 = vunpack.c.l.b16 %v5653
    %v6921 = vunpack.c.h.b16 %v5653
    %v6922 = vunpack.c.l.b16 %v5654
    %v6923 = vunpack.c.h.b16 %v5654
    %v6924 = vunpack.c.l.b16 %v5655
    %v6925 = vunpack.c.h.b16 %v5655
    %v6926 = vunpack.c.l.b16 %v5656
    %v6927 = vunpack.c.h.b16 %v5656
    %v6928 = vunpack.c.l.b16 %v5657
    %v6929 = vunpack.c.h.b16 %v5657
    %v6930 = vunpack.c.l.b16 %v5658
    %v6931 = vunpack.c.h.b16 %v5658
    %v6932 = vunpack.c.l.b16 %v5659
    %v6933 = vunpack.c.h.b16 %v5659
    %v6934 = vunpack.c.l.b16 %v5660
    %v6935 = vunpack.c.h.b16 %v5660
    %v6936 = vunpack.c.l.b16 %v5661
    %v6937 = vunpack.c.h.b16 %v5661
    %v6938 = vunpack.c.l.b16 %v5662
    %v6939 = vunpack.c.h.b16 %v5662
    %v6940 = vunpack.c.l.b16 %v5663
    %v6941 = vunpack.c.h.b16 %v5663
    %v6942 = vunpack.c.l.b16 %v5664
    %v6943 = vunpack.c.h.b16 %v5664
    %v6944 = vunpack.c.l.b16 %v5665
    %v6945 = vunpack.c.h.b16 %v5665
    %v6946 = vunpack.c.l.b16 %v5666
    %v6947 = vunpack.c.h.b16 %v5666
    %v6948 = vunpack.c.l.b16 %v5667
    %v6949 = vunpack.c.h.b16 %v5667
    %v6950 = vunpack.c.l.b16 %v5668
    %v6951 = vunpack.c.h.b16 %v5668
    %v6952 = vunpack.c.l.b16 %v5669
    %v6953 = vunpack.c.h.b16 %v5669
    %v6954 = vunpack.c.l.b16 %v5670
    %v6955 = vunpack.c.h.b16 %v5670
    %v6956 = vunpack.c.l.b16 %v5671
    %v6957 = vunpack.c.h.b16 %v5671
    %v6958 = vunpack.c.l.b16 %v5672
    %v6959 = vunpack.c.h.b16 %v5672
    %v6960 = vunpack.c.l.b16 %v5673
    %v6961 = vunpack.c.h.b16 %v5673
    %v6962 = vunpack.c.l.b16 %v5674
    %v6963 = vunpack.c.h.b16 %v5674
    %v6964 = vunpack.c.l.b16 %v5675
    %v6965 = vunpack.c.h.b16 %v5675
    %v6966 = vunpack.c.l.b16 %v5676
    %v6967 = vunpack.c.h.b16 %v5676
    %v6968 = vunpack.c.l.b16 %v5677
    %v6969 = vunpack.c.h.b16 %v5677
    %v6970 = vunpack.c.l.b16 %v5678
    %v6971 = vunpack.c.h.b16 %v5678
    %v6972 = vunpack.c.l.b16 %v5679
    %v6973 = vunpack.c.h.b16 %v5679
    %v6974 = vunpack.c.l.b16 %v5680
    %v6975 = vunpack.c.h.b16 %v5680
    %v6976 = vunpack.c.l.b16 %v5681
    %v6977 = vunpack.c.h.b16 %v5681
    %v6978 = vunpack.c.l.b16 %v5682
    %v6979 = vunpack.c.h.b16 %v5682
    %v6980 = vunpack.c.l.b16 %v5683
    %v6981 = vunpack.c.h.b16 %v5683
    %v6982 = vunpack.c.l.b16 %v5684
    %v6983 = vunpack.c.h.b16 %v5684
    %v6984 = vunpack.c.l.b16 %v5685
    %v6985 = vunpack.c.h.b16 %v5685
    %v6986 = vunpack.c.l.b16 %v5686
    %v6987 = vunpack.c.h.b16 %v5686
    %v6988 = vunpack.c.l.b16 %v5687
    %v6989 = vunpack.c.h.b16 %v5687
    %v6990 = vunpack.c.l.b16 %v5688
    %v6991 = vunpack.c.h.b16 %v5688
    %v6992 = vunpack.c.l.b16 %v5689
    %v6993 = vunpack.c.h.b16 %v5689
    %v6994 = vunpack.c.l.b16 %v5690
    %v6995 = vunpack.c.h.b16 %v5690
    %v6996 = vunpack.c.l.b16 %v5691
    %v6997 = vunpack.c.h.b16 %v5691
    %v6998 = vunpack.c.l.b16 %v5692
    %v6999 = vunpack.c.h.b16 %v5692
    %v7000 = vunpack.c.l.b16 %v5693
    %v7001 = vunpack.c.h.b16 %v5693
    %v7002 = vunpack.c.l.b16 %v5694
    %v7003 = vunpack.c.h.b16 %v5694
    %v7004 = vunpack.c.l.b16 %v5695
    %v7005 = vunpack.c.h.b16 %v5695
    %v7006 = vunpack.c.l.b16 %v5696
    %v7007 = vunpack.c.h.b16 %v5696
    %v7008 = vunpack.c.l.b16 %v5697
    %v7009 = vunpack.c.h.b16 %v5697
    %v7010 = vunpack.c.l.b16 %v5698
    %v7011 = vunpack.c.h.b16 %v5698
    %v7012 = vunpack.c.l.b16 %v5699
    %v7013 = vunpack.c.h.b16 %v5699
    %v7014 = vunpack.c.l.b16 %v5700
    %v7015 = vunpack.c.h.b16 %v5700
    %v7016 = vunpack.c.l.b16 %v5701
    %v7017 = vunpack.c.h.b16 %v5701
    %v7018 = vunpack.c.l.b16 %v5702
    %v7019 = vunpack.c.h.b16 %v5702
    %v7020 = vunpack.c.l.b16 %v5703
    %v7021 = vunpack.c.h.b16 %v5703
    %v7022 = vunpack.c.l.b16 %v5704
    %v7023 = vunpack.c.h.b16 %v5704
    %v7024 = vunpack.c.l.b16 %v5705
    %v7025 = vunpack.c.h.b16 %v5705
    %v7026 = vunpack.c.l.b16 %v5706
    %v7027 = vunpack.c.h.b16 %v5706
    %v7028 = vunpack.c.l.b16 %v5707
    %v7029 = vunpack.c.h.b16 %v5707
    %v7030 = vunpack.c.l.b16 %v5708
    %v7031 = vunpack.c.h.b16 %v5708
    %v7032 = vunpack.c.l.b16 %v5709
    %v7033 = vunpack.c.h.b16 %v5709
    %v7034 = vunpack.c.l.b16 %v5710
    %v7035 = vunpack.c.h.b16 %v5710
    %v7036 = vunpack.c.l.b16 %v5711
    %v7037 = vunpack.c.h.b16 %v5711
    %v7038 = vunpack.c.l.b16 %v5712
    %v7039 = vunpack.c.h.b16 %v5712
    %v7040 = vunpack.c.l.b16 %v5713
    %v7041 = vunpack.c.h.b16 %v5713
    %v7042 = vunpack.c.l.b16 %v5714
    %v7043 = vunpack.c.h.b16 %v5714
    %v7044 = vunpack.c.l.b16 %v5715
    %v7045 = vunpack.c.h.b16 %v5715
    %v7046 = vunpack.c.l.b16 %v5716
    %v7047 = vunpack.c.h.b16 %v5716
    %v7048 = vunpack.c.l.b16 %v5717
    %v7049 = vunpack.c.h.b16 %v5717
    %v7050 = vunpack.c.l.b16 %v5718
    %v7051 = vunpack.c.h.b16 %v5718
    %v7052 = vunpack.c.l.b16 %v5719
    %v7053 = vunpack.c.h.b16 %v5719
    %v7054 = vunpack.c.l.b16 %v5720
    %v7055 = vunpack.c.h.b16 %v5720
    %v7056 = vunpack.c.l.b16 %v5721
    %v7057 = vunpack.c.h.b16 %v5721
    %v7058 = vunpack.c.l.b16 %v5722
    %v7059 = vunpack.c.h.b16 %v5722
    %v7060 = vunpack.c.l.b16 %v5723
    %v7061 = vunpack.c.h.b16 %v5723
    %v7062 = vunpack.c.l.b16 %v5724
    %v7063 = vunpack.c.h.b16 %v5724
    %v7064 = vunpack.c.l.b16 %v5725
    %v7065 = vunpack.c.h.b16 %v5725
    %v7066 = vunpack.c.l.b16 %v5726
    %v7067 = vunpack.c.h.b16 %v5726
    %v7068 = vunpack.c.l.b16 %v5727
    %v7069 = vunpack.c.h.b16 %v5727
    %v7070 = vunpack.c.l.b16 %v5728
    %v7071 = vunpack.c.h.b16 %v5728
    %v7072 = vunpack.c.l.b16 %v5729
    %v7073 = vunpack.c.h.b16 %v5729
    %v7074 = vunpack.c.l.b16 %v5730
    %v7075 = vunpack.c.h.b16 %v5730
    %v7076 = vunpack.c.l.b16 %v5731
    %v7077 = vunpack.c.h.b16 %v5731
    %v7078 = vunpack.c.l.b16 %v5732
    %v7079 = vunpack.c.h.b16 %v5732
    %v7080 = vunpack.c.l.b16 %v5733
    %v7081 = vunpack.c.h.b16 %v5733
    %v7082 = vunpack.c.l.b16 %v5734
    %v7083 = vunpack.c.h.b16 %v5734
    %v7084 = vunpack.c.l.b16 %v5735
    %v7085 = vunpack.c.h.b16 %v5735
    %v7086 = vunpack.c.l.b16 %v5736
    %v7087 = vunpack.c.h.b16 %v5736
    %v7088 = vunpack.c.l.b16 %v5737
    %v7089 = vunpack.c.h.b16 %v5737
    %v7090 = vunpack.c.l.b16 %v5738
    %v7091 = vunpack.c.h.b16 %v5738
    %v7092 = vunpack.c.l.b16 %v5739
    %v7093 = vunpack.c.h.b16 %v5739
    %v7094 = vunpack.c.l.b16 %v5740
    %v7095 = vunpack.c.h.b16 %v5740
    %v7096 = vunpack.c.l.b16 %v5741
    %v7097 = vunpack.c.h.b16 %v5741
    %v7098 = vunpack.c.l.b16 %v5742
    %v7099 = vunpack.c.h.b16 %v5742
    %v7100 = vunpack.c.l.b16 %v5743
    %v7101 = vunpack.c.h.b16 %v5743
    %v7102 = vunpack.c.l.b16 %v5744
    %v7103 = vunpack.c.h.b16 %v5744
    %v7104 = vunpack.c.l.b16 %v5745
    %v7105 = vunpack.c.h.b16 %v5745
    %v7106 = vunpack.c.l.b16 %v5746
    %v7107 = vunpack.c.h.b16 %v5746
    %v7108 = vunpack.c.l.b16 %v5747
    %v7109 = vunpack.c.h.b16 %v5747
    %v7110 = vunpack.c.l.b16 %v5748
    %v7111 = vunpack.c.h.b16 %v5748
    %v7112 = vunpack.c.l.b16 %v5749
    %v7113 = vunpack.c.h.b16 %v5749
    %v7114 = vunpack.c.l.b16 %v5750
    %v7115 = vunpack.c.h.b16 %v5750
    %v7116 = vunpack.c.l.b16 %v5751
    %v7117 = vunpack.c.h.b16 %v5751
    %v7118 = vunpack.c.l.b16 %v5752
    %v7119 = vunpack.c.h.b16 %v5752
    %v7120 = vunpack.c.l.b16 %v5753
    %v7121 = vunpack.c.h.b16 %v5753
    %v7122 = vunpack.c.l.b16 %v5754
    %v7123 = vunpack.c.h.b16 %v5754
    %v7124 = vunpack.c.l.b16 %v5755
    %v7125 = vunpack.c.h.b16 %v5755
    %v7126 = vunpack.c.l.b16 %v5756
    %v7127 = vunpack.c.h.b16 %v5756
    %v7128 = vunpack.c.l.b16 %v5757
    %v7129 = vunpack.c.h.b16 %v5757
    %v7130 = vunpack.c.l.b16 %v5758
    %v7131 = vunpack.c.h.b16 %v5758
    %v7132 = vunpack.c.l.b16 %v5759
    %v7133 = vunpack.c.h.b16 %v5759
    %v7134 = vunpack.c.l.b16 %v5760
    %v7135 = vunpack.c.h.b16 %v5760
    %v7136 = vunpack.c.l.b16 %v5761
    %v7137 = vunpack.c.h.b16 %v5761
    %v7138 = vunpack.c.l.b16 %v5762
    %v7139 = vunpack.c.h.b16 %v5762
    %v7140 = vunpack.c.l.b16 %v5763
    %v7141 = vunpack.c.h.b16 %v5763
    %v7142 = vunpack.c.l.b16 %v5764
    %v7143 = vunpack.c.h.b16 %v5764
    %v7144 = vunpack.c.l.b16 %v5765
    %v7145 = vunpack.c.h.b16 %v5765
    %v7146 = vunpack.c.l.b16 %v5766
    %v7147 = vunpack.c.h.b16 %v5766
    %v7148 = vunpack.c.l.b16 %v5767
    %v7149 = vunpack.c.h.b16 %v5767
    %v7150 = vunpack.c.l.b16 %v5768
    %v7151 = vunpack.c.h.b16 %v5768
    %v7152 = vunpack.c.l.b16 %v5769
    %v7153 = vunpack.c.h.b16 %v5769
    %v7154 = vunpack.c.l.b16 %v5770
    %v7155 = vunpack.c.h.b16 %v5770
    %v7156 = vunpack.c.l.b16 %v5771
    %v7157 = vunpack.c.h.b16 %v5771
    %v7158 = vunpack.c.l.b16 %v5772
    %v7159 = vunpack.c.h.b16 %v5772
    %v7160 = vunpack.c.l.b16 %v5773
    %v7161 = vunpack.c.h.b16 %v5773
    %v7162 = vunpack.c.l.b16 %v5774
    %v7163 = vunpack.c.h.b16 %v5774
    %v7164 = vunpack.c.l.b16 %v5775
    %v7165 = vunpack.c.h.b16 %v5775
    %v7166 = vunpack.c.l.b16 %v5776
    %v7167 = vunpack.c.h.b16 %v5776
    %v7168 = vunpack.c.l.b16 %v5777
    %v7169 = vunpack.c.h.b16 %v5777
    %v7170 = vunpack.c.l.b16 %v5778
    %v7171 = vunpack.c.h.b16 %v5778
    %v7172 = vunpack.c.l.b16 %v5779
    %v7173 = vunpack.c.h.b16 %v5779
    %v7174 = vunpack.c.l.b16 %v5780
    %v7175 = vunpack.c.h.b16 %v5780
    %v7176 = vunpack.c.l.b16 %v5781
    %v7177 = vunpack.c.h.b16 %v5781
    %v7178 = vunpack.c.l.b16 %v5782
    %v7179 = vunpack.c.h.b16 %v5782
    %v7180 = vunpack.c.l.b16 %v5783
    %v7181 = vunpack.c.h.b16 %v5783
    %v7182 = vunpack.c.l.b16 %v5784
    %v7183 = vunpack.c.h.b16 %v5784
    %v7184 = vunpack.c.l.b16 %v5785
    %v7185 = vunpack.c.h.b16 %v5785
    %v7186 = vunpack.c.l.b16 %v5786
    %v7187 = vunpack.c.h.b16 %v5786
    %v7188 = vunpack.c.l.b16 %v5787
    %v7189 = vunpack.c.h.b16 %v5787
    %v7190 = vunpack.c.l.b16 %v5788
    %v7191 = vunpack.c.h.b16 %v5788
    %v7192 = vunpack.c.l.b16 %v5789
    %v7193 = vunpack.c.h.b16 %v5789
    %v7194 = vunpack.c.l.b16 %v5790
    %v7195 = vunpack.c.h.b16 %v5790
    %v7196 = vunpack.c.l.b16 %v5791
    %v7197 = vunpack.c.h.b16 %v5791
    %v7198 = vunpack.c.l.b16 %v5792
    %v7199 = vunpack.c.h.b16 %v5792
    %v7200 = vunpack.c.l.b16 %v5793
    %v7201 = vunpack.c.h.b16 %v5793
    %v7202 = vunpack.c.l.b16 %v5794
    %v7203 = vunpack.c.h.b16 %v5794
    %v7204 = vunpack.c.l.b16 %v5795
    %v7205 = vunpack.c.h.b16 %v5795
    %v7206 = vunpack.c.l.b16 %v5796
    %v7207 = vunpack.c.h.b16 %v5796
    %v7208 = vunpack.c.l.b16 %v5797
    %v7209 = vunpack.c.h.b16 %v5797
    %v7210 = vunpack.c.l.b16 %v5798
    %v7211 = vunpack.c.h.b16 %v5798
    %v7212 = vunpack.c.l.b16 %v5799
    %v7213 = vunpack.c.h.b16 %v5799
    %v7214 = vunpack.c.l.b16 %v5800
    %v7215 = vunpack.c.h.b16 %v5800
    %v7216 = vunpack.c.l.b16 %v5801
    %v7217 = vunpack.c.h.b16 %v5801
    %v7218 = vunpack.c.l.b16 %v5802
    %v7219 = vunpack.c.h.b16 %v5802
    %v7220 = vunpack.c.l.b16 %v5803
    %v7221 = vunpack.c.h.b16 %v5803
    %v7222 = vunpack.c.l.b16 %v5804
    %v7223 = vunpack.c.h.b16 %v5804
    %v7224 = vunpack.c.l.b16 %v5805
    %v7225 = vunpack.c.h.b16 %v5805
    %v7226 = vunpack.c.l.b16 %v5806
    %v7227 = vunpack.c.h.b16 %v5806
    %v7228 = vunpack.c.l.b16 %v5807
    %v7229 = vunpack.c.h.b16 %v5807
    %v7230 = vunpack.c.l.b16 %v5808
    %v7231 = vunpack.c.h.b16 %v5808
    %v7232 = vunpack.c.l.b16 %v5809
    %v7233 = vunpack.c.h.b16 %v5809
    %v7234 = vunpack.c.l.b16 %v5810
    %v7235 = vunpack.c.h.b16 %v5810
    %v7236 = vunpack.c.l.b16 %v5811
    %v7237 = vunpack.c.h.b16 %v5811
    %v7238 = vunpack.c.l.b16 %v5812
    %v7239 = vunpack.c.h.b16 %v5812
    %v7240 = vunpack.c.l.b16 %v5813
    %v7241 = vunpack.c.h.b16 %v5813
    %v7242 = vunpack.c.l.b16 %v5814
    %v7243 = vunpack.c.h.b16 %v5814
    %v7244 = vunpack.c.l.b16 %v5815
    %v7245 = vunpack.c.h.b16 %v5815
    %v7246 = vunpack.c.l.b16 %v5816
    %v7247 = vunpack.c.h.b16 %v5816
    %v7248 = vunpack.c.l.b16 %v5817
    %v7249 = vunpack.c.h.b16 %v5817
    %v7250 = vunpack.c.l.b16 %v5818
    %v7251 = vunpack.c.h.b16 %v5818
    %v7252 = vunpack.c.l.b16 %v5819
    %v7253 = vunpack.c.h.b16 %v5819
    %v7254 = vunpack.c.l.b16 %v5820
    %v7255 = vunpack.c.h.b16 %v5820
    %v7256 = vunpack.c.l.b16 %v5821
    %v7257 = vunpack.c.h.b16 %v5821
    %v7258 = vunpack.c.l.b16 %v5822
    %v7259 = vunpack.c.h.b16 %v5822
    %v7260 = vunpack.c.l.b16 %v5823
    %v7261 = vunpack.c.h.b16 %v5823
    %v7262 = vunpack.c.l.b16 %v5824
    %v7263 = vunpack.c.h.b16 %v5824
    %v7264 = vunpack.c.l.b16 %v5825
    %v7265 = vunpack.c.h.b16 %v5825
    %v7266 = vunpack.c.l.b16 %v5826
    %v7267 = vunpack.c.h.b16 %v5826
    %v7268 = vunpack.c.l.b16 %v5827
    %v7269 = vunpack.c.h.b16 %v5827
    %v7270 = vunpack.c.l.b16 %v5828
    %v7271 = vunpack.c.h.b16 %v5828
    %v7272 = vunpack.c.l.b16 %v5829
    %v7273 = vunpack.c.h.b16 %v5829
    %v7274 = vunpack.c.l.b16 %v5830
    %v7275 = vunpack.c.h.b16 %v5830
    %v7276 = vunpack.c.l.b16 %v5831
    %v7277 = vunpack.c.h.b16 %v5831
    %v7278 = vunpack.c.l.b16 %v5832
    %v7279 = vunpack.c.h.b16 %v5832
    %v7280 = vunpack.c.l.b16 %v5833
    %v7281 = vunpack.c.h.b16 %v5833
    %v7282 = vunpack.c.l.b16 %v5834
    %v7283 = vunpack.c.h.b16 %v5834
    %v7284 = vunpack.c.l.b16 %v5835
    %v7285 = vunpack.c.h.b16 %v5835
    %v7286 = vunpack.c.l.b16 %v5836
    %v7287 = vunpack.c.h.b16 %v5836
    %v7288 = vunpack.c.l.b16 %v5837
    %v7289 = vunpack.c.h.b16 %v5837
    %v7290 = vunpack.c.l.b16 %v5838
    %v7291 = vunpack.c.h.b16 %v5838
    %v7292 = vunpack.c.l.b16 %v5839
    %v7293 = vunpack.c.h.b16 %v5839
    %v7294 = vunpack.c.l.b16 %v5840
    %v7295 = vunpack.c.h.b16 %v5840
    %v7296 = vunpack.c.l.b16 %v5841
    %v7297 = vunpack.c.h.b16 %v5841
    %v7298 = vunpack.c.l.b16 %v5842
    %v7299 = vunpack.c.h.b16 %v5842
    %v7300 = vunpack.c.l.b16 %v5843
    %v7301 = vunpack.c.h.b16 %v5843
    %v7302 = vunpack.c.l.b16 %v5844
    %v7303 = vunpack.c.h.b16 %v5844
    %v7304 = vunpack.c.l.b16 %v5845
    %v7305 = vunpack.c.h.b16 %v5845
    %v7306 = vunpack.c.l.b16 %v5846
    %v7307 = vunpack.c.h.b16 %v5846
    %v7308 = vunpack.c.l.b16 %v5847
    %v7309 = vunpack.c.h.b16 %v5847
    %v7310 = vunpack.c.l.b16 %v5848
    %v7311 = vunpack.c.h.b16 %v5848
    %v7312 = vunpack.c.l.b16 %v5849
    %v7313 = vunpack.c.h.b16 %v5849
    %v7314 = vunpack.c.l.b16 %v5850
    %v7315 = vunpack.c.h.b16 %v5850
    %v7316 = vunpack.c.l.b16 %v5851
    %v7317 = vunpack.c.h.b16 %v5851
    %v7318 = vunpack.c.l.b16 %v5852
    %v7319 = vunpack.c.h.b16 %v5852
    %v7320 = vunpack.c.l.b16 %v5853
    %v7321 = vunpack.c.h.b16 %v5853
    %v7322 = vunpack.c.l.b16 %v5854
    %v7323 = vunpack.c.h.b16 %v5854
    %v7324 = vunpack.c.l.b16 %v5855
    %v7325 = vunpack.c.h.b16 %v5855
    %v7326 = vunpack.c.l.b16 %v5856
    %v7327 = vunpack.c.h.b16 %v5856
    %v7328 = vunpack.c.l.b16 %v5857
    %v7329 = vunpack.c.h.b16 %v5857
    %v7330 = vunpack.c.l.b16 %v5858
    %v7331 = vunpack.c.h.b16 %v5858
    %v7332 = vunpack.c.l.b16 %v5859
    %v7333 = vunpack.c.h.b16 %v5859
    %v7334 = vunpack.c.l.b16 %v5860
    %v7335 = vunpack.c.h.b16 %v5860
    %v7336 = vunpack.c.l.b16 %v5861
    %v7337 = vunpack.c.h.b16 %v5861
    %v7338 = vunpack.c.l.b16 %v5862
    %v7339 = vunpack.c.h.b16 %v5862
    %v7340 = vunpack.c.l.b16 %v5863
    %v7341 = vunpack.c.h.b16 %v5863
    %v7342 = vunpack.c.l.b16 %v5864
    %v7343 = vunpack.c.h.b16 %v5864
    %v7344 = vunpack.c.l.b16 %v5865
    %v7345 = vunpack.c.h.b16 %v5865
    %v7346 = vunpack.c.l.b16 %v5866
    %v7347 = vunpack.c.h.b16 %v5866
    %v7348 = vunpack.c.l.b16 %v5867
    %v7349 = vunpack.c.h.b16 %v5867
    %v7350 = vunpack.c.l.b16 %v5868
    %v7351 = vunpack.c.h.b16 %v5868
    %v7352 = vunpack.c.l.b16 %v5869
    %v7353 = vunpack.c.h.b16 %v5869
    %v7354 = vunpack.c.l.b16 %v5870
    %v7355 = vunpack.c.h.b16 %v5870
    %v7356 = vunpack.c.l.b16 %v5871
    %v7357 = vunpack.c.h.b16 %v5871
    %v7358 = vunpack.c.l.b16 %v5872
    %v7359 = vunpack.c.h.b16 %v5872
    %v7360 = vunpack.c.l.b16 %v5873
    %v7361 = vunpack.c.h.b16 %v5873
    %v7362 = vunpack.c.l.b16 %v5874
    %v7363 = vunpack.c.h.b16 %v5874
    %v7364 = vunpack.c.l.b16 %v5875
    %v7365 = vunpack.c.h.b16 %v5875
    %v7366 = vunpack.c.l.b16 %v5876
    %v7367 = vunpack.c.h.b16 %v5876
    %v7368 = vunpack.c.l.b16 %v5877
    %v7369 = vunpack.c.h.b16 %v5877
    %v7370 = vunpack.c.l.b16 %v5878
    %v7371 = vunpack.c.h.b16 %v5878
    %v7372 = vunpack.c.l.b16 %v5879
    %v7373 = vunpack.c.h.b16 %v5879
    %v7374 = vunpack.c.l.b16 %v5880
    %v7375 = vunpack.c.h.b16 %v5880
    %v7376 = vunpack.c.l.b16 %v5881
    %v7377 = vunpack.c.h.b16 %v5881
    %v7378 = vunpack.c.l.b16 %v5882
    %v7379 = vunpack.c.h.b16 %v5882
    %v7380 = vunpack.c.l.b16 %v5883
    %v7381 = vunpack.c.h.b16 %v5883
    %v7382 = vunpack.c.l.b16 %v5884
    %v7383 = vunpack.c.h.b16 %v5884
    %v7384 = vunpack.c.l.b16 %v5885
    %v7385 = vunpack.c.h.b16 %v5885
    %v7386 = vunpack.c.l.b16 %v5886
    %v7387 = vunpack.c.h.b16 %v5886
    %v7388 = vunpack.c.l.b16 %v5887
    %v7389 = vunpack.c.h.b16 %v5887
    %v7390 = vunpack.c.l.b16 %v5888
    %v7391 = vunpack.c.h.b16 %v5888
    %v7392 = vunpack.c.l.b16 %v5889
    %v7393 = vunpack.c.h.b16 %v5889
    %v7394 = vunpack.c.l.b16 %v5890
    %v7395 = vunpack.c.h.b16 %v5890
    %v7396 = vunpack.c.l.b16 %v5891
    %v7397 = vunpack.c.h.b16 %v5891
    %v7398 = vunpack.c.l.b16 %v5892
    %v7399 = vunpack.c.h.b16 %v5892
    %v7400 = vunpack.c.l.b16 %v5893
    %v7401 = vunpack.c.h.b16 %v5893
    %v7402 = vunpack.c.l.b16 %v5894
    %v7403 = vunpack.c.h.b16 %v5894
    %v7404 = vunpack.c.l.b16 %v5895
    %v7405 = vunpack.c.h.b16 %v5895
    %v7406 = vunpack.c.l.b16 %v5896
    %v7407 = vunpack.c.h.b16 %v5896
    %v7408 = vunpack.c.l.b16 %v5897
    %v7409 = vunpack.c.h.b16 %v5897
    %v7410 = vunpack.c.l.b16 %v5898
    %v7411 = vunpack.c.h.b16 %v5898
    %v7412 = vunpack.c.l.b16 %v5899
    %v7413 = vunpack.c.h.b16 %v5899
    %v7414 = vunpack.c.l.b16 %v5900
    %v7415 = vunpack.c.h.b16 %v5900
    %v7416 = vunpack.c.l.b16 %v5901
    %v7417 = vunpack.c.h.b16 %v5901
    %v7418 = vunpack.c.l.b16 %v5902
    %v7419 = vunpack.c.h.b16 %v5902
    %v7420 = vunpack.c.l.b16 %v5903
    %v7421 = vunpack.c.h.b16 %v5903
    %v7422 = vunpack.c.l.b16 %v5904
    %v7423 = vunpack.c.h.b16 %v5904
    %v7424 = vunpack.c.l.b16 %v5905
    %v7425 = vunpack.c.h.b16 %v5905
    %v7426 = vunpack.c.l.b16 %v5906
    %v7427 = vunpack.c.h.b16 %v5906
    %v7428 = vunpack.c.l.b16 %v5907
    %v7429 = vunpack.c.h.b16 %v5907
    %v7430 = vunpack.c.l.b16 %v5908
    %v7431 = vunpack.c.h.b16 %v5908
    %v7432 = vunpack.c.l.b16 %v5909
    %v7433 = vunpack.c.h.b16 %v5909
    %v7434 = vunpack.c.l.b16 %v5910
    %v7435 = vunpack.c.h.b16 %v5910
    %v7436 = vunpack.c.l.b16 %v5911
    %v7437 = vunpack.c.h.b16 %v5911
    %v7438 = vunpack.c.l.b16 %v5912
    %v7439 = vunpack.c.h.b16 %v5912
    %v7440 = vunpack.c.l.b16 %v5913
    %v7441 = vunpack.c.h.b16 %v5913
    %v7442 = vunpack.c.l.b16 %v5914
    %v7443 = vunpack.c.h.b16 %v5914
    %v7444 = vunpack.c.l.b16 %v5915
    %v7445 = vunpack.c.h.b16 %v5915
    %v7446 = vunpack.c.l.b16 %v5916
    %v7447 = vunpack.c.h.b16 %v5916
    %v7448 = vunpack.c.l.b16 %v5917
    %v7449 = vunpack.c.h.b16 %v5917
    %v7450 = vunpack.c.l.b16 %v5918
    %v7451 = vunpack.c.h.b16 %v5918
    %v7452 = vunpack.c.l.b16 %v5919
    %v7453 = vunpack.c.h.b16 %v5919
    %v7454 = vunpack.c.l.b16 %v5920
    %v7455 = vunpack.c.h.b16 %v5920
    %v7456 = vunpack.c.l.b16 %v5921
    %v7457 = vunpack.c.h.b16 %v5921
    %v7458 = vunpack.c.l.b16 %v5922
    %v7459 = vunpack.c.h.b16 %v5922
    %v7460 = vunpack.c.l.b16 %v5923
    %v7461 = vunpack.c.h.b16 %v5923
    %v7462 = vunpack.c.l.b16 %v5924
    %v7463 = vunpack.c.h.b16 %v5924
    %v7464 = vunpack.c.l.b16 %v5925
    %v7465 = vunpack.c.h.b16 %v5925
    %v7466 = vunpack.c.l.b16 %v5926
    %v7467 = vunpack.c.h.b16 %v5926
    %v7468 = vunpack.c.l.b16 %v5927
    %v7469 = vunpack.c.h.b16 %v5927
    %v7470 = vunpack.c.l.b16 %v5928
    %v7471 = vunpack.c.h.b16 %v5928
    %v7472 = vunpack.c.l.b16 %v5929
    %v7473 = vunpack.c.h.b16 %v5929
    %v7474 = vunpack.c.l.b16 %v5930
    %v7475 = vunpack.c.h.b16 %v5930
    %v7476 = vunpack.c.l.b16 %v5931
    %v7477 = vunpack.c.h.b16 %v5931
    %v7478 = vunpack.c.l.b16 %v5932
    %v7479 = vunpack.c.h.b16 %v5932
    %v7480 = vunpack.c.l.b16 %v5933
    %v7481 = vunpack.c.h.b16 %v5933
    %v7482 = vunpack.c.l.b16 %v5934
    %v7483 = vunpack.c.h.b16 %v5934
    %v7484 = vunpack.c.l.b16 %v5935
    %v7485 = vunpack.c.h.b16 %v5935
    %v7486 = vunpack.c.l.b16 %v5936
    %v7487 = vunpack.c.h.b16 %v5936
    %v7488 = vunpack.c.l.b16 %v5937
    %v7489 = vunpack.c.h.b16 %v5937
    %v7490 = vunpack.c.l.b16 %v5938
    %v7491 = vunpack.c.h.b16 %v5938
    %v7492 = vunpack.c.l.b16 %v5939
    %v7493 = vunpack.c.h.b16 %v5939
    %v7494 = vunpack.c.l.b16 %v5940
    %v7495 = vunpack.c.h.b16 %v5940
    %v7496 = vunpack.c.l.b16 %v5941
    %v7497 = vunpack.c.h.b16 %v5941
    %v7498 = vunpack.c.l.b16 %v5942
    %v7499 = vunpack.c.h.b16 %v5942
    %v7500 = vunpack.c.l.b16 %v5943
    %v7501 = vunpack.c.h.b16 %v5943
    %v7502 = vunpack.c.l.b16 %v5944
    %v7503 = vunpack.c.h.b16 %v5944
    %v7504 = vunpack.c.l.b16 %v5945
    %v7505 = vunpack.c.h.b16 %v5945
    %v7506 = vunpack.c.l.b16 %v5946
    %v7507 = vunpack.c.h.b16 %v5946
    %v7508 = vunpack.c.l.b16 %v5947
    %v7509 = vunpack.c.h.b16 %v5947
    %v7510 = vunpack.c.l.b16 %v5948
    %v7511 = vunpack.c.h.b16 %v5948
    %v7512 = vunpack.c.l.b16 %v5949
    %v7513 = vunpack.c.h.b16 %v5949
    %v7514 = vunpack.c.l.b16 %v5950
    %v7515 = vunpack.c.h.b16 %v5950
    %v7516 = vunpack.c.l.b16 %v5951
    %v7517 = vunpack.c.h.b16 %v5951
    %v7518 = vunpack.c.l.b16 %v5952
    %v7519 = vunpack.c.h.b16 %v5952
    %v7520 = vunpack.c.l.b16 %v5953
    %v7521 = vunpack.c.h.b16 %v5953
    %v7522 = vunpack.c.l.b16 %v5954
    %v7523 = vunpack.c.h.b16 %v5954
    %v7524 = vunpack.c.l.b16 %v5955
    %v7525 = vunpack.c.h.b16 %v5955
    %v7526 = vunpack.c.l.b16 %v5956
    %v7527 = vunpack.c.h.b16 %v5956
    %v7528 = vunpack.c.l.b16 %v5957
    %v7529 = vunpack.c.h.b16 %v5957
    %v7530 = vunpack.c.l.b16 %v5958
    %v7531 = vunpack.c.h.b16 %v5958
    %v7532 = vunpack.c.l.b16 %v5959
    %v7533 = vunpack.c.h.b16 %v5959
    %v7534 = vunpack.c.l.b16 %v5960
    %v7535 = vunpack.c.h.b16 %v5960
    %v7536 = vunpack.c.l.b16 %v5961
    %v7537 = vunpack.c.h.b16 %v5961
    %v7538 = vunpack.c.l.b16 %v5962
    %v7539 = vunpack.c.h.b16 %v5962
    %v7540 = vunpack.c.l.b16 %v5963
    %v7541 = vunpack.c.h.b16 %v5963
    %v7542 = vunpack.c.l.b16 %v5964
    %v7543 = vunpack.c.h.b16 %v5964
    %v7544 = vunpack.c.l.b16 %v5965
    %v7545 = vunpack.c.h.b16 %v5965
    %v7546 = vunpack.c.l.b16 %v5966
    %v7547 = vunpack.c.h.b16 %v5966
    %v7548 = vunpack.c.l.b16 %v5967
    %v7549 = vunpack.c.h.b16 %v5967
    %v7550 = vunpack.c.l.b16 %v5968
    %v7551 = vunpack.c.h.b16 %v5968
    %v7552 = vunpack.c.l.b16 %v5969
    %v7553 = vunpack.c.h.b16 %v5969
    %v7554 = vunpack.c.l.b16 %v5970
    %v7555 = vunpack.c.h.b16 %v5970
    %v7556 = vunpack.c.l.b16 %v5971
    %v7557 = vunpack.c.h.b16 %v5971
    %v7558 = vunpack.c.l.b16 %v5972
    %v7559 = vunpack.c.h.b16 %v5972
    %v7560 = vunpack.c.l.b16 %v5973
    %v7561 = vunpack.c.h.b16 %v5973
    %v7562 = vunpack.c.l.b16 %v5974
    %v7563 = vunpack.c.h.b16 %v5974
    %v7564 = vunpack.c.l.b16 %v5975
    %v7565 = vunpack.c.h.b16 %v5975
    %v7566 = vunpack.c.l.b16 %v5976
    %v7567 = vunpack.c.h.b16 %v5976
    %v7568 = vunpack.c.l.b16 %v5977
    %v7569 = vunpack.c.h.b16 %v5977
    %v7570 = vunpack.c.l.b16 %v5978
    %v7571 = vunpack.c.h.b16 %v5978
    %v7572 = vunpack.c.l.b16 %v5979
    %v7573 = vunpack.c.h.b16 %v5979
    %v7574 = vunpack.c.l.b16 %v5980
    %v7575 = vunpack.c.h.b16 %v5980
    %v7576 = vunpack.c.l.b16 %v5981
    %v7577 = vunpack.c.h.b16 %v5981
    %v7578 = vunpack.c.l.b16 %v5982
    %v7579 = vunpack.c.h.b16 %v5982
    %v7580 = vunpack.c.l.b16 %v5983
    %v7581 = vunpack.c.h.b16 %v5983
    %v7582 = vunpack.c.l.b16 %v5984
    %v7583 = vunpack.c.h.b16 %v5984
    %v7584 = vunpack.c.l.b16 %v5985
    %v7585 = vunpack.c.h.b16 %v5985
    %v7586 = vunpack.c.l.b16 %v5986
    %v7587 = vunpack.c.h.b16 %v5986
    %v7588 = vunpack.c.l.b16 %v5987
    %v7589 = vunpack.c.h.b16 %v5987
    %v7590 = vunpack.c.l.b16 %v5988
    %v7591 = vunpack.c.h.b16 %v5988
    %v7592 = vunpack.c.l.b16 %v5989
    %v7593 = vunpack.c.h.b16 %v5989
    %v7594 = vunpack.c.l.b16 %v5990
    %v7595 = vunpack.c.h.b16 %v5990
    %v7596 = vunpack.c.l.b16 %v5991
    %v7597 = vunpack.c.h.b16 %v5991
    %v7598 = vunpack.c.l.b16 %v5992
    %v7599 = vunpack.c.h.b16 %v5992
    %v7600 = vunpack.c.l.b16 %v5993
    %v7601 = vunpack.c.h.b16 %v5993
    %v7602 = vunpack.c.l.b16 %v5994
    %v7603 = vunpack.c.h.b16 %v5994
    %v7604 = vunpack.c.l.b16 %v5995
    %v7605 = vunpack.c.h.b16 %v5995
    %v7606 = vunpack.c.l.b16 %v5996
    %v7607 = vunpack.c.h.b16 %v5996
    %v7608 = vunpack.c.l.b16 %v5997
    %v7609 = vunpack.c.h.b16 %v5997
    %v7610 = vunpack.c.l.b16 %v5998
    %v7611 = vunpack.c.h.b16 %v5998
    %v7612 = vunpack.c.l.b16 %v5999
    %v7613 = vunpack.c.h.b16 %v5999
    %v7614 = vunpack.c.l.b16 %v6000
    %v7615 = vunpack.c.h.b16 %v6000
    %v7616 = vunpack.c.l.b16 %v6001
    %v7617 = vunpack.c.h.b16 %v6001
    %v7618 = vunpack.c.l.b16 %v6002
    %v7619 = vunpack.c.h.b16 %v6002
    %v7620 = vunpack.c.l.b16 %v6003
    %v7621 = vunpack.c.h.b16 %v6003
    %v7622 = vunpack.c.l.b16 %v6004
    %v7623 = vunpack.c.h.b16 %v6004
    %v7624 = vunpack.c.l.b16 %v6005
    %v7625 = vunpack.c.h.b16 %v6005
    %v7626 = vunpack.c.l.b16 %v6006
    %v7627 = vunpack.c.h.b16 %v6006
    %v7628 = vunpack.c.l.b16 %v6007
    %v7629 = vunpack.c.h.b16 %v6007
    %v7630 = vunpack.c.l.b16 %v6008
    %v7631 = vunpack.c.h.b16 %v6008
    %v7632 = vunpack.c.l.b16 %v6009
    %v7633 = vunpack.c.h.b16 %v6009
    %v7634 = vunpack.c.l.b16 %v6010
    %v7635 = vunpack.c.h.b16 %v6010
    %v7636 = vunpack.c.l.b16 %v6011
    %v7637 = vunpack.c.h.b16 %v6011
    %v7638 = vunpack.c.l.b16 %v6012
    %v7639 = vunpack.c.h.b16 %v6012
    %v7640 = vunpack.c.l.b16 %v6013
    %v7641 = vunpack.c.h.b16 %v6013
    %v7642 = vunpack.c.l.b16 %v6014
    %v7643 = vunpack.c.h.b16 %v6014
    %v7644 = vunpack.c.l.b16 %v6015
    %v7645 = vunpack.c.h.b16 %v6015
    %v7646 = vunpack.c.l.b16 %v6016
    %v7647 = vunpack.c.h.b16 %v6016
    %v7648 = vunpack.c.l.b16 %v6017
    %v7649 = vunpack.c.h.b16 %v6017
    %v7650 = vunpack.c.l.b16 %v6018
    %v7651 = vunpack.c.h.b16 %v6018
    %v7652 = vunpack.c.l.b16 %v6019
    %v7653 = vunpack.c.h.b16 %v6019
    %v7654 = vunpack.c.l.b16 %v6020
    %v7655 = vunpack.c.h.b16 %v6020
    %v7656 = vunpack.c.l.b16 %v6021
    %v7657 = vunpack.c.h.b16 %v6021
    %v7658 = vunpack.c.l.b16 %v6022
    %v7659 = vunpack.c.h.b16 %v6022
    %v7660 = vunpack.c.l.b16 %v6023
    %v7661 = vunpack.c.h.b16 %v6023
    %v7662 = vunpack.c.l.b16 %v6024
    %v7663 = vunpack.c.h.b16 %v6024
    %v7664 = vunpack.c.l.b16 %v6025
    %v7665 = vunpack.c.h.b16 %v6025
    %v7666 = vunpack.c.l.b16 %v6026
    %v7667 = vunpack.c.h.b16 %v6026
    %v7668 = vunpack.c.l.b16 %v6027
    %v7669 = vunpack.c.h.b16 %v6027
    %v7670 = vunpack.c.l.b16 %v6028
    %v7671 = vunpack.c.h.b16 %v6028
    %v7672 = vunpack.c.l.b16 %v6029
    %v7673 = vunpack.c.h.b16 %v6029
    %v7674 = vunpack.c.l.b16 %v6030
    %v7675 = vunpack.c.h.b16 %v6030
    %v7676 = vunpack.c.l.b16 %v6031
    %v7677 = vunpack.c.h.b16 %v6031
    %v7678 = vunpack.c.l.b16 %v6032
    %v7679 = vunpack.c.h.b16 %v6032
    %v7680 = vunpack.c.l.b16 %v6033
    %v7681 = vunpack.c.h.b16 %v6033
    %v7682 = vunpack.c.l.b16 %v6034
    %v7683 = vunpack.c.h.b16 %v6034
    %v7684 = vunpack.c.l.b16 %v6035
    %v7685 = vunpack.c.h.b16 %v6035
    %v7686 = vunpack.c.l.b16 %v6036
    %v7687 = vunpack.c.h.b16 %v6036
    %v7688 = vunpack.c.l.b16 %v6037
    %v7689 = vunpack.c.h.b16 %v6037
    %v7690 = vunpack.c.l.b16 %v6038
    %v7691 = vunpack.c.h.b16 %v6038
    %v7692 = vunpack.c.l.b16 %v6039
    %v7693 = vunpack.c.h.b16 %v6039
    %v7694 = vunpack.c.l.b16 %v6040
    %v7695 = vunpack.c.h.b16 %v6040
    %v7696 = vunpack.c.l.b16 %v6041
    %v7697 = vunpack.c.h.b16 %v6041
    %v7698 = vunpack.c.l.b16 %v6042
    %v7699 = vunpack.c.h.b16 %v6042
    %v7700 = vunpack.c.l.b16 %v6043
    %v7701 = vunpack.c.h.b16 %v6043
    %v7702 = vunpack.c.l.b16 %v6044
    %v7703 = vunpack.c.h.b16 %v6044
    %v7704 = vunpack.c.l.b16 %v6045
    %v7705 = vunpack.c.h.b16 %v6045
    %v7706 = vunpack.c.l.b16 %v6046
    %v7707 = vunpack.c.h.b16 %v6046
    %v7708 = vunpack.c.l.b16 %v6047
    %v7709 = vunpack.c.h.b16 %v6047
    %v7710 = vunpack.c.l.b16 %v6048
    %v7711 = vunpack.c.h.b16 %v6048
    %v7712 = vunpack.c.l.b16 %v6049
    %v7713 = vunpack.c.h.b16 %v6049
    %v7714 = vunpack.c.l.b16 %v6050
    %v7715 = vunpack.c.h.b16 %v6050
    %v7716 = vunpack.c.l.b16 %v6051
    %v7717 = vunpack.c.h.b16 %v6051
    %v7718 = vunpack.c.l.b16 %v6052
    %v7719 = vunpack.c.h.b16 %v6052
    %v7720 = vunpack.c.l.b16 %v6053
    %v7721 = vunpack.c.h.b16 %v6053
    %v7722 = vunpack.c.l.b16 %v6054
    %v7723 = vunpack.c.h.b16 %v6054
    %v7724 = vunpack.c.l.b16 %v6055
    %v7725 = vunpack.c.h.b16 %v6055
    %v7726 = vunpack.c.l.b16 %v6056
    %v7727 = vunpack.c.h.b16 %v6056
    %v7728 = vunpack.c.l.b16 %v6057
    %v7729 = vunpack.c.h.b16 %v6057
    %v7730 = vunpack.c.l.b16 %v6058
    %v7731 = vunpack.c.h.b16 %v6058
    %v7732 = vunpack.c.l.b16 %v6059
    %v7733 = vunpack.c.h.b16 %v6059
    %v7734 = vunpack.c.l.b16 %v6060
    %v7735 = vunpack.c.h.b16 %v6060
    %v7736 = vunpack.c.l.b16 %v6061
    %v7737 = vunpack.c.h.b16 %v6061
    %v7738 = vunpack.c.l.b16 %v6062
    %v7739 = vunpack.c.h.b16 %v6062
    %v7740 = vunpack.c.l.b16 %v6063
    %v7741 = vunpack.c.h.b16 %v6063
    %v7742 = vunpack.c.l.b16 %v6064
    %v7743 = vunpack.c.h.b16 %v6064
    %v7744 = vunpack.c.l.b16 %v6065
    %v7745 = vunpack.c.h.b16 %v6065
    %v7746 = vpack.c.b16 %v6786, %v6722
    %v7747 = vpack.c.b16 %v6787, %v6723
    %v7748 = vpack.c.b16 %v6788, %v6724
    %v7749 = vpack.c.b16 %v6789, %v6725
    %v7750 = vpack.c.b16 %v6790, %v6726
    %v7751 = vpack.c.b16 %v6791, %v6727
    %v7752 = vpack.c.b16 %v6792, %v6728
    %v7753 = vpack.c.b16 %v6793, %v6729
    %v7754 = vpack.c.b16 %v6794, %v6730
    %v7755 = vpack.c.b16 %v6795, %v6731
    %v7756 = vpack.c.b16 %v6796, %v6732
    %v7757 = vpack.c.b16 %v6797, %v6733
    %v7758 = vpack.c.b16 %v6798, %v6734
    %v7759 = vpack.c.b16 %v6799, %v6735
    %v7760 = vpack.c.b16 %v6800, %v6736
    %v7761 = vpack.c.b16 %v6801, %v6737
    %v7762 = vpack.c.b16 %v6802, %v6738
    %v7763 = vpack.c.b16 %v6803, %v6739
    %v7764 = vpack.c.b16 %v6804, %v6740
    %v7765 = vpack.c.b16 %v6805, %v6741
    %v7766 = vpack.c.b16 %v6806, %v6742
    %v7767 = vpack.c.b16 %v6807, %v6743
    %v7768 = vpack.c.b16 %v6808, %v6744
    %v7769 = vpack.c.b16 %v6809, %v6745
    %v7770 = vpack.c.b16 %v6810, %v6746
    %v7771 = vpack.c.b16 %v6811, %v6747
    %v7772 = vpack.c.b16 %v6812, %v6748
    %v7773 = vpack.c.b16 %v6813, %v6749
    %v7774 = vpack.c.b16 %v6814, %v6750
    %v7775 = vpack.c.b16 %v6815, %v6751
    %v7776 = vpack.c.b16 %v6816, %v6752
    %v7777 = vpack.c.b16 %v6817, %v6753
    %v7778 = vpack.c.b16 %v6818, %v6754
    %v7779 = vpack.c.b16 %v6819, %v6755
    %v7780 = vpack.c.b16 %v6820, %v6756
    %v7781 = vpack.c.b16 %v6821, %v6757
    %v7782 = vpack.c.b16 %v6822, %v6758
    %v7783 = vpack.c.b16 %v6823, %v6759
    %v7784 = vpack.c.b16 %v6824, %v6760
    %v7785 = vpack.c.b16 %v6825, %v6761
    %v7786 = vpack.c.b16 %v6826, %v6762
    %v7787 = vpack.c.b16 %v6827, %v6763
    %v7788 = vpack.c.b16 %v6828, %v6764
    %v7789 = vpack.c.b16 %v6829, %v6765
    %v7790 = vpack.c.b16 %v6830, %v6766
    %v7791 = vpack.c.b16 %v6831, %v6767
    %v7792 = vpack.c.b16 %v6832, %v6768
    %v7793 = vpack.c.b16 %v6833, %v6769
    %v7794 = vpack.c.b16 %v6834, %v6770
    %v7795 = vpack.c.b16 %v6835, %v6771
    %v7796 = vpack.c.b16 %v6836, %v6772
    %v7797 = vpack.c.b16 %v6837, %v6773
    %v7798 = vpack.c.b16 %v6838, %v6774
    %v7799 = vpack.c.b16 %v6839, %v6775
    %v7800 = vpack.c.b16 %v6840, %v6776
    %v7801 = vpack.c.b16 %v6841, %v6777
    %v7802 = vpack.c.b16 %v6842, %v6778
    %v7803 = vpack.c.b16 %v6843, %v6779
    %v7804 = vpack.c.b16 %v6844, %v6780
    %v7805 = vpack.c.b16 %v6845, %v6781
    %v7806 = vpack.c.b16 %v6846, %v6782
    %v7807 = vpack.c.b16 %v6847, %v6783
    %v7808 = vpack.c.b16 %v6848, %v6784
    %v7809 = vpack.c.b16 %v6849, %v6785
    %v7810 = vpack.c.b16 %v6914, %v6850
    %v7811 = vpack.c.b16 %v6915, %v6851
    %v7812 = vpack.c.b16 %v6916, %v6852
    %v7813 = vpack.c.b16 %v6917, %v6853
    %v7814 = vpack.c.b16 %v6918, %v6854
    %v7815 = vpack.c.b16 %v6919, %v6855
    %v7816 = vpack.c.b16 %v6920, %v6856
    %v7817 = vpack.c.b16 %v6921, %v6857
    %v7818 = vpack.c.b16 %v6922, %v6858
    %v7819 = vpack.c.b16 %v6923, %v6859
    %v7820 = vpack.c.b16 %v6924, %v6860
    %v7821 = vpack.c.b16 %v6925, %v6861
    %v7822 = vpack.c.b16 %v6926, %v6862
    %v7823 = vpack.c.b16 %v6927, %v6863
    %v7824 = vpack.c.b16 %v6928, %v6864
    %v7825 = vpack.c.b16 %v6929, %v6865
    %v7826 = vpack.c.b16 %v6930, %v6866
    %v7827 = vpack.c.b16 %v6931, %v6867
    %v7828 = vpack.c.b16 %v6932, %v6868
    %v7829 = vpack.c.b16 %v6933, %v6869
    %v7830 = vpack.c.b16 %v6934, %v6870
    %v7831 = vpack.c.b16 %v6935, %v6871
    %v7832 = vpack.c.b16 %v6936, %v6872
    %v7833 = vpack.c.b16 %v6937, %v6873
    %v7834 = vpack.c.b16 %v6938, %v6874
    %v7835 = vpack.c.b16 %v6939, %v6875
    %v7836 = vpack.c.b16 %v6940, %v6876
    %v7837 = vpack.c.b16 %v6941, %v6877
    %v7838 = vpack.c.b16 %v6942, %v6878
    %v7839 = vpack.c.b16 %v6943, %v6879
    %v7840 = vpack.c.b16 %v6944, %v6880
    %v7841 = vpack.c.b16 %v6945, %v6881
    %v7842 = vpack.c.b16 %v6946, %v6882
    %v7843 = vpack.c.b16 %v6947, %v6883
    %v7844 = vpack.c.b16 %v6948, %v6884
    %v7845 = vpack.c.b16 %v6949, %v6885
    %v7846 = vpack.c.b16 %v6950, %v6886
    %v7847 = vpack.c.b16 %v6951, %v6887
    %v7848 = vpack.c.b16 %v6952, %v6888
    %v7849 = vpack.c.b16 %v6953, %v6889
    %v7850 = vpack.c.b16 %v6954, %v6890
    %v7851 = vpack.c.b16 %v6955, %v6891
    %v7852 = vpack.c.b16 %v6956, %v6892
    %v7853 = vpack.c.b16 %v6957, %v6893
    %v7854 = vpack.c.b16 %v6958, %v6894
    %v7855 = vpack.c.b16 %v6959, %v6895
    %v7856 = vpack.c.b16 %v6960, %v6896
    %v7857 = vpack.c.b16 %v6961, %v6897
    %v7858 = vpack.c.b16 %v6962, %v6898
    %v7859 = vpack.c.b16 %v6963, %v6899
    %v7860 = vpack.c.b16 %v6964, %v6900
    %v7861 = vpack.c.b16 %v6965, %v6901
    %v7862 = vpack.c.b16 %v6966, %v6902
    %v7863 = vpack.c.b16 %v6967, %v6903
    %v7864 = vpack.c.b16 %v6968, %v6904
    %v7865 = vpack.c.b16 %v6969, %v6905
    %v7866 = vpack.c.b16 %v6970, %v6906
    %v7867 = vpack.c.b16 %v6971, %v6907
    %v7868 = vpack.c.b16 %v6972, %v6908
    %v7869 = vpack.c.b16 %v6973, %v6909
    %v7870 = vpack.c.b16 %v6974, %v6910
    %v7871 = vpack.c.b16 %v6975, %v6911
    %v7872 = vpack.c.b16 %v6976, %v6912
    %v7873 = vpack.c.b16 %v6977, %v6913
    %v7874 = vpack.c.b16 %v7042, %v6978
    %v7875 = vpack.c.b16 %v7043, %v6979
    %v7876 = vpack.c.b16 %v7044, %v6980
    %v7877 = vpack.c.b16 %v7045, %v6981
    %v7878 = vpack.c.b16 %v7046, %v6982
    %v7879 = vpack.c.b16 %v7047, %v6983
    %v7880 = vpack.c.b16 %v7048, %v6984
    %v7881 = vpack.c.b16 %v7049, %v6985
    %v7882 = vpack.c.b16 %v7050, %v6986
    %v7883 = vpack.c.b16 %v7051, %v6987
    %v7884 = vpack.c.b16 %v7052, %v6988
    %v7885 = vpack.c.b16 %v7053, %v6989
    %v7886 = vpack.c.b16 %v7054, %v6990
    %v7887 = vpack.c.b16 %v7055, %v6991
    %v7888 = vpack.c.b16 %v7056, %v6992
    %v7889 = vpack.c.b16 %v7057, %v6993
    %v7890 = vpack.c.b16 %v7058, %v6994
    %v7891 = vpack.c.b16 %v7059, %v6995
    %v7892 = vpack.c.b16 %v7060, %v6996
    %v7893 = vpack.c.b16 %v7061, %v6997
    %v7894 = vpack.c.b16 %v7062, %v6998
    %v7895 = vpack.c.b16 %v7063, %v6999
    %v7896 = vpack.c.b16 %v7064, %v7000
    %v7897 = vpack.c.b16 %v7065, %v7001
    %v7898 = vpack.c.b16 %v7066, %v7002
    %v7899 = vpack.c.b16 %v7067, %v7003
    %v7900 = vpack.c.b16 %v7068, %v7004
    %v7901 = vpack.c.b16 %v7069, %v7005
    %v7902 = vpack.c.b16 %v7070, %v7006
    %v7903 = vpack.c.b16 %v7071, %v7007
    %v7904 = vpack.c.b16 %v7072, %v7008
    %v7905 = vpack.c.b16 %v7073, %v7009
    %v7906 = vpack.c.b16 %v7074, %v7010
    %v7907 = vpack.c.b16 %v7075, %v7011
    %v7908 = vpack.c.b16 %v7076, %v7012
    %v7909 = vpack.c.b16 %v7077, %v7013
    %v7910 = vpack.c.b16 %v7078, %v7014
    %v7911 = vpack.c.b16 %v7079, %v7015
    %v7912 = vpack.c.b16 %v7080, %v7016
    %v7913 = vpack.c.b16 %v7081, %v7017
    %v7914 = vpack.c.b16 %v7082, %v7018
    %v7915 = vpack.c.b16 %v7083, %v7019
    %v7916 = vpack.c.b16 %v7084, %v7020
    %v7917 = vpack.c.b16 %v7085, %v7021
    %v7918 = vpack.c.b16 %v7086, %v7022
    %v7919 = vpack.c.b16 %v7087, %v7023
    %v7920 = vpack.c.b16 %v7088, %v7024
    %v7921 = vpack.c.b16 %v7089, %v7025
    %v7922 = vpack.c.b16 %v7090, %v7026
    %v7923 = vpack.c.b16 %v7091, %v7027
    %v7924 = vpack.c.b16 %v7092, %v7028
    %v7925 = vpack.c.b16 %v7093, %v7029
    %v7926 = vpack.c.b16 %v7094, %v7030
    %v7927 = vpack.c.b16 %v7095, %v7031
    %v7928 = vpack.c.b16 %v7096, %v7032
    %v7929 = vpack.c.b16 %v7097, %v7033
    %v7930 = vpack.c.b16 %v7098, %v7034
    %v7931 = vpack.c.b16 %v7099, %v7035
    %v7932 = vpack.c.b16 %v7100, %v7036
    %v7933 = vpack.c.b16 %v7101, %v7037
    %v7934 = vpack.c.b16 %v7102, %v7038
    %v7935 = vpack.c.b16 %v7103, %v7039
    %v7936 = vpack.c.b16 %v7104, %v7040
    %v7937 = vpack.c.b16 %v7105, %v7041
    %v7938 = vpack.c.b16 %v7170, %v7106
    %v7939 = vpack.c.b16 %v7171, %v7107
    %v7940 = vpack.c.b16 %v7172, %v7108
    %v7941 = vpack.c.b16 %v7173, %v7109
    %v7942 = vpack.c.b16 %v7174, %v7110
    %v7943 = vpack.c.b16 %v7175, %v7111
    %v7944 = vpack.c.b16 %v7176, %v7112
    %v7945 = vpack.c.b16 %v7177, %v7113
    %v7946 = vpack.c.b16 %v7178, %v7114
    %v7947 = vpack.c.b16 %v7179, %v7115
    %v7948 = vpack.c.b16 %v7180, %v7116
    %v7949 = vpack.c.b16 %v7181, %v7117
    %v7950 = vpack.c.b16 %v7182, %v7118
    %v7951 = vpack.c.b16 %v7183, %v7119
    %v7952 = vpack.c.b16 %v7184, %v7120
    %v7953 = vpack.c.b16 %v7185, %v7121
    %v7954 = vpack.c.b16 %v7186, %v7122
    %v7955 = vpack.c.b16 %v7187, %v7123
    %v7956 = vpack.c.b16 %v7188, %v7124
    %v7957 = vpack.c.b16 %v7189, %v7125
    %v7958 = vpack.c.b16 %v7190, %v7126
    %v7959 = vpack.c.b16 %v7191, %v7127
    %v7960 = vpack.c.b16 %v7192, %v7128
    %v7961 = vpack.c.b16 %v7193, %v7129
    %v7962 = vpack.c.b16 %v7194, %v7130
    %v7963 = vpack.c.b16 %v7195, %v7131
    %v7964 = vpack.c.b16 %v7196, %v7132
    %v7965 = vpack.c.b16 %v7197, %v7133
    %v7966 = vpack.c.b16 %v7198, %v7134
    %v7967 = vpack.c.b16 %v7199, %v7135
    %v7968 = vpack.c.b16 %v7200, %v7136
    %v7969 = vpack.c.b16 %v7201, %v7137
    %v7970 = vpack.c.b16 %v7202, %v7138
    %v7971 = vpack.c.b16 %v7203, %v7139
    %v7972 = vpack.c.b16 %v7204, %v7140
    %v7973 = vpack.c.b16 %v7205, %v7141
    %v7974 = vpack.c.b16 %v7206, %v7142
    %v7975 = vpack.c.b16 %v7207, %v7143
    %v7976 = vpack.c.b16 %v7208, %v7144
    %v7977 = vpack.c.b16 %v7209, %v7145
    %v7978 = vpack.c.b16 %v7210, %v7146
    %v7979 = vpack.c.b16 %v7211, %v7147
    %v7980 = vpack.c.b16 %v7212, %v7148
    %v7981 = vpack.c.b16 %v7213, %v7149
    %v7982 = vpack.c.b16 %v7214, %v7150
    %v7983 = vpack.c.b16 %v7215, %v7151
    %v7984 = vpack.c.b16 %v7216, %v7152
    %v7985 = vpack.c.b16 %v7217, %v7153
    %v7986 = vpack.c.b16 %v7218, %v7154
    %v7987 = vpack.c.b16 %v7219, %v7155
    %v7988 = vpack.c.b16 %v7220, %v7156
    %v7989 = vpack.c.b16 %v7221, %v7157
    %v7990 = vpack.c.b16 %v7222, %v7158
    %v7991 = vpack.c.b16 %v7223, %v7159
    %v7992 = vpack.c.b16 %v7224, %v7160
    %v7993 = vpack.c.b16 %v7225, %v7161
    %v7994 = vpack.c.b16 %v7226, %v7162
    %v7995 = vpack.c.b16 %v7227, %v7163
    %v7996 = vpack.c.b16 %v7228, %v7164
    %v7997 = vpack.c.b16 %v7229, %v7165
    %v7998 = vpack.c.b16 %v7230, %v7166
    %v7999 = vpack.c.b16 %v7231, %v7167
    %v8000 = vpack.c.b16 %v7232, %v7168
    %v8001 = vpack.c.b16 %v7233, %v7169
    %v8002 = vpack.c.b16 %v7298, %v7234
    %v8003 = vpack.c.b16 %v7299, %v7235
    %v8004 = vpack.c.b16 %v7300, %v7236
    %v8005 = vpack.c.b16 %v7301, %v7237
    %v8006 = vpack.c.b16 %v7302, %v7238
    %v8007 = vpack.c.b16 %v7303, %v7239
    %v8008 = vpack.c.b16 %v7304, %v7240
    %v8009 = vpack.c.b16 %v7305, %v7241
    %v8010 = vpack.c.b16 %v7306, %v7242
    %v8011 = vpack.c.b16 %v7307, %v7243
    %v8012 = vpack.c.b16 %v7308, %v7244
    %v8013 = vpack.c.b16 %v7309, %v7245
    %v8014 = vpack.c.b16 %v7310, %v7246
    %v8015 = vpack.c.b16 %v7311, %v7247
    %v8016 = vpack.c.b16 %v7312, %v7248
    %v8017 = vpack.c.b16 %v7313, %v7249
    %v8018 = vpack.c.b16 %v7314, %v7250
    %v8019 = vpack.c.b16 %v7315, %v7251
    %v8020 = vpack.c.b16 %v7316, %v7252
    %v8021 = vpack.c.b16 %v7317, %v7253
    %v8022 = vpack.c.b16 %v7318, %v7254
    %v8023 = vpack.c.b16 %v7319, %v7255
    %v8024 = vpack.c.b16 %v7320, %v7256
    %v8025 = vpack.c.b16 %v7321, %v7257
    %v8026 = vpack.c.b16 %v7322, %v7258
    %v8027 = vpack.c.b16 %v7323, %v7259
    %v8028 = vpack.c.b16 %v7324, %v7260
    %v8029 = vpack.c.b16 %v7325, %v7261
    %v8030 = vpack.c.b16 %v7326, %v7262
    %v8031 = vpack.c.b16 %v7327, %v7263
    %v8032 = vpack.c.b16 %v7328, %v7264
    %v8033 = vpack.c.b16 %v7329, %v7265
    %v8034 = vpack.c.b16 %v7330, %v7266
    %v8035 = vpack.c.b16 %v7331, %v7267
    %v8036 = vpack.c.b16 %v7332, %v7268
    %v8037 = vpack.c.b16 %v7333, %v7269
    %v8038 = vpack.c.b16 %v7334, %v7270
    %v8039 = vpack.c.b16 %v7335, %v7271
    %v8040 = vpack.c.b16 %v7336, %v7272
    %v8041 = vpack.c.b16 %v7337, %v7273
    %v8042 = vpack.c.b16 %v7338, %v7274
    %v8043 = vpack.c.b16 %v7339, %v7275
    %v8044 = vpack.c.b16 %v7340, %v7276
    %v8045 = vpack.c.b16 %v7341, %v7277
    %v8046 = vpack.c.b16 %v7342, %v7278
    %v8047 = vpack.c.b16 %v7343, %v7279
    %v8048 = vpack.c.b16 %v7344, %v7280
    %v8049 = vpack.c.b16 %v7345, %v7281
    %v8050 = vpack.c.b16 %v7346, %v7282
    %v8051 = vpack.c.b16 %v7347, %v7283
    %v8052 = vpack.c.b16 %v7348, %v7284
    %v8053 = vpack.c.b16 %v7349, %v7285
    %v8054 = vpack.c.b16 %v7350, %v7286
    %v8055 = vpack.c.b16 %v7351, %v7287
    %v8056 = vpack.c.b16 %v7352, %v7288
    %v8057 = vpack.c.b16 %v7353, %v7289
    %v8058 = vpack.c.b16 %v7354, %v7290
    %v8059 = vpack.c.b16 %v7355, %v7291
    %v8060 = vpack.c.b16 %v7356, %v7292
    %v8061 = vpack.c.b16 %v7357, %v7293
    %v8062 = vpack.c.b16 %v7358, %v7294
    %v8063 = vpack.c.b16 %v7359, %v7295
    %v8064 = vpack.c.b16 %v7360, %v7296
    %v8065 = vpack.c.b16 %v7361, %v7297
    %v8066 = vpack.c.b16 %v7426, %v7362
    %v8067 = vpack.c.b16 %v7427, %v7363
    %v8068 = vpack.c.b16 %v7428, %v7364
    %v8069 = vpack.c.b16 %v7429, %v7365
    %v8070 = vpack.c.b16 %v7430, %v7366
    %v8071 = vpack.c.b16 %v7431, %v7367
    %v8072 = vpack.c.b16 %v7432, %v7368
    %v8073 = vpack.c.b16 %v7433, %v7369
    %v8074 = vpack.c.b16 %v7434, %v7370
    %v8075 = vpack.c.b16 %v7435, %v7371
    %v8076 = vpack.c.b16 %v7436, %v7372
    %v8077 = vpack.c.b16 %v7437, %v7373
    %v8078 = vpack.c.b16 %v7438, %v7374
    %v8079 = vpack.c.b16 %v7439, %v7375
    %v8080 = vpack.c.b16 %v7440, %v7376
    %v8081 = vpack.c.b16 %v7441, %v7377
    %v8082 = vpack.c.b16 %v7442, %v7378
    %v8083 = vpack.c.b16 %v7443, %v7379
    %v8084 = vpack.c.b16 %v7444, %v7380
    %v8085 = vpack.c.b16 %v7445, %v7381
    %v8086 = vpack.c.b16 %v7446, %v7382
    %v8087 = vpack.c.b16 %v7447, %v7383
    %v8088 = vpack.c.b16 %v7448, %v7384
    %v8089 = vpack.c.b16 %v7449, %v7385
    %v8090 = vpack.c.b16 %v7450, %v7386
    %v8091 = vpack.c.b16 %v7451, %v7387
    %v8092 = vpack.c.b16 %v7452, %v7388
    %v8093 = vpack.c.b16 %v7453, %v7389
    %v8094 = vpack.c.b16 %v7454, %v7390
    %v8095 = vpack.c.b16 %v7455, %v7391
    %v8096 = vpack.c.b16 %v7456, %v7392
    %v8097 = vpack.c.b16 %v7457, %v7393
    %v8098 = vpack.c.b16 %v7458, %v7394
    %v8099 = vpack.c.b16 %v7459, %v7395
    %v8100 = vpack.c.b16 %v7460, %v7396
    %v8101 = vpack.c.b16 %v7461, %v7397
    %v8102 = vpack.c.b16 %v7462, %v7398
    %v8103 = vpack.c.b16 %v7463, %v7399
    %v8104 = vpack.c.b16 %v7464, %v7400
    %v8105 = vpack.c.b16 %v7465, %v7401
    %v8106 = vpack.c.b16 %v7466, %v7402
    %v8107 = vpack.c.b16 %v7467, %v7403
    %v8108 = vpack.c.b16 %v7468, %v7404
    %v8109 = vpack.c.b16 %v7469, %v7405
    %v8110 = vpack.c.b16 %v7470, %v7406
    %v8111 = vpack.c.b16 %v7471, %v7407
    %v8112 = vpack.c.b16 %v7472, %v7408
    %v8113 = vpack.c.b16 %v7473, %v7409
    %v8114 = vpack.c.b16 %v7474, %v7410
    %v8115 = vpack.c.b16 %v7475, %v7411
    %v8116 = vpack.c.b16 %v7476, %v7412
    %v8117 = vpack.c.b16 %v7477, %v7413
    %v8118 = vpack.c.b16 %v7478, %v7414
    %v8119 = vpack.c.b16 %v7479, %v7415
    %v8120 = vpack.c.b16 %v7480, %v7416
    %v8121 = vpack.c.b16 %v7481, %v7417
    %v8122 = vpack.c.b16 %v7482, %v7418
    %v8123 = vpack.c.b16 %v7483, %v7419
    %v8124 = vpack.c.b16 %v7484, %v7420
    %v8125 = vpack.c.b16 %v7485, %v7421
    %v8126 = vpack.c.b16 %v7486, %v7422
    %v8127 = vpack.c.b16 %v7487, %v7423
    %v8128 = vpack.c.b16 %v7488, %v7424
    %v8129 = vpack.c.b16 %v7489, %v7425
    %v8130 = vpack.c.b16 %v7554, %v7490
    %v8131 = vpack.c.b16 %v7555, %v7491
    %v8132 = vpack.c.b16 %v7556, %v7492
    %v8133 = vpack.c.b16 %v7557, %v7493
    %v8134 = vpack.c.b16 %v7558, %v7494
    %v8135 = vpack.c.b16 %v7559, %v7495
    %v8136 = vpack.c.b16 %v7560, %v7496
    %v8137 = vpack.c.b16 %v7561, %v7497
    %v8138 = vpack.c.b16 %v7562, %v7498
    %v8139 = vpack.c.b16 %v7563, %v7499
    %v8140 = vpack.c.b16 %v7564, %v7500
    %v8141 = vpack.c.b16 %v7565, %v7501
    %v8142 = vpack.c.b16 %v7566, %v7502
    %v8143 = vpack.c.b16 %v7567, %v7503
    %v8144 = vpack.c.b16 %v7568, %v7504
    %v8145 = vpack.c.b16 %v7569, %v7505
    %v8146 = vpack.c.b16 %v7570, %v7506
    %v8147 = vpack.c.b16 %v7571, %v7507
    %v8148 = vpack.c.b16 %v7572, %v7508
    %v8149 = vpack.c.b16 %v7573, %v7509
    %v8150 = vpack.c.b16 %v7574, %v7510
    %v8151 = vpack.c.b16 %v7575, %v7511
    %v8152 = vpack.c.b16 %v7576, %v7512
    %v8153 = vpack.c.b16 %v7577, %v7513
    %v8154 = vpack.c.b16 %v7578, %v7514
    %v8155 = vpack.c.b16 %v7579, %v7515
    %v8156 = vpack.c.b16 %v7580, %v7516
    %v8157 = vpack.c.b16 %v7581, %v7517
    %v8158 = vpack.c.b16 %v7582, %v7518
    %v8159 = vpack.c.b16 %v7583, %v7519
    %v8160 = vpack.c.b16 %v7584, %v7520
    %v8161 = vpack.c.b16 %v7585, %v7521
    %v8162 = vpack.c.b16 %v7586, %v7522
    %v8163 = vpack.c.b16 %v7587, %v7523
    %v8164 = vpack.c.b16 %v7588, %v7524
    %v8165 = vpack.c.b16 %v7589, %v7525
    %v8166 = vpack.c.b16 %v7590, %v7526
    %v8167 = vpack.c.b16 %v7591, %v7527
    %v8168 = vpack.c.b16 %v7592, %v7528
    %v8169 = vpack.c.b16 %v7593, %v7529
    %v8170 = vpack.c.b16 %v7594, %v7530
    %v8171 = vpack.c.b16 %v7595, %v7531
    %v8172 = vpack.c.b16 %v7596, %v7532
    %v8173 = vpack.c.b16 %v7597, %v7533
    %v8174 = vpack.c.b16 %v7598, %v7534
    %v8175 = vpack.c.b16 %v7599, %v7535
    %v8176 = vpack.c.b16 %v7600, %v7536
    %v8177 = vpack.c.b16 %v7601, %v7537
    %v8178 = vpack.c.b16 %v7602, %v7538
    %v8179 = vpack.c.b16 %v7603, %v7539
    %v8180 = vpack.c.b16 %v7604, %v7540
    %v8181 = vpack.c.b16 %v7605, %v7541
    %v8182 = vpack.c.b16 %v7606, %v7542
    %v8183 = vpack.c.b16 %v7607, %v7543
    %v8184 = vpack.c.b16 %v7608, %v7544
    %v8185 = vpack.c.b16 %v7609, %v7545
    %v8186 = vpack.c.b16 %v7610, %v7546
    %v8187 = vpack.c.b16 %v7611, %v7547
    %v8188 = vpack.c.b16 %v7612, %v7548
    %v8189 = vpack.c.b16 %v7613, %v7549
    %v8190 = vpack.c.b16 %v7614, %v7550
    %v8191 = vpack.c.b16 %v7615, %v7551
    %v8192 = vpack.c.b16 %v7616, %v7552
    %v8193 = vpack.c.b16 %v7617, %v7553
    %v8194 = vpack.c.b16 %v7682, %v7618
    %v8195 = vpack.c.b16 %v7683, %v7619
    %v8196 = vpack.c.b16 %v7684, %v7620
    %v8197 = vpack.c.b16 %v7685, %v7621
    %v8198 = vpack.c.b16 %v7686, %v7622
    %v8199 = vpack.c.b16 %v7687, %v7623
    %v8200 = vpack.c.b16 %v7688, %v7624
    %v8201 = vpack.c.b16 %v7689, %v7625
    %v8202 = vpack.c.b16 %v7690, %v7626
    %v8203 = vpack.c.b16 %v7691, %v7627
    %v8204 = vpack.c.b16 %v7692, %v7628
    %v8205 = vpack.c.b16 %v7693, %v7629
    %v8206 = vpack.c.b16 %v7694, %v7630
    %v8207 = vpack.c.b16 %v7695, %v7631
    %v8208 = vpack.c.b16 %v7696, %v7632
    %v8209 = vpack.c.b16 %v7697, %v7633
    %v8210 = vpack.c.b16 %v7698, %v7634
    %v8211 = vpack.c.b16 %v7699, %v7635
    %v8212 = vpack.c.b16 %v7700, %v7636
    %v8213 = vpack.c.b16 %v7701, %v7637
    %v8214 = vpack.c.b16 %v7702, %v7638
    %v8215 = vpack.c.b16 %v7703, %v7639
    %v8216 = vpack.c.b16 %v7704, %v7640
    %v8217 = vpack.c.b16 %v7705, %v7641
    %v8218 = vpack.c.b16 %v7706, %v7642
    %v8219 = vpack.c.b16 %v7707, %v7643
    %v8220 = vpack.c.b16 %v7708, %v7644
    %v8221 = vpack.c.b16 %v7709, %v7645
    %v8222 = vpack.c.b16 %v7710, %v7646
    %v8223 = vpack.c.b16 %v7711, %v7647
    %v8224 = vpack.c.b16 %v7712, %v7648
    %v8225 = vpack.c.b16 %v7713, %v7649
    %v8226 = vpack.c.b16 %v7714, %v7650
    %v8227 = vpack.c.b16 %v7715, %v7651
    %v8228 = vpack.c.b16 %v7716, %v7652
    %v8229 = vpack.c.b16 %v7717, %v7653
    %v8230 = vpack.c.b16 %v7718, %v7654
    %v8231 = vpack.c.b16 %v7719, %v7655
    %v8232 = vpack.c.b16 %v7720, %v7656
    %v8233 = vpack.c.b16 %v7721, %v7657
    %v8234 = vpack.c.b16 %v7722, %v7658
    %v8235 = vpack.c.b16 %v7723, %v7659
    %v8236 = vpack.c.b16 %v7724, %v7660
    %v8237 = vpack.c.b16 %v7725, %v7661
    %v8238 = vpack.c.b16 %v7726, %v7662
    %v8239 = vpack.c.b16 %v7727, %v7663
    %v8240 = vpack.c.b16 %v7728, %v7664
    %v8241 = vpack.c.b16 %v7729, %v7665
    %v8242 = vpack.c.b16 %v7730, %v7666
    %v8243 = vpack.c.b16 %v7731, %v7667
    %v8244 = vpack.c.b16 %v7732, %v7668
    %v8245 = vpack.c.b16 %v7733, %v7669
    %v8246 = vpack.c.b16 %v7734, %v7670
    %v8247 = vpack.c.b16 %v7735, %v7671
    %v8248 = vpack.c.b16 %v7736, %v7672
    %v8249 = vpack.c.b16 %v7737, %v7673
    %v8250 = vpack.c.b16 %v7738, %v7674
    %v8251 = vpack.c.b16 %v7739, %v7675
    %v8252 = vpack.c.b16 %v7740, %v7676
    %v8253 = vpack.c.b16 %v7741, %v7677
    %v8254 = vpack.c.b16 %v7742, %v7678
    %v8255 = vpack.c.b16 %v7743, %v7679
    %v8256 = vpack.c.b16 %v7744, %v7680
    %v8257 = vpack.c.b16 %v7745, %v7681
    %8770 = vmatpush.bf16.msra.mxu0 %v8194
    %8771 = vmatpush.bf16.msra.mxu0 %v8130
    %8772 = vmatpush.bf16.msra.mxu0 %v8066
    %8773 = vmatpush.bf16.msra.mxu0 %v8002
    %8774 = vmatpush.bf16.msra.mxu0 %v7938
    %8775 = vmatpush.bf16.msra.mxu0 %v7874
    %8776 = vmatpush.bf16.msra.mxu0 %v7810
    %8777 = vmatpush.bf16.msra.mxu0 %v7746
    %8778 = vmatmul.bf16.gmra.mxu0 %v5553
    %v8779 = vpop.f32.mrf.mxu0
    %v8780 = vadd.f32 %v6082, %v8779
    %v8781 = vpop.f32.mrf.mxu0
    %8782 = vdwg.mxu0
    %8783 = vmatpush.bf16.msra.mxu0 %v8195
    %8784 = vmatpush.bf16.msra.mxu0 %v8131
    %8785 = vmatpush.bf16.msra.mxu0 %v8067
    %8786 = vmatpush.bf16.msra.mxu0 %v8003
    %8787 = vmatpush.bf16.msra.mxu0 %v7939
    %8788 = vmatpush.bf16.msra.mxu0 %v7875
    %8789 = vmatpush.bf16.msra.mxu0 %v7811
    %8790 = vmatpush.bf16.msra.mxu0 %v7747
    %8791 = vmatmul.bf16.gmra.mxu0 %v5553
    %v8792 = vpop.f32.mrf.mxu0
    %v8793 = vadd.f32 %v6083, %v8792
    %v8794 = vpop.f32.mrf.mxu0
    %8795 = vdwg.mxu0
    %8796 = vmatpush.bf16.msra.mxu0 %v8196
    %8797 = vmatpush.bf16.msra.mxu0 %v8132
    %8798 = vmatpush.bf16.msra.mxu0 %v8068
    %8799 = vmatpush.bf16.msra.mxu0 %v8004
    %8800 = vmatpush.bf16.msra.mxu0 %v7940
    %8801 = vmatpush.bf16.msra.mxu0 %v7876
    %8802 = vmatpush.bf16.msra.mxu0 %v7812
    %8803 = vmatpush.bf16.msra.mxu0 %v7748
    %8804 = vmatmul.bf16.gmra.mxu0 %v5553
    %v8805 = vpop.f32.mrf.mxu0
    %v8806 = vadd.f32 %v6084, %v8805
    %v8807 = vpop.f32.mrf.mxu0
    %8808 = vdwg.mxu0
    %8809 = vmatpush.bf16.msra.mxu0 %v8197
    %8810 = vmatpush.bf16.msra.mxu0 %v8133
    %8811 = vmatpush.bf16.msra.mxu0 %v8069
    %8812 = vmatpush.bf16.msra.mxu0 %v8005
    %8813 = vmatpush.bf16.msra.mxu0 %v7941
    %8814 = vmatpush.bf16.msra.mxu0 %v7877
    %8815 = vmatpush.bf16.msra.mxu0 %v7813
    %8816 = vmatpush.bf16.msra.mxu0 %v7749
    %8817 = vmatmul.bf16.gmra.mxu0 %v5553
    %v8818 = vpop.f32.mrf.mxu0
    %v8819 = vadd.f32 %v6085, %v8818
    %v8820 = vpop.f32.mrf.mxu0
    %8821 = vdwg.mxu0
    %8822 = vmatpush.bf16.msra.mxu0 %v8198
    %8823 = vmatpush.bf16.msra.mxu0 %v8134
    %8824 = vmatpush.bf16.msra.mxu0 %v8070
    %8825 = vmatpush.bf16.msra.mxu0 %v8006
    %8826 = vmatpush.bf16.msra.mxu0 %v7942
    %8827 = vmatpush.bf16.msra.mxu0 %v7878
    %8828 = vmatpush.bf16.msra.mxu0 %v7814
    %8829 = vmatpush.bf16.msra.mxu0 %v7750
    %8830 = vmatmul.bf16.gmra.mxu0 %v5553
    %v8831 = vpop.f32.mrf.mxu0
    %v8832 = vadd.f32 %v6086, %v8831
    %v8833 = vpop.f32.mrf.mxu0
    %8834 = vdwg.mxu0
    %8835 = vmatpush.bf16.msra.mxu0 %v8199
    %8836 = vmatpush.bf16.msra.mxu0 %v8135
    %8837 = vmatpush.bf16.msra.mxu0 %v8071
    %8838 = vmatpush.bf16.msra.mxu0 %v8007
    %8839 = vmatpush.bf16.msra.mxu0 %v7943
    %8840 = vmatpush.bf16.msra.mxu0 %v7879
    %8841 = vmatpush.bf16.msra.mxu0 %v7815
    %8842 = vmatpush.bf16.msra.mxu0 %v7751
    %8843 = vmatmul.bf16.gmra.mxu0 %v5553
    %v8844 = vpop.f32.mrf.mxu0
    %v8845 = vadd.f32 %v6087, %v8844
    %v8846 = vpop.f32.mrf.mxu0
    %8847 = vdwg.mxu0
    %8848 = vmatpush.bf16.msra.mxu0 %v8200
    %8849 = vmatpush.bf16.msra.mxu0 %v8136
    %8850 = vmatpush.bf16.msra.mxu0 %v8072
    %8851 = vmatpush.bf16.msra.mxu0 %v8008
    %8852 = vmatpush.bf16.msra.mxu0 %v7944
    %8853 = vmatpush.bf16.msra.mxu0 %v7880
    %8854 = vmatpush.bf16.msra.mxu0 %v7816
    %8855 = vmatpush.bf16.msra.mxu0 %v7752
    %8856 = vmatmul.bf16.gmra.mxu0 %v5553
    %v8857 = vpop.f32.mrf.mxu0
    %v8858 = vadd.f32 %v6088, %v8857
    %v8859 = vpop.f32.mrf.mxu0
    %8860 = vdwg.mxu0
    %8861 = vmatpush.bf16.msra.mxu0 %v8201
    %8862 = vmatpush.bf16.msra.mxu0 %v8137
    %8863 = vmatpush.bf16.msra.mxu0 %v8073
    %8864 = vmatpush.bf16.msra.mxu0 %v8009
    %8865 = vmatpush.bf16.msra.mxu0 %v7945
    %8866 = vmatpush.bf16.msra.mxu0 %v7881
    %8867 = vmatpush.bf16.msra.mxu0 %v7817
    %8868 = vmatpush.bf16.msra.mxu0 %v7753
    %8869 = vmatmul.bf16.gmra.mxu0 %v5553
    %v8870 = vpop.f32.mrf.mxu0
    %v8871 = vadd.f32 %v6089, %v8870
    %v8872 = vpop.f32.mrf.mxu0
    %8873 = vdwg.mxu0
    %8874 = vmatpush.bf16.msra.mxu0 %v8202
    %8875 = vmatpush.bf16.msra.mxu0 %v8138
    %8876 = vmatpush.bf16.msra.mxu0 %v8074
    %8877 = vmatpush.bf16.msra.mxu0 %v8010
    %8878 = vmatpush.bf16.msra.mxu0 %v7946
    %8879 = vmatpush.bf16.msra.mxu0 %v7882
    %8880 = vmatpush.bf16.msra.mxu0 %v7818
    %8881 = vmatpush.bf16.msra.mxu0 %v7754
    %8882 = vmatmul.bf16.gmra.mxu0 %v5553
    %v8883 = vpop.f32.mrf.mxu0
    %v8884 = vadd.f32 %v6090, %v8883
    %v8885 = vpop.f32.mrf.mxu0
    %8886 = vdwg.mxu0
    %8887 = vmatpush.bf16.msra.mxu0 %v8203
    %8888 = vmatpush.bf16.msra.mxu0 %v8139
    %8889 = vmatpush.bf16.msra.mxu0 %v8075
    %8890 = vmatpush.bf16.msra.mxu0 %v8011
    %8891 = vmatpush.bf16.msra.mxu0 %v7947
    %8892 = vmatpush.bf16.msra.mxu0 %v7883
    %8893 = vmatpush.bf16.msra.mxu0 %v7819
    %8894 = vmatpush.bf16.msra.mxu0 %v7755
    %8895 = vmatmul.bf16.gmra.mxu0 %v5553
    %v8896 = vpop.f32.mrf.mxu0
    %v8897 = vadd.f32 %v6091, %v8896
    %v8898 = vpop.f32.mrf.mxu0
    %8899 = vdwg.mxu0
    %8900 = vmatpush.bf16.msra.mxu0 %v8204
    %8901 = vmatpush.bf16.msra.mxu0 %v8140
    %8902 = vmatpush.bf16.msra.mxu0 %v8076
    %8903 = vmatpush.bf16.msra.mxu0 %v8012
    %8904 = vmatpush.bf16.msra.mxu0 %v7948
    %8905 = vmatpush.bf16.msra.mxu0 %v7884
    %8906 = vmatpush.bf16.msra.mxu0 %v7820
    %8907 = vmatpush.bf16.msra.mxu0 %v7756
    %8908 = vmatmul.bf16.gmra.mxu0 %v5553
    %v8909 = vpop.f32.mrf.mxu0
    %v8910 = vadd.f32 %v6092, %v8909
    %v8911 = vpop.f32.mrf.mxu0
    %8912 = vdwg.mxu0
    %8913 = vmatpush.bf16.msra.mxu0 %v8205
    %8914 = vmatpush.bf16.msra.mxu0 %v8141
    %8915 = vmatpush.bf16.msra.mxu0 %v8077
    %8916 = vmatpush.bf16.msra.mxu0 %v8013
    %8917 = vmatpush.bf16.msra.mxu0 %v7949
    %8918 = vmatpush.bf16.msra.mxu0 %v7885
    %8919 = vmatpush.bf16.msra.mxu0 %v7821
    %8920 = vmatpush.bf16.msra.mxu0 %v7757
    %8921 = vmatmul.bf16.gmra.mxu0 %v5553
    %v8922 = vpop.f32.mrf.mxu0
    %v8923 = vadd.f32 %v6093, %v8922
    %v8924 = vpop.f32.mrf.mxu0
    %8925 = vdwg.mxu0
    %8926 = vmatpush.bf16.msra.mxu0 %v8206
    %8927 = vmatpush.bf16.msra.mxu0 %v8142
    %8928 = vmatpush.bf16.msra.mxu0 %v8078
    %8929 = vmatpush.bf16.msra.mxu0 %v8014
    %8930 = vmatpush.bf16.msra.mxu0 %v7950
    %8931 = vmatpush.bf16.msra.mxu0 %v7886
    %8932 = vmatpush.bf16.msra.mxu0 %v7822
    %8933 = vmatpush.bf16.msra.mxu0 %v7758
    %8934 = vmatmul.bf16.gmra.mxu0 %v5553
    %v8935 = vpop.f32.mrf.mxu0
    %v8936 = vadd.f32 %v6094, %v8935
    %v8937 = vpop.f32.mrf.mxu0
    %8938 = vdwg.mxu0
    %8939 = vmatpush.bf16.msra.mxu0 %v8207
    %8940 = vmatpush.bf16.msra.mxu0 %v8143
    %8941 = vmatpush.bf16.msra.mxu0 %v8079
    %8942 = vmatpush.bf16.msra.mxu0 %v8015
    %8943 = vmatpush.bf16.msra.mxu0 %v7951
    %8944 = vmatpush.bf16.msra.mxu0 %v7887
    %8945 = vmatpush.bf16.msra.mxu0 %v7823
    %8946 = vmatpush.bf16.msra.mxu0 %v7759
    %8947 = vmatmul.bf16.gmra.mxu0 %v5553
    %v8948 = vpop.f32.mrf.mxu0
    %v8949 = vadd.f32 %v6095, %v8948
    %v8950 = vpop.f32.mrf.mxu0
    %8951 = vdwg.mxu0
    %8952 = vmatpush.bf16.msra.mxu0 %v8208
    %8953 = vmatpush.bf16.msra.mxu0 %v8144
    %8954 = vmatpush.bf16.msra.mxu0 %v8080
    %8955 = vmatpush.bf16.msra.mxu0 %v8016
    %8956 = vmatpush.bf16.msra.mxu0 %v7952
    %8957 = vmatpush.bf16.msra.mxu0 %v7888
    %8958 = vmatpush.bf16.msra.mxu0 %v7824
    %8959 = vmatpush.bf16.msra.mxu0 %v7760
    %8960 = vmatmul.bf16.gmra.mxu0 %v5553
    %v8961 = vpop.f32.mrf.mxu0
    %v8962 = vadd.f32 %v6096, %v8961
    %v8963 = vpop.f32.mrf.mxu0
    %8964 = vdwg.mxu0
    %8965 = vmatpush.bf16.msra.mxu0 %v8209
    %8966 = vmatpush.bf16.msra.mxu0 %v8145
    %8967 = vmatpush.bf16.msra.mxu0 %v8081
    %8968 = vmatpush.bf16.msra.mxu0 %v8017
    %8969 = vmatpush.bf16.msra.mxu0 %v7953
    %8970 = vmatpush.bf16.msra.mxu0 %v7889
    %8971 = vmatpush.bf16.msra.mxu0 %v7825
    %8972 = vmatpush.bf16.msra.mxu0 %v7761
    %8973 = vmatmul.bf16.gmra.mxu0 %v5553
    %v8974 = vpop.f32.mrf.mxu0
    %v8975 = vadd.f32 %v6097, %v8974
    %v8976 = vpop.f32.mrf.mxu0
    %8977 = vdwg.mxu0
    %8978 = vmatpush.bf16.msra.mxu0 %v8210
    %8979 = vmatpush.bf16.msra.mxu0 %v8146
    %8980 = vmatpush.bf16.msra.mxu0 %v8082
    %8981 = vmatpush.bf16.msra.mxu0 %v8018
    %8982 = vmatpush.bf16.msra.mxu0 %v7954
    %8983 = vmatpush.bf16.msra.mxu0 %v7890
    %8984 = vmatpush.bf16.msra.mxu0 %v7826
    %8985 = vmatpush.bf16.msra.mxu0 %v7762
    %8986 = vmatmul.bf16.gmra.mxu0 %v5553
    %v8987 = vpop.f32.mrf.mxu0
    %v8988 = vadd.f32 %v6098, %v8987
    %v8989 = vpop.f32.mrf.mxu0
    %8990 = vdwg.mxu0
    %8991 = vmatpush.bf16.msra.mxu0 %v8211
    %8992 = vmatpush.bf16.msra.mxu0 %v8147
    %8993 = vmatpush.bf16.msra.mxu0 %v8083
    %8994 = vmatpush.bf16.msra.mxu0 %v8019
    %8995 = vmatpush.bf16.msra.mxu0 %v7955
    %8996 = vmatpush.bf16.msra.mxu0 %v7891
    %8997 = vmatpush.bf16.msra.mxu0 %v7827
    %8998 = vmatpush.bf16.msra.mxu0 %v7763
    %8999 = vmatmul.bf16.gmra.mxu0 %v5553
    %v9000 = vpop.f32.mrf.mxu0
    %v9001 = vadd.f32 %v6099, %v9000
    %v9002 = vpop.f32.mrf.mxu0
    %9003 = vdwg.mxu0
    %9004 = vmatpush.bf16.msra.mxu0 %v8212
    %9005 = vmatpush.bf16.msra.mxu0 %v8148
    %9006 = vmatpush.bf16.msra.mxu0 %v8084
    %9007 = vmatpush.bf16.msra.mxu0 %v8020
    %9008 = vmatpush.bf16.msra.mxu0 %v7956
    %9009 = vmatpush.bf16.msra.mxu0 %v7892
    %9010 = vmatpush.bf16.msra.mxu0 %v7828
    %9011 = vmatpush.bf16.msra.mxu0 %v7764
    %9012 = vmatmul.bf16.gmra.mxu0 %v5553
    %v9013 = vpop.f32.mrf.mxu0
    %v9014 = vadd.f32 %v6100, %v9013
    %v9015 = vpop.f32.mrf.mxu0
    %9016 = vdwg.mxu0
    %9017 = vmatpush.bf16.msra.mxu0 %v8213
    %9018 = vmatpush.bf16.msra.mxu0 %v8149
    %9019 = vmatpush.bf16.msra.mxu0 %v8085
    %9020 = vmatpush.bf16.msra.mxu0 %v8021
    %9021 = vmatpush.bf16.msra.mxu0 %v7957
    %9022 = vmatpush.bf16.msra.mxu0 %v7893
    %9023 = vmatpush.bf16.msra.mxu0 %v7829
    %9024 = vmatpush.bf16.msra.mxu0 %v7765
    %9025 = vmatmul.bf16.gmra.mxu0 %v5553
    %v9026 = vpop.f32.mrf.mxu0
    %v9027 = vadd.f32 %v6101, %v9026
    %v9028 = vpop.f32.mrf.mxu0
    %9029 = vdwg.mxu0
    %9030 = vmatpush.bf16.msra.mxu0 %v8214
    %9031 = vmatpush.bf16.msra.mxu0 %v8150
    %9032 = vmatpush.bf16.msra.mxu0 %v8086
    %9033 = vmatpush.bf16.msra.mxu0 %v8022
    %9034 = vmatpush.bf16.msra.mxu0 %v7958
    %9035 = vmatpush.bf16.msra.mxu0 %v7894
    %9036 = vmatpush.bf16.msra.mxu0 %v7830
    %9037 = vmatpush.bf16.msra.mxu0 %v7766
    %9038 = vmatmul.bf16.gmra.mxu0 %v5553
    %v9039 = vpop.f32.mrf.mxu0
    %v9040 = vadd.f32 %v6102, %v9039
    %v9041 = vpop.f32.mrf.mxu0
    %9042 = vdwg.mxu0
    %9043 = vmatpush.bf16.msra.mxu0 %v8215
    %9044 = vmatpush.bf16.msra.mxu0 %v8151
    %9045 = vmatpush.bf16.msra.mxu0 %v8087
    %9046 = vmatpush.bf16.msra.mxu0 %v8023
    %9047 = vmatpush.bf16.msra.mxu0 %v7959
    %9048 = vmatpush.bf16.msra.mxu0 %v7895
    %9049 = vmatpush.bf16.msra.mxu0 %v7831
    %9050 = vmatpush.bf16.msra.mxu0 %v7767
    %9051 = vmatmul.bf16.gmra.mxu0 %v5553
    %v9052 = vpop.f32.mrf.mxu0
    %v9053 = vadd.f32 %v6103, %v9052
    %v9054 = vpop.f32.mrf.mxu0
    %9055 = vdwg.mxu0
    %9056 = vmatpush.bf16.msra.mxu0 %v8216
    %9057 = vmatpush.bf16.msra.mxu0 %v8152
    %9058 = vmatpush.bf16.msra.mxu0 %v8088
    %9059 = vmatpush.bf16.msra.mxu0 %v8024
    %9060 = vmatpush.bf16.msra.mxu0 %v7960
    %9061 = vmatpush.bf16.msra.mxu0 %v7896
    %9062 = vmatpush.bf16.msra.mxu0 %v7832
    %9063 = vmatpush.bf16.msra.mxu0 %v7768
    %9064 = vmatmul.bf16.gmra.mxu0 %v5553
    %v9065 = vpop.f32.mrf.mxu0
    %v9066 = vadd.f32 %v6104, %v9065
    %v9067 = vpop.f32.mrf.mxu0
    %9068 = vdwg.mxu0
    %9069 = vmatpush.bf16.msra.mxu0 %v8217
    %9070 = vmatpush.bf16.msra.mxu0 %v8153
    %9071 = vmatpush.bf16.msra.mxu0 %v8089
    %9072 = vmatpush.bf16.msra.mxu0 %v8025
    %9073 = vmatpush.bf16.msra.mxu0 %v7961
    %9074 = vmatpush.bf16.msra.mxu0 %v7897
    %9075 = vmatpush.bf16.msra.mxu0 %v7833
    %9076 = vmatpush.bf16.msra.mxu0 %v7769
    %9077 = vmatmul.bf16.gmra.mxu0 %v5553
    %v9078 = vpop.f32.mrf.mxu0
    %v9079 = vadd.f32 %v6105, %v9078
    %v9080 = vpop.f32.mrf.mxu0
    %9081 = vdwg.mxu0
    %9082 = vmatpush.bf16.msra.mxu0 %v8218
    %9083 = vmatpush.bf16.msra.mxu0 %v8154
    %9084 = vmatpush.bf16.msra.mxu0 %v8090
    %9085 = vmatpush.bf16.msra.mxu0 %v8026
    %9086 = vmatpush.bf16.msra.mxu0 %v7962
    %9087 = vmatpush.bf16.msra.mxu0 %v7898
    %9088 = vmatpush.bf16.msra.mxu0 %v7834
    %9089 = vmatpush.bf16.msra.mxu0 %v7770
    %9090 = vmatmul.bf16.gmra.mxu0 %v5553
    %v9091 = vpop.f32.mrf.mxu0
    %v9092 = vadd.f32 %v6106, %v9091
    %v9093 = vpop.f32.mrf.mxu0
    %9094 = vdwg.mxu0
    %9095 = vmatpush.bf16.msra.mxu0 %v8219
    %9096 = vmatpush.bf16.msra.mxu0 %v8155
    %9097 = vmatpush.bf16.msra.mxu0 %v8091
    %9098 = vmatpush.bf16.msra.mxu0 %v8027
    %9099 = vmatpush.bf16.msra.mxu0 %v7963
    %9100 = vmatpush.bf16.msra.mxu0 %v7899
    %9101 = vmatpush.bf16.msra.mxu0 %v7835
    %9102 = vmatpush.bf16.msra.mxu0 %v7771
    %9103 = vmatmul.bf16.gmra.mxu0 %v5553
    %v9104 = vpop.f32.mrf.mxu0
    %v9105 = vadd.f32 %v6107, %v9104
    %v9106 = vpop.f32.mrf.mxu0
    %9107 = vdwg.mxu0
    %9108 = vmatpush.bf16.msra.mxu0 %v8220
    %9109 = vmatpush.bf16.msra.mxu0 %v8156
    %9110 = vmatpush.bf16.msra.mxu0 %v8092
    %9111 = vmatpush.bf16.msra.mxu0 %v8028
    %9112 = vmatpush.bf16.msra.mxu0 %v7964
    %9113 = vmatpush.bf16.msra.mxu0 %v7900
    %9114 = vmatpush.bf16.msra.mxu0 %v7836
    %9115 = vmatpush.bf16.msra.mxu0 %v7772
    %9116 = vmatmul.bf16.gmra.mxu0 %v5553
    %v9117 = vpop.f32.mrf.mxu0
    %v9118 = vadd.f32 %v6108, %v9117
    %v9119 = vpop.f32.mrf.mxu0
    %9120 = vdwg.mxu0
    %9121 = vmatpush.bf16.msra.mxu0 %v8221
    %9122 = vmatpush.bf16.msra.mxu0 %v8157
    %9123 = vmatpush.bf16.msra.mxu0 %v8093
    %9124 = vmatpush.bf16.msra.mxu0 %v8029
    %9125 = vmatpush.bf16.msra.mxu0 %v7965
    %9126 = vmatpush.bf16.msra.mxu0 %v7901
    %9127 = vmatpush.bf16.msra.mxu0 %v7837
    %9128 = vmatpush.bf16.msra.mxu0 %v7773
    %9129 = vmatmul.bf16.gmra.mxu0 %v5553
    %v9130 = vpop.f32.mrf.mxu0
    %v9131 = vadd.f32 %v6109, %v9130
    %v9132 = vpop.f32.mrf.mxu0
    %9133 = vdwg.mxu0
    %9134 = vmatpush.bf16.msra.mxu0 %v8222
    %9135 = vmatpush.bf16.msra.mxu0 %v8158
    %9136 = vmatpush.bf16.msra.mxu0 %v8094
    %9137 = vmatpush.bf16.msra.mxu0 %v8030
    %9138 = vmatpush.bf16.msra.mxu0 %v7966
    %9139 = vmatpush.bf16.msra.mxu0 %v7902
    %9140 = vmatpush.bf16.msra.mxu0 %v7838
    %9141 = vmatpush.bf16.msra.mxu0 %v7774
    %9142 = vmatmul.bf16.gmra.mxu0 %v5553
    %v9143 = vpop.f32.mrf.mxu0
    %v9144 = vadd.f32 %v6110, %v9143
    %v9145 = vpop.f32.mrf.mxu0
    %9146 = vdwg.mxu0
    %9147 = vmatpush.bf16.msra.mxu0 %v8223
    %9148 = vmatpush.bf16.msra.mxu0 %v8159
    %9149 = vmatpush.bf16.msra.mxu0 %v8095
    %9150 = vmatpush.bf16.msra.mxu0 %v8031
    %9151 = vmatpush.bf16.msra.mxu0 %v7967
    %9152 = vmatpush.bf16.msra.mxu0 %v7903
    %9153 = vmatpush.bf16.msra.mxu0 %v7839
    %9154 = vmatpush.bf16.msra.mxu0 %v7775
    %9155 = vmatmul.bf16.gmra.mxu0 %v5553
    %v9156 = vpop.f32.mrf.mxu0
    %v9157 = vadd.f32 %v6111, %v9156
    %v9158 = vpop.f32.mrf.mxu0
    %9159 = vdwg.mxu0
    %9160 = vmatpush.bf16.msra.mxu0 %v8224
    %9161 = vmatpush.bf16.msra.mxu0 %v8160
    %9162 = vmatpush.bf16.msra.mxu0 %v8096
    %9163 = vmatpush.bf16.msra.mxu0 %v8032
    %9164 = vmatpush.bf16.msra.mxu0 %v7968
    %9165 = vmatpush.bf16.msra.mxu0 %v7904
    %9166 = vmatpush.bf16.msra.mxu0 %v7840
    %9167 = vmatpush.bf16.msra.mxu0 %v7776
    %9168 = vmatmul.bf16.gmra.mxu0 %v5553
    %v9169 = vpop.f32.mrf.mxu0
    %v9170 = vadd.f32 %v6112, %v9169
    %v9171 = vpop.f32.mrf.mxu0
    %9172 = vdwg.mxu0
    %9173 = vmatpush.bf16.msra.mxu0 %v8225
    %9174 = vmatpush.bf16.msra.mxu0 %v8161
    %9175 = vmatpush.bf16.msra.mxu0 %v8097
    %9176 = vmatpush.bf16.msra.mxu0 %v8033
    %9177 = vmatpush.bf16.msra.mxu0 %v7969
    %9178 = vmatpush.bf16.msra.mxu0 %v7905
    %9179 = vmatpush.bf16.msra.mxu0 %v7841
    %9180 = vmatpush.bf16.msra.mxu0 %v7777
    %9181 = vmatmul.bf16.gmra.mxu0 %v5553
    %v9182 = vpop.f32.mrf.mxu0
    %v9183 = vadd.f32 %v6113, %v9182
    %v9184 = vpop.f32.mrf.mxu0
    %9185 = vdwg.mxu0
    %9186 = vmatpush.bf16.msra.mxu0 %v8226
    %9187 = vmatpush.bf16.msra.mxu0 %v8162
    %9188 = vmatpush.bf16.msra.mxu0 %v8098
    %9189 = vmatpush.bf16.msra.mxu0 %v8034
    %9190 = vmatpush.bf16.msra.mxu0 %v7970
    %9191 = vmatpush.bf16.msra.mxu0 %v7906
    %9192 = vmatpush.bf16.msra.mxu0 %v7842
    %9193 = vmatpush.bf16.msra.mxu0 %v7778
    %9194 = vmatmul.bf16.gmra.mxu0 %v5553
    %v9195 = vpop.f32.mrf.mxu0
    %v9196 = vadd.f32 %v6114, %v9195
    %v9197 = vpop.f32.mrf.mxu0
    %9198 = vdwg.mxu0
    %9199 = vmatpush.bf16.msra.mxu0 %v8227
    %9200 = vmatpush.bf16.msra.mxu0 %v8163
    %9201 = vmatpush.bf16.msra.mxu0 %v8099
    %9202 = vmatpush.bf16.msra.mxu0 %v8035
    %9203 = vmatpush.bf16.msra.mxu0 %v7971
    %9204 = vmatpush.bf16.msra.mxu0 %v7907
    %9205 = vmatpush.bf16.msra.mxu0 %v7843
    %9206 = vmatpush.bf16.msra.mxu0 %v7779
    %9207 = vmatmul.bf16.gmra.mxu0 %v5553
    %v9208 = vpop.f32.mrf.mxu0
    %v9209 = vadd.f32 %v6115, %v9208
    %v9210 = vpop.f32.mrf.mxu0
    %9211 = vdwg.mxu0
    %9212 = vmatpush.bf16.msra.mxu0 %v8228
    %9213 = vmatpush.bf16.msra.mxu0 %v8164
    %9214 = vmatpush.bf16.msra.mxu0 %v8100
    %9215 = vmatpush.bf16.msra.mxu0 %v8036
    %9216 = vmatpush.bf16.msra.mxu0 %v7972
    %9217 = vmatpush.bf16.msra.mxu0 %v7908
    %9218 = vmatpush.bf16.msra.mxu0 %v7844
    %9219 = vmatpush.bf16.msra.mxu0 %v7780
    %9220 = vmatmul.bf16.gmra.mxu0 %v5553
    %v9221 = vpop.f32.mrf.mxu0
    %v9222 = vadd.f32 %v6116, %v9221
    %v9223 = vpop.f32.mrf.mxu0
    %9224 = vdwg.mxu0
    %9225 = vmatpush.bf16.msra.mxu0 %v8229
    %9226 = vmatpush.bf16.msra.mxu0 %v8165
    %9227 = vmatpush.bf16.msra.mxu0 %v8101
    %9228 = vmatpush.bf16.msra.mxu0 %v8037
    %9229 = vmatpush.bf16.msra.mxu0 %v7973
    %9230 = vmatpush.bf16.msra.mxu0 %v7909
    %9231 = vmatpush.bf16.msra.mxu0 %v7845
    %9232 = vmatpush.bf16.msra.mxu0 %v7781
    %9233 = vmatmul.bf16.gmra.mxu0 %v5553
    %v9234 = vpop.f32.mrf.mxu0
    %v9235 = vadd.f32 %v6117, %v9234
    %v9236 = vpop.f32.mrf.mxu0
    %9237 = vdwg.mxu0
    %9238 = vmatpush.bf16.msra.mxu0 %v8230
    %9239 = vmatpush.bf16.msra.mxu0 %v8166
    %9240 = vmatpush.bf16.msra.mxu0 %v8102
    %9241 = vmatpush.bf16.msra.mxu0 %v8038
    %9242 = vmatpush.bf16.msra.mxu0 %v7974
    %9243 = vmatpush.bf16.msra.mxu0 %v7910
    %9244 = vmatpush.bf16.msra.mxu0 %v7846
    %9245 = vmatpush.bf16.msra.mxu0 %v7782
    %9246 = vmatmul.bf16.gmra.mxu0 %v5553
    %v9247 = vpop.f32.mrf.mxu0
    %v9248 = vadd.f32 %v6118, %v9247
    %v9249 = vpop.f32.mrf.mxu0
    %9250 = vdwg.mxu0
    %9251 = vmatpush.bf16.msra.mxu0 %v8231
    %9252 = vmatpush.bf16.msra.mxu0 %v8167
    %9253 = vmatpush.bf16.msra.mxu0 %v8103
    %9254 = vmatpush.bf16.msra.mxu0 %v8039
    %9255 = vmatpush.bf16.msra.mxu0 %v7975
    %9256 = vmatpush.bf16.msra.mxu0 %v7911
    %9257 = vmatpush.bf16.msra.mxu0 %v7847
    %9258 = vmatpush.bf16.msra.mxu0 %v7783
    %9259 = vmatmul.bf16.gmra.mxu0 %v5553
    %v9260 = vpop.f32.mrf.mxu0
    %v9261 = vadd.f32 %v6119, %v9260
    %v9262 = vpop.f32.mrf.mxu0
    %9263 = vdwg.mxu0
    %9264 = vmatpush.bf16.msra.mxu0 %v8232
    %9265 = vmatpush.bf16.msra.mxu0 %v8168
    %9266 = vmatpush.bf16.msra.mxu0 %v8104
    %9267 = vmatpush.bf16.msra.mxu0 %v8040
    %9268 = vmatpush.bf16.msra.mxu0 %v7976
    %9269 = vmatpush.bf16.msra.mxu0 %v7912
    %9270 = vmatpush.bf16.msra.mxu0 %v7848
    %9271 = vmatpush.bf16.msra.mxu0 %v7784
    %9272 = vmatmul.bf16.gmra.mxu0 %v5553
    %v9273 = vpop.f32.mrf.mxu0
    %v9274 = vadd.f32 %v6120, %v9273
    %v9275 = vpop.f32.mrf.mxu0
    %9276 = vdwg.mxu0
    %9277 = vmatpush.bf16.msra.mxu0 %v8233
    %9278 = vmatpush.bf16.msra.mxu0 %v8169
    %9279 = vmatpush.bf16.msra.mxu0 %v8105
    %9280 = vmatpush.bf16.msra.mxu0 %v8041
    %9281 = vmatpush.bf16.msra.mxu0 %v7977
    %9282 = vmatpush.bf16.msra.mxu0 %v7913
    %9283 = vmatpush.bf16.msra.mxu0 %v7849
    %9284 = vmatpush.bf16.msra.mxu0 %v7785
    %9285 = vmatmul.bf16.gmra.mxu0 %v5553
    %v9286 = vpop.f32.mrf.mxu0
    %v9287 = vadd.f32 %v6121, %v9286
    %v9288 = vpop.f32.mrf.mxu0
    %9289 = vdwg.mxu0
    %9290 = vmatpush.bf16.msra.mxu0 %v8234
    %9291 = vmatpush.bf16.msra.mxu0 %v8170
    %9292 = vmatpush.bf16.msra.mxu0 %v8106
    %9293 = vmatpush.bf16.msra.mxu0 %v8042
    %9294 = vmatpush.bf16.msra.mxu0 %v7978
    %9295 = vmatpush.bf16.msra.mxu0 %v7914
    %9296 = vmatpush.bf16.msra.mxu0 %v7850
    %9297 = vmatpush.bf16.msra.mxu0 %v7786
    %9298 = vmatmul.bf16.gmra.mxu0 %v5553
    %v9299 = vpop.f32.mrf.mxu0
    %v9300 = vadd.f32 %v6122, %v9299
    %v9301 = vpop.f32.mrf.mxu0
    %9302 = vdwg.mxu0
    %9303 = vmatpush.bf16.msra.mxu0 %v8235
    %9304 = vmatpush.bf16.msra.mxu0 %v8171
    %9305 = vmatpush.bf16.msra.mxu0 %v8107
    %9306 = vmatpush.bf16.msra.mxu0 %v8043
    %9307 = vmatpush.bf16.msra.mxu0 %v7979
    %9308 = vmatpush.bf16.msra.mxu0 %v7915
    %9309 = vmatpush.bf16.msra.mxu0 %v7851
    %9310 = vmatpush.bf16.msra.mxu0 %v7787
    %9311 = vmatmul.bf16.gmra.mxu0 %v5553
    %v9312 = vpop.f32.mrf.mxu0
    %v9313 = vadd.f32 %v6123, %v9312
    %v9314 = vpop.f32.mrf.mxu0
    %9315 = vdwg.mxu0
    %9316 = vmatpush.bf16.msra.mxu0 %v8236
    %9317 = vmatpush.bf16.msra.mxu0 %v8172
    %9318 = vmatpush.bf16.msra.mxu0 %v8108
    %9319 = vmatpush.bf16.msra.mxu0 %v8044
    %9320 = vmatpush.bf16.msra.mxu0 %v7980
    %9321 = vmatpush.bf16.msra.mxu0 %v7916
    %9322 = vmatpush.bf16.msra.mxu0 %v7852
    %9323 = vmatpush.bf16.msra.mxu0 %v7788
    %9324 = vmatmul.bf16.gmra.mxu0 %v5553
    %v9325 = vpop.f32.mrf.mxu0
    %v9326 = vadd.f32 %v6124, %v9325
    %v9327 = vpop.f32.mrf.mxu0
    %9328 = vdwg.mxu0
    %9329 = vmatpush.bf16.msra.mxu0 %v8237
    %9330 = vmatpush.bf16.msra.mxu0 %v8173
    %9331 = vmatpush.bf16.msra.mxu0 %v8109
    %9332 = vmatpush.bf16.msra.mxu0 %v8045
    %9333 = vmatpush.bf16.msra.mxu0 %v7981
    %9334 = vmatpush.bf16.msra.mxu0 %v7917
    %9335 = vmatpush.bf16.msra.mxu0 %v7853
    %9336 = vmatpush.bf16.msra.mxu0 %v7789
    %9337 = vmatmul.bf16.gmra.mxu0 %v5553
    %v9338 = vpop.f32.mrf.mxu0
    %v9339 = vadd.f32 %v6125, %v9338
    %v9340 = vpop.f32.mrf.mxu0
    %9341 = vdwg.mxu0
    %9342 = vmatpush.bf16.msra.mxu0 %v8238
    %9343 = vmatpush.bf16.msra.mxu0 %v8174
    %9344 = vmatpush.bf16.msra.mxu0 %v8110
    %9345 = vmatpush.bf16.msra.mxu0 %v8046
    %9346 = vmatpush.bf16.msra.mxu0 %v7982
    %9347 = vmatpush.bf16.msra.mxu0 %v7918
    %9348 = vmatpush.bf16.msra.mxu0 %v7854
    %9349 = vmatpush.bf16.msra.mxu0 %v7790
    %9350 = vmatmul.bf16.gmra.mxu0 %v5553
    %v9351 = vpop.f32.mrf.mxu0
    %v9352 = vadd.f32 %v6126, %v9351
    %v9353 = vpop.f32.mrf.mxu0
    %9354 = vdwg.mxu0
    %9355 = vmatpush.bf16.msra.mxu0 %v8239
    %9356 = vmatpush.bf16.msra.mxu0 %v8175
    %9357 = vmatpush.bf16.msra.mxu0 %v8111
    %9358 = vmatpush.bf16.msra.mxu0 %v8047
    %9359 = vmatpush.bf16.msra.mxu0 %v7983
    %9360 = vmatpush.bf16.msra.mxu0 %v7919
    %9361 = vmatpush.bf16.msra.mxu0 %v7855
    %9362 = vmatpush.bf16.msra.mxu0 %v7791
    %9363 = vmatmul.bf16.gmra.mxu0 %v5553
    %v9364 = vpop.f32.mrf.mxu0
    %v9365 = vadd.f32 %v6127, %v9364
    %v9366 = vpop.f32.mrf.mxu0
    %9367 = vdwg.mxu0
    %9368 = vmatpush.bf16.msra.mxu0 %v8240
    %9369 = vmatpush.bf16.msra.mxu0 %v8176
    %9370 = vmatpush.bf16.msra.mxu0 %v8112
    %9371 = vmatpush.bf16.msra.mxu0 %v8048
    %9372 = vmatpush.bf16.msra.mxu0 %v7984
    %9373 = vmatpush.bf16.msra.mxu0 %v7920
    %9374 = vmatpush.bf16.msra.mxu0 %v7856
    %9375 = vmatpush.bf16.msra.mxu0 %v7792
    %9376 = vmatmul.bf16.gmra.mxu0 %v5553
    %v9377 = vpop.f32.mrf.mxu0
    %v9378 = vadd.f32 %v6128, %v9377
    %v9379 = vpop.f32.mrf.mxu0
    %9380 = vdwg.mxu0
    %9381 = vmatpush.bf16.msra.mxu0 %v8241
    %9382 = vmatpush.bf16.msra.mxu0 %v8177
    %9383 = vmatpush.bf16.msra.mxu0 %v8113
    %9384 = vmatpush.bf16.msra.mxu0 %v8049
    %9385 = vmatpush.bf16.msra.mxu0 %v7985
    %9386 = vmatpush.bf16.msra.mxu0 %v7921
    %9387 = vmatpush.bf16.msra.mxu0 %v7857
    %9388 = vmatpush.bf16.msra.mxu0 %v7793
    %9389 = vmatmul.bf16.gmra.mxu0 %v5553
    %v9390 = vpop.f32.mrf.mxu0
    %v9391 = vadd.f32 %v6129, %v9390
    %v9392 = vpop.f32.mrf.mxu0
    %9393 = vdwg.mxu0
    %9394 = vmatpush.bf16.msra.mxu0 %v8242
    %9395 = vmatpush.bf16.msra.mxu0 %v8178
    %9396 = vmatpush.bf16.msra.mxu0 %v8114
    %9397 = vmatpush.bf16.msra.mxu0 %v8050
    %9398 = vmatpush.bf16.msra.mxu0 %v7986
    %9399 = vmatpush.bf16.msra.mxu0 %v7922
    %9400 = vmatpush.bf16.msra.mxu0 %v7858
    %9401 = vmatpush.bf16.msra.mxu0 %v7794
    %9402 = vmatmul.bf16.gmra.mxu0 %v5553
    %v9403 = vpop.f32.mrf.mxu0
    %v9404 = vadd.f32 %v6130, %v9403
    %v9405 = vpop.f32.mrf.mxu0
    %9406 = vdwg.mxu0
    %9407 = vmatpush.bf16.msra.mxu0 %v8243
    %9408 = vmatpush.bf16.msra.mxu0 %v8179
    %9409 = vmatpush.bf16.msra.mxu0 %v8115
    %9410 = vmatpush.bf16.msra.mxu0 %v8051
    %9411 = vmatpush.bf16.msra.mxu0 %v7987
    %9412 = vmatpush.bf16.msra.mxu0 %v7923
    %9413 = vmatpush.bf16.msra.mxu0 %v7859
    %9414 = vmatpush.bf16.msra.mxu0 %v7795
    %9415 = vmatmul.bf16.gmra.mxu0 %v5553
    %v9416 = vpop.f32.mrf.mxu0
    %v9417 = vadd.f32 %v6131, %v9416
    %v9418 = vpop.f32.mrf.mxu0
    %9419 = vdwg.mxu0
    %9420 = vmatpush.bf16.msra.mxu0 %v8244
    %9421 = vmatpush.bf16.msra.mxu0 %v8180
    %9422 = vmatpush.bf16.msra.mxu0 %v8116
    %9423 = vmatpush.bf16.msra.mxu0 %v8052
    %9424 = vmatpush.bf16.msra.mxu0 %v7988
    %9425 = vmatpush.bf16.msra.mxu0 %v7924
    %9426 = vmatpush.bf16.msra.mxu0 %v7860
    %9427 = vmatpush.bf16.msra.mxu0 %v7796
    %9428 = vmatmul.bf16.gmra.mxu0 %v5553
    %v9429 = vpop.f32.mrf.mxu0
    %v9430 = vadd.f32 %v6132, %v9429
    %v9431 = vpop.f32.mrf.mxu0
    %9432 = vdwg.mxu0
    %9433 = vmatpush.bf16.msra.mxu0 %v8245
    %9434 = vmatpush.bf16.msra.mxu0 %v8181
    %9435 = vmatpush.bf16.msra.mxu0 %v8117
    %9436 = vmatpush.bf16.msra.mxu0 %v8053
    %9437 = vmatpush.bf16.msra.mxu0 %v7989
    %9438 = vmatpush.bf16.msra.mxu0 %v7925
    %9439 = vmatpush.bf16.msra.mxu0 %v7861
    %9440 = vmatpush.bf16.msra.mxu0 %v7797
    %9441 = vmatmul.bf16.gmra.mxu0 %v5553
    %v9442 = vpop.f32.mrf.mxu0
    %v9443 = vadd.f32 %v6133, %v9442
    %v9444 = vpop.f32.mrf.mxu0
    %9445 = vdwg.mxu0
    %9446 = vmatpush.bf16.msra.mxu0 %v8246
    %9447 = vmatpush.bf16.msra.mxu0 %v8182
    %9448 = vmatpush.bf16.msra.mxu0 %v8118
    %9449 = vmatpush.bf16.msra.mxu0 %v8054
    %9450 = vmatpush.bf16.msra.mxu0 %v7990
    %9451 = vmatpush.bf16.msra.mxu0 %v7926
    %9452 = vmatpush.bf16.msra.mxu0 %v7862
    %9453 = vmatpush.bf16.msra.mxu0 %v7798
    %9454 = vmatmul.bf16.gmra.mxu0 %v5553
    %v9455 = vpop.f32.mrf.mxu0
    %v9456 = vadd.f32 %v6134, %v9455
    %v9457 = vpop.f32.mrf.mxu0
    %9458 = vdwg.mxu0
    %9459 = vmatpush.bf16.msra.mxu0 %v8247
    %9460 = vmatpush.bf16.msra.mxu0 %v8183
    %9461 = vmatpush.bf16.msra.mxu0 %v8119
    %9462 = vmatpush.bf16.msra.mxu0 %v8055
    %9463 = vmatpush.bf16.msra.mxu0 %v7991
    %9464 = vmatpush.bf16.msra.mxu0 %v7927
    %9465 = vmatpush.bf16.msra.mxu0 %v7863
    %9466 = vmatpush.bf16.msra.mxu0 %v7799
    %9467 = vmatmul.bf16.gmra.mxu0 %v5553
    %v9468 = vpop.f32.mrf.mxu0
    %v9469 = vadd.f32 %v6135, %v9468
    %v9470 = vpop.f32.mrf.mxu0
    %9471 = vdwg.mxu0
    %9472 = vmatpush.bf16.msra.mxu0 %v8248
    %9473 = vmatpush.bf16.msra.mxu0 %v8184
    %9474 = vmatpush.bf16.msra.mxu0 %v8120
    %9475 = vmatpush.bf16.msra.mxu0 %v8056
    %9476 = vmatpush.bf16.msra.mxu0 %v7992
    %9477 = vmatpush.bf16.msra.mxu0 %v7928
    %9478 = vmatpush.bf16.msra.mxu0 %v7864
    %9479 = vmatpush.bf16.msra.mxu0 %v7800
    %9480 = vmatmul.bf16.gmra.mxu0 %v5553
    %v9481 = vpop.f32.mrf.mxu0
    %v9482 = vadd.f32 %v6136, %v9481
    %v9483 = vpop.f32.mrf.mxu0
    %9484 = vdwg.mxu0
    %9485 = vmatpush.bf16.msra.mxu0 %v8249
    %9486 = vmatpush.bf16.msra.mxu0 %v8185
    %9487 = vmatpush.bf16.msra.mxu0 %v8121
    %9488 = vmatpush.bf16.msra.mxu0 %v8057
    %9489 = vmatpush.bf16.msra.mxu0 %v7993
    %9490 = vmatpush.bf16.msra.mxu0 %v7929
    %9491 = vmatpush.bf16.msra.mxu0 %v7865
    %9492 = vmatpush.bf16.msra.mxu0 %v7801
    %9493 = vmatmul.bf16.gmra.mxu0 %v5553
    %v9494 = vpop.f32.mrf.mxu0
    %v9495 = vadd.f32 %v6137, %v9494
    %v9496 = vpop.f32.mrf.mxu0
    %9497 = vdwg.mxu0
    %9498 = vmatpush.bf16.msra.mxu0 %v8250
    %9499 = vmatpush.bf16.msra.mxu0 %v8186
    %9500 = vmatpush.bf16.msra.mxu0 %v8122
    %9501 = vmatpush.bf16.msra.mxu0 %v8058
    %9502 = vmatpush.bf16.msra.mxu0 %v7994
    %9503 = vmatpush.bf16.msra.mxu0 %v7930
    %9504 = vmatpush.bf16.msra.mxu0 %v7866
    %9505 = vmatpush.bf16.msra.mxu0 %v7802
    %9506 = vmatmul.bf16.gmra.mxu0 %v5553
    %v9507 = vpop.f32.mrf.mxu0
    %v9508 = vadd.f32 %v6138, %v9507
    %v9509 = vpop.f32.mrf.mxu0
    %9510 = vdwg.mxu0
    %9511 = vmatpush.bf16.msra.mxu0 %v8251
    %9512 = vmatpush.bf16.msra.mxu0 %v8187
    %9513 = vmatpush.bf16.msra.mxu0 %v8123
    %9514 = vmatpush.bf16.msra.mxu0 %v8059
    %9515 = vmatpush.bf16.msra.mxu0 %v7995
    %9516 = vmatpush.bf16.msra.mxu0 %v7931
    %9517 = vmatpush.bf16.msra.mxu0 %v7867
    %9518 = vmatpush.bf16.msra.mxu0 %v7803
    %9519 = vmatmul.bf16.gmra.mxu0 %v5553
    %v9520 = vpop.f32.mrf.mxu0
    %v9521 = vadd.f32 %v6139, %v9520
    %v9522 = vpop.f32.mrf.mxu0
    %9523 = vdwg.mxu0
    %9524 = vmatpush.bf16.msra.mxu0 %v8252
    %9525 = vmatpush.bf16.msra.mxu0 %v8188
    %9526 = vmatpush.bf16.msra.mxu0 %v8124
    %9527 = vmatpush.bf16.msra.mxu0 %v8060
    %9528 = vmatpush.bf16.msra.mxu0 %v7996
    %9529 = vmatpush.bf16.msra.mxu0 %v7932
    %9530 = vmatpush.bf16.msra.mxu0 %v7868
    %9531 = vmatpush.bf16.msra.mxu0 %v7804
    %9532 = vmatmul.bf16.gmra.mxu0 %v5553
    %v9533 = vpop.f32.mrf.mxu0
    %v9534 = vadd.f32 %v6140, %v9533
    %v9535 = vpop.f32.mrf.mxu0
    %9536 = vdwg.mxu0
    %9537 = vmatpush.bf16.msra.mxu0 %v8253
    %9538 = vmatpush.bf16.msra.mxu0 %v8189
    %9539 = vmatpush.bf16.msra.mxu0 %v8125
    %9540 = vmatpush.bf16.msra.mxu0 %v8061
    %9541 = vmatpush.bf16.msra.mxu0 %v7997
    %9542 = vmatpush.bf16.msra.mxu0 %v7933
    %9543 = vmatpush.bf16.msra.mxu0 %v7869
    %9544 = vmatpush.bf16.msra.mxu0 %v7805
    %9545 = vmatmul.bf16.gmra.mxu0 %v5553
    %v9546 = vpop.f32.mrf.mxu0
    %v9547 = vadd.f32 %v6141, %v9546
    %v9548 = vpop.f32.mrf.mxu0
    %9549 = vdwg.mxu0
    %9550 = vmatpush.bf16.msra.mxu0 %v8254
    %9551 = vmatpush.bf16.msra.mxu0 %v8190
    %9552 = vmatpush.bf16.msra.mxu0 %v8126
    %9553 = vmatpush.bf16.msra.mxu0 %v8062
    %9554 = vmatpush.bf16.msra.mxu0 %v7998
    %9555 = vmatpush.bf16.msra.mxu0 %v7934
    %9556 = vmatpush.bf16.msra.mxu0 %v7870
    %9557 = vmatpush.bf16.msra.mxu0 %v7806
    %9558 = vmatmul.bf16.gmra.mxu0 %v5553
    %v9559 = vpop.f32.mrf.mxu0
    %v9560 = vadd.f32 %v6142, %v9559
    %v9561 = vpop.f32.mrf.mxu0
    %9562 = vdwg.mxu0
    %9563 = vmatpush.bf16.msra.mxu0 %v8255
    %9564 = vmatpush.bf16.msra.mxu0 %v8191
    %9565 = vmatpush.bf16.msra.mxu0 %v8127
    %9566 = vmatpush.bf16.msra.mxu0 %v8063
    %9567 = vmatpush.bf16.msra.mxu0 %v7999
    %9568 = vmatpush.bf16.msra.mxu0 %v7935
    %9569 = vmatpush.bf16.msra.mxu0 %v7871
    %9570 = vmatpush.bf16.msra.mxu0 %v7807
    %9571 = vmatmul.bf16.gmra.mxu0 %v5553
    %v9572 = vpop.f32.mrf.mxu0
    %v9573 = vadd.f32 %v6143, %v9572
    %v9574 = vpop.f32.mrf.mxu0
    %9575 = vdwg.mxu0
    %9576 = vmatpush.bf16.msra.mxu0 %v8256
    %9577 = vmatpush.bf16.msra.mxu0 %v8192
    %9578 = vmatpush.bf16.msra.mxu0 %v8128
    %9579 = vmatpush.bf16.msra.mxu0 %v8064
    %9580 = vmatpush.bf16.msra.mxu0 %v8000
    %9581 = vmatpush.bf16.msra.mxu0 %v7936
    %9582 = vmatpush.bf16.msra.mxu0 %v7872
    %9583 = vmatpush.bf16.msra.mxu0 %v7808
    %9584 = vmatmul.bf16.gmra.mxu0 %v5553
    %v9585 = vpop.f32.mrf.mxu0
    %v9586 = vadd.f32 %v6144, %v9585
    %v9587 = vpop.f32.mrf.mxu0
    %9588 = vdwg.mxu0
    %9589 = vmatpush.bf16.msra.mxu0 %v8257
    %9590 = vmatpush.bf16.msra.mxu0 %v8193
    %9591 = vmatpush.bf16.msra.mxu0 %v8129
    %9592 = vmatpush.bf16.msra.mxu0 %v8065
    %9593 = vmatpush.bf16.msra.mxu0 %v8001
    %9594 = vmatpush.bf16.msra.mxu0 %v7937
    %9595 = vmatpush.bf16.msra.mxu0 %v7873
    %9596 = vmatpush.bf16.msra.mxu0 %v7809
    %9597 = vmatmul.bf16.gmra.mxu0 %v5553
    %v9598 = vpop.f32.mrf.mxu0
    %v9599 = vadd.f32 %v6145, %v9598
    %v9600 = vpop.f32.mrf.mxu0
    %9601 = vdwg.mxu0
    %9602 = vst [vmem:[#allocation17] sm:$0xff] %v8780
    %9603 = vst [vmem:[#allocation17 + $0x8] sm:$0xff] %v8793
    %9604 = vst [vmem:[#allocation17 + $0x10] sm:$0xff] %v8806
    %9605 = vst [vmem:[#allocation17 + $0x18] sm:$0xff] %v8819
    %9606 = vst [vmem:[#allocation17 + $0x20] sm:$0xff] %v8832
    %9607 = vst [vmem:[#allocation17 + $0x28] sm:$0xff] %v8845
    %9608 = vst [vmem:[#allocation17 + $0x30] sm:$0xff] %v8858
    %9609 = vst [vmem:[#allocation17 + $0x38] sm:$0xff] %v8871
    %9610 = vst [vmem:[#allocation17 + $0x40] sm:$0xff] %v8884
    %9611 = vst [vmem:[#allocation17 + $0x48] sm:$0xff] %v8897
    %9612 = vst [vmem:[#allocation17 + $0x50] sm:$0xff] %v8910
    %9613 = vst [vmem:[#allocation17 + $0x58] sm:$0xff] %v8923
    %9614 = vst [vmem:[#allocation17 + $0x60] sm:$0xff] %v8936
    %9615 = vst [vmem:[#allocation17 + $0x68] sm:$0xff] %v8949
    %9616 = vst [vmem:[#allocation17 + $0x70] sm:$0xff] %v8962
    %9617 = vst [vmem:[#allocation17 + $0x78] sm:$0xff] %v8975
    %9618 = vst [vmem:[#allocation17 + $0x80] sm:$0xff] %v8988
    %9619 = vst [vmem:[#allocation17 + $0x88] sm:$0xff] %v9001
    %9620 = vst [vmem:[#allocation17 + $0x90] sm:$0xff] %v9014
    %9621 = vst [vmem:[#allocation17 + $0x98] sm:$0xff] %v9027
    %9622 = vst [vmem:[#allocation17 + $0xa0] sm:$0xff] %v9040
    %9623 = vst [vmem:[#allocation17 + $0xa8] sm:$0xff] %v9053
    %9624 = vst [vmem:[#allocation17 + $0xb0] sm:$0xff] %v9066
    %9625 = vst [vmem:[#allocation17 + $0xb8] sm:$0xff] %v9079
    %9626 = vst [vmem:[#allocation17 + $0xc0] sm:$0xff] %v9092
    %9627 = vst [vmem:[#allocation17 + $0xc8] sm:$0xff] %v9105
    %9628 = vst [vmem:[#allocation17 + $0xd0] sm:$0xff] %v9118
    %9629 = vst [vmem:[#allocation17 + $0xd8] sm:$0xff] %v9131
    %9630 = vst [vmem:[#allocation17 + $0xe0] sm:$0xff] %v9144
    %9631 = vst [vmem:[#allocation17 + $0xe8] sm:$0xff] %v9157
    %9632 = vst [vmem:[#allocation17 + $0xf0] sm:$0xff] %v9170
    %9633 = vst [vmem:[#allocation17 + $0xf8] sm:$0xff] %v9183
    %9634 = vst [vmem:[#allocation17 + $0x100] sm:$0xff] %v9196
    %9635 = vst [vmem:[#allocation17 + $0x108] sm:$0xff] %v9209
    %9636 = vst [vmem:[#allocation17 + $0x110] sm:$0xff] %v9222
    %9637 = vst [vmem:[#allocation17 + $0x118] sm:$0xff] %v9235
    %9638 = vst [vmem:[#allocation17 + $0x120] sm:$0xff] %v9248
    %9639 = vst [vmem:[#allocation17 + $0x128] sm:$0xff] %v9261
    %9640 = vst [vmem:[#allocation17 + $0x130] sm:$0xff] %v9274
    %9641 = vst [vmem:[#allocation17 + $0x138] sm:$0xff] %v9287
    %9642 = vst [vmem:[#allocation17 + $0x140] sm:$0xff] %v9300
    %9643 = vst [vmem:[#allocation17 + $0x148] sm:$0xff] %v9313
    %9644 = vst [vmem:[#allocation17 + $0x150] sm:$0xff] %v9326
    %9645 = vst [vmem:[#allocation17 + $0x158] sm:$0xff] %v9339
    %9646 = vst [vmem:[#allocation17 + $0x160] sm:$0xff] %v9352
    %9647 = vst [vmem:[#allocation17 + $0x168] sm:$0xff] %v9365
    %9648 = vst [vmem:[#allocation17 + $0x170] sm:$0xff] %v9378
    %9649 = vst [vmem:[#allocation17 + $0x178] sm:$0xff] %v9391
    %9650 = vst [vmem:[#allocation17 + $0x180] sm:$0xff] %v9404
    %9651 = vst [vmem:[#allocation17 + $0x188] sm:$0xff] %v9417
    %9652 = vst [vmem:[#allocation17 + $0x190] sm:$0xff] %v9430
    %9653 = vst [vmem:[#allocation17 + $0x198] sm:$0xff] %v9443
    %9654 = vst [vmem:[#allocation17 + $0x1a0] sm:$0xff] %v9456
    %9655 = vst [vmem:[#allocation17 + $0x1a8] sm:$0xff] %v9469
    %9656 = vst [vmem:[#allocation17 + $0x1b0] sm:$0xff] %v9482
    %9657 = vst [vmem:[#allocation17 + $0x1b8] sm:$0xff] %v9495
    %9658 = vst [vmem:[#allocation17 + $0x1c0] sm:$0xff] %v9508
    %9659 = vst [vmem:[#allocation17 + $0x1c8] sm:$0xff] %v9521
    %9660 = vst [vmem:[#allocation17 + $0x1d0] sm:$0xff] %v9534
    %9661 = vst [vmem:[#allocation17 + $0x1d8] sm:$0xff] %v9547
    %9662 = vst [vmem:[#allocation17 + $0x1e0] sm:$0xff] %v9560
    %9663 = vst [vmem:[#allocation17 + $0x1e8] sm:$0xff] %v9573
    %9664 = vst [vmem:[#allocation17 + $0x1f0] sm:$0xff] %v9586
    %9665 = vst [vmem:[#allocation17 + $0x1f8] sm:$0xff] %v9599
    // Predicated region
    $region74: #{tpu_custom_call.1} parent=1 // pred_check
      _
    $region75: #{tpu_custom_call.1} parent=1 // pred_check_branch
      %9667 = sbr.rel (0) target = $region77
    $region76: #{tpu_custom_call.1} parent=1 // pred_region
      %9669 = vsyncadd [#allocation4], 0
      %s9671 = sshll.u32 [#allocation17], 4
      %s9672 = int_to_ptr.vmem [resolvable:$true] %s9671
      %s9673 = sshll.u32 %s9, 4
      %s9674 = int_to_ptr.hbm [resolvable:$true] %s9673
      %9676 = dma.vmem_to_hbm [thread:$0]  %s9672, 8192, %s9674, [#allocation4]
    $region77: #{tpu_custom_call.1} parent=1 // pred_fallthru
      _
    // Predicated region
    $region78: #{tpu_custom_call.1} parent=1 // pred_check
      _
    $region79: #{tpu_custom_call.1} parent=1 // pred_check_branch
      %9678 = sbr.rel (0) target = $region81
    $region80: #{tpu_custom_call.1} parent=1 // pred_region
      %9680 = dma.done [#allocation4], 8192
    $region81: #{tpu_custom_call.1} parent=1 // pred_fallthru
      _
    %9681 = vsyncpa [#allocation3], 1
    %9682 = vsyncpa [#allocation6], 1
    %9683 = vsyncpa [#allocation9], 1
    %9684 = vsyncpa [#allocation12], 1
    %9685 = vsyncpa [#allocation15], 1
    %9686 = vsyncpa [#allocation4], 1

</llo_original>
